<compile_context>
chip_gen: v7x
topology: tpu7x:2x2x1
jax: 0.10.0
libtpu: 0.0.40
codegen_flags: <defaults>
</compile_context>

<pallas_src>
import math
import jax
import jax.numpy as jnp
from jax.experimental import pallas as pl
from jax.experimental.pallas import tpu as pltpu


# ------------------------------ static helpers -------------------------------

def _conv_walk(cfg, H, W):
    """Walk cfg statically: per-conv input (h, w, cin) and the final (h, w, c)."""
    assert len(cfg) > 0 and cfg[0] != 'M', "cfg must start with a conv layer"
    h, w, c = H, W, 1
    conv_in = []
    for v in cfg:
        if v == 'M':
            assert h % 2 == 0 and w % 2 == 0
            h, w = h // 2, w // 2
        else:
            conv_in.append((h, w, c))
            c = int(v)
    return conv_in, (h, w, c)


def _maxpool2x2(x):
    """(B, h, w, c) value -> (B, h//2, w//2, c): one reshape + two axis maxes."""
    B, h, w, c = x.shape
    x6 = x.reshape(B, h // 2, 2, w // 2, 2, c)
    return x6.max(axis=4).max(axis=2)


# ----------------------------- fused Pallas kernel ----------------------------

def make_vgg_fused_kernel(cfg, B, H, W):
    """Build the single fused kernel for `cfg` (all refs are whole-array VMEM blocks).

    Kernel args (inputs, then outputs, then scratch):
      x_pad_ref        : (B, H+2, W+2, 1) f32      SAME-padded NHWC input
      w_i              : (9, Cin_i, Cout_i)        f32 for the first (VPU) conv,
                                                    bf16 for the MXU convs
      b_i              : (1, Cout_i) f32
      o_ref            : (B, Hf, Wf, Cf) f32       final NHWC activation
      pad_scratch_i    : (B, h_i+2, w_i+2, Cin_i) f32   zero-padded layer input (i>0)
    """
    conv_in, _ = _conv_walk(cfg, H, W)
    n_conv = len(conv_in)

    def kernel(*args):
        x_ref = args[0]
        wb = args[1:1 + 2 * n_conv]
        o_ref = args[1 + 2 * n_conv]
        pad_refs = args[2 + 2 * n_conv:]

        act = None          # current activation value, (B, h, w, c) f32
        ci = 0              # conv index
        for v in cfg:
            if v == 'M':
                act = _maxpool2x2(act)
                continue

            cout = int(v)
            w_ref, b_ref = wb[2 * ci], wb[2 * ci + 1]
            h, w, cin = conv_in[ci]

            if ci == 0:
                src = x_ref                       # already SAME-padded in HBM->VMEM DMA
            else:
                # Zero-padded VMEM staging buffer for this layer's input.
                pad_ref = pad_refs[ci - 1]
                pad_ref[...] = jnp.zeros_like(pad_ref)
                pad_ref[:, 1:1 + h, 1:1 + w, :] = act
                src = pad_ref

            if cin == 1:
                # 3x3 conv with a single input channel: 9 broadcast MACs on the VPU.
                acc = None
                for t in range(9):
                    kh, kw = divmod(t, 3)
                    tap = src[:, kh:kh + h, kw:kw + w, :]              # (B,h,w,1) f32
                    wrow = w_ref[t].reshape(1, 1, 1, cout)             # (1,1,1,cout)
                    term = tap * wrow
                    acc = term if acc is None else acc + term
            else:
                # 3x3 conv as 9 accumulated dense-K MXU dots: (B*h*w, cin) x (cin, cout),
                # bf16 operands, f32 accumulation.  Everything stays in VMEM/vregs.
                acc = None
                for t in range(9):
                    kh, kw = divmod(t, 3)
                    tap = src[:, kh:kh + h, kw:kw + w, :]              # (B,h,w,cin) f32
                    tmat = tap.reshape(B * h * w, cin).astype(jnp.bfloat16)
                    part = jnp.dot(tmat, w_ref[t],                     # (B*h*w, cout) f32
                                   preferred_element_type=jnp.float32)
                    acc = part if acc is None else acc + part
                acc = acc.reshape(B, h, w, cout)

            acc = acc + b_ref[...].reshape(1, 1, 1, cout)
            act = jnp.maximum(acc, 0.0)
            ci += 1

        o_ref[...] = act.astype(o_ref.dtype)

    return kernel


# --------------------------------- wrapper ------------------------------------

def vgg_forward(x_nchw, params, cfg):
    """Equivalent of VGG.forward: features(x) then rearrange 'b c h w -> b (h w) c'."""
    x = jnp.transpose(x_nchw, (0, 2, 3, 1)).astype(jnp.float32)     # NCHW -> NHWC
    B, H, W, Cin = x.shape
    assert Cin == 1, "VGG.make_layers starts from in_channels=1"
    conv_in, (Hf, Wf, Cf) = _conv_walk(cfg, H, W)

    x_pad = jnp.pad(x, ((0, 0), (1, 1), (1, 1), (0, 0)))            # (B,H+2,W+2,1) f32

    # Flatten conv weights to (9, Cin, Cout) with rows ordered (kh, kw); MXU-bound
    # weights are stored in bf16 (f32 accumulation in-kernel), the tiny first-layer
    # (VPU) weight and all biases stay f32.
    wb = []
    for i, (w, b) in enumerate(params):
        kh, kw, ci, co = w.shape
        wdt = jnp.float32 if i == 0 else jnp.bfloat16
        wb += [w.reshape(kh * kw, ci, co).astype(wdt),
               b.reshape(1, co).astype(jnp.float32)]

    # One zero-padded staging buffer per conv layer after the first.
    scratch_shapes = [pltpu.VMEM((B, h + 2, w + 2, c), jnp.float32)
                      for (h, w, c) in conv_in[1:]]

    kernel = make_vgg_fused_kernel(cfg, B, H, W)
    out = pl.pallas_call(                    # no grid: one invocation, whole arrays in VMEM
        kernel,
        out_shape=jax.ShapeDtypeStruct((B, Hf, Wf, Cf), jnp.float32),
        scratch_shapes=scratch_shapes,
    )(x_pad, *wb)

    return out.reshape(B, Hf * Wf, Cf)       # == rearrange 'b c h w -> b (h w) c'


# --------------------------- params & reference ------------------------------

def init_params(cfg, key):
    """Deterministic VGG._initialize_weights(): W ~ N(0, sqrt(2/(3*3*Cout))), b = 0."""
    params = []
    cin = 1
    for v in cfg:
        if v == 'M':
            continue
        key, k1 = jax.random.split(key)
        std = math.sqrt(2.0 / (3 * 3 * v))
        w = jax.random.normal(k1, (3, 3, cin, v), jnp.float32) * std   # HWIO
        b = jnp.zeros((v,), jnp.float32)
        params.append((w, b))
        cin = v
    return params


def reference_forward(x_nchw, params, cfg):
    """Plain-JAX reference (same semantics as the PyTorch module)."""
    x = jnp.transpose(x_nchw, (0, 2, 3, 1))
    pi = 0
    for v in cfg:
        if v == 'M':
            x = jax.lax.reduce_window(x, -jnp.inf, jax.lax.max,
                                      (1, 2, 2, 1), (1, 2, 2, 1), 'VALID')
        else:
            w, b = params[pi]
            pi += 1
            x = jax.lax.conv_general_dilated(
                x, w, window_strides=(1, 1), padding='SAME',
                dimension_numbers=('NHWC', 'HWIO', 'NHWC')) + b
            x = jnp.maximum(x, 0.0)
    B, H, W, C = x.shape
    return x.reshape(B, H * W, C)


# ---------------------------------- main -------------------------------------

if __name__ == "__main__":
    cfg = [8, 'M', 16, 'M']                    # small VGG-style config
    key = jax.random.PRNGKey(0)
    kx, kp = jax.random.split(key)

    x = jax.random.normal(kx, (2, 1, 16, 16), jnp.float32)   # NCHW, in_channels=1
    params = init_params(cfg, kp)

    fwd = jax.jit(lambda inp: vgg_forward(inp, params, cfg))
    out = jax.block_until_ready(fwd(x))

    assert out.shape == (2, 16, 16), out.shape               # (b, h*w, c) after 2 pools
    ref = reference_forward(x, params, cfg)
    err = float(jnp.max(jnp.abs(out - ref)))
    # Explicit bf16 MXU operands vs. the f32/DEFAULT-precision XLA reference:
    # expect O(1e-2) worst-case absolute error at these activation magnitudes.
    assert err < 5e-2, f"mismatch vs reference: {err}"

    print("KERNEL_OK")
</pallas_src>

<mosaic_0001>
module attributes {stable_mosaic.version = 11 : i64} {
  func.func @kernel(%arg0: memref<2x18x18x1xf32, #tpu.memory_space<vmem>>, %arg1: memref<9x1x8xf32, #tpu.memory_space<vmem>>, %arg2: memref<1x8xf32, #tpu.memory_space<vmem>>, %arg3: memref<9x8x16xbf16, #tpu.memory_space<vmem>>, %arg4: memref<1x16xf32, #tpu.memory_space<vmem>>, %arg5: memref<2x4x4x16xf32, #tpu.memory_space<vmem>>, %arg6: memref<2x10x10x8xf32, #tpu.memory_space<vmem>>) attributes {dimension_semantics = [], scalar_prefetch = 0 : i64, scratch_operands = 1 : i64, tpu.core_type = #tpu.core_type<tc>} {
    %c0 = arith.constant 0 : index
    %c0_0 = arith.constant 0 : index
    %c0_1 = arith.constant 0 : index
    %c0_2 = arith.constant 0 : index
    %0 = vector.load %arg0[%c0, %c0_0, %c0_1, %c0_2] : memref<2x18x18x1xf32, #tpu.memory_space<vmem>>, vector<2x16x16x1xf32>
    %c0_3 = arith.constant 0 : index
    %c0_4 = arith.constant 0 : index
    %c0_5 = arith.constant 0 : index
    %1 = vector.load %arg1[%c0_3, %c0_4, %c0_5] : memref<9x1x8xf32, #tpu.memory_space<vmem>>, vector<1x1x8xf32>
    %2 = vector.shape_cast %1 : vector<1x1x8xf32> to vector<1x8xf32>
    %3 = vector.shape_cast %2 : vector<1x8xf32> to vector<1x1x1x8xf32>
    %4 = vector.broadcast %0 : vector<2x16x16x1xf32> to vector<2x16x16x8xf32>
    %5 = vector.broadcast %3 : vector<1x1x1x8xf32> to vector<2x16x16x8xf32>
    %6 = arith.mulf %4, %5 : vector<2x16x16x8xf32>
    %c0_6 = arith.constant 0 : index
    %c0_7 = arith.constant 0 : index
    %c1 = arith.constant 1 : index
    %c0_8 = arith.constant 0 : index
    %7 = vector.load %arg0[%c0_6, %c0_7, %c1, %c0_8] : memref<2x18x18x1xf32, #tpu.memory_space<vmem>>, vector<2x16x16x1xf32>
    %c1_9 = arith.constant 1 : index
    %c0_10 = arith.constant 0 : index
    %c0_11 = arith.constant 0 : index
    %8 = vector.load %arg1[%c1_9, %c0_10, %c0_11] : memref<9x1x8xf32, #tpu.memory_space<vmem>>, vector<1x1x8xf32>
    %9 = vector.shape_cast %8 : vector<1x1x8xf32> to vector<1x8xf32>
    %10 = vector.shape_cast %9 : vector<1x8xf32> to vector<1x1x1x8xf32>
    %11 = vector.broadcast %7 : vector<2x16x16x1xf32> to vector<2x16x16x8xf32>
    %12 = vector.broadcast %10 : vector<1x1x1x8xf32> to vector<2x16x16x8xf32>
    %13 = arith.mulf %11, %12 : vector<2x16x16x8xf32>
    %14 = arith.addf %6, %13 : vector<2x16x16x8xf32>
    %c0_12 = arith.constant 0 : index
    %c0_13 = arith.constant 0 : index
    %c2 = arith.constant 2 : index
    %c0_14 = arith.constant 0 : index
    %15 = vector.load %arg0[%c0_12, %c0_13, %c2, %c0_14] : memref<2x18x18x1xf32, #tpu.memory_space<vmem>>, vector<2x16x16x1xf32>
    %c2_15 = arith.constant 2 : index
    %c0_16 = arith.constant 0 : index
    %c0_17 = arith.constant 0 : index
    %16 = vector.load %arg1[%c2_15, %c0_16, %c0_17] : memref<9x1x8xf32, #tpu.memory_space<vmem>>, vector<1x1x8xf32>
    %17 = vector.shape_cast %16 : vector<1x1x8xf32> to vector<1x8xf32>
    %18 = vector.shape_cast %17 : vector<1x8xf32> to vector<1x1x1x8xf32>
    %19 = vector.broadcast %15 : vector<2x16x16x1xf32> to vector<2x16x16x8xf32>
    %20 = vector.broadcast %18 : vector<1x1x1x8xf32> to vector<2x16x16x8xf32>
    %21 = arith.mulf %19, %20 : vector<2x16x16x8xf32>
    %22 = arith.addf %14, %21 : vector<2x16x16x8xf32>
    %c0_18 = arith.constant 0 : index
    %c1_19 = arith.constant 1 : index
    %c0_20 = arith.constant 0 : index
    %c0_21 = arith.constant 0 : index
    %23 = vector.load %arg0[%c0_18, %c1_19, %c0_20, %c0_21] : memref<2x18x18x1xf32, #tpu.memory_space<vmem>>, vector<2x16x16x1xf32>
    %c3 = arith.constant 3 : index
    %c0_22 = arith.constant 0 : index
    %c0_23 = arith.constant 0 : index
    %24 = vector.load %arg1[%c3, %c0_22, %c0_23] : memref<9x1x8xf32, #tpu.memory_space<vmem>>, vector<1x1x8xf32>
    %25 = vector.shape_cast %24 : vector<1x1x8xf32> to vector<1x8xf32>
    %26 = vector.shape_cast %25 : vector<1x8xf32> to vector<1x1x1x8xf32>
    %27 = vector.broadcast %23 : vector<2x16x16x1xf32> to vector<2x16x16x8xf32>
    %28 = vector.broadcast %26 : vector<1x1x1x8xf32> to vector<2x16x16x8xf32>
    %29 = arith.mulf %27, %28 : vector<2x16x16x8xf32>
    %30 = arith.addf %22, %29 : vector<2x16x16x8xf32>
    %c0_24 = arith.constant 0 : index
    %c1_25 = arith.constant 1 : index
    %c1_26 = arith.constant 1 : index
    %c0_27 = arith.constant 0 : index
    %31 = vector.load %arg0[%c0_24, %c1_25, %c1_26, %c0_27] : memref<2x18x18x1xf32, #tpu.memory_space<vmem>>, vector<2x16x16x1xf32>
    %c4 = arith.constant 4 : index
    %c0_28 = arith.constant 0 : index
    %c0_29 = arith.constant 0 : index
    %32 = vector.load %arg1[%c4, %c0_28, %c0_29] : memref<9x1x8xf32, #tpu.memory_space<vmem>>, vector<1x1x8xf32>
    %33 = vector.shape_cast %32 : vector<1x1x8xf32> to vector<1x8xf32>
    %34 = vector.shape_cast %33 : vector<1x8xf32> to vector<1x1x1x8xf32>
    %35 = vector.broadcast %31 : vector<2x16x16x1xf32> to vector<2x16x16x8xf32>
    %36 = vector.broadcast %34 : vector<1x1x1x8xf32> to vector<2x16x16x8xf32>
    %37 = arith.mulf %35, %36 : vector<2x16x16x8xf32>
    %38 = arith.addf %30, %37 : vector<2x16x16x8xf32>
    %c0_30 = arith.constant 0 : index
    %c1_31 = arith.constant 1 : index
    %c2_32 = arith.constant 2 : index
    %c0_33 = arith.constant 0 : index
    %39 = vector.load %arg0[%c0_30, %c1_31, %c2_32, %c0_33] : memref<2x18x18x1xf32, #tpu.memory_space<vmem>>, vector<2x16x16x1xf32>
    %c5 = arith.constant 5 : index
    %c0_34 = arith.constant 0 : index
    %c0_35 = arith.constant 0 : index
    %40 = vector.load %arg1[%c5, %c0_34, %c0_35] : memref<9x1x8xf32, #tpu.memory_space<vmem>>, vector<1x1x8xf32>
    %41 = vector.shape_cast %40 : vector<1x1x8xf32> to vector<1x8xf32>
    %42 = vector.shape_cast %41 : vector<1x8xf32> to vector<1x1x1x8xf32>
    %43 = vector.broadcast %39 : vector<2x16x16x1xf32> to vector<2x16x16x8xf32>
    %44 = vector.broadcast %42 : vector<1x1x1x8xf32> to vector<2x16x16x8xf32>
    %45 = arith.mulf %43, %44 : vector<2x16x16x8xf32>
    %46 = arith.addf %38, %45 : vector<2x16x16x8xf32>
    %c0_36 = arith.constant 0 : index
    %c2_37 = arith.constant 2 : index
    %c0_38 = arith.constant 0 : index
    %c0_39 = arith.constant 0 : index
    %47 = vector.load %arg0[%c0_36, %c2_37, %c0_38, %c0_39] : memref<2x18x18x1xf32, #tpu.memory_space<vmem>>, vector<2x16x16x1xf32>
    %c6 = arith.constant 6 : index
    %c0_40 = arith.constant 0 : index
    %c0_41 = arith.constant 0 : index
    %48 = vector.load %arg1[%c6, %c0_40, %c0_41] : memref<9x1x8xf32, #tpu.memory_space<vmem>>, vector<1x1x8xf32>
    %49 = vector.shape_cast %48 : vector<1x1x8xf32> to vector<1x8xf32>
    %50 = vector.shape_cast %49 : vector<1x8xf32> to vector<1x1x1x8xf32>
    %51 = vector.broadcast %47 : vector<2x16x16x1xf32> to vector<2x16x16x8xf32>
    %52 = vector.broadcast %50 : vector<1x1x1x8xf32> to vector<2x16x16x8xf32>
    %53 = arith.mulf %51, %52 : vector<2x16x16x8xf32>
    %54 = arith.addf %46, %53 : vector<2x16x16x8xf32>
    %c0_42 = arith.constant 0 : index
    %c2_43 = arith.constant 2 : index
    %c1_44 = arith.constant 1 : index
    %c0_45 = arith.constant 0 : index
    %55 = vector.load %arg0[%c0_42, %c2_43, %c1_44, %c0_45] : memref<2x18x18x1xf32, #tpu.memory_space<vmem>>, vector<2x16x16x1xf32>
    %c7 = arith.constant 7 : index
    %c0_46 = arith.constant 0 : index
    %c0_47 = arith.constant 0 : index
    %56 = vector.load %arg1[%c7, %c0_46, %c0_47] : memref<9x1x8xf32, #tpu.memory_space<vmem>>, vector<1x1x8xf32>
    %57 = vector.shape_cast %56 : vector<1x1x8xf32> to vector<1x8xf32>
    %58 = vector.shape_cast %57 : vector<1x8xf32> to vector<1x1x1x8xf32>
    %59 = vector.broadcast %55 : vector<2x16x16x1xf32> to vector<2x16x16x8xf32>
    %60 = vector.broadcast %58 : vector<1x1x1x8xf32> to vector<2x16x16x8xf32>
    %61 = arith.mulf %59, %60 : vector<2x16x16x8xf32>
    %62 = arith.addf %54, %61 : vector<2x16x16x8xf32>
    %c0_48 = arith.constant 0 : index
    %c2_49 = arith.constant 2 : index
    %c2_50 = arith.constant 2 : index
    %c0_51 = arith.constant 0 : index
    %63 = vector.load %arg0[%c0_48, %c2_49, %c2_50, %c0_51] : memref<2x18x18x1xf32, #tpu.memory_space<vmem>>, vector<2x16x16x1xf32>
    %c8 = arith.constant 8 : index
    %c0_52 = arith.constant 0 : index
    %c0_53 = arith.constant 0 : index
    %64 = vector.load %arg1[%c8, %c0_52, %c0_53] : memref<9x1x8xf32, #tpu.memory_space<vmem>>, vector<1x1x8xf32>
    %65 = vector.shape_cast %64 : vector<1x1x8xf32> to vector<1x8xf32>
    %66 = vector.shape_cast %65 : vector<1x8xf32> to vector<1x1x1x8xf32>
    %67 = vector.broadcast %63 : vector<2x16x16x1xf32> to vector<2x16x16x8xf32>
    %68 = vector.broadcast %66 : vector<1x1x1x8xf32> to vector<2x16x16x8xf32>
    %69 = arith.mulf %67, %68 : vector<2x16x16x8xf32>
    %70 = arith.addf %62, %69 : vector<2x16x16x8xf32>
    %c0_54 = arith.constant 0 : index
    %c0_55 = arith.constant 0 : index
    %71 = vector.load %arg2[%c0_54, %c0_55] : memref<1x8xf32, #tpu.memory_space<vmem>>, vector<1x8xf32>
    %72 = vector.shape_cast %71 : vector<1x8xf32> to vector<1x1x1x8xf32>
    %73 = vector.broadcast %72 : vector<1x1x1x8xf32> to vector<2x16x16x8xf32>
    %74 = arith.addf %70, %73 : vector<2x16x16x8xf32>
    %cst = arith.constant 0.000000e+00 : f32
    %75 = vector.broadcast %cst : f32 to vector<2x16x16x8xf32>
    %76 = arith.maximumf %74, %75 : vector<2x16x16x8xf32>
    %77 = vector.shape_cast %76 : vector<2x16x16x8xf32> to vector<2x8x2x8x2x8xf32>
    %cst_56 = arith.constant dense<0xFF800000> : vector<2x8x2x8x8xf32>
    %78 = vector.multi_reduction <maximumf>, %77, %cst_56 [4] : vector<2x8x2x8x2x8xf32> to vector<2x8x2x8x8xf32>
    %cst_57 = arith.constant dense<0xFF800000> : vector<2x8x8x8xf32>
    %79 = vector.multi_reduction <maximumf>, %78, %cst_57 [2] : vector<2x8x2x8x8xf32> to vector<2x8x8x8xf32>
    %cst_58 = arith.constant 0.000000e+00 : f32
    %80 = vector.broadcast %cst_58 : f32 to vector<2x10x10x8xf32>
    %c0_59 = arith.constant 0 : index
    %c0_60 = arith.constant 0 : index
    %c0_61 = arith.constant 0 : index
    %c0_62 = arith.constant 0 : index
    %81 = vector.load %arg6[%c0_59, %c0_60, %c0_61, %c0_62] : memref<2x10x10x8xf32, #tpu.memory_space<vmem>>, vector<2x10x10x8xf32>
    tpu.vector_store %arg6[%c0_59, %c0_60, %c0_61, %c0_62], %80 {strides = array<i32>} : memref<2x10x10x8xf32, #tpu.memory_space<vmem>>, vector<2x10x10x8xf32>,
    %c0_63 = arith.constant 0 : index
    %c1_64 = arith.constant 1 : index
    %c1_65 = arith.constant 1 : index
    %c0_66 = arith.constant 0 : index
    %82 = vector.load %arg6[%c0_63, %c1_64, %c1_65, %c0_66] : memref<2x10x10x8xf32, #tpu.memory_space<vmem>>, vector<2x8x8x8xf32>
    tpu.vector_store %arg6[%c0_63, %c1_64, %c1_65, %c0_66], %79 {strides = array<i32>} : memref<2x10x10x8xf32, #tpu.memory_space<vmem>>, vector<2x8x8x8xf32>,
    %c0_67 = arith.constant 0 : index
    %c0_68 = arith.constant 0 : index
    %c0_69 = arith.constant 0 : index
    %c0_70 = arith.constant 0 : index
    %83 = vector.load %arg6[%c0_67, %c0_68, %c0_69, %c0_70] : memref<2x10x10x8xf32, #tpu.memory_space<vmem>>, vector<2x8x8x8xf32>
    %84 = vector.shape_cast %83 : vector<2x8x8x8xf32> to vector<128x8xf32>
    %85 = arith.truncf %84 : vector<128x8xf32> to vector<128x8xbf16>
    %c0_71 = arith.constant 0 : index
    %c0_72 = arith.constant 0 : index
    %c0_73 = arith.constant 0 : index
    %86 = vector.load %arg3[%c0_71, %c0_72, %c0_73] : memref<9x8x16xbf16, #tpu.memory_space<vmem>>, vector<1x8x16xbf16>
    %87 = vector.shape_cast %86 : vector<1x8x16xbf16> to vector<8x16xbf16>
    %cst_74 = arith.constant dense<0.000000e+00> : vector<128x16xf32>
    %88 = tpu.matmul %85, %87, %cst_74 {dimension_numbers = #tpu.dot_dimension_numbers<[1], [0], [0], [1], [0, 0, 1, 1], [], []>} : vector<128x8xbf16>, vector<8x16xbf16>, vector<128x16xf32> -> vector<128x16xf32>
    %c0_75 = arith.constant 0 : index
    %c0_76 = arith.constant 0 : index
    %c1_77 = arith.constant 1 : index
    %c0_78 = arith.constant 0 : index
    %89 = vector.load %arg6[%c0_75, %c0_76, %c1_77, %c0_78] : memref<2x10x10x8xf32, #tpu.memory_space<vmem>>, vector<2x8x8x8xf32>
    %90 = vector.shape_cast %89 : vector<2x8x8x8xf32> to vector<128x8xf32>
    %91 = arith.truncf %90 : vector<128x8xf32> to vector<128x8xbf16>
    %c1_79 = arith.constant 1 : index
    %c0_80 = arith.constant 0 : index
    %c0_81 = arith.constant 0 : index
    %92 = vector.load %arg3[%c1_79, %c0_80, %c0_81] : memref<9x8x16xbf16, #tpu.memory_space<vmem>>, vector<1x8x16xbf16>
    %93 = vector.shape_cast %92 : vector<1x8x16xbf16> to vector<8x16xbf16>
    %cst_82 = arith.constant dense<0.000000e+00> : vector<128x16xf32>
    %94 = tpu.matmul %91, %93, %cst_82 {dimension_numbers = #tpu.dot_dimension_numbers<[1], [0], [0], [1], [0, 0, 1, 1], [], []>} : vector<128x8xbf16>, vector<8x16xbf16>, vector<128x16xf32> -> vector<128x16xf32>
    %95 = arith.addf %88, %94 : vector<128x16xf32>
    %c0_83 = arith.constant 0 : index
    %c0_84 = arith.constant 0 : index
    %c2_85 = arith.constant 2 : index
    %c0_86 = arith.constant 0 : index
    %96 = vector.load %arg6[%c0_83, %c0_84, %c2_85, %c0_86] : memref<2x10x10x8xf32, #tpu.memory_space<vmem>>, vector<2x8x8x8xf32>
    %97 = vector.shape_cast %96 : vector<2x8x8x8xf32> to vector<128x8xf32>
    %98 = arith.truncf %97 : vector<128x8xf32> to vector<128x8xbf16>
    %c2_87 = arith.constant 2 : index
    %c0_88 = arith.constant 0 : index
    %c0_89 = arith.constant 0 : index
    %99 = vector.load %arg3[%c2_87, %c0_88, %c0_89] : memref<9x8x16xbf16, #tpu.memory_space<vmem>>, vector<1x8x16xbf16>
    %100 = vector.shape_cast %99 : vector<1x8x16xbf16> to vector<8x16xbf16>
    %cst_90 = arith.constant dense<0.000000e+00> : vector<128x16xf32>
    %101 = tpu.matmul %98, %100, %cst_90 {dimension_numbers = #tpu.dot_dimension_numbers<[1], [0], [0], [1], [0, 0, 1, 1], [], []>} : vector<128x8xbf16>, vector<8x16xbf16>, vector<128x16xf32> -> vector<128x16xf32>
    %102 = arith.addf %95, %101 : vector<128x16xf32>
    %c0_91 = arith.constant 0 : index
    %c1_92 = arith.constant 1 : index
    %c0_93 = arith.constant 0 : index
    %c0_94 = arith.constant 0 : index
    %103 = vector.load %arg6[%c0_91, %c1_92, %c0_93, %c0_94] : memref<2x10x10x8xf32, #tpu.memory_space<vmem>>, vector<2x8x8x8xf32>
    %104 = vector.shape_cast %103 : vector<2x8x8x8xf32> to vector<128x8xf32>
    %105 = arith.truncf %104 : vector<128x8xf32> to vector<128x8xbf16>
    %c3_95 = arith.constant 3 : index
    %c0_96 = arith.constant 0 : index
    %c0_97 = arith.constant 0 : index
    %106 = vector.load %arg3[%c3_95, %c0_96, %c0_97] : memref<9x8x16xbf16, #tpu.memory_space<vmem>>, vector<1x8x16xbf16>
    %107 = vector.shape_cast %106 : vector<1x8x16xbf16> to vector<8x16xbf16>
    %cst_98 = arith.constant dense<0.000000e+00> : vector<128x16xf32>
    %108 = tpu.matmul %105, %107, %cst_98 {dimension_numbers = #tpu.dot_dimension_numbers<[1], [0], [0], [1], [0, 0, 1, 1], [], []>} : vector<128x8xbf16>, vector<8x16xbf16>, vector<128x16xf32> -> vector<128x16xf32>
    %109 = arith.addf %102, %108 : vector<128x16xf32>
    %c0_99 = arith.constant 0 : index
    %c1_100 = arith.constant 1 : index
    %c1_101 = arith.constant 1 : index
    %c0_102 = arith.constant 0 : index
    %110 = vector.load %arg6[%c0_99, %c1_100, %c1_101, %c0_102] : memref<2x10x10x8xf32, #tpu.memory_space<vmem>>, vector<2x8x8x8xf32>
    %111 = vector.shape_cast %110 : vector<2x8x8x8xf32> to vector<128x8xf32>
    %112 = arith.truncf %111 : vector<128x8xf32> to vector<128x8xbf16>
    %c4_103 = arith.constant 4 : index
    %c0_104 = arith.constant 0 : index
    %c0_105 = arith.constant 0 : index
    %113 = vector.load %arg3[%c4_103, %c0_104, %c0_105] : memref<9x8x16xbf16, #tpu.memory_space<vmem>>, vector<1x8x16xbf16>
    %114 = vector.shape_cast %113 : vector<1x8x16xbf16> to vector<8x16xbf16>
    %cst_106 = arith.constant dense<0.000000e+00> : vector<128x16xf32>
    %115 = tpu.matmul %112, %114, %cst_106 {dimension_numbers = #tpu.dot_dimension_numbers<[1], [0], [0], [1], [0, 0, 1, 1], [], []>} : vector<128x8xbf16>, vector<8x16xbf16>, vector<128x16xf32> -> vector<128x16xf32>
    %116 = arith.addf %109, %115 : vector<128x16xf32>
    %c0_107 = arith.constant 0 : index
    %c1_108 = arith.constant 1 : index
    %c2_109 = arith.constant 2 : index
    %c0_110 = arith.constant 0 : index
    %117 = vector.load %arg6[%c0_107, %c1_108, %c2_109, %c0_110] : memref<2x10x10x8xf32, #tpu.memory_space<vmem>>, vector<2x8x8x8xf32>
    %118 = vector.shape_cast %117 : vector<2x8x8x8xf32> to vector<128x8xf32>
    %119 = arith.truncf %118 : vector<128x8xf32> to vector<128x8xbf16>
    %c5_111 = arith.constant 5 : index
    %c0_112 = arith.constant 0 : index
    %c0_113 = arith.constant 0 : index
    %120 = vector.load %arg3[%c5_111, %c0_112, %c0_113] : memref<9x8x16xbf16, #tpu.memory_space<vmem>>, vector<1x8x16xbf16>
    %121 = vector.shape_cast %120 : vector<1x8x16xbf16> to vector<8x16xbf16>
    %cst_114 = arith.constant dense<0.000000e+00> : vector<128x16xf32>
    %122 = tpu.matmul %119, %121, %cst_114 {dimension_numbers = #tpu.dot_dimension_numbers<[1], [0], [0], [1], [0, 0, 1, 1], [], []>} : vector<128x8xbf16>, vector<8x16xbf16>, vector<128x16xf32> -> vector<128x16xf32>
    %123 = arith.addf %116, %122 : vector<128x16xf32>
    %c0_115 = arith.constant 0 : index
    %c2_116 = arith.constant 2 : index
    %c0_117 = arith.constant 0 : index
    %c0_118 = arith.constant 0 : index
    %124 = vector.load %arg6[%c0_115, %c2_116, %c0_117, %c0_118] : memref<2x10x10x8xf32, #tpu.memory_space<vmem>>, vector<2x8x8x8xf32>
    %125 = vector.shape_cast %124 : vector<2x8x8x8xf32> to vector<128x8xf32>
    %126 = arith.truncf %125 : vector<128x8xf32> to vector<128x8xbf16>
    %c6_119 = arith.constant 6 : index
    %c0_120 = arith.constant 0 : index
    %c0_121 = arith.constant 0 : index
    %127 = vector.load %arg3[%c6_119, %c0_120, %c0_121] : memref<9x8x16xbf16, #tpu.memory_space<vmem>>, vector<1x8x16xbf16>
    %128 = vector.shape_cast %127 : vector<1x8x16xbf16> to vector<8x16xbf16>
    %cst_122 = arith.constant dense<0.000000e+00> : vector<128x16xf32>
    %129 = tpu.matmul %126, %128, %cst_122 {dimension_numbers = #tpu.dot_dimension_numbers<[1], [0], [0], [1], [0, 0, 1, 1], [], []>} : vector<128x8xbf16>, vector<8x16xbf16>, vector<128x16xf32> -> vector<128x16xf32>
    %130 = arith.addf %123, %129 : vector<128x16xf32>
    %c0_123 = arith.constant 0 : index
    %c2_124 = arith.constant 2 : index
    %c1_125 = arith.constant 1 : index
    %c0_126 = arith.constant 0 : index
    %131 = vector.load %arg6[%c0_123, %c2_124, %c1_125, %c0_126] : memref<2x10x10x8xf32, #tpu.memory_space<vmem>>, vector<2x8x8x8xf32>
    %132 = vector.shape_cast %131 : vector<2x8x8x8xf32> to vector<128x8xf32>
    %133 = arith.truncf %132 : vector<128x8xf32> to vector<128x8xbf16>
    %c7_127 = arith.constant 7 : index
    %c0_128 = arith.constant 0 : index
    %c0_129 = arith.constant 0 : index
    %134 = vector.load %arg3[%c7_127, %c0_128, %c0_129] : memref<9x8x16xbf16, #tpu.memory_space<vmem>>, vector<1x8x16xbf16>
    %135 = vector.shape_cast %134 : vector<1x8x16xbf16> to vector<8x16xbf16>
    %cst_130 = arith.constant dense<0.000000e+00> : vector<128x16xf32>
    %136 = tpu.matmul %133, %135, %cst_130 {dimension_numbers = #tpu.dot_dimension_numbers<[1], [0], [0], [1], [0, 0, 1, 1], [], []>} : vector<128x8xbf16>, vector<8x16xbf16>, vector<128x16xf32> -> vector<128x16xf32>
    %137 = arith.addf %130, %136 : vector<128x16xf32>
    %c0_131 = arith.constant 0 : index
    %c2_132 = arith.constant 2 : index
    %c2_133 = arith.constant 2 : index
    %c0_134 = arith.constant 0 : index
    %138 = vector.load %arg6[%c0_131, %c2_132, %c2_133, %c0_134] : memref<2x10x10x8xf32, #tpu.memory_space<vmem>>, vector<2x8x8x8xf32>
    %139 = vector.shape_cast %138 : vector<2x8x8x8xf32> to vector<128x8xf32>
    %140 = arith.truncf %139 : vector<128x8xf32> to vector<128x8xbf16>
    %c8_135 = arith.constant 8 : index
    %c0_136 = arith.constant 0 : index
    %c0_137 = arith.constant 0 : index
    %141 = vector.load %arg3[%c8_135, %c0_136, %c0_137] : memref<9x8x16xbf16, #tpu.memory_space<vmem>>, vector<1x8x16xbf16>
    %142 = vector.shape_cast %141 : vector<1x8x16xbf16> to vector<8x16xbf16>
    %cst_138 = arith.constant dense<0.000000e+00> : vector<128x16xf32>
    %143 = tpu.matmul %140, %142, %cst_138 {dimension_numbers = #tpu.dot_dimension_numbers<[1], [0], [0], [1], [0, 0, 1, 1], [], []>} : vector<128x8xbf16>, vector<8x16xbf16>, vector<128x16xf32> -> vector<128x16xf32>
    %144 = arith.addf %137, %143 : vector<128x16xf32>
    %145 = vector.shape_cast %144 : vector<128x16xf32> to vector<2x8x8x16xf32>
    %c0_139 = arith.constant 0 : index
    %c0_140 = arith.constant 0 : index
    %146 = vector.load %arg4[%c0_139, %c0_140] : memref<1x16xf32, #tpu.memory_space<vmem>>, vector<1x16xf32>
    %147 = vector.shape_cast %146 : vector<1x16xf32> to vector<1x1x1x16xf32>
    %148 = vector.broadcast %147 : vector<1x1x1x16xf32> to vector<2x8x8x16xf32>
    %149 = arith.addf %145, %148 : vector<2x8x8x16xf32>
    %cst_141 = arith.constant 0.000000e+00 : f32
    %150 = vector.broadcast %cst_141 : f32 to vector<2x8x8x16xf32>
    %151 = arith.maximumf %149, %150 : vector<2x8x8x16xf32>
    %152 = vector.shape_cast %151 : vector<2x8x8x16xf32> to vector<2x4x2x4x2x16xf32>
    %cst_142 = arith.constant dense<0xFF800000> : vector<2x4x2x4x16xf32>
    %153 = vector.multi_reduction <maximumf>, %152, %cst_142 [4] : vector<2x4x2x4x2x16xf32> to vector<2x4x2x4x16xf32>
    %cst_143 = arith.constant dense<0xFF800000> : vector<2x4x4x16xf32>
    %154 = vector.multi_reduction <maximumf>, %153, %cst_143 [2] : vector<2x4x2x4x16xf32> to vector<2x4x4x16xf32>
    %c0_144 = arith.constant 0 : index
    %c0_145 = arith.constant 0 : index
    %c0_146 = arith.constant 0 : index
    %c0_147 = arith.constant 0 : index
    %155 = vector.load %arg5[%c0_144, %c0_145, %c0_146, %c0_147] : memref<2x4x4x16xf32, #tpu.memory_space<vmem>>, vector<2x4x4x16xf32>
    tpu.vector_store %arg5[%c0_144, %c0_145, %c0_146, %c0_147], %154 {strides = array<i32>} : memref<2x4x4x16xf32, #tpu.memory_space<vmem>>, vector<2x4x4x16xf32>,
    return
  }
}

</mosaic_0001>

<llo_original>
// kernel: _lambda_.1
$region0: #{_lambda_.1}
  #allocation0 [shape = 'u32[]', space=smem, size = 0x4, offset = 0x4, fixed_abs, tag = 'smem constant byte address 0x4 - core index']
  #allocation1 [shape = 'u32[144,128]{1,0:T(1,128)}', space=vmem, size = 0x12000, scoped, tag = 'internal scratch']
  #allocation2 [shape = 'f32[2,10,10,8]{3,2,1,0:T(8,128)}', space=vmem, size = 0x28000, scoped, tag = 'scratch operand']
  %s0 = inlined_call_operand.vmem [shape: f32[2,18,18,1], index: 0, kind: input, shape index: {}]
  %s1 = inlined_call_operand.vmem [shape: f32[9,1,8], index: 1, kind: input, shape index: {}]
  %s2 = inlined_call_operand.vmem [shape: f32[1,8], index: 2, kind: input, shape index: {}]
  %s3 = inlined_call_operand.vmem [shape: bf16[9,8,16], index: 3, kind: input, shape index: {}]
  %s4 = inlined_call_operand.vmem [shape: f32[1,16], index: 4, kind: input, shape index: {}]
  %s5 = inlined_call_operand.hbm [shape: f32[2,4,4,16], index: 5, kind: output, shape index: {}]
  %s6 = sld [smem:[#allocation0]]
  $region30: #{_lambda_.1} parent=0
    _
  %s8 = ssub.s32 1, %s6
  %s9 = scalar_select 0, %s8, %s6
  $region1: #{_lambda_.1} parent=0
    #allocation3 [shape = 'u8[16384]{0}', space=vmem, size = 0x4000, scoped, tag = 'output window, operand 0, single buffered']
    #allocation4 [shape = 's32[1]{0}', space=sflag, size = 0x4, scoped, tag = 'scoped memory for _lambda_.1']
    %10 = vsyncpa [#allocation4], 0
    // Predicated region
    $region2: #{_lambda_.1} parent=1 // pred_check
      _
    $region3: #{_lambda_.1} parent=1 // pred_check_branch
      %12 = sbr.rel (0) target = $region5
    $region4: #{_lambda_.1} parent=1 // pred_region
      _
    $region5: #{_lambda_.1} parent=1 // pred_fallthru
      _
    // Predicated region
    $region6: #{_lambda_.1} parent=1 // pred_check
      _
    $region7: #{_lambda_.1} parent=1 // pred_check_branch
      %14 = sbr.rel (0) target = $region9
    $region8: #{_lambda_.1} parent=1 // pred_region
      _
    $region9: #{_lambda_.1} parent=1 // pred_fallthru
      _
    // Predicated region
    $region10: #{_lambda_.1} parent=1 // pred_check
      _
    $region11: #{_lambda_.1} parent=1 // pred_check_branch
      %16 = sbr.rel (0) target = $region13
    $region12: #{_lambda_.1} parent=1 // pred_region
      _
    $region13: #{_lambda_.1} parent=1 // pred_fallthru
      _
    // Predicated region
    $region14: #{_lambda_.1} parent=1 // pred_check
      _
    $region15: #{_lambda_.1} parent=1 // pred_check_branch
      %18 = sbr.rel (0) target = $region17
    $region16: #{_lambda_.1} parent=1 // pred_region
      _
    $region17: #{_lambda_.1} parent=1 // pred_fallthru
      _
    // Predicated region
    $region18: #{_lambda_.1} parent=1 // pred_check
      _
    $region19: #{_lambda_.1} parent=1 // pred_check_branch
      %20 = sbr.rel (0) target = $region21
    $region20: #{_lambda_.1} parent=1 // pred_region
      _
    $region21: #{_lambda_.1} parent=1 // pred_fallthru
      _
    %v22 = vld [vmem:[%s0] sm:$0xff]
    %v23 = vld [vmem:[%s0 + $0x8] sm:$0xff]
    %v24 = vld [vmem:[%s0 + $0x18] sm:$0xff]
    %v25 = vld [vmem:[%s0 + $0x20] sm:$0xff]
    %v26 = vld [vmem:[%s0 + $0x30] sm:$0xff]
    %v27 = vld [vmem:[%s0 + $0x38] sm:$0xff]
    %v28 = vld [vmem:[%s0 + $0x48] sm:$0xff]
    %v29 = vld [vmem:[%s0 + $0x50] sm:$0xff]
    %v30 = vld [vmem:[%s0 + $0x60] sm:$0xff]
    %v31 = vld [vmem:[%s0 + $0x68] sm:$0xff]
    %v32 = vld [vmem:[%s0 + $0x78] sm:$0xff]
    %v33 = vld [vmem:[%s0 + $0x80] sm:$0xff]
    %v34 = vld [vmem:[%s0 + $0x90] sm:$0xff]
    %v35 = vld [vmem:[%s0 + $0x98] sm:$0xff]
    %v36 = vld [vmem:[%s0 + $0xa8] sm:$0xff]
    %v37 = vld [vmem:[%s0 + $0xb0] sm:$0xff]
    %v38 = vld [vmem:[%s0 + $0xc0] sm:$0xff]
    %v39 = vld [vmem:[%s0 + $0xc8] sm:$0xff]
    %v40 = vld [vmem:[%s0 + $0xd8] sm:$0xff]
    %v41 = vld [vmem:[%s0 + $0xe0] sm:$0xff]
    %v42 = vld [vmem:[%s0 + $0xf0] sm:$0xff]
    %v43 = vld [vmem:[%s0 + $0xf8] sm:$0xff]
    %v44 = vld [vmem:[%s0 + $0x108] sm:$0xff]
    %v45 = vld [vmem:[%s0 + $0x110] sm:$0xff]
    %v46 = vld [vmem:[%s0 + $0x120] sm:$0xff]
    %v47 = vld [vmem:[%s0 + $0x128] sm:$0xff]
    %v48 = vld [vmem:[%s0 + $0x138] sm:$0xff]
    %v49 = vld [vmem:[%s0 + $0x140] sm:$0xff]
    %v50 = vld [vmem:[%s0 + $0x150] sm:$0xff]
    %v51 = vld [vmem:[%s0 + $0x158] sm:$0xff]
    %v52 = vld [vmem:[%s0 + $0x168] sm:$0xff]
    %v53 = vld [vmem:[%s0 + $0x170] sm:$0xff]
    %v54 = vld [vmem:[%s0 + $0x1b0] sm:$0xff]
    %v55 = vld [vmem:[%s0 + $0x1b8] sm:$0xff]
    %v56 = vld [vmem:[%s0 + $0x1c8] sm:$0xff]
    %v57 = vld [vmem:[%s0 + $0x1d0] sm:$0xff]
    %v58 = vld [vmem:[%s0 + $0x1e0] sm:$0xff]
    %v59 = vld [vmem:[%s0 + $0x1e8] sm:$0xff]
    %v60 = vld [vmem:[%s0 + $0x1f8] sm:$0xff]
    %v61 = vld [vmem:[%s0 + $0x200] sm:$0xff]
    %v62 = vld [vmem:[%s0 + $0x210] sm:$0xff]
    %v63 = vld [vmem:[%s0 + $0x218] sm:$0xff]
    %v64 = vld [vmem:[%s0 + $0x228] sm:$0xff]
    %v65 = vld [vmem:[%s0 + $0x230] sm:$0xff]
    %v66 = vld [vmem:[%s0 + $0x240] sm:$0xff]
    %v67 = vld [vmem:[%s0 + $0x248] sm:$0xff]
    %v68 = vld [vmem:[%s0 + $0x258] sm:$0xff]
    %v69 = vld [vmem:[%s0 + $0x260] sm:$0xff]
    %v70 = vld [vmem:[%s0 + $0x270] sm:$0xff]
    %v71 = vld [vmem:[%s0 + $0x278] sm:$0xff]
    %v72 = vld [vmem:[%s0 + $0x288] sm:$0xff]
    %v73 = vld [vmem:[%s0 + $0x290] sm:$0xff]
    %v74 = vld [vmem:[%s0 + $0x2a0] sm:$0xff]
    %v75 = vld [vmem:[%s0 + $0x2a8] sm:$0xff]
    %v76 = vld [vmem:[%s0 + $0x2b8] sm:$0xff]
    %v77 = vld [vmem:[%s0 + $0x2c0] sm:$0xff]
    %v78 = vld [vmem:[%s0 + $0x2d0] sm:$0xff]
    %v79 = vld [vmem:[%s0 + $0x2d8] sm:$0xff]
    %v80 = vld [vmem:[%s0 + $0x2e8] sm:$0xff]
    %v81 = vld [vmem:[%s0 + $0x2f0] sm:$0xff]
    %v82 = vld [vmem:[%s0 + $0x300] sm:$0xff]
    %v83 = vld [vmem:[%s0 + $0x308] sm:$0xff]
    %v84 = vld [vmem:[%s0 + $0x318] sm:$0xff]
    %v85 = vld [vmem:[%s0 + $0x320] sm:$0xff]
    %v86 = vld [vmem:[%s1] sm:$0x1]
    %88 = vset.pattern.permute.xlu0 0
    %89 = vperm.xlu0 %88, %v22
    %v90 = vpop.permute.xlu0 %89
    %93 = vset.pattern.permute.xlu0 0
    %94 = vperm.xlu0 %93, %v23
    %v95 = vpop.permute.xlu0 %94
    %98 = vset.pattern.permute.xlu0 0
    %99 = vperm.xlu0 %98, %v24
    %v100 = vpop.permute.xlu0 %99
    %103 = vset.pattern.permute.xlu0 0
    %104 = vperm.xlu0 %103, %v25
    %v105 = vpop.permute.xlu0 %104
    %108 = vset.pattern.permute.xlu0 0
    %109 = vperm.xlu0 %108, %v26
    %v110 = vpop.permute.xlu0 %109
    %113 = vset.pattern.permute.xlu0 0
    %114 = vperm.xlu0 %113, %v27
    %v115 = vpop.permute.xlu0 %114
    %118 = vset.pattern.permute.xlu0 0
    %119 = vperm.xlu0 %118, %v28
    %v120 = vpop.permute.xlu0 %119
    %123 = vset.pattern.permute.xlu0 0
    %124 = vperm.xlu0 %123, %v29
    %v125 = vpop.permute.xlu0 %124
    %128 = vset.pattern.permute.xlu0 0
    %129 = vperm.xlu0 %128, %v30
    %v130 = vpop.permute.xlu0 %129
    %133 = vset.pattern.permute.xlu0 0
    %134 = vperm.xlu0 %133, %v31
    %v135 = vpop.permute.xlu0 %134
    %138 = vset.pattern.permute.xlu0 0
    %139 = vperm.xlu0 %138, %v32
    %v140 = vpop.permute.xlu0 %139
    %143 = vset.pattern.permute.xlu0 0
    %144 = vperm.xlu0 %143, %v33
    %v145 = vpop.permute.xlu0 %144
    %148 = vset.pattern.permute.xlu0 0
    %149 = vperm.xlu0 %148, %v34
    %v150 = vpop.permute.xlu0 %149
    %153 = vset.pattern.permute.xlu0 0
    %154 = vperm.xlu0 %153, %v35
    %v155 = vpop.permute.xlu0 %154
    %158 = vset.pattern.permute.xlu0 0
    %159 = vperm.xlu0 %158, %v36
    %v160 = vpop.permute.xlu0 %159
    %163 = vset.pattern.permute.xlu0 0
    %164 = vperm.xlu0 %163, %v37
    %v165 = vpop.permute.xlu0 %164
    %168 = vset.pattern.permute.xlu0 0
    %169 = vperm.xlu0 %168, %v38
    %v170 = vpop.permute.xlu0 %169
    %173 = vset.pattern.permute.xlu0 0
    %174 = vperm.xlu0 %173, %v39
    %v175 = vpop.permute.xlu0 %174
    %178 = vset.pattern.permute.xlu0 0
    %179 = vperm.xlu0 %178, %v40
    %v180 = vpop.permute.xlu0 %179
    %183 = vset.pattern.permute.xlu0 0
    %184 = vperm.xlu0 %183, %v41
    %v185 = vpop.permute.xlu0 %184
    %188 = vset.pattern.permute.xlu0 0
    %189 = vperm.xlu0 %188, %v42
    %v190 = vpop.permute.xlu0 %189
    %193 = vset.pattern.permute.xlu0 0
    %194 = vperm.xlu0 %193, %v43
    %v195 = vpop.permute.xlu0 %194
    %198 = vset.pattern.permute.xlu0 0
    %199 = vperm.xlu0 %198, %v44
    %v200 = vpop.permute.xlu0 %199
    %203 = vset.pattern.permute.xlu0 0
    %204 = vperm.xlu0 %203, %v45
    %v205 = vpop.permute.xlu0 %204
    %208 = vset.pattern.permute.xlu0 0
    %209 = vperm.xlu0 %208, %v46
    %v210 = vpop.permute.xlu0 %209
    %213 = vset.pattern.permute.xlu0 0
    %214 = vperm.xlu0 %213, %v47
    %v215 = vpop.permute.xlu0 %214
    %218 = vset.pattern.permute.xlu0 0
    %219 = vperm.xlu0 %218, %v48
    %v220 = vpop.permute.xlu0 %219
    %223 = vset.pattern.permute.xlu0 0
    %224 = vperm.xlu0 %223, %v49
    %v225 = vpop.permute.xlu0 %224
    %228 = vset.pattern.permute.xlu0 0
    %229 = vperm.xlu0 %228, %v50
    %v230 = vpop.permute.xlu0 %229
    %233 = vset.pattern.permute.xlu0 0
    %234 = vperm.xlu0 %233, %v51
    %v235 = vpop.permute.xlu0 %234
    %238 = vset.pattern.permute.xlu0 0
    %239 = vperm.xlu0 %238, %v52
    %v240 = vpop.permute.xlu0 %239
    %243 = vset.pattern.permute.xlu0 0
    %244 = vperm.xlu0 %243, %v53
    %v245 = vpop.permute.xlu0 %244
    %248 = vset.pattern.permute.xlu0 0
    %249 = vperm.xlu0 %248, %v54
    %v250 = vpop.permute.xlu0 %249
    %253 = vset.pattern.permute.xlu0 0
    %254 = vperm.xlu0 %253, %v55
    %v255 = vpop.permute.xlu0 %254
    %258 = vset.pattern.permute.xlu0 0
    %259 = vperm.xlu0 %258, %v56
    %v260 = vpop.permute.xlu0 %259
    %263 = vset.pattern.permute.xlu0 0
    %264 = vperm.xlu0 %263, %v57
    %v265 = vpop.permute.xlu0 %264
    %268 = vset.pattern.permute.xlu0 0
    %269 = vperm.xlu0 %268, %v58
    %v270 = vpop.permute.xlu0 %269
    %273 = vset.pattern.permute.xlu0 0
    %274 = vperm.xlu0 %273, %v59
    %v275 = vpop.permute.xlu0 %274
    %278 = vset.pattern.permute.xlu0 0
    %279 = vperm.xlu0 %278, %v60
    %v280 = vpop.permute.xlu0 %279
    %283 = vset.pattern.permute.xlu0 0
    %284 = vperm.xlu0 %283, %v61
    %v285 = vpop.permute.xlu0 %284
    %288 = vset.pattern.permute.xlu0 0
    %289 = vperm.xlu0 %288, %v62
    %v290 = vpop.permute.xlu0 %289
    %293 = vset.pattern.permute.xlu0 0
    %294 = vperm.xlu0 %293, %v63
    %v295 = vpop.permute.xlu0 %294
    %298 = vset.pattern.permute.xlu0 0
    %299 = vperm.xlu0 %298, %v64
    %v300 = vpop.permute.xlu0 %299
    %303 = vset.pattern.permute.xlu0 0
    %304 = vperm.xlu0 %303, %v65
    %v305 = vpop.permute.xlu0 %304
    %308 = vset.pattern.permute.xlu0 0
    %309 = vperm.xlu0 %308, %v66
    %v310 = vpop.permute.xlu0 %309
    %313 = vset.pattern.permute.xlu0 0
    %314 = vperm.xlu0 %313, %v67
    %v315 = vpop.permute.xlu0 %314
    %318 = vset.pattern.permute.xlu0 0
    %319 = vperm.xlu0 %318, %v68
    %v320 = vpop.permute.xlu0 %319
    %323 = vset.pattern.permute.xlu0 0
    %324 = vperm.xlu0 %323, %v69
    %v325 = vpop.permute.xlu0 %324
    %328 = vset.pattern.permute.xlu0 0
    %329 = vperm.xlu0 %328, %v70
    %v330 = vpop.permute.xlu0 %329
    %333 = vset.pattern.permute.xlu0 0
    %334 = vperm.xlu0 %333, %v71
    %v335 = vpop.permute.xlu0 %334
    %338 = vset.pattern.permute.xlu0 0
    %339 = vperm.xlu0 %338, %v72
    %v340 = vpop.permute.xlu0 %339
    %343 = vset.pattern.permute.xlu0 0
    %344 = vperm.xlu0 %343, %v73
    %v345 = vpop.permute.xlu0 %344
    %348 = vset.pattern.permute.xlu0 0
    %349 = vperm.xlu0 %348, %v74
    %v350 = vpop.permute.xlu0 %349
    %353 = vset.pattern.permute.xlu0 0
    %354 = vperm.xlu0 %353, %v75
    %v355 = vpop.permute.xlu0 %354
    %358 = vset.pattern.permute.xlu0 0
    %359 = vperm.xlu0 %358, %v76
    %v360 = vpop.permute.xlu0 %359
    %363 = vset.pattern.permute.xlu0 0
    %364 = vperm.xlu0 %363, %v77
    %v365 = vpop.permute.xlu0 %364
    %368 = vset.pattern.permute.xlu0 0
    %369 = vperm.xlu0 %368, %v78
    %v370 = vpop.permute.xlu0 %369
    %373 = vset.pattern.permute.xlu0 0
    %374 = vperm.xlu0 %373, %v79
    %v375 = vpop.permute.xlu0 %374
    %378 = vset.pattern.permute.xlu0 0
    %379 = vperm.xlu0 %378, %v80
    %v380 = vpop.permute.xlu0 %379
    %383 = vset.pattern.permute.xlu0 0
    %384 = vperm.xlu0 %383, %v81
    %v385 = vpop.permute.xlu0 %384
    %388 = vset.pattern.permute.xlu0 0
    %389 = vperm.xlu0 %388, %v82
    %v390 = vpop.permute.xlu0 %389
    %393 = vset.pattern.permute.xlu0 0
    %394 = vperm.xlu0 %393, %v83
    %v395 = vpop.permute.xlu0 %394
    %398 = vset.pattern.permute.xlu0 0
    %399 = vperm.xlu0 %398, %v84
    %v400 = vpop.permute.xlu0 %399
    %403 = vset.pattern.permute.xlu0 0
    %404 = vperm.xlu0 %403, %v85
    %v405 = vpop.permute.xlu0 %404
    %v408 = vlaneseq
    %v409 = vshrl.u32 %v408, 7
    %v410 = vsub.s32 0, %v409
    %v411 = vrot.slane %v86, %v410
    %v413 = vmul.f32 %v90, %v411
    %v414 = vmul.f32 %v95, %v411
    %v415 = vmul.f32 %v100, %v411
    %v416 = vmul.f32 %v105, %v411
    %v417 = vmul.f32 %v110, %v411
    %v418 = vmul.f32 %v115, %v411
    %v419 = vmul.f32 %v120, %v411
    %v420 = vmul.f32 %v125, %v411
    %v421 = vmul.f32 %v130, %v411
    %v422 = vmul.f32 %v135, %v411
    %v423 = vmul.f32 %v140, %v411
    %v424 = vmul.f32 %v145, %v411
    %v425 = vmul.f32 %v150, %v411
    %v426 = vmul.f32 %v155, %v411
    %v427 = vmul.f32 %v160, %v411
    %v428 = vmul.f32 %v165, %v411
    %v429 = vmul.f32 %v170, %v411
    %v430 = vmul.f32 %v175, %v411
    %v431 = vmul.f32 %v180, %v411
    %v432 = vmul.f32 %v185, %v411
    %v433 = vmul.f32 %v190, %v411
    %v434 = vmul.f32 %v195, %v411
    %v435 = vmul.f32 %v200, %v411
    %v436 = vmul.f32 %v205, %v411
    %v437 = vmul.f32 %v210, %v411
    %v438 = vmul.f32 %v215, %v411
    %v439 = vmul.f32 %v220, %v411
    %v440 = vmul.f32 %v225, %v411
    %v441 = vmul.f32 %v230, %v411
    %v442 = vmul.f32 %v235, %v411
    %v443 = vmul.f32 %v240, %v411
    %v444 = vmul.f32 %v245, %v411
    %v445 = vmul.f32 %v250, %v411
    %v446 = vmul.f32 %v255, %v411
    %v447 = vmul.f32 %v260, %v411
    %v448 = vmul.f32 %v265, %v411
    %v449 = vmul.f32 %v270, %v411
    %v450 = vmul.f32 %v275, %v411
    %v451 = vmul.f32 %v280, %v411
    %v452 = vmul.f32 %v285, %v411
    %v453 = vmul.f32 %v290, %v411
    %v454 = vmul.f32 %v295, %v411
    %v455 = vmul.f32 %v300, %v411
    %v456 = vmul.f32 %v305, %v411
    %v457 = vmul.f32 %v310, %v411
    %v458 = vmul.f32 %v315, %v411
    %v459 = vmul.f32 %v320, %v411
    %v460 = vmul.f32 %v325, %v411
    %v461 = vmul.f32 %v330, %v411
    %v462 = vmul.f32 %v335, %v411
    %v463 = vmul.f32 %v340, %v411
    %v464 = vmul.f32 %v345, %v411
    %v465 = vmul.f32 %v350, %v411
    %v466 = vmul.f32 %v355, %v411
    %v467 = vmul.f32 %v360, %v411
    %v468 = vmul.f32 %v365, %v411
    %v469 = vmul.f32 %v370, %v411
    %v470 = vmul.f32 %v375, %v411
    %v471 = vmul.f32 %v380, %v411
    %v472 = vmul.f32 %v385, %v411
    %v473 = vmul.f32 %v390, %v411
    %v474 = vmul.f32 %v395, %v411
    %v475 = vmul.f32 %v400, %v411
    %v476 = vmul.f32 %v405, %v411
    %v477 = vld [vmem:[%s0 + $0x1] sm:$0xff]
    %v478 = vld [vmem:[%s0 + $0x9] sm:$0xff]
    %v479 = vld [vmem:[%s0 + $0x19] sm:$0xff]
    %v480 = vld [vmem:[%s0 + $0x21] sm:$0xff]
    %v481 = vld [vmem:[%s0 + $0x31] sm:$0xff]
    %v482 = vld [vmem:[%s0 + $0x39] sm:$0xff]
    %v483 = vld [vmem:[%s0 + $0x49] sm:$0xff]
    %v484 = vld [vmem:[%s0 + $0x51] sm:$0xff]
    %v485 = vld [vmem:[%s0 + $0x61] sm:$0xff]
    %v486 = vld [vmem:[%s0 + $0x69] sm:$0xff]
    %v487 = vld [vmem:[%s0 + $0x79] sm:$0xff]
    %v488 = vld [vmem:[%s0 + $0x81] sm:$0xff]
    %v489 = vld [vmem:[%s0 + $0x91] sm:$0xff]
    %v490 = vld [vmem:[%s0 + $0x99] sm:$0xff]
    %v491 = vld [vmem:[%s0 + $0xa9] sm:$0xff]
    %v492 = vld [vmem:[%s0 + $0xb1] sm:$0xff]
    %v493 = vld [vmem:[%s0 + $0xc1] sm:$0xff]
    %v494 = vld [vmem:[%s0 + $0xc9] sm:$0xff]
    %v495 = vld [vmem:[%s0 + $0xd9] sm:$0xff]
    %v496 = vld [vmem:[%s0 + $0xe1] sm:$0xff]
    %v497 = vld [vmem:[%s0 + $0xf1] sm:$0xff]
    %v498 = vld [vmem:[%s0 + $0xf9] sm:$0xff]
    %v499 = vld [vmem:[%s0 + $0x109] sm:$0xff]
    %v500 = vld [vmem:[%s0 + $0x111] sm:$0xff]
    %v501 = vld [vmem:[%s0 + $0x121] sm:$0xff]
    %v502 = vld [vmem:[%s0 + $0x129] sm:$0xff]
    %v503 = vld [vmem:[%s0 + $0x139] sm:$0xff]
    %v504 = vld [vmem:[%s0 + $0x141] sm:$0xff]
    %v505 = vld [vmem:[%s0 + $0x151] sm:$0xff]
    %v506 = vld [vmem:[%s0 + $0x159] sm:$0xff]
    %v507 = vld [vmem:[%s0 + $0x169] sm:$0xff]
    %v508 = vld [vmem:[%s0 + $0x171] sm:$0xff]
    %v509 = vld [vmem:[%s0 + $0x1b1] sm:$0xff]
    %v510 = vld [vmem:[%s0 + $0x1b9] sm:$0xff]
    %v511 = vld [vmem:[%s0 + $0x1c9] sm:$0xff]
    %v512 = vld [vmem:[%s0 + $0x1d1] sm:$0xff]
    %v513 = vld [vmem:[%s0 + $0x1e1] sm:$0xff]
    %v514 = vld [vmem:[%s0 + $0x1e9] sm:$0xff]
    %v515 = vld [vmem:[%s0 + $0x1f9] sm:$0xff]
    %v516 = vld [vmem:[%s0 + $0x201] sm:$0xff]
    %v517 = vld [vmem:[%s0 + $0x211] sm:$0xff]
    %v518 = vld [vmem:[%s0 + $0x219] sm:$0xff]
    %v519 = vld [vmem:[%s0 + $0x229] sm:$0xff]
    %v520 = vld [vmem:[%s0 + $0x231] sm:$0xff]
    %v521 = vld [vmem:[%s0 + $0x241] sm:$0xff]
    %v522 = vld [vmem:[%s0 + $0x249] sm:$0xff]
    %v523 = vld [vmem:[%s0 + $0x259] sm:$0xff]
    %v524 = vld [vmem:[%s0 + $0x261] sm:$0xff]
    %v525 = vld [vmem:[%s0 + $0x271] sm:$0xff]
    %v526 = vld [vmem:[%s0 + $0x279] sm:$0xff]
    %v527 = vld [vmem:[%s0 + $0x289] sm:$0xff]
    %v528 = vld [vmem:[%s0 + $0x291] sm:$0xff]
    %v529 = vld [vmem:[%s0 + $0x2a1] sm:$0xff]
    %v530 = vld [vmem:[%s0 + $0x2a9] sm:$0xff]
    %v531 = vld [vmem:[%s0 + $0x2b9] sm:$0xff]
    %v532 = vld [vmem:[%s0 + $0x2c1] sm:$0xff]
    %v533 = vld [vmem:[%s0 + $0x2d1] sm:$0xff]
    %v534 = vld [vmem:[%s0 + $0x2d9] sm:$0xff]
    %v535 = vld [vmem:[%s0 + $0x2e9] sm:$0xff]
    %v536 = vld [vmem:[%s0 + $0x2f1] sm:$0xff]
    %v537 = vld [vmem:[%s0 + $0x301] sm:$0xff]
    %v538 = vld [vmem:[%s0 + $0x309] sm:$0xff]
    %v539 = vld [vmem:[%s0 + $0x319] sm:$0xff]
    %v540 = vld [vmem:[%s0 + $0x321] sm:$0xff]
    %s541 = scalar_lea.vmem %s1, 1
    %v542 = vld [vmem:[%s541] sm:$0x1]
    %544 = vset.pattern.permute.xlu0 0
    %545 = vperm.xlu0 %544, %v477
    %v546 = vpop.permute.xlu0 %545
    %549 = vset.pattern.permute.xlu0 0
    %550 = vperm.xlu0 %549, %v478
    %v551 = vpop.permute.xlu0 %550
    %554 = vset.pattern.permute.xlu0 0
    %555 = vperm.xlu0 %554, %v479
    %v556 = vpop.permute.xlu0 %555
    %559 = vset.pattern.permute.xlu0 0
    %560 = vperm.xlu0 %559, %v480
    %v561 = vpop.permute.xlu0 %560
    %564 = vset.pattern.permute.xlu0 0
    %565 = vperm.xlu0 %564, %v481
    %v566 = vpop.permute.xlu0 %565
    %569 = vset.pattern.permute.xlu0 0
    %570 = vperm.xlu0 %569, %v482
    %v571 = vpop.permute.xlu0 %570
    %574 = vset.pattern.permute.xlu0 0
    %575 = vperm.xlu0 %574, %v483
    %v576 = vpop.permute.xlu0 %575
    %579 = vset.pattern.permute.xlu0 0
    %580 = vperm.xlu0 %579, %v484
    %v581 = vpop.permute.xlu0 %580
    %584 = vset.pattern.permute.xlu0 0
    %585 = vperm.xlu0 %584, %v485
    %v586 = vpop.permute.xlu0 %585
    %589 = vset.pattern.permute.xlu0 0
    %590 = vperm.xlu0 %589, %v486
    %v591 = vpop.permute.xlu0 %590
    %594 = vset.pattern.permute.xlu0 0
    %595 = vperm.xlu0 %594, %v487
    %v596 = vpop.permute.xlu0 %595
    %599 = vset.pattern.permute.xlu0 0
    %600 = vperm.xlu0 %599, %v488
    %v601 = vpop.permute.xlu0 %600
    %604 = vset.pattern.permute.xlu0 0
    %605 = vperm.xlu0 %604, %v489
    %v606 = vpop.permute.xlu0 %605
    %609 = vset.pattern.permute.xlu0 0
    %610 = vperm.xlu0 %609, %v490
    %v611 = vpop.permute.xlu0 %610
    %614 = vset.pattern.permute.xlu0 0
    %615 = vperm.xlu0 %614, %v491
    %v616 = vpop.permute.xlu0 %615
    %619 = vset.pattern.permute.xlu0 0
    %620 = vperm.xlu0 %619, %v492
    %v621 = vpop.permute.xlu0 %620
    %624 = vset.pattern.permute.xlu0 0
    %625 = vperm.xlu0 %624, %v493
    %v626 = vpop.permute.xlu0 %625
    %629 = vset.pattern.permute.xlu0 0
    %630 = vperm.xlu0 %629, %v494
    %v631 = vpop.permute.xlu0 %630
    %634 = vset.pattern.permute.xlu0 0
    %635 = vperm.xlu0 %634, %v495
    %v636 = vpop.permute.xlu0 %635
    %639 = vset.pattern.permute.xlu0 0
    %640 = vperm.xlu0 %639, %v496
    %v641 = vpop.permute.xlu0 %640
    %644 = vset.pattern.permute.xlu0 0
    %645 = vperm.xlu0 %644, %v497
    %v646 = vpop.permute.xlu0 %645
    %649 = vset.pattern.permute.xlu0 0
    %650 = vperm.xlu0 %649, %v498
    %v651 = vpop.permute.xlu0 %650
    %654 = vset.pattern.permute.xlu0 0
    %655 = vperm.xlu0 %654, %v499
    %v656 = vpop.permute.xlu0 %655
    %659 = vset.pattern.permute.xlu0 0
    %660 = vperm.xlu0 %659, %v500
    %v661 = vpop.permute.xlu0 %660
    %664 = vset.pattern.permute.xlu0 0
    %665 = vperm.xlu0 %664, %v501
    %v666 = vpop.permute.xlu0 %665
    %669 = vset.pattern.permute.xlu0 0
    %670 = vperm.xlu0 %669, %v502
    %v671 = vpop.permute.xlu0 %670
    %674 = vset.pattern.permute.xlu0 0
    %675 = vperm.xlu0 %674, %v503
    %v676 = vpop.permute.xlu0 %675
    %679 = vset.pattern.permute.xlu0 0
    %680 = vperm.xlu0 %679, %v504
    %v681 = vpop.permute.xlu0 %680
    %684 = vset.pattern.permute.xlu0 0
    %685 = vperm.xlu0 %684, %v505
    %v686 = vpop.permute.xlu0 %685
    %689 = vset.pattern.permute.xlu0 0
    %690 = vperm.xlu0 %689, %v506
    %v691 = vpop.permute.xlu0 %690
    %694 = vset.pattern.permute.xlu0 0
    %695 = vperm.xlu0 %694, %v507
    %v696 = vpop.permute.xlu0 %695
    %699 = vset.pattern.permute.xlu0 0
    %700 = vperm.xlu0 %699, %v508
    %v701 = vpop.permute.xlu0 %700
    %704 = vset.pattern.permute.xlu0 0
    %705 = vperm.xlu0 %704, %v509
    %v706 = vpop.permute.xlu0 %705
    %709 = vset.pattern.permute.xlu0 0
    %710 = vperm.xlu0 %709, %v510
    %v711 = vpop.permute.xlu0 %710
    %714 = vset.pattern.permute.xlu0 0
    %715 = vperm.xlu0 %714, %v511
    %v716 = vpop.permute.xlu0 %715
    %719 = vset.pattern.permute.xlu0 0
    %720 = vperm.xlu0 %719, %v512
    %v721 = vpop.permute.xlu0 %720
    %724 = vset.pattern.permute.xlu0 0
    %725 = vperm.xlu0 %724, %v513
    %v726 = vpop.permute.xlu0 %725
    %729 = vset.pattern.permute.xlu0 0
    %730 = vperm.xlu0 %729, %v514
    %v731 = vpop.permute.xlu0 %730
    %734 = vset.pattern.permute.xlu0 0
    %735 = vperm.xlu0 %734, %v515
    %v736 = vpop.permute.xlu0 %735
    %739 = vset.pattern.permute.xlu0 0
    %740 = vperm.xlu0 %739, %v516
    %v741 = vpop.permute.xlu0 %740
    %744 = vset.pattern.permute.xlu0 0
    %745 = vperm.xlu0 %744, %v517
    %v746 = vpop.permute.xlu0 %745
    %749 = vset.pattern.permute.xlu0 0
    %750 = vperm.xlu0 %749, %v518
    %v751 = vpop.permute.xlu0 %750
    %754 = vset.pattern.permute.xlu0 0
    %755 = vperm.xlu0 %754, %v519
    %v756 = vpop.permute.xlu0 %755
    %759 = vset.pattern.permute.xlu0 0
    %760 = vperm.xlu0 %759, %v520
    %v761 = vpop.permute.xlu0 %760
    %764 = vset.pattern.permute.xlu0 0
    %765 = vperm.xlu0 %764, %v521
    %v766 = vpop.permute.xlu0 %765
    %769 = vset.pattern.permute.xlu0 0
    %770 = vperm.xlu0 %769, %v522
    %v771 = vpop.permute.xlu0 %770
    %774 = vset.pattern.permute.xlu0 0
    %775 = vperm.xlu0 %774, %v523
    %v776 = vpop.permute.xlu0 %775
    %779 = vset.pattern.permute.xlu0 0
    %780 = vperm.xlu0 %779, %v524
    %v781 = vpop.permute.xlu0 %780
    %784 = vset.pattern.permute.xlu0 0
    %785 = vperm.xlu0 %784, %v525
    %v786 = vpop.permute.xlu0 %785
    %789 = vset.pattern.permute.xlu0 0
    %790 = vperm.xlu0 %789, %v526
    %v791 = vpop.permute.xlu0 %790
    %794 = vset.pattern.permute.xlu0 0
    %795 = vperm.xlu0 %794, %v527
    %v796 = vpop.permute.xlu0 %795
    %799 = vset.pattern.permute.xlu0 0
    %800 = vperm.xlu0 %799, %v528
    %v801 = vpop.permute.xlu0 %800
    %804 = vset.pattern.permute.xlu0 0
    %805 = vperm.xlu0 %804, %v529
    %v806 = vpop.permute.xlu0 %805
    %809 = vset.pattern.permute.xlu0 0
    %810 = vperm.xlu0 %809, %v530
    %v811 = vpop.permute.xlu0 %810
    %814 = vset.pattern.permute.xlu0 0
    %815 = vperm.xlu0 %814, %v531
    %v816 = vpop.permute.xlu0 %815
    %819 = vset.pattern.permute.xlu0 0
    %820 = vperm.xlu0 %819, %v532
    %v821 = vpop.permute.xlu0 %820
    %824 = vset.pattern.permute.xlu0 0
    %825 = vperm.xlu0 %824, %v533
    %v826 = vpop.permute.xlu0 %825
    %829 = vset.pattern.permute.xlu0 0
    %830 = vperm.xlu0 %829, %v534
    %v831 = vpop.permute.xlu0 %830
    %834 = vset.pattern.permute.xlu0 0
    %835 = vperm.xlu0 %834, %v535
    %v836 = vpop.permute.xlu0 %835
    %839 = vset.pattern.permute.xlu0 0
    %840 = vperm.xlu0 %839, %v536
    %v841 = vpop.permute.xlu0 %840
    %844 = vset.pattern.permute.xlu0 0
    %845 = vperm.xlu0 %844, %v537
    %v846 = vpop.permute.xlu0 %845
    %849 = vset.pattern.permute.xlu0 0
    %850 = vperm.xlu0 %849, %v538
    %v851 = vpop.permute.xlu0 %850
    %854 = vset.pattern.permute.xlu0 0
    %855 = vperm.xlu0 %854, %v539
    %v856 = vpop.permute.xlu0 %855
    %859 = vset.pattern.permute.xlu0 0
    %860 = vperm.xlu0 %859, %v540
    %v861 = vpop.permute.xlu0 %860
    %v864 = vlaneseq
    %v865 = vshrl.u32 %v864, 7
    %v866 = vsub.s32 0, %v865
    %v867 = vrot.slane %v542, %v866
    %v869 = vmul.f32 %v546, %v867
    %v870 = vmul.f32 %v551, %v867
    %v871 = vmul.f32 %v556, %v867
    %v872 = vmul.f32 %v561, %v867
    %v873 = vmul.f32 %v566, %v867
    %v874 = vmul.f32 %v571, %v867
    %v875 = vmul.f32 %v576, %v867
    %v876 = vmul.f32 %v581, %v867
    %v877 = vmul.f32 %v586, %v867
    %v878 = vmul.f32 %v591, %v867
    %v879 = vmul.f32 %v596, %v867
    %v880 = vmul.f32 %v601, %v867
    %v881 = vmul.f32 %v606, %v867
    %v882 = vmul.f32 %v611, %v867
    %v883 = vmul.f32 %v616, %v867
    %v884 = vmul.f32 %v621, %v867
    %v885 = vmul.f32 %v626, %v867
    %v886 = vmul.f32 %v631, %v867
    %v887 = vmul.f32 %v636, %v867
    %v888 = vmul.f32 %v641, %v867
    %v889 = vmul.f32 %v646, %v867
    %v890 = vmul.f32 %v651, %v867
    %v891 = vmul.f32 %v656, %v867
    %v892 = vmul.f32 %v661, %v867
    %v893 = vmul.f32 %v666, %v867
    %v894 = vmul.f32 %v671, %v867
    %v895 = vmul.f32 %v676, %v867
    %v896 = vmul.f32 %v681, %v867
    %v897 = vmul.f32 %v686, %v867
    %v898 = vmul.f32 %v691, %v867
    %v899 = vmul.f32 %v696, %v867
    %v900 = vmul.f32 %v701, %v867
    %v901 = vmul.f32 %v706, %v867
    %v902 = vmul.f32 %v711, %v867
    %v903 = vmul.f32 %v716, %v867
    %v904 = vmul.f32 %v721, %v867
    %v905 = vmul.f32 %v726, %v867
    %v906 = vmul.f32 %v731, %v867
    %v907 = vmul.f32 %v736, %v867
    %v908 = vmul.f32 %v741, %v867
    %v909 = vmul.f32 %v746, %v867
    %v910 = vmul.f32 %v751, %v867
    %v911 = vmul.f32 %v756, %v867
    %v912 = vmul.f32 %v761, %v867
    %v913 = vmul.f32 %v766, %v867
    %v914 = vmul.f32 %v771, %v867
    %v915 = vmul.f32 %v776, %v867
    %v916 = vmul.f32 %v781, %v867
    %v917 = vmul.f32 %v786, %v867
    %v918 = vmul.f32 %v791, %v867
    %v919 = vmul.f32 %v796, %v867
    %v920 = vmul.f32 %v801, %v867
    %v921 = vmul.f32 %v806, %v867
    %v922 = vmul.f32 %v811, %v867
    %v923 = vmul.f32 %v816, %v867
    %v924 = vmul.f32 %v821, %v867
    %v925 = vmul.f32 %v826, %v867
    %v926 = vmul.f32 %v831, %v867
    %v927 = vmul.f32 %v836, %v867
    %v928 = vmul.f32 %v841, %v867
    %v929 = vmul.f32 %v846, %v867
    %v930 = vmul.f32 %v851, %v867
    %v931 = vmul.f32 %v856, %v867
    %v932 = vmul.f32 %v861, %v867
    %v933 = vadd.f32 %v413, %v869
    %v934 = vadd.f32 %v414, %v870
    %v935 = vadd.f32 %v415, %v871
    %v936 = vadd.f32 %v416, %v872
    %v937 = vadd.f32 %v417, %v873
    %v938 = vadd.f32 %v418, %v874
    %v939 = vadd.f32 %v419, %v875
    %v940 = vadd.f32 %v420, %v876
    %v941 = vadd.f32 %v421, %v877
    %v942 = vadd.f32 %v422, %v878
    %v943 = vadd.f32 %v423, %v879
    %v944 = vadd.f32 %v424, %v880
    %v945 = vadd.f32 %v425, %v881
    %v946 = vadd.f32 %v426, %v882
    %v947 = vadd.f32 %v427, %v883
    %v948 = vadd.f32 %v428, %v884
    %v949 = vadd.f32 %v429, %v885
    %v950 = vadd.f32 %v430, %v886
    %v951 = vadd.f32 %v431, %v887
    %v952 = vadd.f32 %v432, %v888
    %v953 = vadd.f32 %v433, %v889
    %v954 = vadd.f32 %v434, %v890
    %v955 = vadd.f32 %v435, %v891
    %v956 = vadd.f32 %v436, %v892
    %v957 = vadd.f32 %v437, %v893
    %v958 = vadd.f32 %v438, %v894
    %v959 = vadd.f32 %v439, %v895
    %v960 = vadd.f32 %v440, %v896
    %v961 = vadd.f32 %v441, %v897
    %v962 = vadd.f32 %v442, %v898
    %v963 = vadd.f32 %v443, %v899
    %v964 = vadd.f32 %v444, %v900
    %v965 = vadd.f32 %v445, %v901
    %v966 = vadd.f32 %v446, %v902
    %v967 = vadd.f32 %v447, %v903
    %v968 = vadd.f32 %v448, %v904
    %v969 = vadd.f32 %v449, %v905
    %v970 = vadd.f32 %v450, %v906
    %v971 = vadd.f32 %v451, %v907
    %v972 = vadd.f32 %v452, %v908
    %v973 = vadd.f32 %v453, %v909
    %v974 = vadd.f32 %v454, %v910
    %v975 = vadd.f32 %v455, %v911
    %v976 = vadd.f32 %v456, %v912
    %v977 = vadd.f32 %v457, %v913
    %v978 = vadd.f32 %v458, %v914
    %v979 = vadd.f32 %v459, %v915
    %v980 = vadd.f32 %v460, %v916
    %v981 = vadd.f32 %v461, %v917
    %v982 = vadd.f32 %v462, %v918
    %v983 = vadd.f32 %v463, %v919
    %v984 = vadd.f32 %v464, %v920
    %v985 = vadd.f32 %v465, %v921
    %v986 = vadd.f32 %v466, %v922
    %v987 = vadd.f32 %v467, %v923
    %v988 = vadd.f32 %v468, %v924
    %v989 = vadd.f32 %v469, %v925
    %v990 = vadd.f32 %v470, %v926
    %v991 = vadd.f32 %v471, %v927
    %v992 = vadd.f32 %v472, %v928
    %v993 = vadd.f32 %v473, %v929
    %v994 = vadd.f32 %v474, %v930
    %v995 = vadd.f32 %v475, %v931
    %v996 = vadd.f32 %v476, %v932
    %v997 = vld [vmem:[%s0 + $0x2] sm:$0xff]
    %v998 = vld [vmem:[%s0 + $0xa] sm:$0xff]
    %v999 = vld [vmem:[%s0 + $0x1a] sm:$0xff]
    %v1000 = vld [vmem:[%s0 + $0x22] sm:$0xff]
    %v1001 = vld [vmem:[%s0 + $0x32] sm:$0xff]
    %v1002 = vld [vmem:[%s0 + $0x3a] sm:$0xff]
    %v1003 = vld [vmem:[%s0 + $0x4a] sm:$0xff]
    %v1004 = vld [vmem:[%s0 + $0x52] sm:$0xff]
    %v1005 = vld [vmem:[%s0 + $0x62] sm:$0xff]
    %v1006 = vld [vmem:[%s0 + $0x6a] sm:$0xff]
    %v1007 = vld [vmem:[%s0 + $0x7a] sm:$0xff]
    %v1008 = vld [vmem:[%s0 + $0x82] sm:$0xff]
    %v1009 = vld [vmem:[%s0 + $0x92] sm:$0xff]
    %v1010 = vld [vmem:[%s0 + $0x9a] sm:$0xff]
    %v1011 = vld [vmem:[%s0 + $0xaa] sm:$0xff]
    %v1012 = vld [vmem:[%s0 + $0xb2] sm:$0xff]
    %v1013 = vld [vmem:[%s0 + $0xc2] sm:$0xff]
    %v1014 = vld [vmem:[%s0 + $0xca] sm:$0xff]
    %v1015 = vld [vmem:[%s0 + $0xda] sm:$0xff]
    %v1016 = vld [vmem:[%s0 + $0xe2] sm:$0xff]
    %v1017 = vld [vmem:[%s0 + $0xf2] sm:$0xff]
    %v1018 = vld [vmem:[%s0 + $0xfa] sm:$0xff]
    %v1019 = vld [vmem:[%s0 + $0x10a] sm:$0xff]
    %v1020 = vld [vmem:[%s0 + $0x112] sm:$0xff]
    %v1021 = vld [vmem:[%s0 + $0x122] sm:$0xff]
    %v1022 = vld [vmem:[%s0 + $0x12a] sm:$0xff]
    %v1023 = vld [vmem:[%s0 + $0x13a] sm:$0xff]
    %v1024 = vld [vmem:[%s0 + $0x142] sm:$0xff]
    %v1025 = vld [vmem:[%s0 + $0x152] sm:$0xff]
    %v1026 = vld [vmem:[%s0 + $0x15a] sm:$0xff]
    %v1027 = vld [vmem:[%s0 + $0x16a] sm:$0xff]
    %v1028 = vld [vmem:[%s0 + $0x172] sm:$0xff]
    %v1029 = vld [vmem:[%s0 + $0x1b2] sm:$0xff]
    %v1030 = vld [vmem:[%s0 + $0x1ba] sm:$0xff]
    %v1031 = vld [vmem:[%s0 + $0x1ca] sm:$0xff]
    %v1032 = vld [vmem:[%s0 + $0x1d2] sm:$0xff]
    %v1033 = vld [vmem:[%s0 + $0x1e2] sm:$0xff]
    %v1034 = vld [vmem:[%s0 + $0x1ea] sm:$0xff]
    %v1035 = vld [vmem:[%s0 + $0x1fa] sm:$0xff]
    %v1036 = vld [vmem:[%s0 + $0x202] sm:$0xff]
    %v1037 = vld [vmem:[%s0 + $0x212] sm:$0xff]
    %v1038 = vld [vmem:[%s0 + $0x21a] sm:$0xff]
    %v1039 = vld [vmem:[%s0 + $0x22a] sm:$0xff]
    %v1040 = vld [vmem:[%s0 + $0x232] sm:$0xff]
    %v1041 = vld [vmem:[%s0 + $0x242] sm:$0xff]
    %v1042 = vld [vmem:[%s0 + $0x24a] sm:$0xff]
    %v1043 = vld [vmem:[%s0 + $0x25a] sm:$0xff]
    %v1044 = vld [vmem:[%s0 + $0x262] sm:$0xff]
    %v1045 = vld [vmem:[%s0 + $0x272] sm:$0xff]
    %v1046 = vld [vmem:[%s0 + $0x27a] sm:$0xff]
    %v1047 = vld [vmem:[%s0 + $0x28a] sm:$0xff]
    %v1048 = vld [vmem:[%s0 + $0x292] sm:$0xff]
    %v1049 = vld [vmem:[%s0 + $0x2a2] sm:$0xff]
    %v1050 = vld [vmem:[%s0 + $0x2aa] sm:$0xff]
    %v1051 = vld [vmem:[%s0 + $0x2ba] sm:$0xff]
    %v1052 = vld [vmem:[%s0 + $0x2c2] sm:$0xff]
    %v1053 = vld [vmem:[%s0 + $0x2d2] sm:$0xff]
    %v1054 = vld [vmem:[%s0 + $0x2da] sm:$0xff]
    %v1055 = vld [vmem:[%s0 + $0x2ea] sm:$0xff]
    %v1056 = vld [vmem:[%s0 + $0x2f2] sm:$0xff]
    %v1057 = vld [vmem:[%s0 + $0x302] sm:$0xff]
    %v1058 = vld [vmem:[%s0 + $0x30a] sm:$0xff]
    %v1059 = vld [vmem:[%s0 + $0x31a] sm:$0xff]
    %v1060 = vld [vmem:[%s0 + $0x322] sm:$0xff]
    %s1061 = scalar_lea.vmem %s1, 2
    %v1062 = vld [vmem:[%s1061] sm:$0x1]
    %1064 = vset.pattern.permute.xlu0 0
    %1065 = vperm.xlu0 %1064, %v997
    %v1066 = vpop.permute.xlu0 %1065
    %1069 = vset.pattern.permute.xlu0 0
    %1070 = vperm.xlu0 %1069, %v998
    %v1071 = vpop.permute.xlu0 %1070
    %1074 = vset.pattern.permute.xlu0 0
    %1075 = vperm.xlu0 %1074, %v999
    %v1076 = vpop.permute.xlu0 %1075
    %1079 = vset.pattern.permute.xlu0 0
    %1080 = vperm.xlu0 %1079, %v1000
    %v1081 = vpop.permute.xlu0 %1080
    %1084 = vset.pattern.permute.xlu0 0
    %1085 = vperm.xlu0 %1084, %v1001
    %v1086 = vpop.permute.xlu0 %1085
    %1089 = vset.pattern.permute.xlu0 0
    %1090 = vperm.xlu0 %1089, %v1002
    %v1091 = vpop.permute.xlu0 %1090
    %1094 = vset.pattern.permute.xlu0 0
    %1095 = vperm.xlu0 %1094, %v1003
    %v1096 = vpop.permute.xlu0 %1095
    %1099 = vset.pattern.permute.xlu0 0
    %1100 = vperm.xlu0 %1099, %v1004
    %v1101 = vpop.permute.xlu0 %1100
    %1104 = vset.pattern.permute.xlu0 0
    %1105 = vperm.xlu0 %1104, %v1005
    %v1106 = vpop.permute.xlu0 %1105
    %1109 = vset.pattern.permute.xlu0 0
    %1110 = vperm.xlu0 %1109, %v1006
    %v1111 = vpop.permute.xlu0 %1110
    %1114 = vset.pattern.permute.xlu0 0
    %1115 = vperm.xlu0 %1114, %v1007
    %v1116 = vpop.permute.xlu0 %1115
    %1119 = vset.pattern.permute.xlu0 0
    %1120 = vperm.xlu0 %1119, %v1008
    %v1121 = vpop.permute.xlu0 %1120
    %1124 = vset.pattern.permute.xlu0 0
    %1125 = vperm.xlu0 %1124, %v1009
    %v1126 = vpop.permute.xlu0 %1125
    %1129 = vset.pattern.permute.xlu0 0
    %1130 = vperm.xlu0 %1129, %v1010
    %v1131 = vpop.permute.xlu0 %1130
    %1134 = vset.pattern.permute.xlu0 0
    %1135 = vperm.xlu0 %1134, %v1011
    %v1136 = vpop.permute.xlu0 %1135
    %1139 = vset.pattern.permute.xlu0 0
    %1140 = vperm.xlu0 %1139, %v1012
    %v1141 = vpop.permute.xlu0 %1140
    %1144 = vset.pattern.permute.xlu0 0
    %1145 = vperm.xlu0 %1144, %v1013
    %v1146 = vpop.permute.xlu0 %1145
    %1149 = vset.pattern.permute.xlu0 0
    %1150 = vperm.xlu0 %1149, %v1014
    %v1151 = vpop.permute.xlu0 %1150
    %1154 = vset.pattern.permute.xlu0 0
    %1155 = vperm.xlu0 %1154, %v1015
    %v1156 = vpop.permute.xlu0 %1155
    %1159 = vset.pattern.permute.xlu0 0
    %1160 = vperm.xlu0 %1159, %v1016
    %v1161 = vpop.permute.xlu0 %1160
    %1164 = vset.pattern.permute.xlu0 0
    %1165 = vperm.xlu0 %1164, %v1017
    %v1166 = vpop.permute.xlu0 %1165
    %1169 = vset.pattern.permute.xlu0 0
    %1170 = vperm.xlu0 %1169, %v1018
    %v1171 = vpop.permute.xlu0 %1170
    %1174 = vset.pattern.permute.xlu0 0
    %1175 = vperm.xlu0 %1174, %v1019
    %v1176 = vpop.permute.xlu0 %1175
    %1179 = vset.pattern.permute.xlu0 0
    %1180 = vperm.xlu0 %1179, %v1020
    %v1181 = vpop.permute.xlu0 %1180
    %1184 = vset.pattern.permute.xlu0 0
    %1185 = vperm.xlu0 %1184, %v1021
    %v1186 = vpop.permute.xlu0 %1185
    %1189 = vset.pattern.permute.xlu0 0
    %1190 = vperm.xlu0 %1189, %v1022
    %v1191 = vpop.permute.xlu0 %1190
    %1194 = vset.pattern.permute.xlu0 0
    %1195 = vperm.xlu0 %1194, %v1023
    %v1196 = vpop.permute.xlu0 %1195
    %1199 = vset.pattern.permute.xlu0 0
    %1200 = vperm.xlu0 %1199, %v1024
    %v1201 = vpop.permute.xlu0 %1200
    %1204 = vset.pattern.permute.xlu0 0
    %1205 = vperm.xlu0 %1204, %v1025
    %v1206 = vpop.permute.xlu0 %1205
    %1209 = vset.pattern.permute.xlu0 0
    %1210 = vperm.xlu0 %1209, %v1026
    %v1211 = vpop.permute.xlu0 %1210
    %1214 = vset.pattern.permute.xlu0 0
    %1215 = vperm.xlu0 %1214, %v1027
    %v1216 = vpop.permute.xlu0 %1215
    %1219 = vset.pattern.permute.xlu0 0
    %1220 = vperm.xlu0 %1219, %v1028
    %v1221 = vpop.permute.xlu0 %1220
    %1224 = vset.pattern.permute.xlu0 0
    %1225 = vperm.xlu0 %1224, %v1029
    %v1226 = vpop.permute.xlu0 %1225
    %1229 = vset.pattern.permute.xlu0 0
    %1230 = vperm.xlu0 %1229, %v1030
    %v1231 = vpop.permute.xlu0 %1230
    %1234 = vset.pattern.permute.xlu0 0
    %1235 = vperm.xlu0 %1234, %v1031
    %v1236 = vpop.permute.xlu0 %1235
    %1239 = vset.pattern.permute.xlu0 0
    %1240 = vperm.xlu0 %1239, %v1032
    %v1241 = vpop.permute.xlu0 %1240
    %1244 = vset.pattern.permute.xlu0 0
    %1245 = vperm.xlu0 %1244, %v1033
    %v1246 = vpop.permute.xlu0 %1245
    %1249 = vset.pattern.permute.xlu0 0
    %1250 = vperm.xlu0 %1249, %v1034
    %v1251 = vpop.permute.xlu0 %1250
    %1254 = vset.pattern.permute.xlu0 0
    %1255 = vperm.xlu0 %1254, %v1035
    %v1256 = vpop.permute.xlu0 %1255
    %1259 = vset.pattern.permute.xlu0 0
    %1260 = vperm.xlu0 %1259, %v1036
    %v1261 = vpop.permute.xlu0 %1260
    %1264 = vset.pattern.permute.xlu0 0
    %1265 = vperm.xlu0 %1264, %v1037
    %v1266 = vpop.permute.xlu0 %1265
    %1269 = vset.pattern.permute.xlu0 0
    %1270 = vperm.xlu0 %1269, %v1038
    %v1271 = vpop.permute.xlu0 %1270
    %1274 = vset.pattern.permute.xlu0 0
    %1275 = vperm.xlu0 %1274, %v1039
    %v1276 = vpop.permute.xlu0 %1275
    %1279 = vset.pattern.permute.xlu0 0
    %1280 = vperm.xlu0 %1279, %v1040
    %v1281 = vpop.permute.xlu0 %1280
    %1284 = vset.pattern.permute.xlu0 0
    %1285 = vperm.xlu0 %1284, %v1041
    %v1286 = vpop.permute.xlu0 %1285
    %1289 = vset.pattern.permute.xlu0 0
    %1290 = vperm.xlu0 %1289, %v1042
    %v1291 = vpop.permute.xlu0 %1290
    %1294 = vset.pattern.permute.xlu0 0
    %1295 = vperm.xlu0 %1294, %v1043
    %v1296 = vpop.permute.xlu0 %1295
    %1299 = vset.pattern.permute.xlu0 0
    %1300 = vperm.xlu0 %1299, %v1044
    %v1301 = vpop.permute.xlu0 %1300
    %1304 = vset.pattern.permute.xlu0 0
    %1305 = vperm.xlu0 %1304, %v1045
    %v1306 = vpop.permute.xlu0 %1305
    %1309 = vset.pattern.permute.xlu0 0
    %1310 = vperm.xlu0 %1309, %v1046
    %v1311 = vpop.permute.xlu0 %1310
    %1314 = vset.pattern.permute.xlu0 0
    %1315 = vperm.xlu0 %1314, %v1047
    %v1316 = vpop.permute.xlu0 %1315
    %1319 = vset.pattern.permute.xlu0 0
    %1320 = vperm.xlu0 %1319, %v1048
    %v1321 = vpop.permute.xlu0 %1320
    %1324 = vset.pattern.permute.xlu0 0
    %1325 = vperm.xlu0 %1324, %v1049
    %v1326 = vpop.permute.xlu0 %1325
    %1329 = vset.pattern.permute.xlu0 0
    %1330 = vperm.xlu0 %1329, %v1050
    %v1331 = vpop.permute.xlu0 %1330
    %1334 = vset.pattern.permute.xlu0 0
    %1335 = vperm.xlu0 %1334, %v1051
    %v1336 = vpop.permute.xlu0 %1335
    %1339 = vset.pattern.permute.xlu0 0
    %1340 = vperm.xlu0 %1339, %v1052
    %v1341 = vpop.permute.xlu0 %1340
    %1344 = vset.pattern.permute.xlu0 0
    %1345 = vperm.xlu0 %1344, %v1053
    %v1346 = vpop.permute.xlu0 %1345
    %1349 = vset.pattern.permute.xlu0 0
    %1350 = vperm.xlu0 %1349, %v1054
    %v1351 = vpop.permute.xlu0 %1350
    %1354 = vset.pattern.permute.xlu0 0
    %1355 = vperm.xlu0 %1354, %v1055
    %v1356 = vpop.permute.xlu0 %1355
    %1359 = vset.pattern.permute.xlu0 0
    %1360 = vperm.xlu0 %1359, %v1056
    %v1361 = vpop.permute.xlu0 %1360
    %1364 = vset.pattern.permute.xlu0 0
    %1365 = vperm.xlu0 %1364, %v1057
    %v1366 = vpop.permute.xlu0 %1365
    %1369 = vset.pattern.permute.xlu0 0
    %1370 = vperm.xlu0 %1369, %v1058
    %v1371 = vpop.permute.xlu0 %1370
    %1374 = vset.pattern.permute.xlu0 0
    %1375 = vperm.xlu0 %1374, %v1059
    %v1376 = vpop.permute.xlu0 %1375
    %1379 = vset.pattern.permute.xlu0 0
    %1380 = vperm.xlu0 %1379, %v1060
    %v1381 = vpop.permute.xlu0 %1380
    %v1384 = vlaneseq
    %v1385 = vshrl.u32 %v1384, 7
    %v1386 = vsub.s32 0, %v1385
    %v1387 = vrot.slane %v1062, %v1386
    %v1389 = vmul.f32 %v1066, %v1387
    %v1390 = vmul.f32 %v1071, %v1387
    %v1391 = vmul.f32 %v1076, %v1387
    %v1392 = vmul.f32 %v1081, %v1387
    %v1393 = vmul.f32 %v1086, %v1387
    %v1394 = vmul.f32 %v1091, %v1387
    %v1395 = vmul.f32 %v1096, %v1387
    %v1396 = vmul.f32 %v1101, %v1387
    %v1397 = vmul.f32 %v1106, %v1387
    %v1398 = vmul.f32 %v1111, %v1387
    %v1399 = vmul.f32 %v1116, %v1387
    %v1400 = vmul.f32 %v1121, %v1387
    %v1401 = vmul.f32 %v1126, %v1387
    %v1402 = vmul.f32 %v1131, %v1387
    %v1403 = vmul.f32 %v1136, %v1387
    %v1404 = vmul.f32 %v1141, %v1387
    %v1405 = vmul.f32 %v1146, %v1387
    %v1406 = vmul.f32 %v1151, %v1387
    %v1407 = vmul.f32 %v1156, %v1387
    %v1408 = vmul.f32 %v1161, %v1387
    %v1409 = vmul.f32 %v1166, %v1387
    %v1410 = vmul.f32 %v1171, %v1387
    %v1411 = vmul.f32 %v1176, %v1387
    %v1412 = vmul.f32 %v1181, %v1387
    %v1413 = vmul.f32 %v1186, %v1387
    %v1414 = vmul.f32 %v1191, %v1387
    %v1415 = vmul.f32 %v1196, %v1387
    %v1416 = vmul.f32 %v1201, %v1387
    %v1417 = vmul.f32 %v1206, %v1387
    %v1418 = vmul.f32 %v1211, %v1387
    %v1419 = vmul.f32 %v1216, %v1387
    %v1420 = vmul.f32 %v1221, %v1387
    %v1421 = vmul.f32 %v1226, %v1387
    %v1422 = vmul.f32 %v1231, %v1387
    %v1423 = vmul.f32 %v1236, %v1387
    %v1424 = vmul.f32 %v1241, %v1387
    %v1425 = vmul.f32 %v1246, %v1387
    %v1426 = vmul.f32 %v1251, %v1387
    %v1427 = vmul.f32 %v1256, %v1387
    %v1428 = vmul.f32 %v1261, %v1387
    %v1429 = vmul.f32 %v1266, %v1387
    %v1430 = vmul.f32 %v1271, %v1387
    %v1431 = vmul.f32 %v1276, %v1387
    %v1432 = vmul.f32 %v1281, %v1387
    %v1433 = vmul.f32 %v1286, %v1387
    %v1434 = vmul.f32 %v1291, %v1387
    %v1435 = vmul.f32 %v1296, %v1387
    %v1436 = vmul.f32 %v1301, %v1387
    %v1437 = vmul.f32 %v1306, %v1387
    %v1438 = vmul.f32 %v1311, %v1387
    %v1439 = vmul.f32 %v1316, %v1387
    %v1440 = vmul.f32 %v1321, %v1387
    %v1441 = vmul.f32 %v1326, %v1387
    %v1442 = vmul.f32 %v1331, %v1387
    %v1443 = vmul.f32 %v1336, %v1387
    %v1444 = vmul.f32 %v1341, %v1387
    %v1445 = vmul.f32 %v1346, %v1387
    %v1446 = vmul.f32 %v1351, %v1387
    %v1447 = vmul.f32 %v1356, %v1387
    %v1448 = vmul.f32 %v1361, %v1387
    %v1449 = vmul.f32 %v1366, %v1387
    %v1450 = vmul.f32 %v1371, %v1387
    %v1451 = vmul.f32 %v1376, %v1387
    %v1452 = vmul.f32 %v1381, %v1387
    %v1453 = vadd.f32 %v933, %v1389
    %v1454 = vadd.f32 %v934, %v1390
    %v1455 = vadd.f32 %v935, %v1391
    %v1456 = vadd.f32 %v936, %v1392
    %v1457 = vadd.f32 %v937, %v1393
    %v1458 = vadd.f32 %v938, %v1394
    %v1459 = vadd.f32 %v939, %v1395
    %v1460 = vadd.f32 %v940, %v1396
    %v1461 = vadd.f32 %v941, %v1397
    %v1462 = vadd.f32 %v942, %v1398
    %v1463 = vadd.f32 %v943, %v1399
    %v1464 = vadd.f32 %v944, %v1400
    %v1465 = vadd.f32 %v945, %v1401
    %v1466 = vadd.f32 %v946, %v1402
    %v1467 = vadd.f32 %v947, %v1403
    %v1468 = vadd.f32 %v948, %v1404
    %v1469 = vadd.f32 %v949, %v1405
    %v1470 = vadd.f32 %v950, %v1406
    %v1471 = vadd.f32 %v951, %v1407
    %v1472 = vadd.f32 %v952, %v1408
    %v1473 = vadd.f32 %v953, %v1409
    %v1474 = vadd.f32 %v954, %v1410
    %v1475 = vadd.f32 %v955, %v1411
    %v1476 = vadd.f32 %v956, %v1412
    %v1477 = vadd.f32 %v957, %v1413
    %v1478 = vadd.f32 %v958, %v1414
    %v1479 = vadd.f32 %v959, %v1415
    %v1480 = vadd.f32 %v960, %v1416
    %v1481 = vadd.f32 %v961, %v1417
    %v1482 = vadd.f32 %v962, %v1418
    %v1483 = vadd.f32 %v963, %v1419
    %v1484 = vadd.f32 %v964, %v1420
    %v1485 = vadd.f32 %v965, %v1421
    %v1486 = vadd.f32 %v966, %v1422
    %v1487 = vadd.f32 %v967, %v1423
    %v1488 = vadd.f32 %v968, %v1424
    %v1489 = vadd.f32 %v969, %v1425
    %v1490 = vadd.f32 %v970, %v1426
    %v1491 = vadd.f32 %v971, %v1427
    %v1492 = vadd.f32 %v972, %v1428
    %v1493 = vadd.f32 %v973, %v1429
    %v1494 = vadd.f32 %v974, %v1430
    %v1495 = vadd.f32 %v975, %v1431
    %v1496 = vadd.f32 %v976, %v1432
    %v1497 = vadd.f32 %v977, %v1433
    %v1498 = vadd.f32 %v978, %v1434
    %v1499 = vadd.f32 %v979, %v1435
    %v1500 = vadd.f32 %v980, %v1436
    %v1501 = vadd.f32 %v981, %v1437
    %v1502 = vadd.f32 %v982, %v1438
    %v1503 = vadd.f32 %v983, %v1439
    %v1504 = vadd.f32 %v984, %v1440
    %v1505 = vadd.f32 %v985, %v1441
    %v1506 = vadd.f32 %v986, %v1442
    %v1507 = vadd.f32 %v987, %v1443
    %v1508 = vadd.f32 %v988, %v1444
    %v1509 = vadd.f32 %v989, %v1445
    %v1510 = vadd.f32 %v990, %v1446
    %v1511 = vadd.f32 %v991, %v1447
    %v1512 = vadd.f32 %v992, %v1448
    %v1513 = vadd.f32 %v993, %v1449
    %v1514 = vadd.f32 %v994, %v1450
    %v1515 = vadd.f32 %v995, %v1451
    %v1516 = vadd.f32 %v996, %v1452
    %s1517 = scalar_lea.vmem %s0, 24
    %v1518 = vld [vmem:[%s1517] sm:$0xff]
    %v1519 = vld [vmem:[%s1517 + $0x8] sm:$0xff]
    %v1520 = vld [vmem:[%s1517 + $0x18] sm:$0xff]
    %v1521 = vld [vmem:[%s1517 + $0x20] sm:$0xff]
    %v1522 = vld [vmem:[%s1517 + $0x30] sm:$0xff]
    %v1523 = vld [vmem:[%s1517 + $0x38] sm:$0xff]
    %v1524 = vld [vmem:[%s1517 + $0x48] sm:$0xff]
    %v1525 = vld [vmem:[%s1517 + $0x50] sm:$0xff]
    %v1526 = vld [vmem:[%s1517 + $0x60] sm:$0xff]
    %v1527 = vld [vmem:[%s1517 + $0x68] sm:$0xff]
    %v1528 = vld [vmem:[%s1517 + $0x78] sm:$0xff]
    %v1529 = vld [vmem:[%s1517 + $0x80] sm:$0xff]
    %v1530 = vld [vmem:[%s1517 + $0x90] sm:$0xff]
    %v1531 = vld [vmem:[%s1517 + $0x98] sm:$0xff]
    %v1532 = vld [vmem:[%s1517 + $0xa8] sm:$0xff]
    %v1533 = vld [vmem:[%s1517 + $0xb0] sm:$0xff]
    %v1534 = vld [vmem:[%s1517 + $0xc0] sm:$0xff]
    %v1535 = vld [vmem:[%s1517 + $0xc8] sm:$0xff]
    %v1536 = vld [vmem:[%s1517 + $0xd8] sm:$0xff]
    %v1537 = vld [vmem:[%s1517 + $0xe0] sm:$0xff]
    %v1538 = vld [vmem:[%s1517 + $0xf0] sm:$0xff]
    %v1539 = vld [vmem:[%s1517 + $0xf8] sm:$0xff]
    %v1540 = vld [vmem:[%s1517 + $0x108] sm:$0xff]
    %v1541 = vld [vmem:[%s1517 + $0x110] sm:$0xff]
    %v1542 = vld [vmem:[%s1517 + $0x120] sm:$0xff]
    %v1543 = vld [vmem:[%s1517 + $0x128] sm:$0xff]
    %v1544 = vld [vmem:[%s1517 + $0x138] sm:$0xff]
    %v1545 = vld [vmem:[%s1517 + $0x140] sm:$0xff]
    %v1546 = vld [vmem:[%s1517 + $0x150] sm:$0xff]
    %v1547 = vld [vmem:[%s1517 + $0x158] sm:$0xff]
    %v1548 = vld [vmem:[%s1517 + $0x168] sm:$0xff]
    %v1549 = vld [vmem:[%s1517 + $0x170] sm:$0xff]
    %v1550 = vld [vmem:[%s1517 + $0x1b0] sm:$0xff]
    %v1551 = vld [vmem:[%s1517 + $0x1b8] sm:$0xff]
    %v1552 = vld [vmem:[%s1517 + $0x1c8] sm:$0xff]
    %v1553 = vld [vmem:[%s1517 + $0x1d0] sm:$0xff]
    %v1554 = vld [vmem:[%s1517 + $0x1e0] sm:$0xff]
    %v1555 = vld [vmem:[%s1517 + $0x1e8] sm:$0xff]
    %v1556 = vld [vmem:[%s1517 + $0x1f8] sm:$0xff]
    %v1557 = vld [vmem:[%s1517 + $0x200] sm:$0xff]
    %v1558 = vld [vmem:[%s1517 + $0x210] sm:$0xff]
    %v1559 = vld [vmem:[%s1517 + $0x218] sm:$0xff]
    %v1560 = vld [vmem:[%s1517 + $0x228] sm:$0xff]
    %v1561 = vld [vmem:[%s1517 + $0x230] sm:$0xff]
    %v1562 = vld [vmem:[%s1517 + $0x240] sm:$0xff]
    %v1563 = vld [vmem:[%s1517 + $0x248] sm:$0xff]
    %v1564 = vld [vmem:[%s1517 + $0x258] sm:$0xff]
    %v1565 = vld [vmem:[%s1517 + $0x260] sm:$0xff]
    %v1566 = vld [vmem:[%s1517 + $0x270] sm:$0xff]
    %v1567 = vld [vmem:[%s1517 + $0x278] sm:$0xff]
    %v1568 = vld [vmem:[%s1517 + $0x288] sm:$0xff]
    %v1569 = vld [vmem:[%s1517 + $0x290] sm:$0xff]
    %v1570 = vld [vmem:[%s1517 + $0x2a0] sm:$0xff]
    %v1571 = vld [vmem:[%s1517 + $0x2a8] sm:$0xff]
    %v1572 = vld [vmem:[%s1517 + $0x2b8] sm:$0xff]
    %v1573 = vld [vmem:[%s1517 + $0x2c0] sm:$0xff]
    %v1574 = vld [vmem:[%s1517 + $0x2d0] sm:$0xff]
    %v1575 = vld [vmem:[%s1517 + $0x2d8] sm:$0xff]
    %v1576 = vld [vmem:[%s1517 + $0x2e8] sm:$0xff]
    %v1577 = vld [vmem:[%s1517 + $0x2f0] sm:$0xff]
    %v1578 = vld [vmem:[%s1517 + $0x300] sm:$0xff]
    %v1579 = vld [vmem:[%s1517 + $0x308] sm:$0xff]
    %v1580 = vld [vmem:[%s1517 + $0x318] sm:$0xff]
    %v1581 = vld [vmem:[%s1517 + $0x320] sm:$0xff]
    %s1582 = scalar_lea.vmem %s1, 3
    %v1583 = vld [vmem:[%s1582] sm:$0x1]
    %1585 = vset.pattern.permute.xlu0 0
    %1586 = vperm.xlu0 %1585, %v1518
    %v1587 = vpop.permute.xlu0 %1586
    %1590 = vset.pattern.permute.xlu0 0
    %1591 = vperm.xlu0 %1590, %v1519
    %v1592 = vpop.permute.xlu0 %1591
    %1595 = vset.pattern.permute.xlu0 0
    %1596 = vperm.xlu0 %1595, %v1520
    %v1597 = vpop.permute.xlu0 %1596
    %1600 = vset.pattern.permute.xlu0 0
    %1601 = vperm.xlu0 %1600, %v1521
    %v1602 = vpop.permute.xlu0 %1601
    %1605 = vset.pattern.permute.xlu0 0
    %1606 = vperm.xlu0 %1605, %v1522
    %v1607 = vpop.permute.xlu0 %1606
    %1610 = vset.pattern.permute.xlu0 0
    %1611 = vperm.xlu0 %1610, %v1523
    %v1612 = vpop.permute.xlu0 %1611
    %1615 = vset.pattern.permute.xlu0 0
    %1616 = vperm.xlu0 %1615, %v1524
    %v1617 = vpop.permute.xlu0 %1616
    %1620 = vset.pattern.permute.xlu0 0
    %1621 = vperm.xlu0 %1620, %v1525
    %v1622 = vpop.permute.xlu0 %1621
    %1625 = vset.pattern.permute.xlu0 0
    %1626 = vperm.xlu0 %1625, %v1526
    %v1627 = vpop.permute.xlu0 %1626
    %1630 = vset.pattern.permute.xlu0 0
    %1631 = vperm.xlu0 %1630, %v1527
    %v1632 = vpop.permute.xlu0 %1631
    %1635 = vset.pattern.permute.xlu0 0
    %1636 = vperm.xlu0 %1635, %v1528
    %v1637 = vpop.permute.xlu0 %1636
    %1640 = vset.pattern.permute.xlu0 0
    %1641 = vperm.xlu0 %1640, %v1529
    %v1642 = vpop.permute.xlu0 %1641
    %1645 = vset.pattern.permute.xlu0 0
    %1646 = vperm.xlu0 %1645, %v1530
    %v1647 = vpop.permute.xlu0 %1646
    %1650 = vset.pattern.permute.xlu0 0
    %1651 = vperm.xlu0 %1650, %v1531
    %v1652 = vpop.permute.xlu0 %1651
    %1655 = vset.pattern.permute.xlu0 0
    %1656 = vperm.xlu0 %1655, %v1532
    %v1657 = vpop.permute.xlu0 %1656
    %1660 = vset.pattern.permute.xlu0 0
    %1661 = vperm.xlu0 %1660, %v1533
    %v1662 = vpop.permute.xlu0 %1661
    %1665 = vset.pattern.permute.xlu0 0
    %1666 = vperm.xlu0 %1665, %v1534
    %v1667 = vpop.permute.xlu0 %1666
    %1670 = vset.pattern.permute.xlu0 0
    %1671 = vperm.xlu0 %1670, %v1535
    %v1672 = vpop.permute.xlu0 %1671
    %1675 = vset.pattern.permute.xlu0 0
    %1676 = vperm.xlu0 %1675, %v1536
    %v1677 = vpop.permute.xlu0 %1676
    %1680 = vset.pattern.permute.xlu0 0
    %1681 = vperm.xlu0 %1680, %v1537
    %v1682 = vpop.permute.xlu0 %1681
    %1685 = vset.pattern.permute.xlu0 0
    %1686 = vperm.xlu0 %1685, %v1538
    %v1687 = vpop.permute.xlu0 %1686
    %1690 = vset.pattern.permute.xlu0 0
    %1691 = vperm.xlu0 %1690, %v1539
    %v1692 = vpop.permute.xlu0 %1691
    %1695 = vset.pattern.permute.xlu0 0
    %1696 = vperm.xlu0 %1695, %v1540
    %v1697 = vpop.permute.xlu0 %1696
    %1700 = vset.pattern.permute.xlu0 0
    %1701 = vperm.xlu0 %1700, %v1541
    %v1702 = vpop.permute.xlu0 %1701
    %1705 = vset.pattern.permute.xlu0 0
    %1706 = vperm.xlu0 %1705, %v1542
    %v1707 = vpop.permute.xlu0 %1706
    %1710 = vset.pattern.permute.xlu0 0
    %1711 = vperm.xlu0 %1710, %v1543
    %v1712 = vpop.permute.xlu0 %1711
    %1715 = vset.pattern.permute.xlu0 0
    %1716 = vperm.xlu0 %1715, %v1544
    %v1717 = vpop.permute.xlu0 %1716
    %1720 = vset.pattern.permute.xlu0 0
    %1721 = vperm.xlu0 %1720, %v1545
    %v1722 = vpop.permute.xlu0 %1721
    %1725 = vset.pattern.permute.xlu0 0
    %1726 = vperm.xlu0 %1725, %v1546
    %v1727 = vpop.permute.xlu0 %1726
    %1730 = vset.pattern.permute.xlu0 0
    %1731 = vperm.xlu0 %1730, %v1547
    %v1732 = vpop.permute.xlu0 %1731
    %1735 = vset.pattern.permute.xlu0 0
    %1736 = vperm.xlu0 %1735, %v1548
    %v1737 = vpop.permute.xlu0 %1736
    %1740 = vset.pattern.permute.xlu0 0
    %1741 = vperm.xlu0 %1740, %v1549
    %v1742 = vpop.permute.xlu0 %1741
    %1745 = vset.pattern.permute.xlu0 0
    %1746 = vperm.xlu0 %1745, %v1550
    %v1747 = vpop.permute.xlu0 %1746
    %1750 = vset.pattern.permute.xlu0 0
    %1751 = vperm.xlu0 %1750, %v1551
    %v1752 = vpop.permute.xlu0 %1751
    %1755 = vset.pattern.permute.xlu0 0
    %1756 = vperm.xlu0 %1755, %v1552
    %v1757 = vpop.permute.xlu0 %1756
    %1760 = vset.pattern.permute.xlu0 0
    %1761 = vperm.xlu0 %1760, %v1553
    %v1762 = vpop.permute.xlu0 %1761
    %1765 = vset.pattern.permute.xlu0 0
    %1766 = vperm.xlu0 %1765, %v1554
    %v1767 = vpop.permute.xlu0 %1766
    %1770 = vset.pattern.permute.xlu0 0
    %1771 = vperm.xlu0 %1770, %v1555
    %v1772 = vpop.permute.xlu0 %1771
    %1775 = vset.pattern.permute.xlu0 0
    %1776 = vperm.xlu0 %1775, %v1556
    %v1777 = vpop.permute.xlu0 %1776
    %1780 = vset.pattern.permute.xlu0 0
    %1781 = vperm.xlu0 %1780, %v1557
    %v1782 = vpop.permute.xlu0 %1781
    %1785 = vset.pattern.permute.xlu0 0
    %1786 = vperm.xlu0 %1785, %v1558
    %v1787 = vpop.permute.xlu0 %1786
    %1790 = vset.pattern.permute.xlu0 0
    %1791 = vperm.xlu0 %1790, %v1559
    %v1792 = vpop.permute.xlu0 %1791
    %1795 = vset.pattern.permute.xlu0 0
    %1796 = vperm.xlu0 %1795, %v1560
    %v1797 = vpop.permute.xlu0 %1796
    %1800 = vset.pattern.permute.xlu0 0
    %1801 = vperm.xlu0 %1800, %v1561
    %v1802 = vpop.permute.xlu0 %1801
    %1805 = vset.pattern.permute.xlu0 0
    %1806 = vperm.xlu0 %1805, %v1562
    %v1807 = vpop.permute.xlu0 %1806
    %1810 = vset.pattern.permute.xlu0 0
    %1811 = vperm.xlu0 %1810, %v1563
    %v1812 = vpop.permute.xlu0 %1811
    %1815 = vset.pattern.permute.xlu0 0
    %1816 = vperm.xlu0 %1815, %v1564
    %v1817 = vpop.permute.xlu0 %1816
    %1820 = vset.pattern.permute.xlu0 0
    %1821 = vperm.xlu0 %1820, %v1565
    %v1822 = vpop.permute.xlu0 %1821
    %1825 = vset.pattern.permute.xlu0 0
    %1826 = vperm.xlu0 %1825, %v1566
    %v1827 = vpop.permute.xlu0 %1826
    %1830 = vset.pattern.permute.xlu0 0
    %1831 = vperm.xlu0 %1830, %v1567
    %v1832 = vpop.permute.xlu0 %1831
    %1835 = vset.pattern.permute.xlu0 0
    %1836 = vperm.xlu0 %1835, %v1568
    %v1837 = vpop.permute.xlu0 %1836
    %1840 = vset.pattern.permute.xlu0 0
    %1841 = vperm.xlu0 %1840, %v1569
    %v1842 = vpop.permute.xlu0 %1841
    %1845 = vset.pattern.permute.xlu0 0
    %1846 = vperm.xlu0 %1845, %v1570
    %v1847 = vpop.permute.xlu0 %1846
    %1850 = vset.pattern.permute.xlu0 0
    %1851 = vperm.xlu0 %1850, %v1571
    %v1852 = vpop.permute.xlu0 %1851
    %1855 = vset.pattern.permute.xlu0 0
    %1856 = vperm.xlu0 %1855, %v1572
    %v1857 = vpop.permute.xlu0 %1856
    %1860 = vset.pattern.permute.xlu0 0
    %1861 = vperm.xlu0 %1860, %v1573
    %v1862 = vpop.permute.xlu0 %1861
    %1865 = vset.pattern.permute.xlu0 0
    %1866 = vperm.xlu0 %1865, %v1574
    %v1867 = vpop.permute.xlu0 %1866
    %1870 = vset.pattern.permute.xlu0 0
    %1871 = vperm.xlu0 %1870, %v1575
    %v1872 = vpop.permute.xlu0 %1871
    %1875 = vset.pattern.permute.xlu0 0
    %1876 = vperm.xlu0 %1875, %v1576
    %v1877 = vpop.permute.xlu0 %1876
    %1880 = vset.pattern.permute.xlu0 0
    %1881 = vperm.xlu0 %1880, %v1577
    %v1882 = vpop.permute.xlu0 %1881
    %1885 = vset.pattern.permute.xlu0 0
    %1886 = vperm.xlu0 %1885, %v1578
    %v1887 = vpop.permute.xlu0 %1886
    %1890 = vset.pattern.permute.xlu0 0
    %1891 = vperm.xlu0 %1890, %v1579
    %v1892 = vpop.permute.xlu0 %1891
    %1895 = vset.pattern.permute.xlu0 0
    %1896 = vperm.xlu0 %1895, %v1580
    %v1897 = vpop.permute.xlu0 %1896
    %1900 = vset.pattern.permute.xlu0 0
    %1901 = vperm.xlu0 %1900, %v1581
    %v1902 = vpop.permute.xlu0 %1901
    %v1905 = vlaneseq
    %v1906 = vshrl.u32 %v1905, 7
    %v1907 = vsub.s32 0, %v1906
    %v1908 = vrot.slane %v1583, %v1907
    %v1910 = vmul.f32 %v1587, %v1908
    %v1911 = vmul.f32 %v1592, %v1908
    %v1912 = vmul.f32 %v1597, %v1908
    %v1913 = vmul.f32 %v1602, %v1908
    %v1914 = vmul.f32 %v1607, %v1908
    %v1915 = vmul.f32 %v1612, %v1908
    %v1916 = vmul.f32 %v1617, %v1908
    %v1917 = vmul.f32 %v1622, %v1908
    %v1918 = vmul.f32 %v1627, %v1908
    %v1919 = vmul.f32 %v1632, %v1908
    %v1920 = vmul.f32 %v1637, %v1908
    %v1921 = vmul.f32 %v1642, %v1908
    %v1922 = vmul.f32 %v1647, %v1908
    %v1923 = vmul.f32 %v1652, %v1908
    %v1924 = vmul.f32 %v1657, %v1908
    %v1925 = vmul.f32 %v1662, %v1908
    %v1926 = vmul.f32 %v1667, %v1908
    %v1927 = vmul.f32 %v1672, %v1908
    %v1928 = vmul.f32 %v1677, %v1908
    %v1929 = vmul.f32 %v1682, %v1908
    %v1930 = vmul.f32 %v1687, %v1908
    %v1931 = vmul.f32 %v1692, %v1908
    %v1932 = vmul.f32 %v1697, %v1908
    %v1933 = vmul.f32 %v1702, %v1908
    %v1934 = vmul.f32 %v1707, %v1908
    %v1935 = vmul.f32 %v1712, %v1908
    %v1936 = vmul.f32 %v1717, %v1908
    %v1937 = vmul.f32 %v1722, %v1908
    %v1938 = vmul.f32 %v1727, %v1908
    %v1939 = vmul.f32 %v1732, %v1908
    %v1940 = vmul.f32 %v1737, %v1908
    %v1941 = vmul.f32 %v1742, %v1908
    %v1942 = vmul.f32 %v1747, %v1908
    %v1943 = vmul.f32 %v1752, %v1908
    %v1944 = vmul.f32 %v1757, %v1908
    %v1945 = vmul.f32 %v1762, %v1908
    %v1946 = vmul.f32 %v1767, %v1908
    %v1947 = vmul.f32 %v1772, %v1908
    %v1948 = vmul.f32 %v1777, %v1908
    %v1949 = vmul.f32 %v1782, %v1908
    %v1950 = vmul.f32 %v1787, %v1908
    %v1951 = vmul.f32 %v1792, %v1908
    %v1952 = vmul.f32 %v1797, %v1908
    %v1953 = vmul.f32 %v1802, %v1908
    %v1954 = vmul.f32 %v1807, %v1908
    %v1955 = vmul.f32 %v1812, %v1908
    %v1956 = vmul.f32 %v1817, %v1908
    %v1957 = vmul.f32 %v1822, %v1908
    %v1958 = vmul.f32 %v1827, %v1908
    %v1959 = vmul.f32 %v1832, %v1908
    %v1960 = vmul.f32 %v1837, %v1908
    %v1961 = vmul.f32 %v1842, %v1908
    %v1962 = vmul.f32 %v1847, %v1908
    %v1963 = vmul.f32 %v1852, %v1908
    %v1964 = vmul.f32 %v1857, %v1908
    %v1965 = vmul.f32 %v1862, %v1908
    %v1966 = vmul.f32 %v1867, %v1908
    %v1967 = vmul.f32 %v1872, %v1908
    %v1968 = vmul.f32 %v1877, %v1908
    %v1969 = vmul.f32 %v1882, %v1908
    %v1970 = vmul.f32 %v1887, %v1908
    %v1971 = vmul.f32 %v1892, %v1908
    %v1972 = vmul.f32 %v1897, %v1908
    %v1973 = vmul.f32 %v1902, %v1908
    %v1974 = vadd.f32 %v1453, %v1910
    %v1975 = vadd.f32 %v1454, %v1911
    %v1976 = vadd.f32 %v1455, %v1912
    %v1977 = vadd.f32 %v1456, %v1913
    %v1978 = vadd.f32 %v1457, %v1914
    %v1979 = vadd.f32 %v1458, %v1915
    %v1980 = vadd.f32 %v1459, %v1916
    %v1981 = vadd.f32 %v1460, %v1917
    %v1982 = vadd.f32 %v1461, %v1918
    %v1983 = vadd.f32 %v1462, %v1919
    %v1984 = vadd.f32 %v1463, %v1920
    %v1985 = vadd.f32 %v1464, %v1921
    %v1986 = vadd.f32 %v1465, %v1922
    %v1987 = vadd.f32 %v1466, %v1923
    %v1988 = vadd.f32 %v1467, %v1924
    %v1989 = vadd.f32 %v1468, %v1925
    %v1990 = vadd.f32 %v1469, %v1926
    %v1991 = vadd.f32 %v1470, %v1927
    %v1992 = vadd.f32 %v1471, %v1928
    %v1993 = vadd.f32 %v1472, %v1929
    %v1994 = vadd.f32 %v1473, %v1930
    %v1995 = vadd.f32 %v1474, %v1931
    %v1996 = vadd.f32 %v1475, %v1932
    %v1997 = vadd.f32 %v1476, %v1933
    %v1998 = vadd.f32 %v1477, %v1934
    %v1999 = vadd.f32 %v1478, %v1935
    %v2000 = vadd.f32 %v1479, %v1936
    %v2001 = vadd.f32 %v1480, %v1937
    %v2002 = vadd.f32 %v1481, %v1938
    %v2003 = vadd.f32 %v1482, %v1939
    %v2004 = vadd.f32 %v1483, %v1940
    %v2005 = vadd.f32 %v1484, %v1941
    %v2006 = vadd.f32 %v1485, %v1942
    %v2007 = vadd.f32 %v1486, %v1943
    %v2008 = vadd.f32 %v1487, %v1944
    %v2009 = vadd.f32 %v1488, %v1945
    %v2010 = vadd.f32 %v1489, %v1946
    %v2011 = vadd.f32 %v1490, %v1947
    %v2012 = vadd.f32 %v1491, %v1948
    %v2013 = vadd.f32 %v1492, %v1949
    %v2014 = vadd.f32 %v1493, %v1950
    %v2015 = vadd.f32 %v1494, %v1951
    %v2016 = vadd.f32 %v1495, %v1952
    %v2017 = vadd.f32 %v1496, %v1953
    %v2018 = vadd.f32 %v1497, %v1954
    %v2019 = vadd.f32 %v1498, %v1955
    %v2020 = vadd.f32 %v1499, %v1956
    %v2021 = vadd.f32 %v1500, %v1957
    %v2022 = vadd.f32 %v1501, %v1958
    %v2023 = vadd.f32 %v1502, %v1959
    %v2024 = vadd.f32 %v1503, %v1960
    %v2025 = vadd.f32 %v1504, %v1961
    %v2026 = vadd.f32 %v1505, %v1962
    %v2027 = vadd.f32 %v1506, %v1963
    %v2028 = vadd.f32 %v1507, %v1964
    %v2029 = vadd.f32 %v1508, %v1965
    %v2030 = vadd.f32 %v1509, %v1966
    %v2031 = vadd.f32 %v1510, %v1967
    %v2032 = vadd.f32 %v1511, %v1968
    %v2033 = vadd.f32 %v1512, %v1969
    %v2034 = vadd.f32 %v1513, %v1970
    %v2035 = vadd.f32 %v1514, %v1971
    %v2036 = vadd.f32 %v1515, %v1972
    %v2037 = vadd.f32 %v1516, %v1973
    %v2038 = vld [vmem:[%s1517 + $0x1] sm:$0xff]
    %v2039 = vld [vmem:[%s1517 + $0x9] sm:$0xff]
    %v2040 = vld [vmem:[%s1517 + $0x19] sm:$0xff]
    %v2041 = vld [vmem:[%s1517 + $0x21] sm:$0xff]
    %v2042 = vld [vmem:[%s1517 + $0x31] sm:$0xff]
    %v2043 = vld [vmem:[%s1517 + $0x39] sm:$0xff]
    %v2044 = vld [vmem:[%s1517 + $0x49] sm:$0xff]
    %v2045 = vld [vmem:[%s1517 + $0x51] sm:$0xff]
    %v2046 = vld [vmem:[%s1517 + $0x61] sm:$0xff]
    %v2047 = vld [vmem:[%s1517 + $0x69] sm:$0xff]
    %v2048 = vld [vmem:[%s1517 + $0x79] sm:$0xff]
    %v2049 = vld [vmem:[%s1517 + $0x81] sm:$0xff]
    %v2050 = vld [vmem:[%s1517 + $0x91] sm:$0xff]
    %v2051 = vld [vmem:[%s1517 + $0x99] sm:$0xff]
    %v2052 = vld [vmem:[%s1517 + $0xa9] sm:$0xff]
    %v2053 = vld [vmem:[%s1517 + $0xb1] sm:$0xff]
    %v2054 = vld [vmem:[%s1517 + $0xc1] sm:$0xff]
    %v2055 = vld [vmem:[%s1517 + $0xc9] sm:$0xff]
    %v2056 = vld [vmem:[%s1517 + $0xd9] sm:$0xff]
    %v2057 = vld [vmem:[%s1517 + $0xe1] sm:$0xff]
    %v2058 = vld [vmem:[%s1517 + $0xf1] sm:$0xff]
    %v2059 = vld [vmem:[%s1517 + $0xf9] sm:$0xff]
    %v2060 = vld [vmem:[%s1517 + $0x109] sm:$0xff]
    %v2061 = vld [vmem:[%s1517 + $0x111] sm:$0xff]
    %v2062 = vld [vmem:[%s1517 + $0x121] sm:$0xff]
    %v2063 = vld [vmem:[%s1517 + $0x129] sm:$0xff]
    %v2064 = vld [vmem:[%s1517 + $0x139] sm:$0xff]
    %v2065 = vld [vmem:[%s1517 + $0x141] sm:$0xff]
    %v2066 = vld [vmem:[%s1517 + $0x151] sm:$0xff]
    %v2067 = vld [vmem:[%s1517 + $0x159] sm:$0xff]
    %v2068 = vld [vmem:[%s1517 + $0x169] sm:$0xff]
    %v2069 = vld [vmem:[%s1517 + $0x171] sm:$0xff]
    %v2070 = vld [vmem:[%s1517 + $0x1b1] sm:$0xff]
    %v2071 = vld [vmem:[%s1517 + $0x1b9] sm:$0xff]
    %v2072 = vld [vmem:[%s1517 + $0x1c9] sm:$0xff]
    %v2073 = vld [vmem:[%s1517 + $0x1d1] sm:$0xff]
    %v2074 = vld [vmem:[%s1517 + $0x1e1] sm:$0xff]
    %v2075 = vld [vmem:[%s1517 + $0x1e9] sm:$0xff]
    %v2076 = vld [vmem:[%s1517 + $0x1f9] sm:$0xff]
    %v2077 = vld [vmem:[%s1517 + $0x201] sm:$0xff]
    %v2078 = vld [vmem:[%s1517 + $0x211] sm:$0xff]
    %v2079 = vld [vmem:[%s1517 + $0x219] sm:$0xff]
    %v2080 = vld [vmem:[%s1517 + $0x229] sm:$0xff]
    %v2081 = vld [vmem:[%s1517 + $0x231] sm:$0xff]
    %v2082 = vld [vmem:[%s1517 + $0x241] sm:$0xff]
    %v2083 = vld [vmem:[%s1517 + $0x249] sm:$0xff]
    %v2084 = vld [vmem:[%s1517 + $0x259] sm:$0xff]
    %v2085 = vld [vmem:[%s1517 + $0x261] sm:$0xff]
    %v2086 = vld [vmem:[%s1517 + $0x271] sm:$0xff]
    %v2087 = vld [vmem:[%s1517 + $0x279] sm:$0xff]
    %v2088 = vld [vmem:[%s1517 + $0x289] sm:$0xff]
    %v2089 = vld [vmem:[%s1517 + $0x291] sm:$0xff]
    %v2090 = vld [vmem:[%s1517 + $0x2a1] sm:$0xff]
    %v2091 = vld [vmem:[%s1517 + $0x2a9] sm:$0xff]
    %v2092 = vld [vmem:[%s1517 + $0x2b9] sm:$0xff]
    %v2093 = vld [vmem:[%s1517 + $0x2c1] sm:$0xff]
    %v2094 = vld [vmem:[%s1517 + $0x2d1] sm:$0xff]
    %v2095 = vld [vmem:[%s1517 + $0x2d9] sm:$0xff]
    %v2096 = vld [vmem:[%s1517 + $0x2e9] sm:$0xff]
    %v2097 = vld [vmem:[%s1517 + $0x2f1] sm:$0xff]
    %v2098 = vld [vmem:[%s1517 + $0x301] sm:$0xff]
    %v2099 = vld [vmem:[%s1517 + $0x309] sm:$0xff]
    %v2100 = vld [vmem:[%s1517 + $0x319] sm:$0xff]
    %v2101 = vld [vmem:[%s1517 + $0x321] sm:$0xff]
    %s2102 = scalar_lea.vmem %s1, 4
    %v2103 = vld [vmem:[%s2102] sm:$0x1]
    %2105 = vset.pattern.permute.xlu0 0
    %2106 = vperm.xlu0 %2105, %v2038
    %v2107 = vpop.permute.xlu0 %2106
    %2110 = vset.pattern.permute.xlu0 0
    %2111 = vperm.xlu0 %2110, %v2039
    %v2112 = vpop.permute.xlu0 %2111
    %2115 = vset.pattern.permute.xlu0 0
    %2116 = vperm.xlu0 %2115, %v2040
    %v2117 = vpop.permute.xlu0 %2116
    %2120 = vset.pattern.permute.xlu0 0
    %2121 = vperm.xlu0 %2120, %v2041
    %v2122 = vpop.permute.xlu0 %2121
    %2125 = vset.pattern.permute.xlu0 0
    %2126 = vperm.xlu0 %2125, %v2042
    %v2127 = vpop.permute.xlu0 %2126
    %2130 = vset.pattern.permute.xlu0 0
    %2131 = vperm.xlu0 %2130, %v2043
    %v2132 = vpop.permute.xlu0 %2131
    %2135 = vset.pattern.permute.xlu0 0
    %2136 = vperm.xlu0 %2135, %v2044
    %v2137 = vpop.permute.xlu0 %2136
    %2140 = vset.pattern.permute.xlu0 0
    %2141 = vperm.xlu0 %2140, %v2045
    %v2142 = vpop.permute.xlu0 %2141
    %2145 = vset.pattern.permute.xlu0 0
    %2146 = vperm.xlu0 %2145, %v2046
    %v2147 = vpop.permute.xlu0 %2146
    %2150 = vset.pattern.permute.xlu0 0
    %2151 = vperm.xlu0 %2150, %v2047
    %v2152 = vpop.permute.xlu0 %2151
    %2155 = vset.pattern.permute.xlu0 0
    %2156 = vperm.xlu0 %2155, %v2048
    %v2157 = vpop.permute.xlu0 %2156
    %2160 = vset.pattern.permute.xlu0 0
    %2161 = vperm.xlu0 %2160, %v2049
    %v2162 = vpop.permute.xlu0 %2161
    %2165 = vset.pattern.permute.xlu0 0
    %2166 = vperm.xlu0 %2165, %v2050
    %v2167 = vpop.permute.xlu0 %2166
    %2170 = vset.pattern.permute.xlu0 0
    %2171 = vperm.xlu0 %2170, %v2051
    %v2172 = vpop.permute.xlu0 %2171
    %2175 = vset.pattern.permute.xlu0 0
    %2176 = vperm.xlu0 %2175, %v2052
    %v2177 = vpop.permute.xlu0 %2176
    %2180 = vset.pattern.permute.xlu0 0
    %2181 = vperm.xlu0 %2180, %v2053
    %v2182 = vpop.permute.xlu0 %2181
    %2185 = vset.pattern.permute.xlu0 0
    %2186 = vperm.xlu0 %2185, %v2054
    %v2187 = vpop.permute.xlu0 %2186
    %2190 = vset.pattern.permute.xlu0 0
    %2191 = vperm.xlu0 %2190, %v2055
    %v2192 = vpop.permute.xlu0 %2191
    %2195 = vset.pattern.permute.xlu0 0
    %2196 = vperm.xlu0 %2195, %v2056
    %v2197 = vpop.permute.xlu0 %2196
    %2200 = vset.pattern.permute.xlu0 0
    %2201 = vperm.xlu0 %2200, %v2057
    %v2202 = vpop.permute.xlu0 %2201
    %2205 = vset.pattern.permute.xlu0 0
    %2206 = vperm.xlu0 %2205, %v2058
    %v2207 = vpop.permute.xlu0 %2206
    %2210 = vset.pattern.permute.xlu0 0
    %2211 = vperm.xlu0 %2210, %v2059
    %v2212 = vpop.permute.xlu0 %2211
    %2215 = vset.pattern.permute.xlu0 0
    %2216 = vperm.xlu0 %2215, %v2060
    %v2217 = vpop.permute.xlu0 %2216
    %2220 = vset.pattern.permute.xlu0 0
    %2221 = vperm.xlu0 %2220, %v2061
    %v2222 = vpop.permute.xlu0 %2221
    %2225 = vset.pattern.permute.xlu0 0
    %2226 = vperm.xlu0 %2225, %v2062
    %v2227 = vpop.permute.xlu0 %2226
    %2230 = vset.pattern.permute.xlu0 0
    %2231 = vperm.xlu0 %2230, %v2063
    %v2232 = vpop.permute.xlu0 %2231
    %2235 = vset.pattern.permute.xlu0 0
    %2236 = vperm.xlu0 %2235, %v2064
    %v2237 = vpop.permute.xlu0 %2236
    %2240 = vset.pattern.permute.xlu0 0
    %2241 = vperm.xlu0 %2240, %v2065
    %v2242 = vpop.permute.xlu0 %2241
    %2245 = vset.pattern.permute.xlu0 0
    %2246 = vperm.xlu0 %2245, %v2066
    %v2247 = vpop.permute.xlu0 %2246
    %2250 = vset.pattern.permute.xlu0 0
    %2251 = vperm.xlu0 %2250, %v2067
    %v2252 = vpop.permute.xlu0 %2251
    %2255 = vset.pattern.permute.xlu0 0
    %2256 = vperm.xlu0 %2255, %v2068
    %v2257 = vpop.permute.xlu0 %2256
    %2260 = vset.pattern.permute.xlu0 0
    %2261 = vperm.xlu0 %2260, %v2069
    %v2262 = vpop.permute.xlu0 %2261
    %2265 = vset.pattern.permute.xlu0 0
    %2266 = vperm.xlu0 %2265, %v2070
    %v2267 = vpop.permute.xlu0 %2266
    %2270 = vset.pattern.permute.xlu0 0
    %2271 = vperm.xlu0 %2270, %v2071
    %v2272 = vpop.permute.xlu0 %2271
    %2275 = vset.pattern.permute.xlu0 0
    %2276 = vperm.xlu0 %2275, %v2072
    %v2277 = vpop.permute.xlu0 %2276
    %2280 = vset.pattern.permute.xlu0 0
    %2281 = vperm.xlu0 %2280, %v2073
    %v2282 = vpop.permute.xlu0 %2281
    %2285 = vset.pattern.permute.xlu0 0
    %2286 = vperm.xlu0 %2285, %v2074
    %v2287 = vpop.permute.xlu0 %2286
    %2290 = vset.pattern.permute.xlu0 0
    %2291 = vperm.xlu0 %2290, %v2075
    %v2292 = vpop.permute.xlu0 %2291
    %2295 = vset.pattern.permute.xlu0 0
    %2296 = vperm.xlu0 %2295, %v2076
    %v2297 = vpop.permute.xlu0 %2296
    %2300 = vset.pattern.permute.xlu0 0
    %2301 = vperm.xlu0 %2300, %v2077
    %v2302 = vpop.permute.xlu0 %2301
    %2305 = vset.pattern.permute.xlu0 0
    %2306 = vperm.xlu0 %2305, %v2078
    %v2307 = vpop.permute.xlu0 %2306
    %2310 = vset.pattern.permute.xlu0 0
    %2311 = vperm.xlu0 %2310, %v2079
    %v2312 = vpop.permute.xlu0 %2311
    %2315 = vset.pattern.permute.xlu0 0
    %2316 = vperm.xlu0 %2315, %v2080
    %v2317 = vpop.permute.xlu0 %2316
    %2320 = vset.pattern.permute.xlu0 0
    %2321 = vperm.xlu0 %2320, %v2081
    %v2322 = vpop.permute.xlu0 %2321
    %2325 = vset.pattern.permute.xlu0 0
    %2326 = vperm.xlu0 %2325, %v2082
    %v2327 = vpop.permute.xlu0 %2326
    %2330 = vset.pattern.permute.xlu0 0
    %2331 = vperm.xlu0 %2330, %v2083
    %v2332 = vpop.permute.xlu0 %2331
    %2335 = vset.pattern.permute.xlu0 0
    %2336 = vperm.xlu0 %2335, %v2084
    %v2337 = vpop.permute.xlu0 %2336
    %2340 = vset.pattern.permute.xlu0 0
    %2341 = vperm.xlu0 %2340, %v2085
    %v2342 = vpop.permute.xlu0 %2341
    %2345 = vset.pattern.permute.xlu0 0
    %2346 = vperm.xlu0 %2345, %v2086
    %v2347 = vpop.permute.xlu0 %2346
    %2350 = vset.pattern.permute.xlu0 0
    %2351 = vperm.xlu0 %2350, %v2087
    %v2352 = vpop.permute.xlu0 %2351
    %2355 = vset.pattern.permute.xlu0 0
    %2356 = vperm.xlu0 %2355, %v2088
    %v2357 = vpop.permute.xlu0 %2356
    %2360 = vset.pattern.permute.xlu0 0
    %2361 = vperm.xlu0 %2360, %v2089
    %v2362 = vpop.permute.xlu0 %2361
    %2365 = vset.pattern.permute.xlu0 0
    %2366 = vperm.xlu0 %2365, %v2090
    %v2367 = vpop.permute.xlu0 %2366
    %2370 = vset.pattern.permute.xlu0 0
    %2371 = vperm.xlu0 %2370, %v2091
    %v2372 = vpop.permute.xlu0 %2371
    %2375 = vset.pattern.permute.xlu0 0
    %2376 = vperm.xlu0 %2375, %v2092
    %v2377 = vpop.permute.xlu0 %2376
    %2380 = vset.pattern.permute.xlu0 0
    %2381 = vperm.xlu0 %2380, %v2093
    %v2382 = vpop.permute.xlu0 %2381
    %2385 = vset.pattern.permute.xlu0 0
    %2386 = vperm.xlu0 %2385, %v2094
    %v2387 = vpop.permute.xlu0 %2386
    %2390 = vset.pattern.permute.xlu0 0
    %2391 = vperm.xlu0 %2390, %v2095
    %v2392 = vpop.permute.xlu0 %2391
    %2395 = vset.pattern.permute.xlu0 0
    %2396 = vperm.xlu0 %2395, %v2096
    %v2397 = vpop.permute.xlu0 %2396
    %2400 = vset.pattern.permute.xlu0 0
    %2401 = vperm.xlu0 %2400, %v2097
    %v2402 = vpop.permute.xlu0 %2401
    %2405 = vset.pattern.permute.xlu0 0
    %2406 = vperm.xlu0 %2405, %v2098
    %v2407 = vpop.permute.xlu0 %2406
    %2410 = vset.pattern.permute.xlu0 0
    %2411 = vperm.xlu0 %2410, %v2099
    %v2412 = vpop.permute.xlu0 %2411
    %2415 = vset.pattern.permute.xlu0 0
    %2416 = vperm.xlu0 %2415, %v2100
    %v2417 = vpop.permute.xlu0 %2416
    %2420 = vset.pattern.permute.xlu0 0
    %2421 = vperm.xlu0 %2420, %v2101
    %v2422 = vpop.permute.xlu0 %2421
    %v2425 = vlaneseq
    %v2426 = vshrl.u32 %v2425, 7
    %v2427 = vsub.s32 0, %v2426
    %v2428 = vrot.slane %v2103, %v2427
    %v2430 = vmul.f32 %v2107, %v2428
    %v2431 = vmul.f32 %v2112, %v2428
    %v2432 = vmul.f32 %v2117, %v2428
    %v2433 = vmul.f32 %v2122, %v2428
    %v2434 = vmul.f32 %v2127, %v2428
    %v2435 = vmul.f32 %v2132, %v2428
    %v2436 = vmul.f32 %v2137, %v2428
    %v2437 = vmul.f32 %v2142, %v2428
    %v2438 = vmul.f32 %v2147, %v2428
    %v2439 = vmul.f32 %v2152, %v2428
    %v2440 = vmul.f32 %v2157, %v2428
    %v2441 = vmul.f32 %v2162, %v2428
    %v2442 = vmul.f32 %v2167, %v2428
    %v2443 = vmul.f32 %v2172, %v2428
    %v2444 = vmul.f32 %v2177, %v2428
    %v2445 = vmul.f32 %v2182, %v2428
    %v2446 = vmul.f32 %v2187, %v2428
    %v2447 = vmul.f32 %v2192, %v2428
    %v2448 = vmul.f32 %v2197, %v2428
    %v2449 = vmul.f32 %v2202, %v2428
    %v2450 = vmul.f32 %v2207, %v2428
    %v2451 = vmul.f32 %v2212, %v2428
    %v2452 = vmul.f32 %v2217, %v2428
    %v2453 = vmul.f32 %v2222, %v2428
    %v2454 = vmul.f32 %v2227, %v2428
    %v2455 = vmul.f32 %v2232, %v2428
    %v2456 = vmul.f32 %v2237, %v2428
    %v2457 = vmul.f32 %v2242, %v2428
    %v2458 = vmul.f32 %v2247, %v2428
    %v2459 = vmul.f32 %v2252, %v2428
    %v2460 = vmul.f32 %v2257, %v2428
    %v2461 = vmul.f32 %v2262, %v2428
    %v2462 = vmul.f32 %v2267, %v2428
    %v2463 = vmul.f32 %v2272, %v2428
    %v2464 = vmul.f32 %v2277, %v2428
    %v2465 = vmul.f32 %v2282, %v2428
    %v2466 = vmul.f32 %v2287, %v2428
    %v2467 = vmul.f32 %v2292, %v2428
    %v2468 = vmul.f32 %v2297, %v2428
    %v2469 = vmul.f32 %v2302, %v2428
    %v2470 = vmul.f32 %v2307, %v2428
    %v2471 = vmul.f32 %v2312, %v2428
    %v2472 = vmul.f32 %v2317, %v2428
    %v2473 = vmul.f32 %v2322, %v2428
    %v2474 = vmul.f32 %v2327, %v2428
    %v2475 = vmul.f32 %v2332, %v2428
    %v2476 = vmul.f32 %v2337, %v2428
    %v2477 = vmul.f32 %v2342, %v2428
    %v2478 = vmul.f32 %v2347, %v2428
    %v2479 = vmul.f32 %v2352, %v2428
    %v2480 = vmul.f32 %v2357, %v2428
    %v2481 = vmul.f32 %v2362, %v2428
    %v2482 = vmul.f32 %v2367, %v2428
    %v2483 = vmul.f32 %v2372, %v2428
    %v2484 = vmul.f32 %v2377, %v2428
    %v2485 = vmul.f32 %v2382, %v2428
    %v2486 = vmul.f32 %v2387, %v2428
    %v2487 = vmul.f32 %v2392, %v2428
    %v2488 = vmul.f32 %v2397, %v2428
    %v2489 = vmul.f32 %v2402, %v2428
    %v2490 = vmul.f32 %v2407, %v2428
    %v2491 = vmul.f32 %v2412, %v2428
    %v2492 = vmul.f32 %v2417, %v2428
    %v2493 = vmul.f32 %v2422, %v2428
    %v2494 = vadd.f32 %v1974, %v2430
    %v2495 = vadd.f32 %v1975, %v2431
    %v2496 = vadd.f32 %v1976, %v2432
    %v2497 = vadd.f32 %v1977, %v2433
    %v2498 = vadd.f32 %v1978, %v2434
    %v2499 = vadd.f32 %v1979, %v2435
    %v2500 = vadd.f32 %v1980, %v2436
    %v2501 = vadd.f32 %v1981, %v2437
    %v2502 = vadd.f32 %v1982, %v2438
    %v2503 = vadd.f32 %v1983, %v2439
    %v2504 = vadd.f32 %v1984, %v2440
    %v2505 = vadd.f32 %v1985, %v2441
    %v2506 = vadd.f32 %v1986, %v2442
    %v2507 = vadd.f32 %v1987, %v2443
    %v2508 = vadd.f32 %v1988, %v2444
    %v2509 = vadd.f32 %v1989, %v2445
    %v2510 = vadd.f32 %v1990, %v2446
    %v2511 = vadd.f32 %v1991, %v2447
    %v2512 = vadd.f32 %v1992, %v2448
    %v2513 = vadd.f32 %v1993, %v2449
    %v2514 = vadd.f32 %v1994, %v2450
    %v2515 = vadd.f32 %v1995, %v2451
    %v2516 = vadd.f32 %v1996, %v2452
    %v2517 = vadd.f32 %v1997, %v2453
    %v2518 = vadd.f32 %v1998, %v2454
    %v2519 = vadd.f32 %v1999, %v2455
    %v2520 = vadd.f32 %v2000, %v2456
    %v2521 = vadd.f32 %v2001, %v2457
    %v2522 = vadd.f32 %v2002, %v2458
    %v2523 = vadd.f32 %v2003, %v2459
    %v2524 = vadd.f32 %v2004, %v2460
    %v2525 = vadd.f32 %v2005, %v2461
    %v2526 = vadd.f32 %v2006, %v2462
    %v2527 = vadd.f32 %v2007, %v2463
    %v2528 = vadd.f32 %v2008, %v2464
    %v2529 = vadd.f32 %v2009, %v2465
    %v2530 = vadd.f32 %v2010, %v2466
    %v2531 = vadd.f32 %v2011, %v2467
    %v2532 = vadd.f32 %v2012, %v2468
    %v2533 = vadd.f32 %v2013, %v2469
    %v2534 = vadd.f32 %v2014, %v2470
    %v2535 = vadd.f32 %v2015, %v2471
    %v2536 = vadd.f32 %v2016, %v2472
    %v2537 = vadd.f32 %v2017, %v2473
    %v2538 = vadd.f32 %v2018, %v2474
    %v2539 = vadd.f32 %v2019, %v2475
    %v2540 = vadd.f32 %v2020, %v2476
    %v2541 = vadd.f32 %v2021, %v2477
    %v2542 = vadd.f32 %v2022, %v2478
    %v2543 = vadd.f32 %v2023, %v2479
    %v2544 = vadd.f32 %v2024, %v2480
    %v2545 = vadd.f32 %v2025, %v2481
    %v2546 = vadd.f32 %v2026, %v2482
    %v2547 = vadd.f32 %v2027, %v2483
    %v2548 = vadd.f32 %v2028, %v2484
    %v2549 = vadd.f32 %v2029, %v2485
    %v2550 = vadd.f32 %v2030, %v2486
    %v2551 = vadd.f32 %v2031, %v2487
    %v2552 = vadd.f32 %v2032, %v2488
    %v2553 = vadd.f32 %v2033, %v2489
    %v2554 = vadd.f32 %v2034, %v2490
    %v2555 = vadd.f32 %v2035, %v2491
    %v2556 = vadd.f32 %v2036, %v2492
    %v2557 = vadd.f32 %v2037, %v2493
    %v2558 = vld [vmem:[%s1517 + $0x2] sm:$0xff]
    %v2559 = vld [vmem:[%s1517 + $0xa] sm:$0xff]
    %v2560 = vld [vmem:[%s1517 + $0x1a] sm:$0xff]
    %v2561 = vld [vmem:[%s1517 + $0x22] sm:$0xff]
    %v2562 = vld [vmem:[%s1517 + $0x32] sm:$0xff]
    %v2563 = vld [vmem:[%s1517 + $0x3a] sm:$0xff]
    %v2564 = vld [vmem:[%s1517 + $0x4a] sm:$0xff]
    %v2565 = vld [vmem:[%s1517 + $0x52] sm:$0xff]
    %v2566 = vld [vmem:[%s1517 + $0x62] sm:$0xff]
    %v2567 = vld [vmem:[%s1517 + $0x6a] sm:$0xff]
    %v2568 = vld [vmem:[%s1517 + $0x7a] sm:$0xff]
    %v2569 = vld [vmem:[%s1517 + $0x82] sm:$0xff]
    %v2570 = vld [vmem:[%s1517 + $0x92] sm:$0xff]
    %v2571 = vld [vmem:[%s1517 + $0x9a] sm:$0xff]
    %v2572 = vld [vmem:[%s1517 + $0xaa] sm:$0xff]
    %v2573 = vld [vmem:[%s1517 + $0xb2] sm:$0xff]
    %v2574 = vld [vmem:[%s1517 + $0xc2] sm:$0xff]
    %v2575 = vld [vmem:[%s1517 + $0xca] sm:$0xff]
    %v2576 = vld [vmem:[%s1517 + $0xda] sm:$0xff]
    %v2577 = vld [vmem:[%s1517 + $0xe2] sm:$0xff]
    %v2578 = vld [vmem:[%s1517 + $0xf2] sm:$0xff]
    %v2579 = vld [vmem:[%s1517 + $0xfa] sm:$0xff]
    %v2580 = vld [vmem:[%s1517 + $0x10a] sm:$0xff]
    %v2581 = vld [vmem:[%s1517 + $0x112] sm:$0xff]
    %v2582 = vld [vmem:[%s1517 + $0x122] sm:$0xff]
    %v2583 = vld [vmem:[%s1517 + $0x12a] sm:$0xff]
    %v2584 = vld [vmem:[%s1517 + $0x13a] sm:$0xff]
    %v2585 = vld [vmem:[%s1517 + $0x142] sm:$0xff]
    %v2586 = vld [vmem:[%s1517 + $0x152] sm:$0xff]
    %v2587 = vld [vmem:[%s1517 + $0x15a] sm:$0xff]
    %v2588 = vld [vmem:[%s1517 + $0x16a] sm:$0xff]
    %v2589 = vld [vmem:[%s1517 + $0x172] sm:$0xff]
    %v2590 = vld [vmem:[%s1517 + $0x1b2] sm:$0xff]
    %v2591 = vld [vmem:[%s1517 + $0x1ba] sm:$0xff]
    %v2592 = vld [vmem:[%s1517 + $0x1ca] sm:$0xff]
    %v2593 = vld [vmem:[%s1517 + $0x1d2] sm:$0xff]
    %v2594 = vld [vmem:[%s1517 + $0x1e2] sm:$0xff]
    %v2595 = vld [vmem:[%s1517 + $0x1ea] sm:$0xff]
    %v2596 = vld [vmem:[%s1517 + $0x1fa] sm:$0xff]
    %v2597 = vld [vmem:[%s1517 + $0x202] sm:$0xff]
    %v2598 = vld [vmem:[%s1517 + $0x212] sm:$0xff]
    %v2599 = vld [vmem:[%s1517 + $0x21a] sm:$0xff]
    %v2600 = vld [vmem:[%s1517 + $0x22a] sm:$0xff]
    %v2601 = vld [vmem:[%s1517 + $0x232] sm:$0xff]
    %v2602 = vld [vmem:[%s1517 + $0x242] sm:$0xff]
    %v2603 = vld [vmem:[%s1517 + $0x24a] sm:$0xff]
    %v2604 = vld [vmem:[%s1517 + $0x25a] sm:$0xff]
    %v2605 = vld [vmem:[%s1517 + $0x262] sm:$0xff]
    %v2606 = vld [vmem:[%s1517 + $0x272] sm:$0xff]
    %v2607 = vld [vmem:[%s1517 + $0x27a] sm:$0xff]
    %v2608 = vld [vmem:[%s1517 + $0x28a] sm:$0xff]
    %v2609 = vld [vmem:[%s1517 + $0x292] sm:$0xff]
    %v2610 = vld [vmem:[%s1517 + $0x2a2] sm:$0xff]
    %v2611 = vld [vmem:[%s1517 + $0x2aa] sm:$0xff]
    %v2612 = vld [vmem:[%s1517 + $0x2ba] sm:$0xff]
    %v2613 = vld [vmem:[%s1517 + $0x2c2] sm:$0xff]
    %v2614 = vld [vmem:[%s1517 + $0x2d2] sm:$0xff]
    %v2615 = vld [vmem:[%s1517 + $0x2da] sm:$0xff]
    %v2616 = vld [vmem:[%s1517 + $0x2ea] sm:$0xff]
    %v2617 = vld [vmem:[%s1517 + $0x2f2] sm:$0xff]
    %v2618 = vld [vmem:[%s1517 + $0x302] sm:$0xff]
    %v2619 = vld [vmem:[%s1517 + $0x30a] sm:$0xff]
    %v2620 = vld [vmem:[%s1517 + $0x31a] sm:$0xff]
    %v2621 = vld [vmem:[%s1517 + $0x322] sm:$0xff]
    %s2622 = scalar_lea.vmem %s1, 5
    %v2623 = vld [vmem:[%s2622] sm:$0x1]
    %2625 = vset.pattern.permute.xlu0 0
    %2626 = vperm.xlu0 %2625, %v2558
    %v2627 = vpop.permute.xlu0 %2626
    %2630 = vset.pattern.permute.xlu0 0
    %2631 = vperm.xlu0 %2630, %v2559
    %v2632 = vpop.permute.xlu0 %2631
    %2635 = vset.pattern.permute.xlu0 0
    %2636 = vperm.xlu0 %2635, %v2560
    %v2637 = vpop.permute.xlu0 %2636
    %2640 = vset.pattern.permute.xlu0 0
    %2641 = vperm.xlu0 %2640, %v2561
    %v2642 = vpop.permute.xlu0 %2641
    %2645 = vset.pattern.permute.xlu0 0
    %2646 = vperm.xlu0 %2645, %v2562
    %v2647 = vpop.permute.xlu0 %2646
    %2650 = vset.pattern.permute.xlu0 0
    %2651 = vperm.xlu0 %2650, %v2563
    %v2652 = vpop.permute.xlu0 %2651
    %2655 = vset.pattern.permute.xlu0 0
    %2656 = vperm.xlu0 %2655, %v2564
    %v2657 = vpop.permute.xlu0 %2656
    %2660 = vset.pattern.permute.xlu0 0
    %2661 = vperm.xlu0 %2660, %v2565
    %v2662 = vpop.permute.xlu0 %2661
    %2665 = vset.pattern.permute.xlu0 0
    %2666 = vperm.xlu0 %2665, %v2566
    %v2667 = vpop.permute.xlu0 %2666
    %2670 = vset.pattern.permute.xlu0 0
    %2671 = vperm.xlu0 %2670, %v2567
    %v2672 = vpop.permute.xlu0 %2671
    %2675 = vset.pattern.permute.xlu0 0
    %2676 = vperm.xlu0 %2675, %v2568
    %v2677 = vpop.permute.xlu0 %2676
    %2680 = vset.pattern.permute.xlu0 0
    %2681 = vperm.xlu0 %2680, %v2569
    %v2682 = vpop.permute.xlu0 %2681
    %2685 = vset.pattern.permute.xlu0 0
    %2686 = vperm.xlu0 %2685, %v2570
    %v2687 = vpop.permute.xlu0 %2686
    %2690 = vset.pattern.permute.xlu0 0
    %2691 = vperm.xlu0 %2690, %v2571
    %v2692 = vpop.permute.xlu0 %2691
    %2695 = vset.pattern.permute.xlu0 0
    %2696 = vperm.xlu0 %2695, %v2572
    %v2697 = vpop.permute.xlu0 %2696
    %2700 = vset.pattern.permute.xlu0 0
    %2701 = vperm.xlu0 %2700, %v2573
    %v2702 = vpop.permute.xlu0 %2701
    %2705 = vset.pattern.permute.xlu0 0
    %2706 = vperm.xlu0 %2705, %v2574
    %v2707 = vpop.permute.xlu0 %2706
    %2710 = vset.pattern.permute.xlu0 0
    %2711 = vperm.xlu0 %2710, %v2575
    %v2712 = vpop.permute.xlu0 %2711
    %2715 = vset.pattern.permute.xlu0 0
    %2716 = vperm.xlu0 %2715, %v2576
    %v2717 = vpop.permute.xlu0 %2716
    %2720 = vset.pattern.permute.xlu0 0
    %2721 = vperm.xlu0 %2720, %v2577
    %v2722 = vpop.permute.xlu0 %2721
    %2725 = vset.pattern.permute.xlu0 0
    %2726 = vperm.xlu0 %2725, %v2578
    %v2727 = vpop.permute.xlu0 %2726
    %2730 = vset.pattern.permute.xlu0 0
    %2731 = vperm.xlu0 %2730, %v2579
    %v2732 = vpop.permute.xlu0 %2731
    %2735 = vset.pattern.permute.xlu0 0
    %2736 = vperm.xlu0 %2735, %v2580
    %v2737 = vpop.permute.xlu0 %2736
    %2740 = vset.pattern.permute.xlu0 0
    %2741 = vperm.xlu0 %2740, %v2581
    %v2742 = vpop.permute.xlu0 %2741
    %2745 = vset.pattern.permute.xlu0 0
    %2746 = vperm.xlu0 %2745, %v2582
    %v2747 = vpop.permute.xlu0 %2746
    %2750 = vset.pattern.permute.xlu0 0
    %2751 = vperm.xlu0 %2750, %v2583
    %v2752 = vpop.permute.xlu0 %2751
    %2755 = vset.pattern.permute.xlu0 0
    %2756 = vperm.xlu0 %2755, %v2584
    %v2757 = vpop.permute.xlu0 %2756
    %2760 = vset.pattern.permute.xlu0 0
    %2761 = vperm.xlu0 %2760, %v2585
    %v2762 = vpop.permute.xlu0 %2761
    %2765 = vset.pattern.permute.xlu0 0
    %2766 = vperm.xlu0 %2765, %v2586
    %v2767 = vpop.permute.xlu0 %2766
    %2770 = vset.pattern.permute.xlu0 0
    %2771 = vperm.xlu0 %2770, %v2587
    %v2772 = vpop.permute.xlu0 %2771
    %2775 = vset.pattern.permute.xlu0 0
    %2776 = vperm.xlu0 %2775, %v2588
    %v2777 = vpop.permute.xlu0 %2776
    %2780 = vset.pattern.permute.xlu0 0
    %2781 = vperm.xlu0 %2780, %v2589
    %v2782 = vpop.permute.xlu0 %2781
    %2785 = vset.pattern.permute.xlu0 0
    %2786 = vperm.xlu0 %2785, %v2590
    %v2787 = vpop.permute.xlu0 %2786
    %2790 = vset.pattern.permute.xlu0 0
    %2791 = vperm.xlu0 %2790, %v2591
    %v2792 = vpop.permute.xlu0 %2791
    %2795 = vset.pattern.permute.xlu0 0
    %2796 = vperm.xlu0 %2795, %v2592
    %v2797 = vpop.permute.xlu0 %2796
    %2800 = vset.pattern.permute.xlu0 0
    %2801 = vperm.xlu0 %2800, %v2593
    %v2802 = vpop.permute.xlu0 %2801
    %2805 = vset.pattern.permute.xlu0 0
    %2806 = vperm.xlu0 %2805, %v2594
    %v2807 = vpop.permute.xlu0 %2806
    %2810 = vset.pattern.permute.xlu0 0
    %2811 = vperm.xlu0 %2810, %v2595
    %v2812 = vpop.permute.xlu0 %2811
    %2815 = vset.pattern.permute.xlu0 0
    %2816 = vperm.xlu0 %2815, %v2596
    %v2817 = vpop.permute.xlu0 %2816
    %2820 = vset.pattern.permute.xlu0 0
    %2821 = vperm.xlu0 %2820, %v2597
    %v2822 = vpop.permute.xlu0 %2821
    %2825 = vset.pattern.permute.xlu0 0
    %2826 = vperm.xlu0 %2825, %v2598
    %v2827 = vpop.permute.xlu0 %2826
    %2830 = vset.pattern.permute.xlu0 0
    %2831 = vperm.xlu0 %2830, %v2599
    %v2832 = vpop.permute.xlu0 %2831
    %2835 = vset.pattern.permute.xlu0 0
    %2836 = vperm.xlu0 %2835, %v2600
    %v2837 = vpop.permute.xlu0 %2836
    %2840 = vset.pattern.permute.xlu0 0
    %2841 = vperm.xlu0 %2840, %v2601
    %v2842 = vpop.permute.xlu0 %2841
    %2845 = vset.pattern.permute.xlu0 0
    %2846 = vperm.xlu0 %2845, %v2602
    %v2847 = vpop.permute.xlu0 %2846
    %2850 = vset.pattern.permute.xlu0 0
    %2851 = vperm.xlu0 %2850, %v2603
    %v2852 = vpop.permute.xlu0 %2851
    %2855 = vset.pattern.permute.xlu0 0
    %2856 = vperm.xlu0 %2855, %v2604
    %v2857 = vpop.permute.xlu0 %2856
    %2860 = vset.pattern.permute.xlu0 0
    %2861 = vperm.xlu0 %2860, %v2605
    %v2862 = vpop.permute.xlu0 %2861
    %2865 = vset.pattern.permute.xlu0 0
    %2866 = vperm.xlu0 %2865, %v2606
    %v2867 = vpop.permute.xlu0 %2866
    %2870 = vset.pattern.permute.xlu0 0
    %2871 = vperm.xlu0 %2870, %v2607
    %v2872 = vpop.permute.xlu0 %2871
    %2875 = vset.pattern.permute.xlu0 0
    %2876 = vperm.xlu0 %2875, %v2608
    %v2877 = vpop.permute.xlu0 %2876
    %2880 = vset.pattern.permute.xlu0 0
    %2881 = vperm.xlu0 %2880, %v2609
    %v2882 = vpop.permute.xlu0 %2881
    %2885 = vset.pattern.permute.xlu0 0
    %2886 = vperm.xlu0 %2885, %v2610
    %v2887 = vpop.permute.xlu0 %2886
    %2890 = vset.pattern.permute.xlu0 0
    %2891 = vperm.xlu0 %2890, %v2611
    %v2892 = vpop.permute.xlu0 %2891
    %2895 = vset.pattern.permute.xlu0 0
    %2896 = vperm.xlu0 %2895, %v2612
    %v2897 = vpop.permute.xlu0 %2896
    %2900 = vset.pattern.permute.xlu0 0
    %2901 = vperm.xlu0 %2900, %v2613
    %v2902 = vpop.permute.xlu0 %2901
    %2905 = vset.pattern.permute.xlu0 0
    %2906 = vperm.xlu0 %2905, %v2614
    %v2907 = vpop.permute.xlu0 %2906
    %2910 = vset.pattern.permute.xlu0 0
    %2911 = vperm.xlu0 %2910, %v2615
    %v2912 = vpop.permute.xlu0 %2911
    %2915 = vset.pattern.permute.xlu0 0
    %2916 = vperm.xlu0 %2915, %v2616
    %v2917 = vpop.permute.xlu0 %2916
    %2920 = vset.pattern.permute.xlu0 0
    %2921 = vperm.xlu0 %2920, %v2617
    %v2922 = vpop.permute.xlu0 %2921
    %2925 = vset.pattern.permute.xlu0 0
    %2926 = vperm.xlu0 %2925, %v2618
    %v2927 = vpop.permute.xlu0 %2926
    %2930 = vset.pattern.permute.xlu0 0
    %2931 = vperm.xlu0 %2930, %v2619
    %v2932 = vpop.permute.xlu0 %2931
    %2935 = vset.pattern.permute.xlu0 0
    %2936 = vperm.xlu0 %2935, %v2620
    %v2937 = vpop.permute.xlu0 %2936
    %2940 = vset.pattern.permute.xlu0 0
    %2941 = vperm.xlu0 %2940, %v2621
    %v2942 = vpop.permute.xlu0 %2941
    %v2945 = vlaneseq
    %v2946 = vshrl.u32 %v2945, 7
    %v2947 = vsub.s32 0, %v2946
    %v2948 = vrot.slane %v2623, %v2947
    %v2950 = vmul.f32 %v2627, %v2948
    %v2951 = vmul.f32 %v2632, %v2948
    %v2952 = vmul.f32 %v2637, %v2948
    %v2953 = vmul.f32 %v2642, %v2948
    %v2954 = vmul.f32 %v2647, %v2948
    %v2955 = vmul.f32 %v2652, %v2948
    %v2956 = vmul.f32 %v2657, %v2948
    %v2957 = vmul.f32 %v2662, %v2948
    %v2958 = vmul.f32 %v2667, %v2948
    %v2959 = vmul.f32 %v2672, %v2948
    %v2960 = vmul.f32 %v2677, %v2948
    %v2961 = vmul.f32 %v2682, %v2948
    %v2962 = vmul.f32 %v2687, %v2948
    %v2963 = vmul.f32 %v2692, %v2948
    %v2964 = vmul.f32 %v2697, %v2948
    %v2965 = vmul.f32 %v2702, %v2948
    %v2966 = vmul.f32 %v2707, %v2948
    %v2967 = vmul.f32 %v2712, %v2948
    %v2968 = vmul.f32 %v2717, %v2948
    %v2969 = vmul.f32 %v2722, %v2948
    %v2970 = vmul.f32 %v2727, %v2948
    %v2971 = vmul.f32 %v2732, %v2948
    %v2972 = vmul.f32 %v2737, %v2948
    %v2973 = vmul.f32 %v2742, %v2948
    %v2974 = vmul.f32 %v2747, %v2948
    %v2975 = vmul.f32 %v2752, %v2948
    %v2976 = vmul.f32 %v2757, %v2948
    %v2977 = vmul.f32 %v2762, %v2948
    %v2978 = vmul.f32 %v2767, %v2948
    %v2979 = vmul.f32 %v2772, %v2948
    %v2980 = vmul.f32 %v2777, %v2948
    %v2981 = vmul.f32 %v2782, %v2948
    %v2982 = vmul.f32 %v2787, %v2948
    %v2983 = vmul.f32 %v2792, %v2948
    %v2984 = vmul.f32 %v2797, %v2948
    %v2985 = vmul.f32 %v2802, %v2948
    %v2986 = vmul.f32 %v2807, %v2948
    %v2987 = vmul.f32 %v2812, %v2948
    %v2988 = vmul.f32 %v2817, %v2948
    %v2989 = vmul.f32 %v2822, %v2948
    %v2990 = vmul.f32 %v2827, %v2948
    %v2991 = vmul.f32 %v2832, %v2948
    %v2992 = vmul.f32 %v2837, %v2948
    %v2993 = vmul.f32 %v2842, %v2948
    %v2994 = vmul.f32 %v2847, %v2948
    %v2995 = vmul.f32 %v2852, %v2948
    %v2996 = vmul.f32 %v2857, %v2948
    %v2997 = vmul.f32 %v2862, %v2948
    %v2998 = vmul.f32 %v2867, %v2948
    %v2999 = vmul.f32 %v2872, %v2948
    %v3000 = vmul.f32 %v2877, %v2948
    %v3001 = vmul.f32 %v2882, %v2948
    %v3002 = vmul.f32 %v2887, %v2948
    %v3003 = vmul.f32 %v2892, %v2948
    %v3004 = vmul.f32 %v2897, %v2948
    %v3005 = vmul.f32 %v2902, %v2948
    %v3006 = vmul.f32 %v2907, %v2948
    %v3007 = vmul.f32 %v2912, %v2948
    %v3008 = vmul.f32 %v2917, %v2948
    %v3009 = vmul.f32 %v2922, %v2948
    %v3010 = vmul.f32 %v2927, %v2948
    %v3011 = vmul.f32 %v2932, %v2948
    %v3012 = vmul.f32 %v2937, %v2948
    %v3013 = vmul.f32 %v2942, %v2948
    %v3014 = vadd.f32 %v2494, %v2950
    %v3015 = vadd.f32 %v2495, %v2951
    %v3016 = vadd.f32 %v2496, %v2952
    %v3017 = vadd.f32 %v2497, %v2953
    %v3018 = vadd.f32 %v2498, %v2954
    %v3019 = vadd.f32 %v2499, %v2955
    %v3020 = vadd.f32 %v2500, %v2956
    %v3021 = vadd.f32 %v2501, %v2957
    %v3022 = vadd.f32 %v2502, %v2958
    %v3023 = vadd.f32 %v2503, %v2959
    %v3024 = vadd.f32 %v2504, %v2960
    %v3025 = vadd.f32 %v2505, %v2961
    %v3026 = vadd.f32 %v2506, %v2962
    %v3027 = vadd.f32 %v2507, %v2963
    %v3028 = vadd.f32 %v2508, %v2964
    %v3029 = vadd.f32 %v2509, %v2965
    %v3030 = vadd.f32 %v2510, %v2966
    %v3031 = vadd.f32 %v2511, %v2967
    %v3032 = vadd.f32 %v2512, %v2968
    %v3033 = vadd.f32 %v2513, %v2969
    %v3034 = vadd.f32 %v2514, %v2970
    %v3035 = vadd.f32 %v2515, %v2971
    %v3036 = vadd.f32 %v2516, %v2972
    %v3037 = vadd.f32 %v2517, %v2973
    %v3038 = vadd.f32 %v2518, %v2974
    %v3039 = vadd.f32 %v2519, %v2975
    %v3040 = vadd.f32 %v2520, %v2976
    %v3041 = vadd.f32 %v2521, %v2977
    %v3042 = vadd.f32 %v2522, %v2978
    %v3043 = vadd.f32 %v2523, %v2979
    %v3044 = vadd.f32 %v2524, %v2980
    %v3045 = vadd.f32 %v2525, %v2981
    %v3046 = vadd.f32 %v2526, %v2982
    %v3047 = vadd.f32 %v2527, %v2983
    %v3048 = vadd.f32 %v2528, %v2984
    %v3049 = vadd.f32 %v2529, %v2985
    %v3050 = vadd.f32 %v2530, %v2986
    %v3051 = vadd.f32 %v2531, %v2987
    %v3052 = vadd.f32 %v2532, %v2988
    %v3053 = vadd.f32 %v2533, %v2989
    %v3054 = vadd.f32 %v2534, %v2990
    %v3055 = vadd.f32 %v2535, %v2991
    %v3056 = vadd.f32 %v2536, %v2992
    %v3057 = vadd.f32 %v2537, %v2993
    %v3058 = vadd.f32 %v2538, %v2994
    %v3059 = vadd.f32 %v2539, %v2995
    %v3060 = vadd.f32 %v2540, %v2996
    %v3061 = vadd.f32 %v2541, %v2997
    %v3062 = vadd.f32 %v2542, %v2998
    %v3063 = vadd.f32 %v2543, %v2999
    %v3064 = vadd.f32 %v2544, %v3000
    %v3065 = vadd.f32 %v2545, %v3001
    %v3066 = vadd.f32 %v2546, %v3002
    %v3067 = vadd.f32 %v2547, %v3003
    %v3068 = vadd.f32 %v2548, %v3004
    %v3069 = vadd.f32 %v2549, %v3005
    %v3070 = vadd.f32 %v2550, %v3006
    %v3071 = vadd.f32 %v2551, %v3007
    %v3072 = vadd.f32 %v2552, %v3008
    %v3073 = vadd.f32 %v2553, %v3009
    %v3074 = vadd.f32 %v2554, %v3010
    %v3075 = vadd.f32 %v2555, %v3011
    %v3076 = vadd.f32 %v2556, %v3012
    %v3077 = vadd.f32 %v2557, %v3013
    %s3078 = scalar_lea.vmem %s0, 48
    %v3079 = vld [vmem:[%s3078] sm:$0xff]
    %v3080 = vld [vmem:[%s3078 + $0x8] sm:$0xff]
    %v3081 = vld [vmem:[%s3078 + $0x18] sm:$0xff]
    %v3082 = vld [vmem:[%s3078 + $0x20] sm:$0xff]
    %v3083 = vld [vmem:[%s3078 + $0x30] sm:$0xff]
    %v3084 = vld [vmem:[%s3078 + $0x38] sm:$0xff]
    %v3085 = vld [vmem:[%s3078 + $0x48] sm:$0xff]
    %v3086 = vld [vmem:[%s3078 + $0x50] sm:$0xff]
    %v3087 = vld [vmem:[%s3078 + $0x60] sm:$0xff]
    %v3088 = vld [vmem:[%s3078 + $0x68] sm:$0xff]
    %v3089 = vld [vmem:[%s3078 + $0x78] sm:$0xff]
    %v3090 = vld [vmem:[%s3078 + $0x80] sm:$0xff]
    %v3091 = vld [vmem:[%s3078 + $0x90] sm:$0xff]
    %v3092 = vld [vmem:[%s3078 + $0x98] sm:$0xff]
    %v3093 = vld [vmem:[%s3078 + $0xa8] sm:$0xff]
    %v3094 = vld [vmem:[%s3078 + $0xb0] sm:$0xff]
    %v3095 = vld [vmem:[%s3078 + $0xc0] sm:$0xff]
    %v3096 = vld [vmem:[%s3078 + $0xc8] sm:$0xff]
    %v3097 = vld [vmem:[%s3078 + $0xd8] sm:$0xff]
    %v3098 = vld [vmem:[%s3078 + $0xe0] sm:$0xff]
    %v3099 = vld [vmem:[%s3078 + $0xf0] sm:$0xff]
    %v3100 = vld [vmem:[%s3078 + $0xf8] sm:$0xff]
    %v3101 = vld [vmem:[%s3078 + $0x108] sm:$0xff]
    %v3102 = vld [vmem:[%s3078 + $0x110] sm:$0xff]
    %v3103 = vld [vmem:[%s3078 + $0x120] sm:$0xff]
    %v3104 = vld [vmem:[%s3078 + $0x128] sm:$0xff]
    %v3105 = vld [vmem:[%s3078 + $0x138] sm:$0xff]
    %v3106 = vld [vmem:[%s3078 + $0x140] sm:$0xff]
    %v3107 = vld [vmem:[%s3078 + $0x150] sm:$0xff]
    %v3108 = vld [vmem:[%s3078 + $0x158] sm:$0xff]
    %v3109 = vld [vmem:[%s3078 + $0x168] sm:$0xff]
    %v3110 = vld [vmem:[%s3078 + $0x170] sm:$0xff]
    %v3111 = vld [vmem:[%s3078 + $0x1b0] sm:$0xff]
    %v3112 = vld [vmem:[%s3078 + $0x1b8] sm:$0xff]
    %v3113 = vld [vmem:[%s3078 + $0x1c8] sm:$0xff]
    %v3114 = vld [vmem:[%s3078 + $0x1d0] sm:$0xff]
    %v3115 = vld [vmem:[%s3078 + $0x1e0] sm:$0xff]
    %v3116 = vld [vmem:[%s3078 + $0x1e8] sm:$0xff]
    %v3117 = vld [vmem:[%s3078 + $0x1f8] sm:$0xff]
    %v3118 = vld [vmem:[%s3078 + $0x200] sm:$0xff]
    %v3119 = vld [vmem:[%s3078 + $0x210] sm:$0xff]
    %v3120 = vld [vmem:[%s3078 + $0x218] sm:$0xff]
    %v3121 = vld [vmem:[%s3078 + $0x228] sm:$0xff]
    %v3122 = vld [vmem:[%s3078 + $0x230] sm:$0xff]
    %v3123 = vld [vmem:[%s3078 + $0x240] sm:$0xff]
    %v3124 = vld [vmem:[%s3078 + $0x248] sm:$0xff]
    %v3125 = vld [vmem:[%s3078 + $0x258] sm:$0xff]
    %v3126 = vld [vmem:[%s3078 + $0x260] sm:$0xff]
    %v3127 = vld [vmem:[%s3078 + $0x270] sm:$0xff]
    %v3128 = vld [vmem:[%s3078 + $0x278] sm:$0xff]
    %v3129 = vld [vmem:[%s3078 + $0x288] sm:$0xff]
    %v3130 = vld [vmem:[%s3078 + $0x290] sm:$0xff]
    %v3131 = vld [vmem:[%s3078 + $0x2a0] sm:$0xff]
    %v3132 = vld [vmem:[%s3078 + $0x2a8] sm:$0xff]
    %v3133 = vld [vmem:[%s3078 + $0x2b8] sm:$0xff]
    %v3134 = vld [vmem:[%s3078 + $0x2c0] sm:$0xff]
    %v3135 = vld [vmem:[%s3078 + $0x2d0] sm:$0xff]
    %v3136 = vld [vmem:[%s3078 + $0x2d8] sm:$0xff]
    %v3137 = vld [vmem:[%s3078 + $0x2e8] sm:$0xff]
    %v3138 = vld [vmem:[%s3078 + $0x2f0] sm:$0xff]
    %v3139 = vld [vmem:[%s3078 + $0x300] sm:$0xff]
    %v3140 = vld [vmem:[%s3078 + $0x308] sm:$0xff]
    %v3141 = vld [vmem:[%s3078 + $0x318] sm:$0xff]
    %v3142 = vld [vmem:[%s3078 + $0x320] sm:$0xff]
    %s3143 = scalar_lea.vmem %s1, 6
    %v3144 = vld [vmem:[%s3143] sm:$0x1]
    %3146 = vset.pattern.permute.xlu0 0
    %3147 = vperm.xlu0 %3146, %v3079
    %v3148 = vpop.permute.xlu0 %3147
    %3151 = vset.pattern.permute.xlu0 0
    %3152 = vperm.xlu0 %3151, %v3080
    %v3153 = vpop.permute.xlu0 %3152
    %3156 = vset.pattern.permute.xlu0 0
    %3157 = vperm.xlu0 %3156, %v3081
    %v3158 = vpop.permute.xlu0 %3157
    %3161 = vset.pattern.permute.xlu0 0
    %3162 = vperm.xlu0 %3161, %v3082
    %v3163 = vpop.permute.xlu0 %3162
    %3166 = vset.pattern.permute.xlu0 0
    %3167 = vperm.xlu0 %3166, %v3083
    %v3168 = vpop.permute.xlu0 %3167
    %3171 = vset.pattern.permute.xlu0 0
    %3172 = vperm.xlu0 %3171, %v3084
    %v3173 = vpop.permute.xlu0 %3172
    %3176 = vset.pattern.permute.xlu0 0
    %3177 = vperm.xlu0 %3176, %v3085
    %v3178 = vpop.permute.xlu0 %3177
    %3181 = vset.pattern.permute.xlu0 0
    %3182 = vperm.xlu0 %3181, %v3086
    %v3183 = vpop.permute.xlu0 %3182
    %3186 = vset.pattern.permute.xlu0 0
    %3187 = vperm.xlu0 %3186, %v3087
    %v3188 = vpop.permute.xlu0 %3187
    %3191 = vset.pattern.permute.xlu0 0
    %3192 = vperm.xlu0 %3191, %v3088
    %v3193 = vpop.permute.xlu0 %3192
    %3196 = vset.pattern.permute.xlu0 0
    %3197 = vperm.xlu0 %3196, %v3089
    %v3198 = vpop.permute.xlu0 %3197
    %3201 = vset.pattern.permute.xlu0 0
    %3202 = vperm.xlu0 %3201, %v3090
    %v3203 = vpop.permute.xlu0 %3202
    %3206 = vset.pattern.permute.xlu0 0
    %3207 = vperm.xlu0 %3206, %v3091
    %v3208 = vpop.permute.xlu0 %3207
    %3211 = vset.pattern.permute.xlu0 0
    %3212 = vperm.xlu0 %3211, %v3092
    %v3213 = vpop.permute.xlu0 %3212
    %3216 = vset.pattern.permute.xlu0 0
    %3217 = vperm.xlu0 %3216, %v3093
    %v3218 = vpop.permute.xlu0 %3217
    %3221 = vset.pattern.permute.xlu0 0
    %3222 = vperm.xlu0 %3221, %v3094
    %v3223 = vpop.permute.xlu0 %3222
    %3226 = vset.pattern.permute.xlu0 0
    %3227 = vperm.xlu0 %3226, %v3095
    %v3228 = vpop.permute.xlu0 %3227
    %3231 = vset.pattern.permute.xlu0 0
    %3232 = vperm.xlu0 %3231, %v3096
    %v3233 = vpop.permute.xlu0 %3232
    %3236 = vset.pattern.permute.xlu0 0
    %3237 = vperm.xlu0 %3236, %v3097
    %v3238 = vpop.permute.xlu0 %3237
    %3241 = vset.pattern.permute.xlu0 0
    %3242 = vperm.xlu0 %3241, %v3098
    %v3243 = vpop.permute.xlu0 %3242
    %3246 = vset.pattern.permute.xlu0 0
    %3247 = vperm.xlu0 %3246, %v3099
    %v3248 = vpop.permute.xlu0 %3247
    %3251 = vset.pattern.permute.xlu0 0
    %3252 = vperm.xlu0 %3251, %v3100
    %v3253 = vpop.permute.xlu0 %3252
    %3256 = vset.pattern.permute.xlu0 0
    %3257 = vperm.xlu0 %3256, %v3101
    %v3258 = vpop.permute.xlu0 %3257
    %3261 = vset.pattern.permute.xlu0 0
    %3262 = vperm.xlu0 %3261, %v3102
    %v3263 = vpop.permute.xlu0 %3262
    %3266 = vset.pattern.permute.xlu0 0
    %3267 = vperm.xlu0 %3266, %v3103
    %v3268 = vpop.permute.xlu0 %3267
    %3271 = vset.pattern.permute.xlu0 0
    %3272 = vperm.xlu0 %3271, %v3104
    %v3273 = vpop.permute.xlu0 %3272
    %3276 = vset.pattern.permute.xlu0 0
    %3277 = vperm.xlu0 %3276, %v3105
    %v3278 = vpop.permute.xlu0 %3277
    %3281 = vset.pattern.permute.xlu0 0
    %3282 = vperm.xlu0 %3281, %v3106
    %v3283 = vpop.permute.xlu0 %3282
    %3286 = vset.pattern.permute.xlu0 0
    %3287 = vperm.xlu0 %3286, %v3107
    %v3288 = vpop.permute.xlu0 %3287
    %3291 = vset.pattern.permute.xlu0 0
    %3292 = vperm.xlu0 %3291, %v3108
    %v3293 = vpop.permute.xlu0 %3292
    %3296 = vset.pattern.permute.xlu0 0
    %3297 = vperm.xlu0 %3296, %v3109
    %v3298 = vpop.permute.xlu0 %3297
    %3301 = vset.pattern.permute.xlu0 0
    %3302 = vperm.xlu0 %3301, %v3110
    %v3303 = vpop.permute.xlu0 %3302
    %3306 = vset.pattern.permute.xlu0 0
    %3307 = vperm.xlu0 %3306, %v3111
    %v3308 = vpop.permute.xlu0 %3307
    %3311 = vset.pattern.permute.xlu0 0
    %3312 = vperm.xlu0 %3311, %v3112
    %v3313 = vpop.permute.xlu0 %3312
    %3316 = vset.pattern.permute.xlu0 0
    %3317 = vperm.xlu0 %3316, %v3113
    %v3318 = vpop.permute.xlu0 %3317
    %3321 = vset.pattern.permute.xlu0 0
    %3322 = vperm.xlu0 %3321, %v3114
    %v3323 = vpop.permute.xlu0 %3322
    %3326 = vset.pattern.permute.xlu0 0
    %3327 = vperm.xlu0 %3326, %v3115
    %v3328 = vpop.permute.xlu0 %3327
    %3331 = vset.pattern.permute.xlu0 0
    %3332 = vperm.xlu0 %3331, %v3116
    %v3333 = vpop.permute.xlu0 %3332
    %3336 = vset.pattern.permute.xlu0 0
    %3337 = vperm.xlu0 %3336, %v3117
    %v3338 = vpop.permute.xlu0 %3337
    %3341 = vset.pattern.permute.xlu0 0
    %3342 = vperm.xlu0 %3341, %v3118
    %v3343 = vpop.permute.xlu0 %3342
    %3346 = vset.pattern.permute.xlu0 0
    %3347 = vperm.xlu0 %3346, %v3119
    %v3348 = vpop.permute.xlu0 %3347
    %3351 = vset.pattern.permute.xlu0 0
    %3352 = vperm.xlu0 %3351, %v3120
    %v3353 = vpop.permute.xlu0 %3352
    %3356 = vset.pattern.permute.xlu0 0
    %3357 = vperm.xlu0 %3356, %v3121
    %v3358 = vpop.permute.xlu0 %3357
    %3361 = vset.pattern.permute.xlu0 0
    %3362 = vperm.xlu0 %3361, %v3122
    %v3363 = vpop.permute.xlu0 %3362
    %3366 = vset.pattern.permute.xlu0 0
    %3367 = vperm.xlu0 %3366, %v3123
    %v3368 = vpop.permute.xlu0 %3367
    %3371 = vset.pattern.permute.xlu0 0
    %3372 = vperm.xlu0 %3371, %v3124
    %v3373 = vpop.permute.xlu0 %3372
    %3376 = vset.pattern.permute.xlu0 0
    %3377 = vperm.xlu0 %3376, %v3125
    %v3378 = vpop.permute.xlu0 %3377
    %3381 = vset.pattern.permute.xlu0 0
    %3382 = vperm.xlu0 %3381, %v3126
    %v3383 = vpop.permute.xlu0 %3382
    %3386 = vset.pattern.permute.xlu0 0
    %3387 = vperm.xlu0 %3386, %v3127
    %v3388 = vpop.permute.xlu0 %3387
    %3391 = vset.pattern.permute.xlu0 0
    %3392 = vperm.xlu0 %3391, %v3128
    %v3393 = vpop.permute.xlu0 %3392
    %3396 = vset.pattern.permute.xlu0 0
    %3397 = vperm.xlu0 %3396, %v3129
    %v3398 = vpop.permute.xlu0 %3397
    %3401 = vset.pattern.permute.xlu0 0
    %3402 = vperm.xlu0 %3401, %v3130
    %v3403 = vpop.permute.xlu0 %3402
    %3406 = vset.pattern.permute.xlu0 0
    %3407 = vperm.xlu0 %3406, %v3131
    %v3408 = vpop.permute.xlu0 %3407
    %3411 = vset.pattern.permute.xlu0 0
    %3412 = vperm.xlu0 %3411, %v3132
    %v3413 = vpop.permute.xlu0 %3412
    %3416 = vset.pattern.permute.xlu0 0
    %3417 = vperm.xlu0 %3416, %v3133
    %v3418 = vpop.permute.xlu0 %3417
    %3421 = vset.pattern.permute.xlu0 0
    %3422 = vperm.xlu0 %3421, %v3134
    %v3423 = vpop.permute.xlu0 %3422
    %3426 = vset.pattern.permute.xlu0 0
    %3427 = vperm.xlu0 %3426, %v3135
    %v3428 = vpop.permute.xlu0 %3427
    %3431 = vset.pattern.permute.xlu0 0
    %3432 = vperm.xlu0 %3431, %v3136
    %v3433 = vpop.permute.xlu0 %3432
    %3436 = vset.pattern.permute.xlu0 0
    %3437 = vperm.xlu0 %3436, %v3137
    %v3438 = vpop.permute.xlu0 %3437
    %3441 = vset.pattern.permute.xlu0 0
    %3442 = vperm.xlu0 %3441, %v3138
    %v3443 = vpop.permute.xlu0 %3442
    %3446 = vset.pattern.permute.xlu0 0
    %3447 = vperm.xlu0 %3446, %v3139
    %v3448 = vpop.permute.xlu0 %3447
    %3451 = vset.pattern.permute.xlu0 0
    %3452 = vperm.xlu0 %3451, %v3140
    %v3453 = vpop.permute.xlu0 %3452
    %3456 = vset.pattern.permute.xlu0 0
    %3457 = vperm.xlu0 %3456, %v3141
    %v3458 = vpop.permute.xlu0 %3457
    %3461 = vset.pattern.permute.xlu0 0
    %3462 = vperm.xlu0 %3461, %v3142
    %v3463 = vpop.permute.xlu0 %3462
    %v3466 = vlaneseq
    %v3467 = vshrl.u32 %v3466, 7
    %v3468 = vsub.s32 0, %v3467
    %v3469 = vrot.slane %v3144, %v3468
    %v3471 = vmul.f32 %v3148, %v3469
    %v3472 = vmul.f32 %v3153, %v3469
    %v3473 = vmul.f32 %v3158, %v3469
    %v3474 = vmul.f32 %v3163, %v3469
    %v3475 = vmul.f32 %v3168, %v3469
    %v3476 = vmul.f32 %v3173, %v3469
    %v3477 = vmul.f32 %v3178, %v3469
    %v3478 = vmul.f32 %v3183, %v3469
    %v3479 = vmul.f32 %v3188, %v3469
    %v3480 = vmul.f32 %v3193, %v3469
    %v3481 = vmul.f32 %v3198, %v3469
    %v3482 = vmul.f32 %v3203, %v3469
    %v3483 = vmul.f32 %v3208, %v3469
    %v3484 = vmul.f32 %v3213, %v3469
    %v3485 = vmul.f32 %v3218, %v3469
    %v3486 = vmul.f32 %v3223, %v3469
    %v3487 = vmul.f32 %v3228, %v3469
    %v3488 = vmul.f32 %v3233, %v3469
    %v3489 = vmul.f32 %v3238, %v3469
    %v3490 = vmul.f32 %v3243, %v3469
    %v3491 = vmul.f32 %v3248, %v3469
    %v3492 = vmul.f32 %v3253, %v3469
    %v3493 = vmul.f32 %v3258, %v3469
    %v3494 = vmul.f32 %v3263, %v3469
    %v3495 = vmul.f32 %v3268, %v3469
    %v3496 = vmul.f32 %v3273, %v3469
    %v3497 = vmul.f32 %v3278, %v3469
    %v3498 = vmul.f32 %v3283, %v3469
    %v3499 = vmul.f32 %v3288, %v3469
    %v3500 = vmul.f32 %v3293, %v3469
    %v3501 = vmul.f32 %v3298, %v3469
    %v3502 = vmul.f32 %v3303, %v3469
    %v3503 = vmul.f32 %v3308, %v3469
    %v3504 = vmul.f32 %v3313, %v3469
    %v3505 = vmul.f32 %v3318, %v3469
    %v3506 = vmul.f32 %v3323, %v3469
    %v3507 = vmul.f32 %v3328, %v3469
    %v3508 = vmul.f32 %v3333, %v3469
    %v3509 = vmul.f32 %v3338, %v3469
    %v3510 = vmul.f32 %v3343, %v3469
    %v3511 = vmul.f32 %v3348, %v3469
    %v3512 = vmul.f32 %v3353, %v3469
    %v3513 = vmul.f32 %v3358, %v3469
    %v3514 = vmul.f32 %v3363, %v3469
    %v3515 = vmul.f32 %v3368, %v3469
    %v3516 = vmul.f32 %v3373, %v3469
    %v3517 = vmul.f32 %v3378, %v3469
    %v3518 = vmul.f32 %v3383, %v3469
    %v3519 = vmul.f32 %v3388, %v3469
    %v3520 = vmul.f32 %v3393, %v3469
    %v3521 = vmul.f32 %v3398, %v3469
    %v3522 = vmul.f32 %v3403, %v3469
    %v3523 = vmul.f32 %v3408, %v3469
    %v3524 = vmul.f32 %v3413, %v3469
    %v3525 = vmul.f32 %v3418, %v3469
    %v3526 = vmul.f32 %v3423, %v3469
    %v3527 = vmul.f32 %v3428, %v3469
    %v3528 = vmul.f32 %v3433, %v3469
    %v3529 = vmul.f32 %v3438, %v3469
    %v3530 = vmul.f32 %v3443, %v3469
    %v3531 = vmul.f32 %v3448, %v3469
    %v3532 = vmul.f32 %v3453, %v3469
    %v3533 = vmul.f32 %v3458, %v3469
    %v3534 = vmul.f32 %v3463, %v3469
    %v3535 = vadd.f32 %v3014, %v3471
    %v3536 = vadd.f32 %v3015, %v3472
    %v3537 = vadd.f32 %v3016, %v3473
    %v3538 = vadd.f32 %v3017, %v3474
    %v3539 = vadd.f32 %v3018, %v3475
    %v3540 = vadd.f32 %v3019, %v3476
    %v3541 = vadd.f32 %v3020, %v3477
    %v3542 = vadd.f32 %v3021, %v3478
    %v3543 = vadd.f32 %v3022, %v3479
    %v3544 = vadd.f32 %v3023, %v3480
    %v3545 = vadd.f32 %v3024, %v3481
    %v3546 = vadd.f32 %v3025, %v3482
    %v3547 = vadd.f32 %v3026, %v3483
    %v3548 = vadd.f32 %v3027, %v3484
    %v3549 = vadd.f32 %v3028, %v3485
    %v3550 = vadd.f32 %v3029, %v3486
    %v3551 = vadd.f32 %v3030, %v3487
    %v3552 = vadd.f32 %v3031, %v3488
    %v3553 = vadd.f32 %v3032, %v3489
    %v3554 = vadd.f32 %v3033, %v3490
    %v3555 = vadd.f32 %v3034, %v3491
    %v3556 = vadd.f32 %v3035, %v3492
    %v3557 = vadd.f32 %v3036, %v3493
    %v3558 = vadd.f32 %v3037, %v3494
    %v3559 = vadd.f32 %v3038, %v3495
    %v3560 = vadd.f32 %v3039, %v3496
    %v3561 = vadd.f32 %v3040, %v3497
    %v3562 = vadd.f32 %v3041, %v3498
    %v3563 = vadd.f32 %v3042, %v3499
    %v3564 = vadd.f32 %v3043, %v3500
    %v3565 = vadd.f32 %v3044, %v3501
    %v3566 = vadd.f32 %v3045, %v3502
    %v3567 = vadd.f32 %v3046, %v3503
    %v3568 = vadd.f32 %v3047, %v3504
    %v3569 = vadd.f32 %v3048, %v3505
    %v3570 = vadd.f32 %v3049, %v3506
    %v3571 = vadd.f32 %v3050, %v3507
    %v3572 = vadd.f32 %v3051, %v3508
    %v3573 = vadd.f32 %v3052, %v3509
    %v3574 = vadd.f32 %v3053, %v3510
    %v3575 = vadd.f32 %v3054, %v3511
    %v3576 = vadd.f32 %v3055, %v3512
    %v3577 = vadd.f32 %v3056, %v3513
    %v3578 = vadd.f32 %v3057, %v3514
    %v3579 = vadd.f32 %v3058, %v3515
    %v3580 = vadd.f32 %v3059, %v3516
    %v3581 = vadd.f32 %v3060, %v3517
    %v3582 = vadd.f32 %v3061, %v3518
    %v3583 = vadd.f32 %v3062, %v3519
    %v3584 = vadd.f32 %v3063, %v3520
    %v3585 = vadd.f32 %v3064, %v3521
    %v3586 = vadd.f32 %v3065, %v3522
    %v3587 = vadd.f32 %v3066, %v3523
    %v3588 = vadd.f32 %v3067, %v3524
    %v3589 = vadd.f32 %v3068, %v3525
    %v3590 = vadd.f32 %v3069, %v3526
    %v3591 = vadd.f32 %v3070, %v3527
    %v3592 = vadd.f32 %v3071, %v3528
    %v3593 = vadd.f32 %v3072, %v3529
    %v3594 = vadd.f32 %v3073, %v3530
    %v3595 = vadd.f32 %v3074, %v3531
    %v3596 = vadd.f32 %v3075, %v3532
    %v3597 = vadd.f32 %v3076, %v3533
    %v3598 = vadd.f32 %v3077, %v3534
    %v3599 = vld [vmem:[%s3078 + $0x1] sm:$0xff]
    %v3600 = vld [vmem:[%s3078 + $0x9] sm:$0xff]
    %v3601 = vld [vmem:[%s3078 + $0x19] sm:$0xff]
    %v3602 = vld [vmem:[%s3078 + $0x21] sm:$0xff]
    %v3603 = vld [vmem:[%s3078 + $0x31] sm:$0xff]
    %v3604 = vld [vmem:[%s3078 + $0x39] sm:$0xff]
    %v3605 = vld [vmem:[%s3078 + $0x49] sm:$0xff]
    %v3606 = vld [vmem:[%s3078 + $0x51] sm:$0xff]
    %v3607 = vld [vmem:[%s3078 + $0x61] sm:$0xff]
    %v3608 = vld [vmem:[%s3078 + $0x69] sm:$0xff]
    %v3609 = vld [vmem:[%s3078 + $0x79] sm:$0xff]
    %v3610 = vld [vmem:[%s3078 + $0x81] sm:$0xff]
    %v3611 = vld [vmem:[%s3078 + $0x91] sm:$0xff]
    %v3612 = vld [vmem:[%s3078 + $0x99] sm:$0xff]
    %v3613 = vld [vmem:[%s3078 + $0xa9] sm:$0xff]
    %v3614 = vld [vmem:[%s3078 + $0xb1] sm:$0xff]
    %v3615 = vld [vmem:[%s3078 + $0xc1] sm:$0xff]
    %v3616 = vld [vmem:[%s3078 + $0xc9] sm:$0xff]
    %v3617 = vld [vmem:[%s3078 + $0xd9] sm:$0xff]
    %v3618 = vld [vmem:[%s3078 + $0xe1] sm:$0xff]
    %v3619 = vld [vmem:[%s3078 + $0xf1] sm:$0xff]
    %v3620 = vld [vmem:[%s3078 + $0xf9] sm:$0xff]
    %v3621 = vld [vmem:[%s3078 + $0x109] sm:$0xff]
    %v3622 = vld [vmem:[%s3078 + $0x111] sm:$0xff]
    %v3623 = vld [vmem:[%s3078 + $0x121] sm:$0xff]
    %v3624 = vld [vmem:[%s3078 + $0x129] sm:$0xff]
    %v3625 = vld [vmem:[%s3078 + $0x139] sm:$0xff]
    %v3626 = vld [vmem:[%s3078 + $0x141] sm:$0xff]
    %v3627 = vld [vmem:[%s3078 + $0x151] sm:$0xff]
    %v3628 = vld [vmem:[%s3078 + $0x159] sm:$0xff]
    %v3629 = vld [vmem:[%s3078 + $0x169] sm:$0xff]
    %v3630 = vld [vmem:[%s3078 + $0x171] sm:$0xff]
    %v3631 = vld [vmem:[%s3078 + $0x1b1] sm:$0xff]
    %v3632 = vld [vmem:[%s3078 + $0x1b9] sm:$0xff]
    %v3633 = vld [vmem:[%s3078 + $0x1c9] sm:$0xff]
    %v3634 = vld [vmem:[%s3078 + $0x1d1] sm:$0xff]
    %v3635 = vld [vmem:[%s3078 + $0x1e1] sm:$0xff]
    %v3636 = vld [vmem:[%s3078 + $0x1e9] sm:$0xff]
    %v3637 = vld [vmem:[%s3078 + $0x1f9] sm:$0xff]
    %v3638 = vld [vmem:[%s3078 + $0x201] sm:$0xff]
    %v3639 = vld [vmem:[%s3078 + $0x211] sm:$0xff]
    %v3640 = vld [vmem:[%s3078 + $0x219] sm:$0xff]
    %v3641 = vld [vmem:[%s3078 + $0x229] sm:$0xff]
    %v3642 = vld [vmem:[%s3078 + $0x231] sm:$0xff]
    %v3643 = vld [vmem:[%s3078 + $0x241] sm:$0xff]
    %v3644 = vld [vmem:[%s3078 + $0x249] sm:$0xff]
    %v3645 = vld [vmem:[%s3078 + $0x259] sm:$0xff]
    %v3646 = vld [vmem:[%s3078 + $0x261] sm:$0xff]
    %v3647 = vld [vmem:[%s3078 + $0x271] sm:$0xff]
    %v3648 = vld [vmem:[%s3078 + $0x279] sm:$0xff]
    %v3649 = vld [vmem:[%s3078 + $0x289] sm:$0xff]
    %v3650 = vld [vmem:[%s3078 + $0x291] sm:$0xff]
    %v3651 = vld [vmem:[%s3078 + $0x2a1] sm:$0xff]
    %v3652 = vld [vmem:[%s3078 + $0x2a9] sm:$0xff]
    %v3653 = vld [vmem:[%s3078 + $0x2b9] sm:$0xff]
    %v3654 = vld [vmem:[%s3078 + $0x2c1] sm:$0xff]
    %v3655 = vld [vmem:[%s3078 + $0x2d1] sm:$0xff]
    %v3656 = vld [vmem:[%s3078 + $0x2d9] sm:$0xff]
    %v3657 = vld [vmem:[%s3078 + $0x2e9] sm:$0xff]
    %v3658 = vld [vmem:[%s3078 + $0x2f1] sm:$0xff]
    %v3659 = vld [vmem:[%s3078 + $0x301] sm:$0xff]
    %v3660 = vld [vmem:[%s3078 + $0x309] sm:$0xff]
    %v3661 = vld [vmem:[%s3078 + $0x319] sm:$0xff]
    %v3662 = vld [vmem:[%s3078 + $0x321] sm:$0xff]
    %s3663 = scalar_lea.vmem %s1, 7
    %v3664 = vld [vmem:[%s3663] sm:$0x1]
    %3666 = vset.pattern.permute.xlu0 0
    %3667 = vperm.xlu0 %3666, %v3599
    %v3668 = vpop.permute.xlu0 %3667
    %3671 = vset.pattern.permute.xlu0 0
    %3672 = vperm.xlu0 %3671, %v3600
    %v3673 = vpop.permute.xlu0 %3672
    %3676 = vset.pattern.permute.xlu0 0
    %3677 = vperm.xlu0 %3676, %v3601
    %v3678 = vpop.permute.xlu0 %3677
    %3681 = vset.pattern.permute.xlu0 0
    %3682 = vperm.xlu0 %3681, %v3602
    %v3683 = vpop.permute.xlu0 %3682
    %3686 = vset.pattern.permute.xlu0 0
    %3687 = vperm.xlu0 %3686, %v3603
    %v3688 = vpop.permute.xlu0 %3687
    %3691 = vset.pattern.permute.xlu0 0
    %3692 = vperm.xlu0 %3691, %v3604
    %v3693 = vpop.permute.xlu0 %3692
    %3696 = vset.pattern.permute.xlu0 0
    %3697 = vperm.xlu0 %3696, %v3605
    %v3698 = vpop.permute.xlu0 %3697
    %3701 = vset.pattern.permute.xlu0 0
    %3702 = vperm.xlu0 %3701, %v3606
    %v3703 = vpop.permute.xlu0 %3702
    %3706 = vset.pattern.permute.xlu0 0
    %3707 = vperm.xlu0 %3706, %v3607
    %v3708 = vpop.permute.xlu0 %3707
    %3711 = vset.pattern.permute.xlu0 0
    %3712 = vperm.xlu0 %3711, %v3608
    %v3713 = vpop.permute.xlu0 %3712
    %3716 = vset.pattern.permute.xlu0 0
    %3717 = vperm.xlu0 %3716, %v3609
    %v3718 = vpop.permute.xlu0 %3717
    %3721 = vset.pattern.permute.xlu0 0
    %3722 = vperm.xlu0 %3721, %v3610
    %v3723 = vpop.permute.xlu0 %3722
    %3726 = vset.pattern.permute.xlu0 0
    %3727 = vperm.xlu0 %3726, %v3611
    %v3728 = vpop.permute.xlu0 %3727
    %3731 = vset.pattern.permute.xlu0 0
    %3732 = vperm.xlu0 %3731, %v3612
    %v3733 = vpop.permute.xlu0 %3732
    %3736 = vset.pattern.permute.xlu0 0
    %3737 = vperm.xlu0 %3736, %v3613
    %v3738 = vpop.permute.xlu0 %3737
    %3741 = vset.pattern.permute.xlu0 0
    %3742 = vperm.xlu0 %3741, %v3614
    %v3743 = vpop.permute.xlu0 %3742
    %3746 = vset.pattern.permute.xlu0 0
    %3747 = vperm.xlu0 %3746, %v3615
    %v3748 = vpop.permute.xlu0 %3747
    %3751 = vset.pattern.permute.xlu0 0
    %3752 = vperm.xlu0 %3751, %v3616
    %v3753 = vpop.permute.xlu0 %3752
    %3756 = vset.pattern.permute.xlu0 0
    %3757 = vperm.xlu0 %3756, %v3617
    %v3758 = vpop.permute.xlu0 %3757
    %3761 = vset.pattern.permute.xlu0 0
    %3762 = vperm.xlu0 %3761, %v3618
    %v3763 = vpop.permute.xlu0 %3762
    %3766 = vset.pattern.permute.xlu0 0
    %3767 = vperm.xlu0 %3766, %v3619
    %v3768 = vpop.permute.xlu0 %3767
    %3771 = vset.pattern.permute.xlu0 0
    %3772 = vperm.xlu0 %3771, %v3620
    %v3773 = vpop.permute.xlu0 %3772
    %3776 = vset.pattern.permute.xlu0 0
    %3777 = vperm.xlu0 %3776, %v3621
    %v3778 = vpop.permute.xlu0 %3777
    %3781 = vset.pattern.permute.xlu0 0
    %3782 = vperm.xlu0 %3781, %v3622
    %v3783 = vpop.permute.xlu0 %3782
    %3786 = vset.pattern.permute.xlu0 0
    %3787 = vperm.xlu0 %3786, %v3623
    %v3788 = vpop.permute.xlu0 %3787
    %3791 = vset.pattern.permute.xlu0 0
    %3792 = vperm.xlu0 %3791, %v3624
    %v3793 = vpop.permute.xlu0 %3792
    %3796 = vset.pattern.permute.xlu0 0
    %3797 = vperm.xlu0 %3796, %v3625
    %v3798 = vpop.permute.xlu0 %3797
    %3801 = vset.pattern.permute.xlu0 0
    %3802 = vperm.xlu0 %3801, %v3626
    %v3803 = vpop.permute.xlu0 %3802
    %3806 = vset.pattern.permute.xlu0 0
    %3807 = vperm.xlu0 %3806, %v3627
    %v3808 = vpop.permute.xlu0 %3807
    %3811 = vset.pattern.permute.xlu0 0
    %3812 = vperm.xlu0 %3811, %v3628
    %v3813 = vpop.permute.xlu0 %3812
    %3816 = vset.pattern.permute.xlu0 0
    %3817 = vperm.xlu0 %3816, %v3629
    %v3818 = vpop.permute.xlu0 %3817
    %3821 = vset.pattern.permute.xlu0 0
    %3822 = vperm.xlu0 %3821, %v3630
    %v3823 = vpop.permute.xlu0 %3822
    %3826 = vset.pattern.permute.xlu0 0
    %3827 = vperm.xlu0 %3826, %v3631
    %v3828 = vpop.permute.xlu0 %3827
    %3831 = vset.pattern.permute.xlu0 0
    %3832 = vperm.xlu0 %3831, %v3632
    %v3833 = vpop.permute.xlu0 %3832
    %3836 = vset.pattern.permute.xlu0 0
    %3837 = vperm.xlu0 %3836, %v3633
    %v3838 = vpop.permute.xlu0 %3837
    %3841 = vset.pattern.permute.xlu0 0
    %3842 = vperm.xlu0 %3841, %v3634
    %v3843 = vpop.permute.xlu0 %3842
    %3846 = vset.pattern.permute.xlu0 0
    %3847 = vperm.xlu0 %3846, %v3635
    %v3848 = vpop.permute.xlu0 %3847
    %3851 = vset.pattern.permute.xlu0 0
    %3852 = vperm.xlu0 %3851, %v3636
    %v3853 = vpop.permute.xlu0 %3852
    %3856 = vset.pattern.permute.xlu0 0
    %3857 = vperm.xlu0 %3856, %v3637
    %v3858 = vpop.permute.xlu0 %3857
    %3861 = vset.pattern.permute.xlu0 0
    %3862 = vperm.xlu0 %3861, %v3638
    %v3863 = vpop.permute.xlu0 %3862
    %3866 = vset.pattern.permute.xlu0 0
    %3867 = vperm.xlu0 %3866, %v3639
    %v3868 = vpop.permute.xlu0 %3867
    %3871 = vset.pattern.permute.xlu0 0
    %3872 = vperm.xlu0 %3871, %v3640
    %v3873 = vpop.permute.xlu0 %3872
    %3876 = vset.pattern.permute.xlu0 0
    %3877 = vperm.xlu0 %3876, %v3641
    %v3878 = vpop.permute.xlu0 %3877
    %3881 = vset.pattern.permute.xlu0 0
    %3882 = vperm.xlu0 %3881, %v3642
    %v3883 = vpop.permute.xlu0 %3882
    %3886 = vset.pattern.permute.xlu0 0
    %3887 = vperm.xlu0 %3886, %v3643
    %v3888 = vpop.permute.xlu0 %3887
    %3891 = vset.pattern.permute.xlu0 0
    %3892 = vperm.xlu0 %3891, %v3644
    %v3893 = vpop.permute.xlu0 %3892
    %3896 = vset.pattern.permute.xlu0 0
    %3897 = vperm.xlu0 %3896, %v3645
    %v3898 = vpop.permute.xlu0 %3897
    %3901 = vset.pattern.permute.xlu0 0
    %3902 = vperm.xlu0 %3901, %v3646
    %v3903 = vpop.permute.xlu0 %3902
    %3906 = vset.pattern.permute.xlu0 0
    %3907 = vperm.xlu0 %3906, %v3647
    %v3908 = vpop.permute.xlu0 %3907
    %3911 = vset.pattern.permute.xlu0 0
    %3912 = vperm.xlu0 %3911, %v3648
    %v3913 = vpop.permute.xlu0 %3912
    %3916 = vset.pattern.permute.xlu0 0
    %3917 = vperm.xlu0 %3916, %v3649
    %v3918 = vpop.permute.xlu0 %3917
    %3921 = vset.pattern.permute.xlu0 0
    %3922 = vperm.xlu0 %3921, %v3650
    %v3923 = vpop.permute.xlu0 %3922
    %3926 = vset.pattern.permute.xlu0 0
    %3927 = vperm.xlu0 %3926, %v3651
    %v3928 = vpop.permute.xlu0 %3927
    %3931 = vset.pattern.permute.xlu0 0
    %3932 = vperm.xlu0 %3931, %v3652
    %v3933 = vpop.permute.xlu0 %3932
    %3936 = vset.pattern.permute.xlu0 0
    %3937 = vperm.xlu0 %3936, %v3653
    %v3938 = vpop.permute.xlu0 %3937
    %3941 = vset.pattern.permute.xlu0 0
    %3942 = vperm.xlu0 %3941, %v3654
    %v3943 = vpop.permute.xlu0 %3942
    %3946 = vset.pattern.permute.xlu0 0
    %3947 = vperm.xlu0 %3946, %v3655
    %v3948 = vpop.permute.xlu0 %3947
    %3951 = vset.pattern.permute.xlu0 0
    %3952 = vperm.xlu0 %3951, %v3656
    %v3953 = vpop.permute.xlu0 %3952
    %3956 = vset.pattern.permute.xlu0 0
    %3957 = vperm.xlu0 %3956, %v3657
    %v3958 = vpop.permute.xlu0 %3957
    %3961 = vset.pattern.permute.xlu0 0
    %3962 = vperm.xlu0 %3961, %v3658
    %v3963 = vpop.permute.xlu0 %3962
    %3966 = vset.pattern.permute.xlu0 0
    %3967 = vperm.xlu0 %3966, %v3659
    %v3968 = vpop.permute.xlu0 %3967
    %3971 = vset.pattern.permute.xlu0 0
    %3972 = vperm.xlu0 %3971, %v3660
    %v3973 = vpop.permute.xlu0 %3972
    %3976 = vset.pattern.permute.xlu0 0
    %3977 = vperm.xlu0 %3976, %v3661
    %v3978 = vpop.permute.xlu0 %3977
    %3981 = vset.pattern.permute.xlu0 0
    %3982 = vperm.xlu0 %3981, %v3662
    %v3983 = vpop.permute.xlu0 %3982
    %v3986 = vlaneseq
    %v3987 = vshrl.u32 %v3986, 7
    %v3988 = vsub.s32 0, %v3987
    %v3989 = vrot.slane %v3664, %v3988
    %v3991 = vmul.f32 %v3668, %v3989
    %v3992 = vmul.f32 %v3673, %v3989
    %v3993 = vmul.f32 %v3678, %v3989
    %v3994 = vmul.f32 %v3683, %v3989
    %v3995 = vmul.f32 %v3688, %v3989
    %v3996 = vmul.f32 %v3693, %v3989
    %v3997 = vmul.f32 %v3698, %v3989
    %v3998 = vmul.f32 %v3703, %v3989
    %v3999 = vmul.f32 %v3708, %v3989
    %v4000 = vmul.f32 %v3713, %v3989
    %v4001 = vmul.f32 %v3718, %v3989
    %v4002 = vmul.f32 %v3723, %v3989
    %v4003 = vmul.f32 %v3728, %v3989
    %v4004 = vmul.f32 %v3733, %v3989
    %v4005 = vmul.f32 %v3738, %v3989
    %v4006 = vmul.f32 %v3743, %v3989
    %v4007 = vmul.f32 %v3748, %v3989
    %v4008 = vmul.f32 %v3753, %v3989
    %v4009 = vmul.f32 %v3758, %v3989
    %v4010 = vmul.f32 %v3763, %v3989
    %v4011 = vmul.f32 %v3768, %v3989
    %v4012 = vmul.f32 %v3773, %v3989
    %v4013 = vmul.f32 %v3778, %v3989
    %v4014 = vmul.f32 %v3783, %v3989
    %v4015 = vmul.f32 %v3788, %v3989
    %v4016 = vmul.f32 %v3793, %v3989
    %v4017 = vmul.f32 %v3798, %v3989
    %v4018 = vmul.f32 %v3803, %v3989
    %v4019 = vmul.f32 %v3808, %v3989
    %v4020 = vmul.f32 %v3813, %v3989
    %v4021 = vmul.f32 %v3818, %v3989
    %v4022 = vmul.f32 %v3823, %v3989
    %v4023 = vmul.f32 %v3828, %v3989
    %v4024 = vmul.f32 %v3833, %v3989
    %v4025 = vmul.f32 %v3838, %v3989
    %v4026 = vmul.f32 %v3843, %v3989
    %v4027 = vmul.f32 %v3848, %v3989
    %v4028 = vmul.f32 %v3853, %v3989
    %v4029 = vmul.f32 %v3858, %v3989
    %v4030 = vmul.f32 %v3863, %v3989
    %v4031 = vmul.f32 %v3868, %v3989
    %v4032 = vmul.f32 %v3873, %v3989
    %v4033 = vmul.f32 %v3878, %v3989
    %v4034 = vmul.f32 %v3883, %v3989
    %v4035 = vmul.f32 %v3888, %v3989
    %v4036 = vmul.f32 %v3893, %v3989
    %v4037 = vmul.f32 %v3898, %v3989
    %v4038 = vmul.f32 %v3903, %v3989
    %v4039 = vmul.f32 %v3908, %v3989
    %v4040 = vmul.f32 %v3913, %v3989
    %v4041 = vmul.f32 %v3918, %v3989
    %v4042 = vmul.f32 %v3923, %v3989
    %v4043 = vmul.f32 %v3928, %v3989
    %v4044 = vmul.f32 %v3933, %v3989
    %v4045 = vmul.f32 %v3938, %v3989
    %v4046 = vmul.f32 %v3943, %v3989
    %v4047 = vmul.f32 %v3948, %v3989
    %v4048 = vmul.f32 %v3953, %v3989
    %v4049 = vmul.f32 %v3958, %v3989
    %v4050 = vmul.f32 %v3963, %v3989
    %v4051 = vmul.f32 %v3968, %v3989
    %v4052 = vmul.f32 %v3973, %v3989
    %v4053 = vmul.f32 %v3978, %v3989
    %v4054 = vmul.f32 %v3983, %v3989
    %v4055 = vadd.f32 %v3535, %v3991
    %v4056 = vadd.f32 %v3536, %v3992
    %v4057 = vadd.f32 %v3537, %v3993
    %v4058 = vadd.f32 %v3538, %v3994
    %v4059 = vadd.f32 %v3539, %v3995
    %v4060 = vadd.f32 %v3540, %v3996
    %v4061 = vadd.f32 %v3541, %v3997
    %v4062 = vadd.f32 %v3542, %v3998
    %v4063 = vadd.f32 %v3543, %v3999
    %v4064 = vadd.f32 %v3544, %v4000
    %v4065 = vadd.f32 %v3545, %v4001
    %v4066 = vadd.f32 %v3546, %v4002
    %v4067 = vadd.f32 %v3547, %v4003
    %v4068 = vadd.f32 %v3548, %v4004
    %v4069 = vadd.f32 %v3549, %v4005
    %v4070 = vadd.f32 %v3550, %v4006
    %v4071 = vadd.f32 %v3551, %v4007
    %v4072 = vadd.f32 %v3552, %v4008
    %v4073 = vadd.f32 %v3553, %v4009
    %v4074 = vadd.f32 %v3554, %v4010
    %v4075 = vadd.f32 %v3555, %v4011
    %v4076 = vadd.f32 %v3556, %v4012
    %v4077 = vadd.f32 %v3557, %v4013
    %v4078 = vadd.f32 %v3558, %v4014
    %v4079 = vadd.f32 %v3559, %v4015
    %v4080 = vadd.f32 %v3560, %v4016
    %v4081 = vadd.f32 %v3561, %v4017
    %v4082 = vadd.f32 %v3562, %v4018
    %v4083 = vadd.f32 %v3563, %v4019
    %v4084 = vadd.f32 %v3564, %v4020
    %v4085 = vadd.f32 %v3565, %v4021
    %v4086 = vadd.f32 %v3566, %v4022
    %v4087 = vadd.f32 %v3567, %v4023
    %v4088 = vadd.f32 %v3568, %v4024
    %v4089 = vadd.f32 %v3569, %v4025
    %v4090 = vadd.f32 %v3570, %v4026
    %v4091 = vadd.f32 %v3571, %v4027
    %v4092 = vadd.f32 %v3572, %v4028
    %v4093 = vadd.f32 %v3573, %v4029
    %v4094 = vadd.f32 %v3574, %v4030
    %v4095 = vadd.f32 %v3575, %v4031
    %v4096 = vadd.f32 %v3576, %v4032
    %v4097 = vadd.f32 %v3577, %v4033
    %v4098 = vadd.f32 %v3578, %v4034
    %v4099 = vadd.f32 %v3579, %v4035
    %v4100 = vadd.f32 %v3580, %v4036
    %v4101 = vadd.f32 %v3581, %v4037
    %v4102 = vadd.f32 %v3582, %v4038
    %v4103 = vadd.f32 %v3583, %v4039
    %v4104 = vadd.f32 %v3584, %v4040
    %v4105 = vadd.f32 %v3585, %v4041
    %v4106 = vadd.f32 %v3586, %v4042
    %v4107 = vadd.f32 %v3587, %v4043
    %v4108 = vadd.f32 %v3588, %v4044
    %v4109 = vadd.f32 %v3589, %v4045
    %v4110 = vadd.f32 %v3590, %v4046
    %v4111 = vadd.f32 %v3591, %v4047
    %v4112 = vadd.f32 %v3592, %v4048
    %v4113 = vadd.f32 %v3593, %v4049
    %v4114 = vadd.f32 %v3594, %v4050
    %v4115 = vadd.f32 %v3595, %v4051
    %v4116 = vadd.f32 %v3596, %v4052
    %v4117 = vadd.f32 %v3597, %v4053
    %v4118 = vadd.f32 %v3598, %v4054
    %v4119 = vld [vmem:[%s3078 + $0x2] sm:$0xff]
    %v4120 = vld [vmem:[%s3078 + $0xa] sm:$0xff]
    %v4121 = vld [vmem:[%s3078 + $0x1a] sm:$0xff]
    %v4122 = vld [vmem:[%s3078 + $0x22] sm:$0xff]
    %v4123 = vld [vmem:[%s3078 + $0x32] sm:$0xff]
    %v4124 = vld [vmem:[%s3078 + $0x3a] sm:$0xff]
    %v4125 = vld [vmem:[%s3078 + $0x4a] sm:$0xff]
    %v4126 = vld [vmem:[%s3078 + $0x52] sm:$0xff]
    %v4127 = vld [vmem:[%s3078 + $0x62] sm:$0xff]
    %v4128 = vld [vmem:[%s3078 + $0x6a] sm:$0xff]
    %v4129 = vld [vmem:[%s3078 + $0x7a] sm:$0xff]
    %v4130 = vld [vmem:[%s3078 + $0x82] sm:$0xff]
    %v4131 = vld [vmem:[%s3078 + $0x92] sm:$0xff]
    %v4132 = vld [vmem:[%s3078 + $0x9a] sm:$0xff]
    %v4133 = vld [vmem:[%s3078 + $0xaa] sm:$0xff]
    %v4134 = vld [vmem:[%s3078 + $0xb2] sm:$0xff]
    %v4135 = vld [vmem:[%s3078 + $0xc2] sm:$0xff]
    %v4136 = vld [vmem:[%s3078 + $0xca] sm:$0xff]
    %v4137 = vld [vmem:[%s3078 + $0xda] sm:$0xff]
    %v4138 = vld [vmem:[%s3078 + $0xe2] sm:$0xff]
    %v4139 = vld [vmem:[%s3078 + $0xf2] sm:$0xff]
    %v4140 = vld [vmem:[%s3078 + $0xfa] sm:$0xff]
    %v4141 = vld [vmem:[%s3078 + $0x10a] sm:$0xff]
    %v4142 = vld [vmem:[%s3078 + $0x112] sm:$0xff]
    %v4143 = vld [vmem:[%s3078 + $0x122] sm:$0xff]
    %v4144 = vld [vmem:[%s3078 + $0x12a] sm:$0xff]
    %v4145 = vld [vmem:[%s3078 + $0x13a] sm:$0xff]
    %v4146 = vld [vmem:[%s3078 + $0x142] sm:$0xff]
    %v4147 = vld [vmem:[%s3078 + $0x152] sm:$0xff]
    %v4148 = vld [vmem:[%s3078 + $0x15a] sm:$0xff]
    %v4149 = vld [vmem:[%s3078 + $0x16a] sm:$0xff]
    %v4150 = vld [vmem:[%s3078 + $0x172] sm:$0xff]
    %v4151 = vld [vmem:[%s3078 + $0x1b2] sm:$0xff]
    %v4152 = vld [vmem:[%s3078 + $0x1ba] sm:$0xff]
    %v4153 = vld [vmem:[%s3078 + $0x1ca] sm:$0xff]
    %v4154 = vld [vmem:[%s3078 + $0x1d2] sm:$0xff]
    %v4155 = vld [vmem:[%s3078 + $0x1e2] sm:$0xff]
    %v4156 = vld [vmem:[%s3078 + $0x1ea] sm:$0xff]
    %v4157 = vld [vmem:[%s3078 + $0x1fa] sm:$0xff]
    %v4158 = vld [vmem:[%s3078 + $0x202] sm:$0xff]
    %v4159 = vld [vmem:[%s3078 + $0x212] sm:$0xff]
    %v4160 = vld [vmem:[%s3078 + $0x21a] sm:$0xff]
    %v4161 = vld [vmem:[%s3078 + $0x22a] sm:$0xff]
    %v4162 = vld [vmem:[%s3078 + $0x232] sm:$0xff]
    %v4163 = vld [vmem:[%s3078 + $0x242] sm:$0xff]
    %v4164 = vld [vmem:[%s3078 + $0x24a] sm:$0xff]
    %v4165 = vld [vmem:[%s3078 + $0x25a] sm:$0xff]
    %v4166 = vld [vmem:[%s3078 + $0x262] sm:$0xff]
    %v4167 = vld [vmem:[%s3078 + $0x272] sm:$0xff]
    %v4168 = vld [vmem:[%s3078 + $0x27a] sm:$0xff]
    %v4169 = vld [vmem:[%s3078 + $0x28a] sm:$0xff]
    %v4170 = vld [vmem:[%s3078 + $0x292] sm:$0xff]
    %v4171 = vld [vmem:[%s3078 + $0x2a2] sm:$0xff]
    %v4172 = vld [vmem:[%s3078 + $0x2aa] sm:$0xff]
    %v4173 = vld [vmem:[%s3078 + $0x2ba] sm:$0xff]
    %v4174 = vld [vmem:[%s3078 + $0x2c2] sm:$0xff]
    %v4175 = vld [vmem:[%s3078 + $0x2d2] sm:$0xff]
    %v4176 = vld [vmem:[%s3078 + $0x2da] sm:$0xff]
    %v4177 = vld [vmem:[%s3078 + $0x2ea] sm:$0xff]
    %v4178 = vld [vmem:[%s3078 + $0x2f2] sm:$0xff]
    %v4179 = vld [vmem:[%s3078 + $0x302] sm:$0xff]
    %v4180 = vld [vmem:[%s3078 + $0x30a] sm:$0xff]
    %v4181 = vld [vmem:[%s3078 + $0x31a] sm:$0xff]
    %v4182 = vld [vmem:[%s3078 + $0x322] sm:$0xff]
    %s4183 = scalar_lea.vmem %s1, 8
    %v4184 = vld [vmem:[%s4183] sm:$0x1]
    %4186 = vset.pattern.permute.xlu0 0
    %4187 = vperm.xlu0 %4186, %v4119
    %v4188 = vpop.permute.xlu0 %4187
    %4191 = vset.pattern.permute.xlu0 0
    %4192 = vperm.xlu0 %4191, %v4120
    %v4193 = vpop.permute.xlu0 %4192
    %4196 = vset.pattern.permute.xlu0 0
    %4197 = vperm.xlu0 %4196, %v4121
    %v4198 = vpop.permute.xlu0 %4197
    %4201 = vset.pattern.permute.xlu0 0
    %4202 = vperm.xlu0 %4201, %v4122
    %v4203 = vpop.permute.xlu0 %4202
    %4206 = vset.pattern.permute.xlu0 0
    %4207 = vperm.xlu0 %4206, %v4123
    %v4208 = vpop.permute.xlu0 %4207
    %4211 = vset.pattern.permute.xlu0 0
    %4212 = vperm.xlu0 %4211, %v4124
    %v4213 = vpop.permute.xlu0 %4212
    %4216 = vset.pattern.permute.xlu0 0
    %4217 = vperm.xlu0 %4216, %v4125
    %v4218 = vpop.permute.xlu0 %4217
    %4221 = vset.pattern.permute.xlu0 0
    %4222 = vperm.xlu0 %4221, %v4126
    %v4223 = vpop.permute.xlu0 %4222
    %4226 = vset.pattern.permute.xlu0 0
    %4227 = vperm.xlu0 %4226, %v4127
    %v4228 = vpop.permute.xlu0 %4227
    %4231 = vset.pattern.permute.xlu0 0
    %4232 = vperm.xlu0 %4231, %v4128
    %v4233 = vpop.permute.xlu0 %4232
    %4236 = vset.pattern.permute.xlu0 0
    %4237 = vperm.xlu0 %4236, %v4129
    %v4238 = vpop.permute.xlu0 %4237
    %4241 = vset.pattern.permute.xlu0 0
    %4242 = vperm.xlu0 %4241, %v4130
    %v4243 = vpop.permute.xlu0 %4242
    %4246 = vset.pattern.permute.xlu0 0
    %4247 = vperm.xlu0 %4246, %v4131
    %v4248 = vpop.permute.xlu0 %4247
    %4251 = vset.pattern.permute.xlu0 0
    %4252 = vperm.xlu0 %4251, %v4132
    %v4253 = vpop.permute.xlu0 %4252
    %4256 = vset.pattern.permute.xlu0 0
    %4257 = vperm.xlu0 %4256, %v4133
    %v4258 = vpop.permute.xlu0 %4257
    %4261 = vset.pattern.permute.xlu0 0
    %4262 = vperm.xlu0 %4261, %v4134
    %v4263 = vpop.permute.xlu0 %4262
    %4266 = vset.pattern.permute.xlu0 0
    %4267 = vperm.xlu0 %4266, %v4135
    %v4268 = vpop.permute.xlu0 %4267
    %4271 = vset.pattern.permute.xlu0 0
    %4272 = vperm.xlu0 %4271, %v4136
    %v4273 = vpop.permute.xlu0 %4272
    %4276 = vset.pattern.permute.xlu0 0
    %4277 = vperm.xlu0 %4276, %v4137
    %v4278 = vpop.permute.xlu0 %4277
    %4281 = vset.pattern.permute.xlu0 0
    %4282 = vperm.xlu0 %4281, %v4138
    %v4283 = vpop.permute.xlu0 %4282
    %4286 = vset.pattern.permute.xlu0 0
    %4287 = vperm.xlu0 %4286, %v4139
    %v4288 = vpop.permute.xlu0 %4287
    %4291 = vset.pattern.permute.xlu0 0
    %4292 = vperm.xlu0 %4291, %v4140
    %v4293 = vpop.permute.xlu0 %4292
    %4296 = vset.pattern.permute.xlu0 0
    %4297 = vperm.xlu0 %4296, %v4141
    %v4298 = vpop.permute.xlu0 %4297
    %4301 = vset.pattern.permute.xlu0 0
    %4302 = vperm.xlu0 %4301, %v4142
    %v4303 = vpop.permute.xlu0 %4302
    %4306 = vset.pattern.permute.xlu0 0
    %4307 = vperm.xlu0 %4306, %v4143
    %v4308 = vpop.permute.xlu0 %4307
    %4311 = vset.pattern.permute.xlu0 0
    %4312 = vperm.xlu0 %4311, %v4144
    %v4313 = vpop.permute.xlu0 %4312
    %4316 = vset.pattern.permute.xlu0 0
    %4317 = vperm.xlu0 %4316, %v4145
    %v4318 = vpop.permute.xlu0 %4317
    %4321 = vset.pattern.permute.xlu0 0
    %4322 = vperm.xlu0 %4321, %v4146
    %v4323 = vpop.permute.xlu0 %4322
    %4326 = vset.pattern.permute.xlu0 0
    %4327 = vperm.xlu0 %4326, %v4147
    %v4328 = vpop.permute.xlu0 %4327
    %4331 = vset.pattern.permute.xlu0 0
    %4332 = vperm.xlu0 %4331, %v4148
    %v4333 = vpop.permute.xlu0 %4332
    %4336 = vset.pattern.permute.xlu0 0
    %4337 = vperm.xlu0 %4336, %v4149
    %v4338 = vpop.permute.xlu0 %4337
    %4341 = vset.pattern.permute.xlu0 0
    %4342 = vperm.xlu0 %4341, %v4150
    %v4343 = vpop.permute.xlu0 %4342
    %4346 = vset.pattern.permute.xlu0 0
    %4347 = vperm.xlu0 %4346, %v4151
    %v4348 = vpop.permute.xlu0 %4347
    %4351 = vset.pattern.permute.xlu0 0
    %4352 = vperm.xlu0 %4351, %v4152
    %v4353 = vpop.permute.xlu0 %4352
    %4356 = vset.pattern.permute.xlu0 0
    %4357 = vperm.xlu0 %4356, %v4153
    %v4358 = vpop.permute.xlu0 %4357
    %4361 = vset.pattern.permute.xlu0 0
    %4362 = vperm.xlu0 %4361, %v4154
    %v4363 = vpop.permute.xlu0 %4362
    %4366 = vset.pattern.permute.xlu0 0
    %4367 = vperm.xlu0 %4366, %v4155
    %v4368 = vpop.permute.xlu0 %4367
    %4371 = vset.pattern.permute.xlu0 0
    %4372 = vperm.xlu0 %4371, %v4156
    %v4373 = vpop.permute.xlu0 %4372
    %4376 = vset.pattern.permute.xlu0 0
    %4377 = vperm.xlu0 %4376, %v4157
    %v4378 = vpop.permute.xlu0 %4377
    %4381 = vset.pattern.permute.xlu0 0
    %4382 = vperm.xlu0 %4381, %v4158
    %v4383 = vpop.permute.xlu0 %4382
    %4386 = vset.pattern.permute.xlu0 0
    %4387 = vperm.xlu0 %4386, %v4159
    %v4388 = vpop.permute.xlu0 %4387
    %4391 = vset.pattern.permute.xlu0 0
    %4392 = vperm.xlu0 %4391, %v4160
    %v4393 = vpop.permute.xlu0 %4392
    %4396 = vset.pattern.permute.xlu0 0
    %4397 = vperm.xlu0 %4396, %v4161
    %v4398 = vpop.permute.xlu0 %4397
    %4401 = vset.pattern.permute.xlu0 0
    %4402 = vperm.xlu0 %4401, %v4162
    %v4403 = vpop.permute.xlu0 %4402
    %4406 = vset.pattern.permute.xlu0 0
    %4407 = vperm.xlu0 %4406, %v4163
    %v4408 = vpop.permute.xlu0 %4407
    %4411 = vset.pattern.permute.xlu0 0
    %4412 = vperm.xlu0 %4411, %v4164
    %v4413 = vpop.permute.xlu0 %4412
    %4416 = vset.pattern.permute.xlu0 0
    %4417 = vperm.xlu0 %4416, %v4165
    %v4418 = vpop.permute.xlu0 %4417
    %4421 = vset.pattern.permute.xlu0 0
    %4422 = vperm.xlu0 %4421, %v4166
    %v4423 = vpop.permute.xlu0 %4422
    %4426 = vset.pattern.permute.xlu0 0
    %4427 = vperm.xlu0 %4426, %v4167
    %v4428 = vpop.permute.xlu0 %4427
    %4431 = vset.pattern.permute.xlu0 0
    %4432 = vperm.xlu0 %4431, %v4168
    %v4433 = vpop.permute.xlu0 %4432
    %4436 = vset.pattern.permute.xlu0 0
    %4437 = vperm.xlu0 %4436, %v4169
    %v4438 = vpop.permute.xlu0 %4437
    %4441 = vset.pattern.permute.xlu0 0
    %4442 = vperm.xlu0 %4441, %v4170
    %v4443 = vpop.permute.xlu0 %4442
    %4446 = vset.pattern.permute.xlu0 0
    %4447 = vperm.xlu0 %4446, %v4171
    %v4448 = vpop.permute.xlu0 %4447
    %4451 = vset.pattern.permute.xlu0 0
    %4452 = vperm.xlu0 %4451, %v4172
    %v4453 = vpop.permute.xlu0 %4452
    %4456 = vset.pattern.permute.xlu0 0
    %4457 = vperm.xlu0 %4456, %v4173
    %v4458 = vpop.permute.xlu0 %4457
    %4461 = vset.pattern.permute.xlu0 0
    %4462 = vperm.xlu0 %4461, %v4174
    %v4463 = vpop.permute.xlu0 %4462
    %4466 = vset.pattern.permute.xlu0 0
    %4467 = vperm.xlu0 %4466, %v4175
    %v4468 = vpop.permute.xlu0 %4467
    %4471 = vset.pattern.permute.xlu0 0
    %4472 = vperm.xlu0 %4471, %v4176
    %v4473 = vpop.permute.xlu0 %4472
    %4476 = vset.pattern.permute.xlu0 0
    %4477 = vperm.xlu0 %4476, %v4177
    %v4478 = vpop.permute.xlu0 %4477
    %4481 = vset.pattern.permute.xlu0 0
    %4482 = vperm.xlu0 %4481, %v4178
    %v4483 = vpop.permute.xlu0 %4482
    %4486 = vset.pattern.permute.xlu0 0
    %4487 = vperm.xlu0 %4486, %v4179
    %v4488 = vpop.permute.xlu0 %4487
    %4491 = vset.pattern.permute.xlu0 0
    %4492 = vperm.xlu0 %4491, %v4180
    %v4493 = vpop.permute.xlu0 %4492
    %4496 = vset.pattern.permute.xlu0 0
    %4497 = vperm.xlu0 %4496, %v4181
    %v4498 = vpop.permute.xlu0 %4497
    %4501 = vset.pattern.permute.xlu0 0
    %4502 = vperm.xlu0 %4501, %v4182
    %v4503 = vpop.permute.xlu0 %4502
    %v4506 = vlaneseq
    %v4507 = vshrl.u32 %v4506, 7
    %v4508 = vsub.s32 0, %v4507
    %v4509 = vrot.slane %v4184, %v4508
    %v4511 = vmul.f32 %v4188, %v4509
    %v4512 = vmul.f32 %v4193, %v4509
    %v4513 = vmul.f32 %v4198, %v4509
    %v4514 = vmul.f32 %v4203, %v4509
    %v4515 = vmul.f32 %v4208, %v4509
    %v4516 = vmul.f32 %v4213, %v4509
    %v4517 = vmul.f32 %v4218, %v4509
    %v4518 = vmul.f32 %v4223, %v4509
    %v4519 = vmul.f32 %v4228, %v4509
    %v4520 = vmul.f32 %v4233, %v4509
    %v4521 = vmul.f32 %v4238, %v4509
    %v4522 = vmul.f32 %v4243, %v4509
    %v4523 = vmul.f32 %v4248, %v4509
    %v4524 = vmul.f32 %v4253, %v4509
    %v4525 = vmul.f32 %v4258, %v4509
    %v4526 = vmul.f32 %v4263, %v4509
    %v4527 = vmul.f32 %v4268, %v4509
    %v4528 = vmul.f32 %v4273, %v4509
    %v4529 = vmul.f32 %v4278, %v4509
    %v4530 = vmul.f32 %v4283, %v4509
    %v4531 = vmul.f32 %v4288, %v4509
    %v4532 = vmul.f32 %v4293, %v4509
    %v4533 = vmul.f32 %v4298, %v4509
    %v4534 = vmul.f32 %v4303, %v4509
    %v4535 = vmul.f32 %v4308, %v4509
    %v4536 = vmul.f32 %v4313, %v4509
    %v4537 = vmul.f32 %v4318, %v4509
    %v4538 = vmul.f32 %v4323, %v4509
    %v4539 = vmul.f32 %v4328, %v4509
    %v4540 = vmul.f32 %v4333, %v4509
    %v4541 = vmul.f32 %v4338, %v4509
    %v4542 = vmul.f32 %v4343, %v4509
    %v4543 = vmul.f32 %v4348, %v4509
    %v4544 = vmul.f32 %v4353, %v4509
    %v4545 = vmul.f32 %v4358, %v4509
    %v4546 = vmul.f32 %v4363, %v4509
    %v4547 = vmul.f32 %v4368, %v4509
    %v4548 = vmul.f32 %v4373, %v4509
    %v4549 = vmul.f32 %v4378, %v4509
    %v4550 = vmul.f32 %v4383, %v4509
    %v4551 = vmul.f32 %v4388, %v4509
    %v4552 = vmul.f32 %v4393, %v4509
    %v4553 = vmul.f32 %v4398, %v4509
    %v4554 = vmul.f32 %v4403, %v4509
    %v4555 = vmul.f32 %v4408, %v4509
    %v4556 = vmul.f32 %v4413, %v4509
    %v4557 = vmul.f32 %v4418, %v4509
    %v4558 = vmul.f32 %v4423, %v4509
    %v4559 = vmul.f32 %v4428, %v4509
    %v4560 = vmul.f32 %v4433, %v4509
    %v4561 = vmul.f32 %v4438, %v4509
    %v4562 = vmul.f32 %v4443, %v4509
    %v4563 = vmul.f32 %v4448, %v4509
    %v4564 = vmul.f32 %v4453, %v4509
    %v4565 = vmul.f32 %v4458, %v4509
    %v4566 = vmul.f32 %v4463, %v4509
    %v4567 = vmul.f32 %v4468, %v4509
    %v4568 = vmul.f32 %v4473, %v4509
    %v4569 = vmul.f32 %v4478, %v4509
    %v4570 = vmul.f32 %v4483, %v4509
    %v4571 = vmul.f32 %v4488, %v4509
    %v4572 = vmul.f32 %v4493, %v4509
    %v4573 = vmul.f32 %v4498, %v4509
    %v4574 = vmul.f32 %v4503, %v4509
    %v4575 = vadd.f32 %v4055, %v4511
    %v4576 = vadd.f32 %v4056, %v4512
    %v4577 = vadd.f32 %v4057, %v4513
    %v4578 = vadd.f32 %v4058, %v4514
    %v4579 = vadd.f32 %v4059, %v4515
    %v4580 = vadd.f32 %v4060, %v4516
    %v4581 = vadd.f32 %v4061, %v4517
    %v4582 = vadd.f32 %v4062, %v4518
    %v4583 = vadd.f32 %v4063, %v4519
    %v4584 = vadd.f32 %v4064, %v4520
    %v4585 = vadd.f32 %v4065, %v4521
    %v4586 = vadd.f32 %v4066, %v4522
    %v4587 = vadd.f32 %v4067, %v4523
    %v4588 = vadd.f32 %v4068, %v4524
    %v4589 = vadd.f32 %v4069, %v4525
    %v4590 = vadd.f32 %v4070, %v4526
    %v4591 = vadd.f32 %v4071, %v4527
    %v4592 = vadd.f32 %v4072, %v4528
    %v4593 = vadd.f32 %v4073, %v4529
    %v4594 = vadd.f32 %v4074, %v4530
    %v4595 = vadd.f32 %v4075, %v4531
    %v4596 = vadd.f32 %v4076, %v4532
    %v4597 = vadd.f32 %v4077, %v4533
    %v4598 = vadd.f32 %v4078, %v4534
    %v4599 = vadd.f32 %v4079, %v4535
    %v4600 = vadd.f32 %v4080, %v4536
    %v4601 = vadd.f32 %v4081, %v4537
    %v4602 = vadd.f32 %v4082, %v4538
    %v4603 = vadd.f32 %v4083, %v4539
    %v4604 = vadd.f32 %v4084, %v4540
    %v4605 = vadd.f32 %v4085, %v4541
    %v4606 = vadd.f32 %v4086, %v4542
    %v4607 = vadd.f32 %v4087, %v4543
    %v4608 = vadd.f32 %v4088, %v4544
    %v4609 = vadd.f32 %v4089, %v4545
    %v4610 = vadd.f32 %v4090, %v4546
    %v4611 = vadd.f32 %v4091, %v4547
    %v4612 = vadd.f32 %v4092, %v4548
    %v4613 = vadd.f32 %v4093, %v4549
    %v4614 = vadd.f32 %v4094, %v4550
    %v4615 = vadd.f32 %v4095, %v4551
    %v4616 = vadd.f32 %v4096, %v4552
    %v4617 = vadd.f32 %v4097, %v4553
    %v4618 = vadd.f32 %v4098, %v4554
    %v4619 = vadd.f32 %v4099, %v4555
    %v4620 = vadd.f32 %v4100, %v4556
    %v4621 = vadd.f32 %v4101, %v4557
    %v4622 = vadd.f32 %v4102, %v4558
    %v4623 = vadd.f32 %v4103, %v4559
    %v4624 = vadd.f32 %v4104, %v4560
    %v4625 = vadd.f32 %v4105, %v4561
    %v4626 = vadd.f32 %v4106, %v4562
    %v4627 = vadd.f32 %v4107, %v4563
    %v4628 = vadd.f32 %v4108, %v4564
    %v4629 = vadd.f32 %v4109, %v4565
    %v4630 = vadd.f32 %v4110, %v4566
    %v4631 = vadd.f32 %v4111, %v4567
    %v4632 = vadd.f32 %v4112, %v4568
    %v4633 = vadd.f32 %v4113, %v4569
    %v4634 = vadd.f32 %v4114, %v4570
    %v4635 = vadd.f32 %v4115, %v4571
    %v4636 = vadd.f32 %v4116, %v4572
    %v4637 = vadd.f32 %v4117, %v4573
    %v4638 = vadd.f32 %v4118, %v4574
    %v4639 = vld [vmem:[%s2] sm:$0x1]
    %v4641 = vlaneseq
    %v4642 = vshrl.u32 %v4641, 7
    %v4643 = vsub.s32 0, %v4642
    %v4644 = vrot.slane %v4639, %v4643
    %v4646 = vadd.f32 %v4575, %v4644
    %v4647 = vadd.f32 %v4576, %v4644
    %v4648 = vadd.f32 %v4577, %v4644
    %v4649 = vadd.f32 %v4578, %v4644
    %v4650 = vadd.f32 %v4579, %v4644
    %v4651 = vadd.f32 %v4580, %v4644
    %v4652 = vadd.f32 %v4581, %v4644
    %v4653 = vadd.f32 %v4582, %v4644
    %v4654 = vadd.f32 %v4583, %v4644
    %v4655 = vadd.f32 %v4584, %v4644
    %v4656 = vadd.f32 %v4585, %v4644
    %v4657 = vadd.f32 %v4586, %v4644
    %v4658 = vadd.f32 %v4587, %v4644
    %v4659 = vadd.f32 %v4588, %v4644
    %v4660 = vadd.f32 %v4589, %v4644
    %v4661 = vadd.f32 %v4590, %v4644
    %v4662 = vadd.f32 %v4591, %v4644
    %v4663 = vadd.f32 %v4592, %v4644
    %v4664 = vadd.f32 %v4593, %v4644
    %v4665 = vadd.f32 %v4594, %v4644
    %v4666 = vadd.f32 %v4595, %v4644
    %v4667 = vadd.f32 %v4596, %v4644
    %v4668 = vadd.f32 %v4597, %v4644
    %v4669 = vadd.f32 %v4598, %v4644
    %v4670 = vadd.f32 %v4599, %v4644
    %v4671 = vadd.f32 %v4600, %v4644
    %v4672 = vadd.f32 %v4601, %v4644
    %v4673 = vadd.f32 %v4602, %v4644
    %v4674 = vadd.f32 %v4603, %v4644
    %v4675 = vadd.f32 %v4604, %v4644
    %v4676 = vadd.f32 %v4605, %v4644
    %v4677 = vadd.f32 %v4606, %v4644
    %v4678 = vadd.f32 %v4607, %v4644
    %v4679 = vadd.f32 %v4608, %v4644
    %v4680 = vadd.f32 %v4609, %v4644
    %v4681 = vadd.f32 %v4610, %v4644
    %v4682 = vadd.f32 %v4611, %v4644
    %v4683 = vadd.f32 %v4612, %v4644
    %v4684 = vadd.f32 %v4613, %v4644
    %v4685 = vadd.f32 %v4614, %v4644
    %v4686 = vadd.f32 %v4615, %v4644
    %v4687 = vadd.f32 %v4616, %v4644
    %v4688 = vadd.f32 %v4617, %v4644
    %v4689 = vadd.f32 %v4618, %v4644
    %v4690 = vadd.f32 %v4619, %v4644
    %v4691 = vadd.f32 %v4620, %v4644
    %v4692 = vadd.f32 %v4621, %v4644
    %v4693 = vadd.f32 %v4622, %v4644
    %v4694 = vadd.f32 %v4623, %v4644
    %v4695 = vadd.f32 %v4624, %v4644
    %v4696 = vadd.f32 %v4625, %v4644
    %v4697 = vadd.f32 %v4626, %v4644
    %v4698 = vadd.f32 %v4627, %v4644
    %v4699 = vadd.f32 %v4628, %v4644
    %v4700 = vadd.f32 %v4629, %v4644
    %v4701 = vadd.f32 %v4630, %v4644
    %v4702 = vadd.f32 %v4631, %v4644
    %v4703 = vadd.f32 %v4632, %v4644
    %v4704 = vadd.f32 %v4633, %v4644
    %v4705 = vadd.f32 %v4634, %v4644
    %v4706 = vadd.f32 %v4635, %v4644
    %v4707 = vadd.f32 %v4636, %v4644
    %v4708 = vadd.f32 %v4637, %v4644
    %v4709 = vadd.f32 %v4638, %v4644
    %v4710 = vmax.f32 %v4646, 0.0
    %v4711 = vmax.f32 %v4647, 0.0
    %v4712 = vmax.f32 %v4648, 0.0
    %v4713 = vmax.f32 %v4649, 0.0
    %v4714 = vmax.f32 %v4650, 0.0
    %v4715 = vmax.f32 %v4651, 0.0
    %v4716 = vmax.f32 %v4652, 0.0
    %v4717 = vmax.f32 %v4653, 0.0
    %v4718 = vmax.f32 %v4654, 0.0
    %v4719 = vmax.f32 %v4655, 0.0
    %v4720 = vmax.f32 %v4656, 0.0
    %v4721 = vmax.f32 %v4657, 0.0
    %v4722 = vmax.f32 %v4658, 0.0
    %v4723 = vmax.f32 %v4659, 0.0
    %v4724 = vmax.f32 %v4660, 0.0
    %v4725 = vmax.f32 %v4661, 0.0
    %v4726 = vmax.f32 %v4662, 0.0
    %v4727 = vmax.f32 %v4663, 0.0
    %v4728 = vmax.f32 %v4664, 0.0
    %v4729 = vmax.f32 %v4665, 0.0
    %v4730 = vmax.f32 %v4666, 0.0
    %v4731 = vmax.f32 %v4667, 0.0
    %v4732 = vmax.f32 %v4668, 0.0
    %v4733 = vmax.f32 %v4669, 0.0
    %v4734 = vmax.f32 %v4670, 0.0
    %v4735 = vmax.f32 %v4671, 0.0
    %v4736 = vmax.f32 %v4672, 0.0
    %v4737 = vmax.f32 %v4673, 0.0
    %v4738 = vmax.f32 %v4674, 0.0
    %v4739 = vmax.f32 %v4675, 0.0
    %v4740 = vmax.f32 %v4676, 0.0
    %v4741 = vmax.f32 %v4677, 0.0
    %v4742 = vmax.f32 %v4678, 0.0
    %v4743 = vmax.f32 %v4679, 0.0
    %v4744 = vmax.f32 %v4680, 0.0
    %v4745 = vmax.f32 %v4681, 0.0
    %v4746 = vmax.f32 %v4682, 0.0
    %v4747 = vmax.f32 %v4683, 0.0
    %v4748 = vmax.f32 %v4684, 0.0
    %v4749 = vmax.f32 %v4685, 0.0
    %v4750 = vmax.f32 %v4686, 0.0
    %v4751 = vmax.f32 %v4687, 0.0
    %v4752 = vmax.f32 %v4688, 0.0
    %v4753 = vmax.f32 %v4689, 0.0
    %v4754 = vmax.f32 %v4690, 0.0
    %v4755 = vmax.f32 %v4691, 0.0
    %v4756 = vmax.f32 %v4692, 0.0
    %v4757 = vmax.f32 %v4693, 0.0
    %v4758 = vmax.f32 %v4694, 0.0
    %v4759 = vmax.f32 %v4695, 0.0
    %v4760 = vmax.f32 %v4696, 0.0
    %v4761 = vmax.f32 %v4697, 0.0
    %v4762 = vmax.f32 %v4698, 0.0
    %v4763 = vmax.f32 %v4699, 0.0
    %v4764 = vmax.f32 %v4700, 0.0
    %v4765 = vmax.f32 %v4701, 0.0
    %v4766 = vmax.f32 %v4702, 0.0
    %v4767 = vmax.f32 %v4703, 0.0
    %v4768 = vmax.f32 %v4704, 0.0
    %v4769 = vmax.f32 %v4705, 0.0
    %v4770 = vmax.f32 %v4706, 0.0
    %v4771 = vmax.f32 %v4707, 0.0
    %v4772 = vmax.f32 %v4708, 0.0
    %v4773 = vmax.f32 %v4709, 0.0
    %v4838 = vcombine.high %v4710, %v4710
    %v4840 = vunpack.c.l.s4 1983009808
    %v4841 = vunpack.c.0.s8 %v4840
    %v4842 = vlaneseq
    %v4843 = vshrl.u32 %v4842, 7
    %v4844 = vsub.s32 %v4841, %v4843
    %v4845 = vrot.slane %v4710, %v4844
    %v4847 = vunpack.c.l.s4 1983009808
    %v4848 = vunpack.c.0.s8 %v4847
    %v4849 = vlaneseq
    %v4850 = vshrl.u32 %v4849, 7
    %v4851 = vsub.s32 %v4848, %v4850
    %v4852 = vrot.slane %v4838, %v4851
    %v4853 = vcombine.high %v4845, %v4845
    %v4854 = vcombine.high %v4852, %v4852
    %v4855 = vcombine.high %v4711, %v4711
    %v4857 = vunpack.c.l.s4 1983009808
    %v4858 = vunpack.c.0.s8 %v4857
    %v4859 = vlaneseq
    %v4860 = vshrl.u32 %v4859, 7
    %v4861 = vsub.s32 %v4858, %v4860
    %v4862 = vrot.slane %v4711, %v4861
    %v4864 = vunpack.c.l.s4 1983009808
    %v4865 = vunpack.c.0.s8 %v4864
    %v4866 = vlaneseq
    %v4867 = vshrl.u32 %v4866, 7
    %v4868 = vsub.s32 %v4865, %v4867
    %v4869 = vrot.slane %v4855, %v4868
    %v4870 = vcombine.high %v4862, %v4862
    %v4871 = vcombine.high %v4869, %v4869
    %v4872 = vcombine.high %v4712, %v4712
    %v4874 = vunpack.c.l.s4 1983009808
    %v4875 = vunpack.c.0.s8 %v4874
    %v4876 = vlaneseq
    %v4877 = vshrl.u32 %v4876, 7
    %v4878 = vsub.s32 %v4875, %v4877
    %v4879 = vrot.slane %v4712, %v4878
    %v4881 = vunpack.c.l.s4 1983009808
    %v4882 = vunpack.c.0.s8 %v4881
    %v4883 = vlaneseq
    %v4884 = vshrl.u32 %v4883, 7
    %v4885 = vsub.s32 %v4882, %v4884
    %v4886 = vrot.slane %v4872, %v4885
    %v4887 = vcombine.high %v4879, %v4879
    %v4888 = vcombine.high %v4886, %v4886
    %v4889 = vcombine.high %v4713, %v4713
    %v4891 = vunpack.c.l.s4 1983009808
    %v4892 = vunpack.c.0.s8 %v4891
    %v4893 = vlaneseq
    %v4894 = vshrl.u32 %v4893, 7
    %v4895 = vsub.s32 %v4892, %v4894
    %v4896 = vrot.slane %v4713, %v4895
    %v4898 = vunpack.c.l.s4 1983009808
    %v4899 = vunpack.c.0.s8 %v4898
    %v4900 = vlaneseq
    %v4901 = vshrl.u32 %v4900, 7
    %v4902 = vsub.s32 %v4899, %v4901
    %v4903 = vrot.slane %v4889, %v4902
    %v4904 = vcombine.high %v4896, %v4896
    %v4905 = vcombine.high %v4903, %v4903
    %v4906 = vcombine.high %v4714, %v4714
    %v4908 = vunpack.c.l.s4 1983009808
    %v4909 = vunpack.c.0.s8 %v4908
    %v4910 = vlaneseq
    %v4911 = vshrl.u32 %v4910, 7
    %v4912 = vsub.s32 %v4909, %v4911
    %v4913 = vrot.slane %v4714, %v4912
    %v4915 = vunpack.c.l.s4 1983009808
    %v4916 = vunpack.c.0.s8 %v4915
    %v4917 = vlaneseq
    %v4918 = vshrl.u32 %v4917, 7
    %v4919 = vsub.s32 %v4916, %v4918
    %v4920 = vrot.slane %v4906, %v4919
    %v4921 = vcombine.high %v4913, %v4913
    %v4922 = vcombine.high %v4920, %v4920
    %v4923 = vcombine.high %v4715, %v4715
    %v4925 = vunpack.c.l.s4 1983009808
    %v4926 = vunpack.c.0.s8 %v4925
    %v4927 = vlaneseq
    %v4928 = vshrl.u32 %v4927, 7
    %v4929 = vsub.s32 %v4926, %v4928
    %v4930 = vrot.slane %v4715, %v4929
    %v4932 = vunpack.c.l.s4 1983009808
    %v4933 = vunpack.c.0.s8 %v4932
    %v4934 = vlaneseq
    %v4935 = vshrl.u32 %v4934, 7
    %v4936 = vsub.s32 %v4933, %v4935
    %v4937 = vrot.slane %v4923, %v4936
    %v4938 = vcombine.high %v4930, %v4930
    %v4939 = vcombine.high %v4937, %v4937
    %v4940 = vcombine.high %v4716, %v4716
    %v4942 = vunpack.c.l.s4 1983009808
    %v4943 = vunpack.c.0.s8 %v4942
    %v4944 = vlaneseq
    %v4945 = vshrl.u32 %v4944, 7
    %v4946 = vsub.s32 %v4943, %v4945
    %v4947 = vrot.slane %v4716, %v4946
    %v4949 = vunpack.c.l.s4 1983009808
    %v4950 = vunpack.c.0.s8 %v4949
    %v4951 = vlaneseq
    %v4952 = vshrl.u32 %v4951, 7
    %v4953 = vsub.s32 %v4950, %v4952
    %v4954 = vrot.slane %v4940, %v4953
    %v4955 = vcombine.high %v4947, %v4947
    %v4956 = vcombine.high %v4954, %v4954
    %v4957 = vcombine.high %v4717, %v4717
    %v4959 = vunpack.c.l.s4 1983009808
    %v4960 = vunpack.c.0.s8 %v4959
    %v4961 = vlaneseq
    %v4962 = vshrl.u32 %v4961, 7
    %v4963 = vsub.s32 %v4960, %v4962
    %v4964 = vrot.slane %v4717, %v4963
    %v4966 = vunpack.c.l.s4 1983009808
    %v4967 = vunpack.c.0.s8 %v4966
    %v4968 = vlaneseq
    %v4969 = vshrl.u32 %v4968, 7
    %v4970 = vsub.s32 %v4967, %v4969
    %v4971 = vrot.slane %v4957, %v4970
    %v4972 = vcombine.high %v4964, %v4964
    %v4973 = vcombine.high %v4971, %v4971
    %v4974 = vcombine.high %v4718, %v4718
    %v4976 = vunpack.c.l.s4 1983009808
    %v4977 = vunpack.c.0.s8 %v4976
    %v4978 = vlaneseq
    %v4979 = vshrl.u32 %v4978, 7
    %v4980 = vsub.s32 %v4977, %v4979
    %v4981 = vrot.slane %v4718, %v4980
    %v4983 = vunpack.c.l.s4 1983009808
    %v4984 = vunpack.c.0.s8 %v4983
    %v4985 = vlaneseq
    %v4986 = vshrl.u32 %v4985, 7
    %v4987 = vsub.s32 %v4984, %v4986
    %v4988 = vrot.slane %v4974, %v4987
    %v4989 = vcombine.high %v4981, %v4981
    %v4990 = vcombine.high %v4988, %v4988
    %v4991 = vcombine.high %v4719, %v4719
    %v4993 = vunpack.c.l.s4 1983009808
    %v4994 = vunpack.c.0.s8 %v4993
    %v4995 = vlaneseq
    %v4996 = vshrl.u32 %v4995, 7
    %v4997 = vsub.s32 %v4994, %v4996
    %v4998 = vrot.slane %v4719, %v4997
    %v5000 = vunpack.c.l.s4 1983009808
    %v5001 = vunpack.c.0.s8 %v5000
    %v5002 = vlaneseq
    %v5003 = vshrl.u32 %v5002, 7
    %v5004 = vsub.s32 %v5001, %v5003
    %v5005 = vrot.slane %v4991, %v5004
    %v5006 = vcombine.high %v4998, %v4998
    %v5007 = vcombine.high %v5005, %v5005
    %v5008 = vcombine.high %v4720, %v4720
    %v5010 = vunpack.c.l.s4 1983009808
    %v5011 = vunpack.c.0.s8 %v5010
    %v5012 = vlaneseq
    %v5013 = vshrl.u32 %v5012, 7
    %v5014 = vsub.s32 %v5011, %v5013
    %v5015 = vrot.slane %v4720, %v5014
    %v5017 = vunpack.c.l.s4 1983009808
    %v5018 = vunpack.c.0.s8 %v5017
    %v5019 = vlaneseq
    %v5020 = vshrl.u32 %v5019, 7
    %v5021 = vsub.s32 %v5018, %v5020
    %v5022 = vrot.slane %v5008, %v5021
    %v5023 = vcombine.high %v5015, %v5015
    %v5024 = vcombine.high %v5022, %v5022
    %v5025 = vcombine.high %v4721, %v4721
    %v5027 = vunpack.c.l.s4 1983009808
    %v5028 = vunpack.c.0.s8 %v5027
    %v5029 = vlaneseq
    %v5030 = vshrl.u32 %v5029, 7
    %v5031 = vsub.s32 %v5028, %v5030
    %v5032 = vrot.slane %v4721, %v5031
    %v5034 = vunpack.c.l.s4 1983009808
    %v5035 = vunpack.c.0.s8 %v5034
    %v5036 = vlaneseq
    %v5037 = vshrl.u32 %v5036, 7
    %v5038 = vsub.s32 %v5035, %v5037
    %v5039 = vrot.slane %v5025, %v5038
    %v5040 = vcombine.high %v5032, %v5032
    %v5041 = vcombine.high %v5039, %v5039
    %v5042 = vcombine.high %v4722, %v4722
    %v5044 = vunpack.c.l.s4 1983009808
    %v5045 = vunpack.c.0.s8 %v5044
    %v5046 = vlaneseq
    %v5047 = vshrl.u32 %v5046, 7
    %v5048 = vsub.s32 %v5045, %v5047
    %v5049 = vrot.slane %v4722, %v5048
    %v5051 = vunpack.c.l.s4 1983009808
    %v5052 = vunpack.c.0.s8 %v5051
    %v5053 = vlaneseq
    %v5054 = vshrl.u32 %v5053, 7
    %v5055 = vsub.s32 %v5052, %v5054
    %v5056 = vrot.slane %v5042, %v5055
    %v5057 = vcombine.high %v5049, %v5049
    %v5058 = vcombine.high %v5056, %v5056
    %v5059 = vcombine.high %v4723, %v4723
    %v5061 = vunpack.c.l.s4 1983009808
    %v5062 = vunpack.c.0.s8 %v5061
    %v5063 = vlaneseq
    %v5064 = vshrl.u32 %v5063, 7
    %v5065 = vsub.s32 %v5062, %v5064
    %v5066 = vrot.slane %v4723, %v5065
    %v5068 = vunpack.c.l.s4 1983009808
    %v5069 = vunpack.c.0.s8 %v5068
    %v5070 = vlaneseq
    %v5071 = vshrl.u32 %v5070, 7
    %v5072 = vsub.s32 %v5069, %v5071
    %v5073 = vrot.slane %v5059, %v5072
    %v5074 = vcombine.high %v5066, %v5066
    %v5075 = vcombine.high %v5073, %v5073
    %v5076 = vcombine.high %v4724, %v4724
    %v5078 = vunpack.c.l.s4 1983009808
    %v5079 = vunpack.c.0.s8 %v5078
    %v5080 = vlaneseq
    %v5081 = vshrl.u32 %v5080, 7
    %v5082 = vsub.s32 %v5079, %v5081
    %v5083 = vrot.slane %v4724, %v5082
    %v5085 = vunpack.c.l.s4 1983009808
    %v5086 = vunpack.c.0.s8 %v5085
    %v5087 = vlaneseq
    %v5088 = vshrl.u32 %v5087, 7
    %v5089 = vsub.s32 %v5086, %v5088
    %v5090 = vrot.slane %v5076, %v5089
    %v5091 = vcombine.high %v5083, %v5083
    %v5092 = vcombine.high %v5090, %v5090
    %v5093 = vcombine.high %v4725, %v4725
    %v5095 = vunpack.c.l.s4 1983009808
    %v5096 = vunpack.c.0.s8 %v5095
    %v5097 = vlaneseq
    %v5098 = vshrl.u32 %v5097, 7
    %v5099 = vsub.s32 %v5096, %v5098
    %v5100 = vrot.slane %v4725, %v5099
    %v5102 = vunpack.c.l.s4 1983009808
    %v5103 = vunpack.c.0.s8 %v5102
    %v5104 = vlaneseq
    %v5105 = vshrl.u32 %v5104, 7
    %v5106 = vsub.s32 %v5103, %v5105
    %v5107 = vrot.slane %v5093, %v5106
    %v5108 = vcombine.high %v5100, %v5100
    %v5109 = vcombine.high %v5107, %v5107
    %v5110 = vcombine.high %v4726, %v4726
    %v5112 = vunpack.c.l.s4 1983009808
    %v5113 = vunpack.c.0.s8 %v5112
    %v5114 = vlaneseq
    %v5115 = vshrl.u32 %v5114, 7
    %v5116 = vsub.s32 %v5113, %v5115
    %v5117 = vrot.slane %v4726, %v5116
    %v5119 = vunpack.c.l.s4 1983009808
    %v5120 = vunpack.c.0.s8 %v5119
    %v5121 = vlaneseq
    %v5122 = vshrl.u32 %v5121, 7
    %v5123 = vsub.s32 %v5120, %v5122
    %v5124 = vrot.slane %v5110, %v5123
    %v5125 = vcombine.high %v5117, %v5117
    %v5126 = vcombine.high %v5124, %v5124
    %v5127 = vcombine.high %v4727, %v4727
    %v5129 = vunpack.c.l.s4 1983009808
    %v5130 = vunpack.c.0.s8 %v5129
    %v5131 = vlaneseq
    %v5132 = vshrl.u32 %v5131, 7
    %v5133 = vsub.s32 %v5130, %v5132
    %v5134 = vrot.slane %v4727, %v5133
    %v5136 = vunpack.c.l.s4 1983009808
    %v5137 = vunpack.c.0.s8 %v5136
    %v5138 = vlaneseq
    %v5139 = vshrl.u32 %v5138, 7
    %v5140 = vsub.s32 %v5137, %v5139
    %v5141 = vrot.slane %v5127, %v5140
    %v5142 = vcombine.high %v5134, %v5134
    %v5143 = vcombine.high %v5141, %v5141
    %v5144 = vcombine.high %v4728, %v4728
    %v5146 = vunpack.c.l.s4 1983009808
    %v5147 = vunpack.c.0.s8 %v5146
    %v5148 = vlaneseq
    %v5149 = vshrl.u32 %v5148, 7
    %v5150 = vsub.s32 %v5147, %v5149
    %v5151 = vrot.slane %v4728, %v5150
    %v5153 = vunpack.c.l.s4 1983009808
    %v5154 = vunpack.c.0.s8 %v5153
    %v5155 = vlaneseq
    %v5156 = vshrl.u32 %v5155, 7
    %v5157 = vsub.s32 %v5154, %v5156
    %v5158 = vrot.slane %v5144, %v5157
    %v5159 = vcombine.high %v5151, %v5151
    %v5160 = vcombine.high %v5158, %v5158
    %v5161 = vcombine.high %v4729, %v4729
    %v5163 = vunpack.c.l.s4 1983009808
    %v5164 = vunpack.c.0.s8 %v5163
    %v5165 = vlaneseq
    %v5166 = vshrl.u32 %v5165, 7
    %v5167 = vsub.s32 %v5164, %v5166
    %v5168 = vrot.slane %v4729, %v5167
    %v5170 = vunpack.c.l.s4 1983009808
    %v5171 = vunpack.c.0.s8 %v5170
    %v5172 = vlaneseq
    %v5173 = vshrl.u32 %v5172, 7
    %v5174 = vsub.s32 %v5171, %v5173
    %v5175 = vrot.slane %v5161, %v5174
    %v5176 = vcombine.high %v5168, %v5168
    %v5177 = vcombine.high %v5175, %v5175
    %v5178 = vcombine.high %v4730, %v4730
    %v5180 = vunpack.c.l.s4 1983009808
    %v5181 = vunpack.c.0.s8 %v5180
    %v5182 = vlaneseq
    %v5183 = vshrl.u32 %v5182, 7
    %v5184 = vsub.s32 %v5181, %v5183
    %v5185 = vrot.slane %v4730, %v5184
    %v5187 = vunpack.c.l.s4 1983009808
    %v5188 = vunpack.c.0.s8 %v5187
    %v5189 = vlaneseq
    %v5190 = vshrl.u32 %v5189, 7
    %v5191 = vsub.s32 %v5188, %v5190
    %v5192 = vrot.slane %v5178, %v5191
    %v5193 = vcombine.high %v5185, %v5185
    %v5194 = vcombine.high %v5192, %v5192
    %v5195 = vcombine.high %v4731, %v4731
    %v5197 = vunpack.c.l.s4 1983009808
    %v5198 = vunpack.c.0.s8 %v5197
    %v5199 = vlaneseq
    %v5200 = vshrl.u32 %v5199, 7
    %v5201 = vsub.s32 %v5198, %v5200
    %v5202 = vrot.slane %v4731, %v5201
    %v5204 = vunpack.c.l.s4 1983009808
    %v5205 = vunpack.c.0.s8 %v5204
    %v5206 = vlaneseq
    %v5207 = vshrl.u32 %v5206, 7
    %v5208 = vsub.s32 %v5205, %v5207
    %v5209 = vrot.slane %v5195, %v5208
    %v5210 = vcombine.high %v5202, %v5202
    %v5211 = vcombine.high %v5209, %v5209
    %v5212 = vcombine.high %v4732, %v4732
    %v5214 = vunpack.c.l.s4 1983009808
    %v5215 = vunpack.c.0.s8 %v5214
    %v5216 = vlaneseq
    %v5217 = vshrl.u32 %v5216, 7
    %v5218 = vsub.s32 %v5215, %v5217
    %v5219 = vrot.slane %v4732, %v5218
    %v5221 = vunpack.c.l.s4 1983009808
    %v5222 = vunpack.c.0.s8 %v5221
    %v5223 = vlaneseq
    %v5224 = vshrl.u32 %v5223, 7
    %v5225 = vsub.s32 %v5222, %v5224
    %v5226 = vrot.slane %v5212, %v5225
    %v5227 = vcombine.high %v5219, %v5219
    %v5228 = vcombine.high %v5226, %v5226
    %v5229 = vcombine.high %v4733, %v4733
    %v5231 = vunpack.c.l.s4 1983009808
    %v5232 = vunpack.c.0.s8 %v5231
    %v5233 = vlaneseq
    %v5234 = vshrl.u32 %v5233, 7
    %v5235 = vsub.s32 %v5232, %v5234
    %v5236 = vrot.slane %v4733, %v5235
    %v5238 = vunpack.c.l.s4 1983009808
    %v5239 = vunpack.c.0.s8 %v5238
    %v5240 = vlaneseq
    %v5241 = vshrl.u32 %v5240, 7
    %v5242 = vsub.s32 %v5239, %v5241
    %v5243 = vrot.slane %v5229, %v5242
    %v5244 = vcombine.high %v5236, %v5236
    %v5245 = vcombine.high %v5243, %v5243
    %v5246 = vcombine.high %v4734, %v4734
    %v5248 = vunpack.c.l.s4 1983009808
    %v5249 = vunpack.c.0.s8 %v5248
    %v5250 = vlaneseq
    %v5251 = vshrl.u32 %v5250, 7
    %v5252 = vsub.s32 %v5249, %v5251
    %v5253 = vrot.slane %v4734, %v5252
    %v5255 = vunpack.c.l.s4 1983009808
    %v5256 = vunpack.c.0.s8 %v5255
    %v5257 = vlaneseq
    %v5258 = vshrl.u32 %v5257, 7
    %v5259 = vsub.s32 %v5256, %v5258
    %v5260 = vrot.slane %v5246, %v5259
    %v5261 = vcombine.high %v5253, %v5253
    %v5262 = vcombine.high %v5260, %v5260
    %v5263 = vcombine.high %v4735, %v4735
    %v5265 = vunpack.c.l.s4 1983009808
    %v5266 = vunpack.c.0.s8 %v5265
    %v5267 = vlaneseq
    %v5268 = vshrl.u32 %v5267, 7
    %v5269 = vsub.s32 %v5266, %v5268
    %v5270 = vrot.slane %v4735, %v5269
    %v5272 = vunpack.c.l.s4 1983009808
    %v5273 = vunpack.c.0.s8 %v5272
    %v5274 = vlaneseq
    %v5275 = vshrl.u32 %v5274, 7
    %v5276 = vsub.s32 %v5273, %v5275
    %v5277 = vrot.slane %v5263, %v5276
    %v5278 = vcombine.high %v5270, %v5270
    %v5279 = vcombine.high %v5277, %v5277
    %v5280 = vcombine.high %v4736, %v4736
    %v5282 = vunpack.c.l.s4 1983009808
    %v5283 = vunpack.c.0.s8 %v5282
    %v5284 = vlaneseq
    %v5285 = vshrl.u32 %v5284, 7
    %v5286 = vsub.s32 %v5283, %v5285
    %v5287 = vrot.slane %v4736, %v5286
    %v5289 = vunpack.c.l.s4 1983009808
    %v5290 = vunpack.c.0.s8 %v5289
    %v5291 = vlaneseq
    %v5292 = vshrl.u32 %v5291, 7
    %v5293 = vsub.s32 %v5290, %v5292
    %v5294 = vrot.slane %v5280, %v5293
    %v5295 = vcombine.high %v5287, %v5287
    %v5296 = vcombine.high %v5294, %v5294
    %v5297 = vcombine.high %v4737, %v4737
    %v5299 = vunpack.c.l.s4 1983009808
    %v5300 = vunpack.c.0.s8 %v5299
    %v5301 = vlaneseq
    %v5302 = vshrl.u32 %v5301, 7
    %v5303 = vsub.s32 %v5300, %v5302
    %v5304 = vrot.slane %v4737, %v5303
    %v5306 = vunpack.c.l.s4 1983009808
    %v5307 = vunpack.c.0.s8 %v5306
    %v5308 = vlaneseq
    %v5309 = vshrl.u32 %v5308, 7
    %v5310 = vsub.s32 %v5307, %v5309
    %v5311 = vrot.slane %v5297, %v5310
    %v5312 = vcombine.high %v5304, %v5304
    %v5313 = vcombine.high %v5311, %v5311
    %v5314 = vcombine.high %v4738, %v4738
    %v5316 = vunpack.c.l.s4 1983009808
    %v5317 = vunpack.c.0.s8 %v5316
    %v5318 = vlaneseq
    %v5319 = vshrl.u32 %v5318, 7
    %v5320 = vsub.s32 %v5317, %v5319
    %v5321 = vrot.slane %v4738, %v5320
    %v5323 = vunpack.c.l.s4 1983009808
    %v5324 = vunpack.c.0.s8 %v5323
    %v5325 = vlaneseq
    %v5326 = vshrl.u32 %v5325, 7
    %v5327 = vsub.s32 %v5324, %v5326
    %v5328 = vrot.slane %v5314, %v5327
    %v5329 = vcombine.high %v5321, %v5321
    %v5330 = vcombine.high %v5328, %v5328
    %v5331 = vcombine.high %v4739, %v4739
    %v5333 = vunpack.c.l.s4 1983009808
    %v5334 = vunpack.c.0.s8 %v5333
    %v5335 = vlaneseq
    %v5336 = vshrl.u32 %v5335, 7
    %v5337 = vsub.s32 %v5334, %v5336
    %v5338 = vrot.slane %v4739, %v5337
    %v5340 = vunpack.c.l.s4 1983009808
    %v5341 = vunpack.c.0.s8 %v5340
    %v5342 = vlaneseq
    %v5343 = vshrl.u32 %v5342, 7
    %v5344 = vsub.s32 %v5341, %v5343
    %v5345 = vrot.slane %v5331, %v5344
    %v5346 = vcombine.high %v5338, %v5338
    %v5347 = vcombine.high %v5345, %v5345
    %v5348 = vcombine.high %v4740, %v4740
    %v5350 = vunpack.c.l.s4 1983009808
    %v5351 = vunpack.c.0.s8 %v5350
    %v5352 = vlaneseq
    %v5353 = vshrl.u32 %v5352, 7
    %v5354 = vsub.s32 %v5351, %v5353
    %v5355 = vrot.slane %v4740, %v5354
    %v5357 = vunpack.c.l.s4 1983009808
    %v5358 = vunpack.c.0.s8 %v5357
    %v5359 = vlaneseq
    %v5360 = vshrl.u32 %v5359, 7
    %v5361 = vsub.s32 %v5358, %v5360
    %v5362 = vrot.slane %v5348, %v5361
    %v5363 = vcombine.high %v5355, %v5355
    %v5364 = vcombine.high %v5362, %v5362
    %v5365 = vcombine.high %v4741, %v4741
    %v5367 = vunpack.c.l.s4 1983009808
    %v5368 = vunpack.c.0.s8 %v5367
    %v5369 = vlaneseq
    %v5370 = vshrl.u32 %v5369, 7
    %v5371 = vsub.s32 %v5368, %v5370
    %v5372 = vrot.slane %v4741, %v5371
    %v5374 = vunpack.c.l.s4 1983009808
    %v5375 = vunpack.c.0.s8 %v5374
    %v5376 = vlaneseq
    %v5377 = vshrl.u32 %v5376, 7
    %v5378 = vsub.s32 %v5375, %v5377
    %v5379 = vrot.slane %v5365, %v5378
    %v5380 = vcombine.high %v5372, %v5372
    %v5381 = vcombine.high %v5379, %v5379
    %v5382 = vcombine.high %v4742, %v4742
    %v5384 = vunpack.c.l.s4 1983009808
    %v5385 = vunpack.c.0.s8 %v5384
    %v5386 = vlaneseq
    %v5387 = vshrl.u32 %v5386, 7
    %v5388 = vsub.s32 %v5385, %v5387
    %v5389 = vrot.slane %v4742, %v5388
    %v5391 = vunpack.c.l.s4 1983009808
    %v5392 = vunpack.c.0.s8 %v5391
    %v5393 = vlaneseq
    %v5394 = vshrl.u32 %v5393, 7
    %v5395 = vsub.s32 %v5392, %v5394
    %v5396 = vrot.slane %v5382, %v5395
    %v5397 = vcombine.high %v5389, %v5389
    %v5398 = vcombine.high %v5396, %v5396
    %v5399 = vcombine.high %v4743, %v4743
    %v5401 = vunpack.c.l.s4 1983009808
    %v5402 = vunpack.c.0.s8 %v5401
    %v5403 = vlaneseq
    %v5404 = vshrl.u32 %v5403, 7
    %v5405 = vsub.s32 %v5402, %v5404
    %v5406 = vrot.slane %v4743, %v5405
    %v5408 = vunpack.c.l.s4 1983009808
    %v5409 = vunpack.c.0.s8 %v5408
    %v5410 = vlaneseq
    %v5411 = vshrl.u32 %v5410, 7
    %v5412 = vsub.s32 %v5409, %v5411
    %v5413 = vrot.slane %v5399, %v5412
    %v5414 = vcombine.high %v5406, %v5406
    %v5415 = vcombine.high %v5413, %v5413
    %v5416 = vcombine.high %v4744, %v4744
    %v5418 = vunpack.c.l.s4 1983009808
    %v5419 = vunpack.c.0.s8 %v5418
    %v5420 = vlaneseq
    %v5421 = vshrl.u32 %v5420, 7
    %v5422 = vsub.s32 %v5419, %v5421
    %v5423 = vrot.slane %v4744, %v5422
    %v5425 = vunpack.c.l.s4 1983009808
    %v5426 = vunpack.c.0.s8 %v5425
    %v5427 = vlaneseq
    %v5428 = vshrl.u32 %v5427, 7
    %v5429 = vsub.s32 %v5426, %v5428
    %v5430 = vrot.slane %v5416, %v5429
    %v5431 = vcombine.high %v5423, %v5423
    %v5432 = vcombine.high %v5430, %v5430
    %v5433 = vcombine.high %v4745, %v4745
    %v5435 = vunpack.c.l.s4 1983009808
    %v5436 = vunpack.c.0.s8 %v5435
    %v5437 = vlaneseq
    %v5438 = vshrl.u32 %v5437, 7
    %v5439 = vsub.s32 %v5436, %v5438
    %v5440 = vrot.slane %v4745, %v5439
    %v5442 = vunpack.c.l.s4 1983009808
    %v5443 = vunpack.c.0.s8 %v5442
    %v5444 = vlaneseq
    %v5445 = vshrl.u32 %v5444, 7
    %v5446 = vsub.s32 %v5443, %v5445
    %v5447 = vrot.slane %v5433, %v5446
    %v5448 = vcombine.high %v5440, %v5440
    %v5449 = vcombine.high %v5447, %v5447
    %v5450 = vcombine.high %v4746, %v4746
    %v5452 = vunpack.c.l.s4 1983009808
    %v5453 = vunpack.c.0.s8 %v5452
    %v5454 = vlaneseq
    %v5455 = vshrl.u32 %v5454, 7
    %v5456 = vsub.s32 %v5453, %v5455
    %v5457 = vrot.slane %v4746, %v5456
    %v5459 = vunpack.c.l.s4 1983009808
    %v5460 = vunpack.c.0.s8 %v5459
    %v5461 = vlaneseq
    %v5462 = vshrl.u32 %v5461, 7
    %v5463 = vsub.s32 %v5460, %v5462
    %v5464 = vrot.slane %v5450, %v5463
    %v5465 = vcombine.high %v5457, %v5457
    %v5466 = vcombine.high %v5464, %v5464
    %v5467 = vcombine.high %v4747, %v4747
    %v5469 = vunpack.c.l.s4 1983009808
    %v5470 = vunpack.c.0.s8 %v5469
    %v5471 = vlaneseq
    %v5472 = vshrl.u32 %v5471, 7
    %v5473 = vsub.s32 %v5470, %v5472
    %v5474 = vrot.slane %v4747, %v5473
    %v5476 = vunpack.c.l.s4 1983009808
    %v5477 = vunpack.c.0.s8 %v5476
    %v5478 = vlaneseq
    %v5479 = vshrl.u32 %v5478, 7
    %v5480 = vsub.s32 %v5477, %v5479
    %v5481 = vrot.slane %v5467, %v5480
    %v5482 = vcombine.high %v5474, %v5474
    %v5483 = vcombine.high %v5481, %v5481
    %v5484 = vcombine.high %v4748, %v4748
    %v5486 = vunpack.c.l.s4 1983009808
    %v5487 = vunpack.c.0.s8 %v5486
    %v5488 = vlaneseq
    %v5489 = vshrl.u32 %v5488, 7
    %v5490 = vsub.s32 %v5487, %v5489
    %v5491 = vrot.slane %v4748, %v5490
    %v5493 = vunpack.c.l.s4 1983009808
    %v5494 = vunpack.c.0.s8 %v5493
    %v5495 = vlaneseq
    %v5496 = vshrl.u32 %v5495, 7
    %v5497 = vsub.s32 %v5494, %v5496
    %v5498 = vrot.slane %v5484, %v5497
    %v5499 = vcombine.high %v5491, %v5491
    %v5500 = vcombine.high %v5498, %v5498
    %v5501 = vcombine.high %v4749, %v4749
    %v5503 = vunpack.c.l.s4 1983009808
    %v5504 = vunpack.c.0.s8 %v5503
    %v5505 = vlaneseq
    %v5506 = vshrl.u32 %v5505, 7
    %v5507 = vsub.s32 %v5504, %v5506
    %v5508 = vrot.slane %v4749, %v5507
    %v5510 = vunpack.c.l.s4 1983009808
    %v5511 = vunpack.c.0.s8 %v5510
    %v5512 = vlaneseq
    %v5513 = vshrl.u32 %v5512, 7
    %v5514 = vsub.s32 %v5511, %v5513
    %v5515 = vrot.slane %v5501, %v5514
    %v5516 = vcombine.high %v5508, %v5508
    %v5517 = vcombine.high %v5515, %v5515
    %v5518 = vcombine.high %v4750, %v4750
    %v5520 = vunpack.c.l.s4 1983009808
    %v5521 = vunpack.c.0.s8 %v5520
    %v5522 = vlaneseq
    %v5523 = vshrl.u32 %v5522, 7
    %v5524 = vsub.s32 %v5521, %v5523
    %v5525 = vrot.slane %v4750, %v5524
    %v5527 = vunpack.c.l.s4 1983009808
    %v5528 = vunpack.c.0.s8 %v5527
    %v5529 = vlaneseq
    %v5530 = vshrl.u32 %v5529, 7
    %v5531 = vsub.s32 %v5528, %v5530
    %v5532 = vrot.slane %v5518, %v5531
    %v5533 = vcombine.high %v5525, %v5525
    %v5534 = vcombine.high %v5532, %v5532
    %v5535 = vcombine.high %v4751, %v4751
    %v5537 = vunpack.c.l.s4 1983009808
    %v5538 = vunpack.c.0.s8 %v5537
    %v5539 = vlaneseq
    %v5540 = vshrl.u32 %v5539, 7
    %v5541 = vsub.s32 %v5538, %v5540
    %v5542 = vrot.slane %v4751, %v5541
    %v5544 = vunpack.c.l.s4 1983009808
    %v5545 = vunpack.c.0.s8 %v5544
    %v5546 = vlaneseq
    %v5547 = vshrl.u32 %v5546, 7
    %v5548 = vsub.s32 %v5545, %v5547
    %v5549 = vrot.slane %v5535, %v5548
    %v5550 = vcombine.high %v5542, %v5542
    %v5551 = vcombine.high %v5549, %v5549
    %v5552 = vcombine.high %v4752, %v4752
    %v5554 = vunpack.c.l.s4 1983009808
    %v5555 = vunpack.c.0.s8 %v5554
    %v5556 = vlaneseq
    %v5557 = vshrl.u32 %v5556, 7
    %v5558 = vsub.s32 %v5555, %v5557
    %v5559 = vrot.slane %v4752, %v5558
    %v5561 = vunpack.c.l.s4 1983009808
    %v5562 = vunpack.c.0.s8 %v5561
    %v5563 = vlaneseq
    %v5564 = vshrl.u32 %v5563, 7
    %v5565 = vsub.s32 %v5562, %v5564
    %v5566 = vrot.slane %v5552, %v5565
    %v5567 = vcombine.high %v5559, %v5559
    %v5568 = vcombine.high %v5566, %v5566
    %v5569 = vcombine.high %v4753, %v4753
    %v5571 = vunpack.c.l.s4 1983009808
    %v5572 = vunpack.c.0.s8 %v5571
    %v5573 = vlaneseq
    %v5574 = vshrl.u32 %v5573, 7
    %v5575 = vsub.s32 %v5572, %v5574
    %v5576 = vrot.slane %v4753, %v5575
    %v5578 = vunpack.c.l.s4 1983009808
    %v5579 = vunpack.c.0.s8 %v5578
    %v5580 = vlaneseq
    %v5581 = vshrl.u32 %v5580, 7
    %v5582 = vsub.s32 %v5579, %v5581
    %v5583 = vrot.slane %v5569, %v5582
    %v5584 = vcombine.high %v5576, %v5576
    %v5585 = vcombine.high %v5583, %v5583
    %v5586 = vcombine.high %v4754, %v4754
    %v5588 = vunpack.c.l.s4 1983009808
    %v5589 = vunpack.c.0.s8 %v5588
    %v5590 = vlaneseq
    %v5591 = vshrl.u32 %v5590, 7
    %v5592 = vsub.s32 %v5589, %v5591
    %v5593 = vrot.slane %v4754, %v5592
    %v5595 = vunpack.c.l.s4 1983009808
    %v5596 = vunpack.c.0.s8 %v5595
    %v5597 = vlaneseq
    %v5598 = vshrl.u32 %v5597, 7
    %v5599 = vsub.s32 %v5596, %v5598
    %v5600 = vrot.slane %v5586, %v5599
    %v5601 = vcombine.high %v5593, %v5593
    %v5602 = vcombine.high %v5600, %v5600
    %v5603 = vcombine.high %v4755, %v4755
    %v5605 = vunpack.c.l.s4 1983009808
    %v5606 = vunpack.c.0.s8 %v5605
    %v5607 = vlaneseq
    %v5608 = vshrl.u32 %v5607, 7
    %v5609 = vsub.s32 %v5606, %v5608
    %v5610 = vrot.slane %v4755, %v5609
    %v5612 = vunpack.c.l.s4 1983009808
    %v5613 = vunpack.c.0.s8 %v5612
    %v5614 = vlaneseq
    %v5615 = vshrl.u32 %v5614, 7
    %v5616 = vsub.s32 %v5613, %v5615
    %v5617 = vrot.slane %v5603, %v5616
    %v5618 = vcombine.high %v5610, %v5610
    %v5619 = vcombine.high %v5617, %v5617
    %v5620 = vcombine.high %v4756, %v4756
    %v5622 = vunpack.c.l.s4 1983009808
    %v5623 = vunpack.c.0.s8 %v5622
    %v5624 = vlaneseq
    %v5625 = vshrl.u32 %v5624, 7
    %v5626 = vsub.s32 %v5623, %v5625
    %v5627 = vrot.slane %v4756, %v5626
    %v5629 = vunpack.c.l.s4 1983009808
    %v5630 = vunpack.c.0.s8 %v5629
    %v5631 = vlaneseq
    %v5632 = vshrl.u32 %v5631, 7
    %v5633 = vsub.s32 %v5630, %v5632
    %v5634 = vrot.slane %v5620, %v5633
    %v5635 = vcombine.high %v5627, %v5627
    %v5636 = vcombine.high %v5634, %v5634
    %v5637 = vcombine.high %v4757, %v4757
    %v5639 = vunpack.c.l.s4 1983009808
    %v5640 = vunpack.c.0.s8 %v5639
    %v5641 = vlaneseq
    %v5642 = vshrl.u32 %v5641, 7
    %v5643 = vsub.s32 %v5640, %v5642
    %v5644 = vrot.slane %v4757, %v5643
    %v5646 = vunpack.c.l.s4 1983009808
    %v5647 = vunpack.c.0.s8 %v5646
    %v5648 = vlaneseq
    %v5649 = vshrl.u32 %v5648, 7
    %v5650 = vsub.s32 %v5647, %v5649
    %v5651 = vrot.slane %v5637, %v5650
    %v5652 = vcombine.high %v5644, %v5644
    %v5653 = vcombine.high %v5651, %v5651
    %v5654 = vcombine.high %v4758, %v4758
    %v5656 = vunpack.c.l.s4 1983009808
    %v5657 = vunpack.c.0.s8 %v5656
    %v5658 = vlaneseq
    %v5659 = vshrl.u32 %v5658, 7
    %v5660 = vsub.s32 %v5657, %v5659
    %v5661 = vrot.slane %v4758, %v5660
    %v5663 = vunpack.c.l.s4 1983009808
    %v5664 = vunpack.c.0.s8 %v5663
    %v5665 = vlaneseq
    %v5666 = vshrl.u32 %v5665, 7
    %v5667 = vsub.s32 %v5664, %v5666
    %v5668 = vrot.slane %v5654, %v5667
    %v5669 = vcombine.high %v5661, %v5661
    %v5670 = vcombine.high %v5668, %v5668
    %v5671 = vcombine.high %v4759, %v4759
    %v5673 = vunpack.c.l.s4 1983009808
    %v5674 = vunpack.c.0.s8 %v5673
    %v5675 = vlaneseq
    %v5676 = vshrl.u32 %v5675, 7
    %v5677 = vsub.s32 %v5674, %v5676
    %v5678 = vrot.slane %v4759, %v5677
    %v5680 = vunpack.c.l.s4 1983009808
    %v5681 = vunpack.c.0.s8 %v5680
    %v5682 = vlaneseq
    %v5683 = vshrl.u32 %v5682, 7
    %v5684 = vsub.s32 %v5681, %v5683
    %v5685 = vrot.slane %v5671, %v5684
    %v5686 = vcombine.high %v5678, %v5678
    %v5687 = vcombine.high %v5685, %v5685
    %v5688 = vcombine.high %v4760, %v4760
    %v5690 = vunpack.c.l.s4 1983009808
    %v5691 = vunpack.c.0.s8 %v5690
    %v5692 = vlaneseq
    %v5693 = vshrl.u32 %v5692, 7
    %v5694 = vsub.s32 %v5691, %v5693
    %v5695 = vrot.slane %v4760, %v5694
    %v5697 = vunpack.c.l.s4 1983009808
    %v5698 = vunpack.c.0.s8 %v5697
    %v5699 = vlaneseq
    %v5700 = vshrl.u32 %v5699, 7
    %v5701 = vsub.s32 %v5698, %v5700
    %v5702 = vrot.slane %v5688, %v5701
    %v5703 = vcombine.high %v5695, %v5695
    %v5704 = vcombine.high %v5702, %v5702
    %v5705 = vcombine.high %v4761, %v4761
    %v5707 = vunpack.c.l.s4 1983009808
    %v5708 = vunpack.c.0.s8 %v5707
    %v5709 = vlaneseq
    %v5710 = vshrl.u32 %v5709, 7
    %v5711 = vsub.s32 %v5708, %v5710
    %v5712 = vrot.slane %v4761, %v5711
    %v5714 = vunpack.c.l.s4 1983009808
    %v5715 = vunpack.c.0.s8 %v5714
    %v5716 = vlaneseq
    %v5717 = vshrl.u32 %v5716, 7
    %v5718 = vsub.s32 %v5715, %v5717
    %v5719 = vrot.slane %v5705, %v5718
    %v5720 = vcombine.high %v5712, %v5712
    %v5721 = vcombine.high %v5719, %v5719
    %v5722 = vcombine.high %v4762, %v4762
    %v5724 = vunpack.c.l.s4 1983009808
    %v5725 = vunpack.c.0.s8 %v5724
    %v5726 = vlaneseq
    %v5727 = vshrl.u32 %v5726, 7
    %v5728 = vsub.s32 %v5725, %v5727
    %v5729 = vrot.slane %v4762, %v5728
    %v5731 = vunpack.c.l.s4 1983009808
    %v5732 = vunpack.c.0.s8 %v5731
    %v5733 = vlaneseq
    %v5734 = vshrl.u32 %v5733, 7
    %v5735 = vsub.s32 %v5732, %v5734
    %v5736 = vrot.slane %v5722, %v5735
    %v5737 = vcombine.high %v5729, %v5729
    %v5738 = vcombine.high %v5736, %v5736
    %v5739 = vcombine.high %v4763, %v4763
    %v5741 = vunpack.c.l.s4 1983009808
    %v5742 = vunpack.c.0.s8 %v5741
    %v5743 = vlaneseq
    %v5744 = vshrl.u32 %v5743, 7
    %v5745 = vsub.s32 %v5742, %v5744
    %v5746 = vrot.slane %v4763, %v5745
    %v5748 = vunpack.c.l.s4 1983009808
    %v5749 = vunpack.c.0.s8 %v5748
    %v5750 = vlaneseq
    %v5751 = vshrl.u32 %v5750, 7
    %v5752 = vsub.s32 %v5749, %v5751
    %v5753 = vrot.slane %v5739, %v5752
    %v5754 = vcombine.high %v5746, %v5746
    %v5755 = vcombine.high %v5753, %v5753
    %v5756 = vcombine.high %v4764, %v4764
    %v5758 = vunpack.c.l.s4 1983009808
    %v5759 = vunpack.c.0.s8 %v5758
    %v5760 = vlaneseq
    %v5761 = vshrl.u32 %v5760, 7
    %v5762 = vsub.s32 %v5759, %v5761
    %v5763 = vrot.slane %v4764, %v5762
    %v5765 = vunpack.c.l.s4 1983009808
    %v5766 = vunpack.c.0.s8 %v5765
    %v5767 = vlaneseq
    %v5768 = vshrl.u32 %v5767, 7
    %v5769 = vsub.s32 %v5766, %v5768
    %v5770 = vrot.slane %v5756, %v5769
    %v5771 = vcombine.high %v5763, %v5763
    %v5772 = vcombine.high %v5770, %v5770
    %v5773 = vcombine.high %v4765, %v4765
    %v5775 = vunpack.c.l.s4 1983009808
    %v5776 = vunpack.c.0.s8 %v5775
    %v5777 = vlaneseq
    %v5778 = vshrl.u32 %v5777, 7
    %v5779 = vsub.s32 %v5776, %v5778
    %v5780 = vrot.slane %v4765, %v5779
    %v5782 = vunpack.c.l.s4 1983009808
    %v5783 = vunpack.c.0.s8 %v5782
    %v5784 = vlaneseq
    %v5785 = vshrl.u32 %v5784, 7
    %v5786 = vsub.s32 %v5783, %v5785
    %v5787 = vrot.slane %v5773, %v5786
    %v5788 = vcombine.high %v5780, %v5780
    %v5789 = vcombine.high %v5787, %v5787
    %v5790 = vcombine.high %v4766, %v4766
    %v5792 = vunpack.c.l.s4 1983009808
    %v5793 = vunpack.c.0.s8 %v5792
    %v5794 = vlaneseq
    %v5795 = vshrl.u32 %v5794, 7
    %v5796 = vsub.s32 %v5793, %v5795
    %v5797 = vrot.slane %v4766, %v5796
    %v5799 = vunpack.c.l.s4 1983009808
    %v5800 = vunpack.c.0.s8 %v5799
    %v5801 = vlaneseq
    %v5802 = vshrl.u32 %v5801, 7
    %v5803 = vsub.s32 %v5800, %v5802
    %v5804 = vrot.slane %v5790, %v5803
    %v5805 = vcombine.high %v5797, %v5797
    %v5806 = vcombine.high %v5804, %v5804
    %v5807 = vcombine.high %v4767, %v4767
    %v5809 = vunpack.c.l.s4 1983009808
    %v5810 = vunpack.c.0.s8 %v5809
    %v5811 = vlaneseq
    %v5812 = vshrl.u32 %v5811, 7
    %v5813 = vsub.s32 %v5810, %v5812
    %v5814 = vrot.slane %v4767, %v5813
    %v5816 = vunpack.c.l.s4 1983009808
    %v5817 = vunpack.c.0.s8 %v5816
    %v5818 = vlaneseq
    %v5819 = vshrl.u32 %v5818, 7
    %v5820 = vsub.s32 %v5817, %v5819
    %v5821 = vrot.slane %v5807, %v5820
    %v5822 = vcombine.high %v5814, %v5814
    %v5823 = vcombine.high %v5821, %v5821
    %v5824 = vcombine.high %v4768, %v4768
    %v5826 = vunpack.c.l.s4 1983009808
    %v5827 = vunpack.c.0.s8 %v5826
    %v5828 = vlaneseq
    %v5829 = vshrl.u32 %v5828, 7
    %v5830 = vsub.s32 %v5827, %v5829
    %v5831 = vrot.slane %v4768, %v5830
    %v5833 = vunpack.c.l.s4 1983009808
    %v5834 = vunpack.c.0.s8 %v5833
    %v5835 = vlaneseq
    %v5836 = vshrl.u32 %v5835, 7
    %v5837 = vsub.s32 %v5834, %v5836
    %v5838 = vrot.slane %v5824, %v5837
    %v5839 = vcombine.high %v5831, %v5831
    %v5840 = vcombine.high %v5838, %v5838
    %v5841 = vcombine.high %v4769, %v4769
    %v5843 = vunpack.c.l.s4 1983009808
    %v5844 = vunpack.c.0.s8 %v5843
    %v5845 = vlaneseq
    %v5846 = vshrl.u32 %v5845, 7
    %v5847 = vsub.s32 %v5844, %v5846
    %v5848 = vrot.slane %v4769, %v5847
    %v5850 = vunpack.c.l.s4 1983009808
    %v5851 = vunpack.c.0.s8 %v5850
    %v5852 = vlaneseq
    %v5853 = vshrl.u32 %v5852, 7
    %v5854 = vsub.s32 %v5851, %v5853
    %v5855 = vrot.slane %v5841, %v5854
    %v5856 = vcombine.high %v5848, %v5848
    %v5857 = vcombine.high %v5855, %v5855
    %v5858 = vcombine.high %v4770, %v4770
    %v5860 = vunpack.c.l.s4 1983009808
    %v5861 = vunpack.c.0.s8 %v5860
    %v5862 = vlaneseq
    %v5863 = vshrl.u32 %v5862, 7
    %v5864 = vsub.s32 %v5861, %v5863
    %v5865 = vrot.slane %v4770, %v5864
    %v5867 = vunpack.c.l.s4 1983009808
    %v5868 = vunpack.c.0.s8 %v5867
    %v5869 = vlaneseq
    %v5870 = vshrl.u32 %v5869, 7
    %v5871 = vsub.s32 %v5868, %v5870
    %v5872 = vrot.slane %v5858, %v5871
    %v5873 = vcombine.high %v5865, %v5865
    %v5874 = vcombine.high %v5872, %v5872
    %v5875 = vcombine.high %v4771, %v4771
    %v5877 = vunpack.c.l.s4 1983009808
    %v5878 = vunpack.c.0.s8 %v5877
    %v5879 = vlaneseq
    %v5880 = vshrl.u32 %v5879, 7
    %v5881 = vsub.s32 %v5878, %v5880
    %v5882 = vrot.slane %v4771, %v5881
    %v5884 = vunpack.c.l.s4 1983009808
    %v5885 = vunpack.c.0.s8 %v5884
    %v5886 = vlaneseq
    %v5887 = vshrl.u32 %v5886, 7
    %v5888 = vsub.s32 %v5885, %v5887
    %v5889 = vrot.slane %v5875, %v5888
    %v5890 = vcombine.high %v5882, %v5882
    %v5891 = vcombine.high %v5889, %v5889
    %v5892 = vcombine.high %v4772, %v4772
    %v5894 = vunpack.c.l.s4 1983009808
    %v5895 = vunpack.c.0.s8 %v5894
    %v5896 = vlaneseq
    %v5897 = vshrl.u32 %v5896, 7
    %v5898 = vsub.s32 %v5895, %v5897
    %v5899 = vrot.slane %v4772, %v5898
    %v5901 = vunpack.c.l.s4 1983009808
    %v5902 = vunpack.c.0.s8 %v5901
    %v5903 = vlaneseq
    %v5904 = vshrl.u32 %v5903, 7
    %v5905 = vsub.s32 %v5902, %v5904
    %v5906 = vrot.slane %v5892, %v5905
    %v5907 = vcombine.high %v5899, %v5899
    %v5908 = vcombine.high %v5906, %v5906
    %v5909 = vcombine.high %v4773, %v4773
    %v5911 = vunpack.c.l.s4 1983009808
    %v5912 = vunpack.c.0.s8 %v5911
    %v5913 = vlaneseq
    %v5914 = vshrl.u32 %v5913, 7
    %v5915 = vsub.s32 %v5912, %v5914
    %v5916 = vrot.slane %v4773, %v5915
    %v5918 = vunpack.c.l.s4 1983009808
    %v5919 = vunpack.c.0.s8 %v5918
    %v5920 = vlaneseq
    %v5921 = vshrl.u32 %v5920, 7
    %v5922 = vsub.s32 %v5919, %v5921
    %v5923 = vrot.slane %v5909, %v5922
    %v5924 = vcombine.high %v5916, %v5916
    %v5925 = vcombine.high %v5923, %v5923
    %vm6182 = vcmask 58368
    %v6183 = vsel %vm6182, %v4845, -inf
    %v6184 = vrot.slane %v6183, 4
    %v6185 = vmax.f32 %v6183, %v6184
    %v6186 = vrot.slane %v6185, 2
    %v6187 = vmax.f32 %v6185, %v6186
    %v6188 = vrot.slane %v6187, 1
    %v6189 = vmax.f32 %v6187, %v6188
    %v6190 = vsel %vm6182, %v4853, -inf
    %v6191 = vrot.slane %v6190, 4
    %v6192 = vmax.f32 %v6190, %v6191
    %v6193 = vrot.slane %v6192, 2
    %v6194 = vmax.f32 %v6192, %v6193
    %v6195 = vrot.slane %v6194, 1
    %v6196 = vmax.f32 %v6194, %v6195
    %v6197 = vsel %vm6182, %v4852, -inf
    %v6198 = vrot.slane %v6197, 4
    %v6199 = vmax.f32 %v6197, %v6198
    %v6200 = vrot.slane %v6199, 2
    %v6201 = vmax.f32 %v6199, %v6200
    %v6202 = vrot.slane %v6201, 1
    %v6203 = vmax.f32 %v6201, %v6202
    %v6204 = vsel %vm6182, %v4854, -inf
    %v6205 = vrot.slane %v6204, 4
    %v6206 = vmax.f32 %v6204, %v6205
    %v6207 = vrot.slane %v6206, 2
    %v6208 = vmax.f32 %v6206, %v6207
    %v6209 = vrot.slane %v6208, 1
    %v6210 = vmax.f32 %v6208, %v6209
    %v6211 = vsel %vm6182, %v4862, -inf
    %v6212 = vrot.slane %v6211, 4
    %v6213 = vmax.f32 %v6211, %v6212
    %v6214 = vrot.slane %v6213, 2
    %v6215 = vmax.f32 %v6213, %v6214
    %v6216 = vrot.slane %v6215, 1
    %v6217 = vmax.f32 %v6215, %v6216
    %v6218 = vsel %vm6182, %v4870, -inf
    %v6219 = vrot.slane %v6218, 4
    %v6220 = vmax.f32 %v6218, %v6219
    %v6221 = vrot.slane %v6220, 2
    %v6222 = vmax.f32 %v6220, %v6221
    %v6223 = vrot.slane %v6222, 1
    %v6224 = vmax.f32 %v6222, %v6223
    %v6225 = vsel %vm6182, %v4869, -inf
    %v6226 = vrot.slane %v6225, 4
    %v6227 = vmax.f32 %v6225, %v6226
    %v6228 = vrot.slane %v6227, 2
    %v6229 = vmax.f32 %v6227, %v6228
    %v6230 = vrot.slane %v6229, 1
    %v6231 = vmax.f32 %v6229, %v6230
    %v6232 = vsel %vm6182, %v4871, -inf
    %v6233 = vrot.slane %v6232, 4
    %v6234 = vmax.f32 %v6232, %v6233
    %v6235 = vrot.slane %v6234, 2
    %v6236 = vmax.f32 %v6234, %v6235
    %v6237 = vrot.slane %v6236, 1
    %v6238 = vmax.f32 %v6236, %v6237
    %v6239 = vsel %vm6182, %v4879, -inf
    %v6240 = vrot.slane %v6239, 4
    %v6241 = vmax.f32 %v6239, %v6240
    %v6242 = vrot.slane %v6241, 2
    %v6243 = vmax.f32 %v6241, %v6242
    %v6244 = vrot.slane %v6243, 1
    %v6245 = vmax.f32 %v6243, %v6244
    %v6246 = vsel %vm6182, %v4887, -inf
    %v6247 = vrot.slane %v6246, 4
    %v6248 = vmax.f32 %v6246, %v6247
    %v6249 = vrot.slane %v6248, 2
    %v6250 = vmax.f32 %v6248, %v6249
    %v6251 = vrot.slane %v6250, 1
    %v6252 = vmax.f32 %v6250, %v6251
    %v6253 = vsel %vm6182, %v4886, -inf
    %v6254 = vrot.slane %v6253, 4
    %v6255 = vmax.f32 %v6253, %v6254
    %v6256 = vrot.slane %v6255, 2
    %v6257 = vmax.f32 %v6255, %v6256
    %v6258 = vrot.slane %v6257, 1
    %v6259 = vmax.f32 %v6257, %v6258
    %v6260 = vsel %vm6182, %v4888, -inf
    %v6261 = vrot.slane %v6260, 4
    %v6262 = vmax.f32 %v6260, %v6261
    %v6263 = vrot.slane %v6262, 2
    %v6264 = vmax.f32 %v6262, %v6263
    %v6265 = vrot.slane %v6264, 1
    %v6266 = vmax.f32 %v6264, %v6265
    %v6267 = vsel %vm6182, %v4896, -inf
    %v6268 = vrot.slane %v6267, 4
    %v6269 = vmax.f32 %v6267, %v6268
    %v6270 = vrot.slane %v6269, 2
    %v6271 = vmax.f32 %v6269, %v6270
    %v6272 = vrot.slane %v6271, 1
    %v6273 = vmax.f32 %v6271, %v6272
    %v6274 = vsel %vm6182, %v4904, -inf
    %v6275 = vrot.slane %v6274, 4
    %v6276 = vmax.f32 %v6274, %v6275
    %v6277 = vrot.slane %v6276, 2
    %v6278 = vmax.f32 %v6276, %v6277
    %v6279 = vrot.slane %v6278, 1
    %v6280 = vmax.f32 %v6278, %v6279
    %v6281 = vsel %vm6182, %v4903, -inf
    %v6282 = vrot.slane %v6281, 4
    %v6283 = vmax.f32 %v6281, %v6282
    %v6284 = vrot.slane %v6283, 2
    %v6285 = vmax.f32 %v6283, %v6284
    %v6286 = vrot.slane %v6285, 1
    %v6287 = vmax.f32 %v6285, %v6286
    %v6288 = vsel %vm6182, %v4905, -inf
    %v6289 = vrot.slane %v6288, 4
    %v6290 = vmax.f32 %v6288, %v6289
    %v6291 = vrot.slane %v6290, 2
    %v6292 = vmax.f32 %v6290, %v6291
    %v6293 = vrot.slane %v6292, 1
    %v6294 = vmax.f32 %v6292, %v6293
    %v6295 = vsel %vm6182, %v4913, -inf
    %v6296 = vrot.slane %v6295, 4
    %v6297 = vmax.f32 %v6295, %v6296
    %v6298 = vrot.slane %v6297, 2
    %v6299 = vmax.f32 %v6297, %v6298
    %v6300 = vrot.slane %v6299, 1
    %v6301 = vmax.f32 %v6299, %v6300
    %v6302 = vsel %vm6182, %v4921, -inf
    %v6303 = vrot.slane %v6302, 4
    %v6304 = vmax.f32 %v6302, %v6303
    %v6305 = vrot.slane %v6304, 2
    %v6306 = vmax.f32 %v6304, %v6305
    %v6307 = vrot.slane %v6306, 1
    %v6308 = vmax.f32 %v6306, %v6307
    %v6309 = vsel %vm6182, %v4920, -inf
    %v6310 = vrot.slane %v6309, 4
    %v6311 = vmax.f32 %v6309, %v6310
    %v6312 = vrot.slane %v6311, 2
    %v6313 = vmax.f32 %v6311, %v6312
    %v6314 = vrot.slane %v6313, 1
    %v6315 = vmax.f32 %v6313, %v6314
    %v6316 = vsel %vm6182, %v4922, -inf
    %v6317 = vrot.slane %v6316, 4
    %v6318 = vmax.f32 %v6316, %v6317
    %v6319 = vrot.slane %v6318, 2
    %v6320 = vmax.f32 %v6318, %v6319
    %v6321 = vrot.slane %v6320, 1
    %v6322 = vmax.f32 %v6320, %v6321
    %v6323 = vsel %vm6182, %v4930, -inf
    %v6324 = vrot.slane %v6323, 4
    %v6325 = vmax.f32 %v6323, %v6324
    %v6326 = vrot.slane %v6325, 2
    %v6327 = vmax.f32 %v6325, %v6326
    %v6328 = vrot.slane %v6327, 1
    %v6329 = vmax.f32 %v6327, %v6328
    %v6330 = vsel %vm6182, %v4938, -inf
    %v6331 = vrot.slane %v6330, 4
    %v6332 = vmax.f32 %v6330, %v6331
    %v6333 = vrot.slane %v6332, 2
    %v6334 = vmax.f32 %v6332, %v6333
    %v6335 = vrot.slane %v6334, 1
    %v6336 = vmax.f32 %v6334, %v6335
    %v6337 = vsel %vm6182, %v4937, -inf
    %v6338 = vrot.slane %v6337, 4
    %v6339 = vmax.f32 %v6337, %v6338
    %v6340 = vrot.slane %v6339, 2
    %v6341 = vmax.f32 %v6339, %v6340
    %v6342 = vrot.slane %v6341, 1
    %v6343 = vmax.f32 %v6341, %v6342
    %v6344 = vsel %vm6182, %v4939, -inf
    %v6345 = vrot.slane %v6344, 4
    %v6346 = vmax.f32 %v6344, %v6345
    %v6347 = vrot.slane %v6346, 2
    %v6348 = vmax.f32 %v6346, %v6347
    %v6349 = vrot.slane %v6348, 1
    %v6350 = vmax.f32 %v6348, %v6349
    %v6351 = vsel %vm6182, %v4947, -inf
    %v6352 = vrot.slane %v6351, 4
    %v6353 = vmax.f32 %v6351, %v6352
    %v6354 = vrot.slane %v6353, 2
    %v6355 = vmax.f32 %v6353, %v6354
    %v6356 = vrot.slane %v6355, 1
    %v6357 = vmax.f32 %v6355, %v6356
    %v6358 = vsel %vm6182, %v4955, -inf
    %v6359 = vrot.slane %v6358, 4
    %v6360 = vmax.f32 %v6358, %v6359
    %v6361 = vrot.slane %v6360, 2
    %v6362 = vmax.f32 %v6360, %v6361
    %v6363 = vrot.slane %v6362, 1
    %v6364 = vmax.f32 %v6362, %v6363
    %v6365 = vsel %vm6182, %v4954, -inf
    %v6366 = vrot.slane %v6365, 4
    %v6367 = vmax.f32 %v6365, %v6366
    %v6368 = vrot.slane %v6367, 2
    %v6369 = vmax.f32 %v6367, %v6368
    %v6370 = vrot.slane %v6369, 1
    %v6371 = vmax.f32 %v6369, %v6370
    %v6372 = vsel %vm6182, %v4956, -inf
    %v6373 = vrot.slane %v6372, 4
    %v6374 = vmax.f32 %v6372, %v6373
    %v6375 = vrot.slane %v6374, 2
    %v6376 = vmax.f32 %v6374, %v6375
    %v6377 = vrot.slane %v6376, 1
    %v6378 = vmax.f32 %v6376, %v6377
    %v6379 = vsel %vm6182, %v4964, -inf
    %v6380 = vrot.slane %v6379, 4
    %v6381 = vmax.f32 %v6379, %v6380
    %v6382 = vrot.slane %v6381, 2
    %v6383 = vmax.f32 %v6381, %v6382
    %v6384 = vrot.slane %v6383, 1
    %v6385 = vmax.f32 %v6383, %v6384
    %v6386 = vsel %vm6182, %v4972, -inf
    %v6387 = vrot.slane %v6386, 4
    %v6388 = vmax.f32 %v6386, %v6387
    %v6389 = vrot.slane %v6388, 2
    %v6390 = vmax.f32 %v6388, %v6389
    %v6391 = vrot.slane %v6390, 1
    %v6392 = vmax.f32 %v6390, %v6391
    %v6393 = vsel %vm6182, %v4971, -inf
    %v6394 = vrot.slane %v6393, 4
    %v6395 = vmax.f32 %v6393, %v6394
    %v6396 = vrot.slane %v6395, 2
    %v6397 = vmax.f32 %v6395, %v6396
    %v6398 = vrot.slane %v6397, 1
    %v6399 = vmax.f32 %v6397, %v6398
    %v6400 = vsel %vm6182, %v4973, -inf
    %v6401 = vrot.slane %v6400, 4
    %v6402 = vmax.f32 %v6400, %v6401
    %v6403 = vrot.slane %v6402, 2
    %v6404 = vmax.f32 %v6402, %v6403
    %v6405 = vrot.slane %v6404, 1
    %v6406 = vmax.f32 %v6404, %v6405
    %v6407 = vsel %vm6182, %v4981, -inf
    %v6408 = vrot.slane %v6407, 4
    %v6409 = vmax.f32 %v6407, %v6408
    %v6410 = vrot.slane %v6409, 2
    %v6411 = vmax.f32 %v6409, %v6410
    %v6412 = vrot.slane %v6411, 1
    %v6413 = vmax.f32 %v6411, %v6412
    %v6414 = vsel %vm6182, %v4989, -inf
    %v6415 = vrot.slane %v6414, 4
    %v6416 = vmax.f32 %v6414, %v6415
    %v6417 = vrot.slane %v6416, 2
    %v6418 = vmax.f32 %v6416, %v6417
    %v6419 = vrot.slane %v6418, 1
    %v6420 = vmax.f32 %v6418, %v6419
    %v6421 = vsel %vm6182, %v4988, -inf
    %v6422 = vrot.slane %v6421, 4
    %v6423 = vmax.f32 %v6421, %v6422
    %v6424 = vrot.slane %v6423, 2
    %v6425 = vmax.f32 %v6423, %v6424
    %v6426 = vrot.slane %v6425, 1
    %v6427 = vmax.f32 %v6425, %v6426
    %v6428 = vsel %vm6182, %v4990, -inf
    %v6429 = vrot.slane %v6428, 4
    %v6430 = vmax.f32 %v6428, %v6429
    %v6431 = vrot.slane %v6430, 2
    %v6432 = vmax.f32 %v6430, %v6431
    %v6433 = vrot.slane %v6432, 1
    %v6434 = vmax.f32 %v6432, %v6433
    %v6435 = vsel %vm6182, %v4998, -inf
    %v6436 = vrot.slane %v6435, 4
    %v6437 = vmax.f32 %v6435, %v6436
    %v6438 = vrot.slane %v6437, 2
    %v6439 = vmax.f32 %v6437, %v6438
    %v6440 = vrot.slane %v6439, 1
    %v6441 = vmax.f32 %v6439, %v6440
    %v6442 = vsel %vm6182, %v5006, -inf
    %v6443 = vrot.slane %v6442, 4
    %v6444 = vmax.f32 %v6442, %v6443
    %v6445 = vrot.slane %v6444, 2
    %v6446 = vmax.f32 %v6444, %v6445
    %v6447 = vrot.slane %v6446, 1
    %v6448 = vmax.f32 %v6446, %v6447
    %v6449 = vsel %vm6182, %v5005, -inf
    %v6450 = vrot.slane %v6449, 4
    %v6451 = vmax.f32 %v6449, %v6450
    %v6452 = vrot.slane %v6451, 2
    %v6453 = vmax.f32 %v6451, %v6452
    %v6454 = vrot.slane %v6453, 1
    %v6455 = vmax.f32 %v6453, %v6454
    %v6456 = vsel %vm6182, %v5007, -inf
    %v6457 = vrot.slane %v6456, 4
    %v6458 = vmax.f32 %v6456, %v6457
    %v6459 = vrot.slane %v6458, 2
    %v6460 = vmax.f32 %v6458, %v6459
    %v6461 = vrot.slane %v6460, 1
    %v6462 = vmax.f32 %v6460, %v6461
    %v6463 = vsel %vm6182, %v5015, -inf
    %v6464 = vrot.slane %v6463, 4
    %v6465 = vmax.f32 %v6463, %v6464
    %v6466 = vrot.slane %v6465, 2
    %v6467 = vmax.f32 %v6465, %v6466
    %v6468 = vrot.slane %v6467, 1
    %v6469 = vmax.f32 %v6467, %v6468
    %v6470 = vsel %vm6182, %v5023, -inf
    %v6471 = vrot.slane %v6470, 4
    %v6472 = vmax.f32 %v6470, %v6471
    %v6473 = vrot.slane %v6472, 2
    %v6474 = vmax.f32 %v6472, %v6473
    %v6475 = vrot.slane %v6474, 1
    %v6476 = vmax.f32 %v6474, %v6475
    %v6477 = vsel %vm6182, %v5022, -inf
    %v6478 = vrot.slane %v6477, 4
    %v6479 = vmax.f32 %v6477, %v6478
    %v6480 = vrot.slane %v6479, 2
    %v6481 = vmax.f32 %v6479, %v6480
    %v6482 = vrot.slane %v6481, 1
    %v6483 = vmax.f32 %v6481, %v6482
    %v6484 = vsel %vm6182, %v5024, -inf
    %v6485 = vrot.slane %v6484, 4
    %v6486 = vmax.f32 %v6484, %v6485
    %v6487 = vrot.slane %v6486, 2
    %v6488 = vmax.f32 %v6486, %v6487
    %v6489 = vrot.slane %v6488, 1
    %v6490 = vmax.f32 %v6488, %v6489
    %v6491 = vsel %vm6182, %v5032, -inf
    %v6492 = vrot.slane %v6491, 4
    %v6493 = vmax.f32 %v6491, %v6492
    %v6494 = vrot.slane %v6493, 2
    %v6495 = vmax.f32 %v6493, %v6494
    %v6496 = vrot.slane %v6495, 1
    %v6497 = vmax.f32 %v6495, %v6496
    %v6498 = vsel %vm6182, %v5040, -inf
    %v6499 = vrot.slane %v6498, 4
    %v6500 = vmax.f32 %v6498, %v6499
    %v6501 = vrot.slane %v6500, 2
    %v6502 = vmax.f32 %v6500, %v6501
    %v6503 = vrot.slane %v6502, 1
    %v6504 = vmax.f32 %v6502, %v6503
    %v6505 = vsel %vm6182, %v5039, -inf
    %v6506 = vrot.slane %v6505, 4
    %v6507 = vmax.f32 %v6505, %v6506
    %v6508 = vrot.slane %v6507, 2
    %v6509 = vmax.f32 %v6507, %v6508
    %v6510 = vrot.slane %v6509, 1
    %v6511 = vmax.f32 %v6509, %v6510
    %v6512 = vsel %vm6182, %v5041, -inf
    %v6513 = vrot.slane %v6512, 4
    %v6514 = vmax.f32 %v6512, %v6513
    %v6515 = vrot.slane %v6514, 2
    %v6516 = vmax.f32 %v6514, %v6515
    %v6517 = vrot.slane %v6516, 1
    %v6518 = vmax.f32 %v6516, %v6517
    %v6519 = vsel %vm6182, %v5049, -inf
    %v6520 = vrot.slane %v6519, 4
    %v6521 = vmax.f32 %v6519, %v6520
    %v6522 = vrot.slane %v6521, 2
    %v6523 = vmax.f32 %v6521, %v6522
    %v6524 = vrot.slane %v6523, 1
    %v6525 = vmax.f32 %v6523, %v6524
    %v6526 = vsel %vm6182, %v5057, -inf
    %v6527 = vrot.slane %v6526, 4
    %v6528 = vmax.f32 %v6526, %v6527
    %v6529 = vrot.slane %v6528, 2
    %v6530 = vmax.f32 %v6528, %v6529
    %v6531 = vrot.slane %v6530, 1
    %v6532 = vmax.f32 %v6530, %v6531
    %v6533 = vsel %vm6182, %v5056, -inf
    %v6534 = vrot.slane %v6533, 4
    %v6535 = vmax.f32 %v6533, %v6534
    %v6536 = vrot.slane %v6535, 2
    %v6537 = vmax.f32 %v6535, %v6536
    %v6538 = vrot.slane %v6537, 1
    %v6539 = vmax.f32 %v6537, %v6538
    %v6540 = vsel %vm6182, %v5058, -inf
    %v6541 = vrot.slane %v6540, 4
    %v6542 = vmax.f32 %v6540, %v6541
    %v6543 = vrot.slane %v6542, 2
    %v6544 = vmax.f32 %v6542, %v6543
    %v6545 = vrot.slane %v6544, 1
    %v6546 = vmax.f32 %v6544, %v6545
    %v6547 = vsel %vm6182, %v5066, -inf
    %v6548 = vrot.slane %v6547, 4
    %v6549 = vmax.f32 %v6547, %v6548
    %v6550 = vrot.slane %v6549, 2
    %v6551 = vmax.f32 %v6549, %v6550
    %v6552 = vrot.slane %v6551, 1
    %v6553 = vmax.f32 %v6551, %v6552
    %v6554 = vsel %vm6182, %v5074, -inf
    %v6555 = vrot.slane %v6554, 4
    %v6556 = vmax.f32 %v6554, %v6555
    %v6557 = vrot.slane %v6556, 2
    %v6558 = vmax.f32 %v6556, %v6557
    %v6559 = vrot.slane %v6558, 1
    %v6560 = vmax.f32 %v6558, %v6559
    %v6561 = vsel %vm6182, %v5073, -inf
    %v6562 = vrot.slane %v6561, 4
    %v6563 = vmax.f32 %v6561, %v6562
    %v6564 = vrot.slane %v6563, 2
    %v6565 = vmax.f32 %v6563, %v6564
    %v6566 = vrot.slane %v6565, 1
    %v6567 = vmax.f32 %v6565, %v6566
    %v6568 = vsel %vm6182, %v5075, -inf
    %v6569 = vrot.slane %v6568, 4
    %v6570 = vmax.f32 %v6568, %v6569
    %v6571 = vrot.slane %v6570, 2
    %v6572 = vmax.f32 %v6570, %v6571
    %v6573 = vrot.slane %v6572, 1
    %v6574 = vmax.f32 %v6572, %v6573
    %v6575 = vsel %vm6182, %v5083, -inf
    %v6576 = vrot.slane %v6575, 4
    %v6577 = vmax.f32 %v6575, %v6576
    %v6578 = vrot.slane %v6577, 2
    %v6579 = vmax.f32 %v6577, %v6578
    %v6580 = vrot.slane %v6579, 1
    %v6581 = vmax.f32 %v6579, %v6580
    %v6582 = vsel %vm6182, %v5091, -inf
    %v6583 = vrot.slane %v6582, 4
    %v6584 = vmax.f32 %v6582, %v6583
    %v6585 = vrot.slane %v6584, 2
    %v6586 = vmax.f32 %v6584, %v6585
    %v6587 = vrot.slane %v6586, 1
    %v6588 = vmax.f32 %v6586, %v6587
    %v6589 = vsel %vm6182, %v5090, -inf
    %v6590 = vrot.slane %v6589, 4
    %v6591 = vmax.f32 %v6589, %v6590
    %v6592 = vrot.slane %v6591, 2
    %v6593 = vmax.f32 %v6591, %v6592
    %v6594 = vrot.slane %v6593, 1
    %v6595 = vmax.f32 %v6593, %v6594
    %v6596 = vsel %vm6182, %v5092, -inf
    %v6597 = vrot.slane %v6596, 4
    %v6598 = vmax.f32 %v6596, %v6597
    %v6599 = vrot.slane %v6598, 2
    %v6600 = vmax.f32 %v6598, %v6599
    %v6601 = vrot.slane %v6600, 1
    %v6602 = vmax.f32 %v6600, %v6601
    %v6603 = vsel %vm6182, %v5100, -inf
    %v6604 = vrot.slane %v6603, 4
    %v6605 = vmax.f32 %v6603, %v6604
    %v6606 = vrot.slane %v6605, 2
    %v6607 = vmax.f32 %v6605, %v6606
    %v6608 = vrot.slane %v6607, 1
    %v6609 = vmax.f32 %v6607, %v6608
    %v6610 = vsel %vm6182, %v5108, -inf
    %v6611 = vrot.slane %v6610, 4
    %v6612 = vmax.f32 %v6610, %v6611
    %v6613 = vrot.slane %v6612, 2
    %v6614 = vmax.f32 %v6612, %v6613
    %v6615 = vrot.slane %v6614, 1
    %v6616 = vmax.f32 %v6614, %v6615
    %v6617 = vsel %vm6182, %v5107, -inf
    %v6618 = vrot.slane %v6617, 4
    %v6619 = vmax.f32 %v6617, %v6618
    %v6620 = vrot.slane %v6619, 2
    %v6621 = vmax.f32 %v6619, %v6620
    %v6622 = vrot.slane %v6621, 1
    %v6623 = vmax.f32 %v6621, %v6622
    %v6624 = vsel %vm6182, %v5109, -inf
    %v6625 = vrot.slane %v6624, 4
    %v6626 = vmax.f32 %v6624, %v6625
    %v6627 = vrot.slane %v6626, 2
    %v6628 = vmax.f32 %v6626, %v6627
    %v6629 = vrot.slane %v6628, 1
    %v6630 = vmax.f32 %v6628, %v6629
    %v6631 = vsel %vm6182, %v5117, -inf
    %v6632 = vrot.slane %v6631, 4
    %v6633 = vmax.f32 %v6631, %v6632
    %v6634 = vrot.slane %v6633, 2
    %v6635 = vmax.f32 %v6633, %v6634
    %v6636 = vrot.slane %v6635, 1
    %v6637 = vmax.f32 %v6635, %v6636
    %v6638 = vsel %vm6182, %v5125, -inf
    %v6639 = vrot.slane %v6638, 4
    %v6640 = vmax.f32 %v6638, %v6639
    %v6641 = vrot.slane %v6640, 2
    %v6642 = vmax.f32 %v6640, %v6641
    %v6643 = vrot.slane %v6642, 1
    %v6644 = vmax.f32 %v6642, %v6643
    %v6645 = vsel %vm6182, %v5124, -inf
    %v6646 = vrot.slane %v6645, 4
    %v6647 = vmax.f32 %v6645, %v6646
    %v6648 = vrot.slane %v6647, 2
    %v6649 = vmax.f32 %v6647, %v6648
    %v6650 = vrot.slane %v6649, 1
    %v6651 = vmax.f32 %v6649, %v6650
    %v6652 = vsel %vm6182, %v5126, -inf
    %v6653 = vrot.slane %v6652, 4
    %v6654 = vmax.f32 %v6652, %v6653
    %v6655 = vrot.slane %v6654, 2
    %v6656 = vmax.f32 %v6654, %v6655
    %v6657 = vrot.slane %v6656, 1
    %v6658 = vmax.f32 %v6656, %v6657
    %v6659 = vsel %vm6182, %v5134, -inf
    %v6660 = vrot.slane %v6659, 4
    %v6661 = vmax.f32 %v6659, %v6660
    %v6662 = vrot.slane %v6661, 2
    %v6663 = vmax.f32 %v6661, %v6662
    %v6664 = vrot.slane %v6663, 1
    %v6665 = vmax.f32 %v6663, %v6664
    %v6666 = vsel %vm6182, %v5142, -inf
    %v6667 = vrot.slane %v6666, 4
    %v6668 = vmax.f32 %v6666, %v6667
    %v6669 = vrot.slane %v6668, 2
    %v6670 = vmax.f32 %v6668, %v6669
    %v6671 = vrot.slane %v6670, 1
    %v6672 = vmax.f32 %v6670, %v6671
    %v6673 = vsel %vm6182, %v5141, -inf
    %v6674 = vrot.slane %v6673, 4
    %v6675 = vmax.f32 %v6673, %v6674
    %v6676 = vrot.slane %v6675, 2
    %v6677 = vmax.f32 %v6675, %v6676
    %v6678 = vrot.slane %v6677, 1
    %v6679 = vmax.f32 %v6677, %v6678
    %v6680 = vsel %vm6182, %v5143, -inf
    %v6681 = vrot.slane %v6680, 4
    %v6682 = vmax.f32 %v6680, %v6681
    %v6683 = vrot.slane %v6682, 2
    %v6684 = vmax.f32 %v6682, %v6683
    %v6685 = vrot.slane %v6684, 1
    %v6686 = vmax.f32 %v6684, %v6685
    %v6687 = vsel %vm6182, %v5151, -inf
    %v6688 = vrot.slane %v6687, 4
    %v6689 = vmax.f32 %v6687, %v6688
    %v6690 = vrot.slane %v6689, 2
    %v6691 = vmax.f32 %v6689, %v6690
    %v6692 = vrot.slane %v6691, 1
    %v6693 = vmax.f32 %v6691, %v6692
    %v6694 = vsel %vm6182, %v5159, -inf
    %v6695 = vrot.slane %v6694, 4
    %v6696 = vmax.f32 %v6694, %v6695
    %v6697 = vrot.slane %v6696, 2
    %v6698 = vmax.f32 %v6696, %v6697
    %v6699 = vrot.slane %v6698, 1
    %v6700 = vmax.f32 %v6698, %v6699
    %v6701 = vsel %vm6182, %v5158, -inf
    %v6702 = vrot.slane %v6701, 4
    %v6703 = vmax.f32 %v6701, %v6702
    %v6704 = vrot.slane %v6703, 2
    %v6705 = vmax.f32 %v6703, %v6704
    %v6706 = vrot.slane %v6705, 1
    %v6707 = vmax.f32 %v6705, %v6706
    %v6708 = vsel %vm6182, %v5160, -inf
    %v6709 = vrot.slane %v6708, 4
    %v6710 = vmax.f32 %v6708, %v6709
    %v6711 = vrot.slane %v6710, 2
    %v6712 = vmax.f32 %v6710, %v6711
    %v6713 = vrot.slane %v6712, 1
    %v6714 = vmax.f32 %v6712, %v6713
    %v6715 = vsel %vm6182, %v5168, -inf
    %v6716 = vrot.slane %v6715, 4
    %v6717 = vmax.f32 %v6715, %v6716
    %v6718 = vrot.slane %v6717, 2
    %v6719 = vmax.f32 %v6717, %v6718
    %v6720 = vrot.slane %v6719, 1
    %v6721 = vmax.f32 %v6719, %v6720
    %v6722 = vsel %vm6182, %v5176, -inf
    %v6723 = vrot.slane %v6722, 4
    %v6724 = vmax.f32 %v6722, %v6723
    %v6725 = vrot.slane %v6724, 2
    %v6726 = vmax.f32 %v6724, %v6725
    %v6727 = vrot.slane %v6726, 1
    %v6728 = vmax.f32 %v6726, %v6727
    %v6729 = vsel %vm6182, %v5175, -inf
    %v6730 = vrot.slane %v6729, 4
    %v6731 = vmax.f32 %v6729, %v6730
    %v6732 = vrot.slane %v6731, 2
    %v6733 = vmax.f32 %v6731, %v6732
    %v6734 = vrot.slane %v6733, 1
    %v6735 = vmax.f32 %v6733, %v6734
    %v6736 = vsel %vm6182, %v5177, -inf
    %v6737 = vrot.slane %v6736, 4
    %v6738 = vmax.f32 %v6736, %v6737
    %v6739 = vrot.slane %v6738, 2
    %v6740 = vmax.f32 %v6738, %v6739
    %v6741 = vrot.slane %v6740, 1
    %v6742 = vmax.f32 %v6740, %v6741
    %v6743 = vsel %vm6182, %v5185, -inf
    %v6744 = vrot.slane %v6743, 4
    %v6745 = vmax.f32 %v6743, %v6744
    %v6746 = vrot.slane %v6745, 2
    %v6747 = vmax.f32 %v6745, %v6746
    %v6748 = vrot.slane %v6747, 1
    %v6749 = vmax.f32 %v6747, %v6748
    %v6750 = vsel %vm6182, %v5193, -inf
    %v6751 = vrot.slane %v6750, 4
    %v6752 = vmax.f32 %v6750, %v6751
    %v6753 = vrot.slane %v6752, 2
    %v6754 = vmax.f32 %v6752, %v6753
    %v6755 = vrot.slane %v6754, 1
    %v6756 = vmax.f32 %v6754, %v6755
    %v6757 = vsel %vm6182, %v5192, -inf
    %v6758 = vrot.slane %v6757, 4
    %v6759 = vmax.f32 %v6757, %v6758
    %v6760 = vrot.slane %v6759, 2
    %v6761 = vmax.f32 %v6759, %v6760
    %v6762 = vrot.slane %v6761, 1
    %v6763 = vmax.f32 %v6761, %v6762
    %v6764 = vsel %vm6182, %v5194, -inf
    %v6765 = vrot.slane %v6764, 4
    %v6766 = vmax.f32 %v6764, %v6765
    %v6767 = vrot.slane %v6766, 2
    %v6768 = vmax.f32 %v6766, %v6767
    %v6769 = vrot.slane %v6768, 1
    %v6770 = vmax.f32 %v6768, %v6769
    %v6771 = vsel %vm6182, %v5202, -inf
    %v6772 = vrot.slane %v6771, 4
    %v6773 = vmax.f32 %v6771, %v6772
    %v6774 = vrot.slane %v6773, 2
    %v6775 = vmax.f32 %v6773, %v6774
    %v6776 = vrot.slane %v6775, 1
    %v6777 = vmax.f32 %v6775, %v6776
    %v6778 = vsel %vm6182, %v5210, -inf
    %v6779 = vrot.slane %v6778, 4
    %v6780 = vmax.f32 %v6778, %v6779
    %v6781 = vrot.slane %v6780, 2
    %v6782 = vmax.f32 %v6780, %v6781
    %v6783 = vrot.slane %v6782, 1
    %v6784 = vmax.f32 %v6782, %v6783
    %v6785 = vsel %vm6182, %v5209, -inf
    %v6786 = vrot.slane %v6785, 4
    %v6787 = vmax.f32 %v6785, %v6786
    %v6788 = vrot.slane %v6787, 2
    %v6789 = vmax.f32 %v6787, %v6788
    %v6790 = vrot.slane %v6789, 1
    %v6791 = vmax.f32 %v6789, %v6790
    %v6792 = vsel %vm6182, %v5211, -inf
    %v6793 = vrot.slane %v6792, 4
    %v6794 = vmax.f32 %v6792, %v6793
    %v6795 = vrot.slane %v6794, 2
    %v6796 = vmax.f32 %v6794, %v6795
    %v6797 = vrot.slane %v6796, 1
    %v6798 = vmax.f32 %v6796, %v6797
    %v6799 = vsel %vm6182, %v5219, -inf
    %v6800 = vrot.slane %v6799, 4
    %v6801 = vmax.f32 %v6799, %v6800
    %v6802 = vrot.slane %v6801, 2
    %v6803 = vmax.f32 %v6801, %v6802
    %v6804 = vrot.slane %v6803, 1
    %v6805 = vmax.f32 %v6803, %v6804
    %v6806 = vsel %vm6182, %v5227, -inf
    %v6807 = vrot.slane %v6806, 4
    %v6808 = vmax.f32 %v6806, %v6807
    %v6809 = vrot.slane %v6808, 2
    %v6810 = vmax.f32 %v6808, %v6809
    %v6811 = vrot.slane %v6810, 1
    %v6812 = vmax.f32 %v6810, %v6811
    %v6813 = vsel %vm6182, %v5226, -inf
    %v6814 = vrot.slane %v6813, 4
    %v6815 = vmax.f32 %v6813, %v6814
    %v6816 = vrot.slane %v6815, 2
    %v6817 = vmax.f32 %v6815, %v6816
    %v6818 = vrot.slane %v6817, 1
    %v6819 = vmax.f32 %v6817, %v6818
    %v6820 = vsel %vm6182, %v5228, -inf
    %v6821 = vrot.slane %v6820, 4
    %v6822 = vmax.f32 %v6820, %v6821
    %v6823 = vrot.slane %v6822, 2
    %v6824 = vmax.f32 %v6822, %v6823
    %v6825 = vrot.slane %v6824, 1
    %v6826 = vmax.f32 %v6824, %v6825
    %v6827 = vsel %vm6182, %v5236, -inf
    %v6828 = vrot.slane %v6827, 4
    %v6829 = vmax.f32 %v6827, %v6828
    %v6830 = vrot.slane %v6829, 2
    %v6831 = vmax.f32 %v6829, %v6830
    %v6832 = vrot.slane %v6831, 1
    %v6833 = vmax.f32 %v6831, %v6832
    %v6834 = vsel %vm6182, %v5244, -inf
    %v6835 = vrot.slane %v6834, 4
    %v6836 = vmax.f32 %v6834, %v6835
    %v6837 = vrot.slane %v6836, 2
    %v6838 = vmax.f32 %v6836, %v6837
    %v6839 = vrot.slane %v6838, 1
    %v6840 = vmax.f32 %v6838, %v6839
    %v6841 = vsel %vm6182, %v5243, -inf
    %v6842 = vrot.slane %v6841, 4
    %v6843 = vmax.f32 %v6841, %v6842
    %v6844 = vrot.slane %v6843, 2
    %v6845 = vmax.f32 %v6843, %v6844
    %v6846 = vrot.slane %v6845, 1
    %v6847 = vmax.f32 %v6845, %v6846
    %v6848 = vsel %vm6182, %v5245, -inf
    %v6849 = vrot.slane %v6848, 4
    %v6850 = vmax.f32 %v6848, %v6849
    %v6851 = vrot.slane %v6850, 2
    %v6852 = vmax.f32 %v6850, %v6851
    %v6853 = vrot.slane %v6852, 1
    %v6854 = vmax.f32 %v6852, %v6853
    %v6855 = vsel %vm6182, %v5253, -inf
    %v6856 = vrot.slane %v6855, 4
    %v6857 = vmax.f32 %v6855, %v6856
    %v6858 = vrot.slane %v6857, 2
    %v6859 = vmax.f32 %v6857, %v6858
    %v6860 = vrot.slane %v6859, 1
    %v6861 = vmax.f32 %v6859, %v6860
    %v6862 = vsel %vm6182, %v5261, -inf
    %v6863 = vrot.slane %v6862, 4
    %v6864 = vmax.f32 %v6862, %v6863
    %v6865 = vrot.slane %v6864, 2
    %v6866 = vmax.f32 %v6864, %v6865
    %v6867 = vrot.slane %v6866, 1
    %v6868 = vmax.f32 %v6866, %v6867
    %v6869 = vsel %vm6182, %v5260, -inf
    %v6870 = vrot.slane %v6869, 4
    %v6871 = vmax.f32 %v6869, %v6870
    %v6872 = vrot.slane %v6871, 2
    %v6873 = vmax.f32 %v6871, %v6872
    %v6874 = vrot.slane %v6873, 1
    %v6875 = vmax.f32 %v6873, %v6874
    %v6876 = vsel %vm6182, %v5262, -inf
    %v6877 = vrot.slane %v6876, 4
    %v6878 = vmax.f32 %v6876, %v6877
    %v6879 = vrot.slane %v6878, 2
    %v6880 = vmax.f32 %v6878, %v6879
    %v6881 = vrot.slane %v6880, 1
    %v6882 = vmax.f32 %v6880, %v6881
    %v6883 = vsel %vm6182, %v5270, -inf
    %v6884 = vrot.slane %v6883, 4
    %v6885 = vmax.f32 %v6883, %v6884
    %v6886 = vrot.slane %v6885, 2
    %v6887 = vmax.f32 %v6885, %v6886
    %v6888 = vrot.slane %v6887, 1
    %v6889 = vmax.f32 %v6887, %v6888
    %v6890 = vsel %vm6182, %v5278, -inf
    %v6891 = vrot.slane %v6890, 4
    %v6892 = vmax.f32 %v6890, %v6891
    %v6893 = vrot.slane %v6892, 2
    %v6894 = vmax.f32 %v6892, %v6893
    %v6895 = vrot.slane %v6894, 1
    %v6896 = vmax.f32 %v6894, %v6895
    %v6897 = vsel %vm6182, %v5277, -inf
    %v6898 = vrot.slane %v6897, 4
    %v6899 = vmax.f32 %v6897, %v6898
    %v6900 = vrot.slane %v6899, 2
    %v6901 = vmax.f32 %v6899, %v6900
    %v6902 = vrot.slane %v6901, 1
    %v6903 = vmax.f32 %v6901, %v6902
    %v6904 = vsel %vm6182, %v5279, -inf
    %v6905 = vrot.slane %v6904, 4
    %v6906 = vmax.f32 %v6904, %v6905
    %v6907 = vrot.slane %v6906, 2
    %v6908 = vmax.f32 %v6906, %v6907
    %v6909 = vrot.slane %v6908, 1
    %v6910 = vmax.f32 %v6908, %v6909
    %v6911 = vsel %vm6182, %v5287, -inf
    %v6912 = vrot.slane %v6911, 4
    %v6913 = vmax.f32 %v6911, %v6912
    %v6914 = vrot.slane %v6913, 2
    %v6915 = vmax.f32 %v6913, %v6914
    %v6916 = vrot.slane %v6915, 1
    %v6917 = vmax.f32 %v6915, %v6916
    %v6918 = vsel %vm6182, %v5295, -inf
    %v6919 = vrot.slane %v6918, 4
    %v6920 = vmax.f32 %v6918, %v6919
    %v6921 = vrot.slane %v6920, 2
    %v6922 = vmax.f32 %v6920, %v6921
    %v6923 = vrot.slane %v6922, 1
    %v6924 = vmax.f32 %v6922, %v6923
    %v6925 = vsel %vm6182, %v5294, -inf
    %v6926 = vrot.slane %v6925, 4
    %v6927 = vmax.f32 %v6925, %v6926
    %v6928 = vrot.slane %v6927, 2
    %v6929 = vmax.f32 %v6927, %v6928
    %v6930 = vrot.slane %v6929, 1
    %v6931 = vmax.f32 %v6929, %v6930
    %v6932 = vsel %vm6182, %v5296, -inf
    %v6933 = vrot.slane %v6932, 4
    %v6934 = vmax.f32 %v6932, %v6933
    %v6935 = vrot.slane %v6934, 2
    %v6936 = vmax.f32 %v6934, %v6935
    %v6937 = vrot.slane %v6936, 1
    %v6938 = vmax.f32 %v6936, %v6937
    %v6939 = vsel %vm6182, %v5304, -inf
    %v6940 = vrot.slane %v6939, 4
    %v6941 = vmax.f32 %v6939, %v6940
    %v6942 = vrot.slane %v6941, 2
    %v6943 = vmax.f32 %v6941, %v6942
    %v6944 = vrot.slane %v6943, 1
    %v6945 = vmax.f32 %v6943, %v6944
    %v6946 = vsel %vm6182, %v5312, -inf
    %v6947 = vrot.slane %v6946, 4
    %v6948 = vmax.f32 %v6946, %v6947
    %v6949 = vrot.slane %v6948, 2
    %v6950 = vmax.f32 %v6948, %v6949
    %v6951 = vrot.slane %v6950, 1
    %v6952 = vmax.f32 %v6950, %v6951
    %v6953 = vsel %vm6182, %v5311, -inf
    %v6954 = vrot.slane %v6953, 4
    %v6955 = vmax.f32 %v6953, %v6954
    %v6956 = vrot.slane %v6955, 2
    %v6957 = vmax.f32 %v6955, %v6956
    %v6958 = vrot.slane %v6957, 1
    %v6959 = vmax.f32 %v6957, %v6958
    %v6960 = vsel %vm6182, %v5313, -inf
    %v6961 = vrot.slane %v6960, 4
    %v6962 = vmax.f32 %v6960, %v6961
    %v6963 = vrot.slane %v6962, 2
    %v6964 = vmax.f32 %v6962, %v6963
    %v6965 = vrot.slane %v6964, 1
    %v6966 = vmax.f32 %v6964, %v6965
    %v6967 = vsel %vm6182, %v5321, -inf
    %v6968 = vrot.slane %v6967, 4
    %v6969 = vmax.f32 %v6967, %v6968
    %v6970 = vrot.slane %v6969, 2
    %v6971 = vmax.f32 %v6969, %v6970
    %v6972 = vrot.slane %v6971, 1
    %v6973 = vmax.f32 %v6971, %v6972
    %v6974 = vsel %vm6182, %v5329, -inf
    %v6975 = vrot.slane %v6974, 4
    %v6976 = vmax.f32 %v6974, %v6975
    %v6977 = vrot.slane %v6976, 2
    %v6978 = vmax.f32 %v6976, %v6977
    %v6979 = vrot.slane %v6978, 1
    %v6980 = vmax.f32 %v6978, %v6979
    %v6981 = vsel %vm6182, %v5328, -inf
    %v6982 = vrot.slane %v6981, 4
    %v6983 = vmax.f32 %v6981, %v6982
    %v6984 = vrot.slane %v6983, 2
    %v6985 = vmax.f32 %v6983, %v6984
    %v6986 = vrot.slane %v6985, 1
    %v6987 = vmax.f32 %v6985, %v6986
    %v6988 = vsel %vm6182, %v5330, -inf
    %v6989 = vrot.slane %v6988, 4
    %v6990 = vmax.f32 %v6988, %v6989
    %v6991 = vrot.slane %v6990, 2
    %v6992 = vmax.f32 %v6990, %v6991
    %v6993 = vrot.slane %v6992, 1
    %v6994 = vmax.f32 %v6992, %v6993
    %v6995 = vsel %vm6182, %v5338, -inf
    %v6996 = vrot.slane %v6995, 4
    %v6997 = vmax.f32 %v6995, %v6996
    %v6998 = vrot.slane %v6997, 2
    %v6999 = vmax.f32 %v6997, %v6998
    %v7000 = vrot.slane %v6999, 1
    %v7001 = vmax.f32 %v6999, %v7000
    %v7002 = vsel %vm6182, %v5346, -inf
    %v7003 = vrot.slane %v7002, 4
    %v7004 = vmax.f32 %v7002, %v7003
    %v7005 = vrot.slane %v7004, 2
    %v7006 = vmax.f32 %v7004, %v7005
    %v7007 = vrot.slane %v7006, 1
    %v7008 = vmax.f32 %v7006, %v7007
    %v7009 = vsel %vm6182, %v5345, -inf
    %v7010 = vrot.slane %v7009, 4
    %v7011 = vmax.f32 %v7009, %v7010
    %v7012 = vrot.slane %v7011, 2
    %v7013 = vmax.f32 %v7011, %v7012
    %v7014 = vrot.slane %v7013, 1
    %v7015 = vmax.f32 %v7013, %v7014
    %v7016 = vsel %vm6182, %v5347, -inf
    %v7017 = vrot.slane %v7016, 4
    %v7018 = vmax.f32 %v7016, %v7017
    %v7019 = vrot.slane %v7018, 2
    %v7020 = vmax.f32 %v7018, %v7019
    %v7021 = vrot.slane %v7020, 1
    %v7022 = vmax.f32 %v7020, %v7021
    %v7023 = vsel %vm6182, %v5355, -inf
    %v7024 = vrot.slane %v7023, 4
    %v7025 = vmax.f32 %v7023, %v7024
    %v7026 = vrot.slane %v7025, 2
    %v7027 = vmax.f32 %v7025, %v7026
    %v7028 = vrot.slane %v7027, 1
    %v7029 = vmax.f32 %v7027, %v7028
    %v7030 = vsel %vm6182, %v5363, -inf
    %v7031 = vrot.slane %v7030, 4
    %v7032 = vmax.f32 %v7030, %v7031
    %v7033 = vrot.slane %v7032, 2
    %v7034 = vmax.f32 %v7032, %v7033
    %v7035 = vrot.slane %v7034, 1
    %v7036 = vmax.f32 %v7034, %v7035
    %v7037 = vsel %vm6182, %v5362, -inf
    %v7038 = vrot.slane %v7037, 4
    %v7039 = vmax.f32 %v7037, %v7038
    %v7040 = vrot.slane %v7039, 2
    %v7041 = vmax.f32 %v7039, %v7040
    %v7042 = vrot.slane %v7041, 1
    %v7043 = vmax.f32 %v7041, %v7042
    %v7044 = vsel %vm6182, %v5364, -inf
    %v7045 = vrot.slane %v7044, 4
    %v7046 = vmax.f32 %v7044, %v7045
    %v7047 = vrot.slane %v7046, 2
    %v7048 = vmax.f32 %v7046, %v7047
    %v7049 = vrot.slane %v7048, 1
    %v7050 = vmax.f32 %v7048, %v7049
    %v7051 = vsel %vm6182, %v5372, -inf
    %v7052 = vrot.slane %v7051, 4
    %v7053 = vmax.f32 %v7051, %v7052
    %v7054 = vrot.slane %v7053, 2
    %v7055 = vmax.f32 %v7053, %v7054
    %v7056 = vrot.slane %v7055, 1
    %v7057 = vmax.f32 %v7055, %v7056
    %v7058 = vsel %vm6182, %v5380, -inf
    %v7059 = vrot.slane %v7058, 4
    %v7060 = vmax.f32 %v7058, %v7059
    %v7061 = vrot.slane %v7060, 2
    %v7062 = vmax.f32 %v7060, %v7061
    %v7063 = vrot.slane %v7062, 1
    %v7064 = vmax.f32 %v7062, %v7063
    %v7065 = vsel %vm6182, %v5379, -inf
    %v7066 = vrot.slane %v7065, 4
    %v7067 = vmax.f32 %v7065, %v7066
    %v7068 = vrot.slane %v7067, 2
    %v7069 = vmax.f32 %v7067, %v7068
    %v7070 = vrot.slane %v7069, 1
    %v7071 = vmax.f32 %v7069, %v7070
    %v7072 = vsel %vm6182, %v5381, -inf
    %v7073 = vrot.slane %v7072, 4
    %v7074 = vmax.f32 %v7072, %v7073
    %v7075 = vrot.slane %v7074, 2
    %v7076 = vmax.f32 %v7074, %v7075
    %v7077 = vrot.slane %v7076, 1
    %v7078 = vmax.f32 %v7076, %v7077
    %v7079 = vsel %vm6182, %v5389, -inf
    %v7080 = vrot.slane %v7079, 4
    %v7081 = vmax.f32 %v7079, %v7080
    %v7082 = vrot.slane %v7081, 2
    %v7083 = vmax.f32 %v7081, %v7082
    %v7084 = vrot.slane %v7083, 1
    %v7085 = vmax.f32 %v7083, %v7084
    %v7086 = vsel %vm6182, %v5397, -inf
    %v7087 = vrot.slane %v7086, 4
    %v7088 = vmax.f32 %v7086, %v7087
    %v7089 = vrot.slane %v7088, 2
    %v7090 = vmax.f32 %v7088, %v7089
    %v7091 = vrot.slane %v7090, 1
    %v7092 = vmax.f32 %v7090, %v7091
    %v7093 = vsel %vm6182, %v5396, -inf
    %v7094 = vrot.slane %v7093, 4
    %v7095 = vmax.f32 %v7093, %v7094
    %v7096 = vrot.slane %v7095, 2
    %v7097 = vmax.f32 %v7095, %v7096
    %v7098 = vrot.slane %v7097, 1
    %v7099 = vmax.f32 %v7097, %v7098
    %v7100 = vsel %vm6182, %v5398, -inf
    %v7101 = vrot.slane %v7100, 4
    %v7102 = vmax.f32 %v7100, %v7101
    %v7103 = vrot.slane %v7102, 2
    %v7104 = vmax.f32 %v7102, %v7103
    %v7105 = vrot.slane %v7104, 1
    %v7106 = vmax.f32 %v7104, %v7105
    %v7107 = vsel %vm6182, %v5406, -inf
    %v7108 = vrot.slane %v7107, 4
    %v7109 = vmax.f32 %v7107, %v7108
    %v7110 = vrot.slane %v7109, 2
    %v7111 = vmax.f32 %v7109, %v7110
    %v7112 = vrot.slane %v7111, 1
    %v7113 = vmax.f32 %v7111, %v7112
    %v7114 = vsel %vm6182, %v5414, -inf
    %v7115 = vrot.slane %v7114, 4
    %v7116 = vmax.f32 %v7114, %v7115
    %v7117 = vrot.slane %v7116, 2
    %v7118 = vmax.f32 %v7116, %v7117
    %v7119 = vrot.slane %v7118, 1
    %v7120 = vmax.f32 %v7118, %v7119
    %v7121 = vsel %vm6182, %v5413, -inf
    %v7122 = vrot.slane %v7121, 4
    %v7123 = vmax.f32 %v7121, %v7122
    %v7124 = vrot.slane %v7123, 2
    %v7125 = vmax.f32 %v7123, %v7124
    %v7126 = vrot.slane %v7125, 1
    %v7127 = vmax.f32 %v7125, %v7126
    %v7128 = vsel %vm6182, %v5415, -inf
    %v7129 = vrot.slane %v7128, 4
    %v7130 = vmax.f32 %v7128, %v7129
    %v7131 = vrot.slane %v7130, 2
    %v7132 = vmax.f32 %v7130, %v7131
    %v7133 = vrot.slane %v7132, 1
    %v7134 = vmax.f32 %v7132, %v7133
    %v7135 = vsel %vm6182, %v5423, -inf
    %v7136 = vrot.slane %v7135, 4
    %v7137 = vmax.f32 %v7135, %v7136
    %v7138 = vrot.slane %v7137, 2
    %v7139 = vmax.f32 %v7137, %v7138
    %v7140 = vrot.slane %v7139, 1
    %v7141 = vmax.f32 %v7139, %v7140
    %v7142 = vsel %vm6182, %v5431, -inf
    %v7143 = vrot.slane %v7142, 4
    %v7144 = vmax.f32 %v7142, %v7143
    %v7145 = vrot.slane %v7144, 2
    %v7146 = vmax.f32 %v7144, %v7145
    %v7147 = vrot.slane %v7146, 1
    %v7148 = vmax.f32 %v7146, %v7147
    %v7149 = vsel %vm6182, %v5430, -inf
    %v7150 = vrot.slane %v7149, 4
    %v7151 = vmax.f32 %v7149, %v7150
    %v7152 = vrot.slane %v7151, 2
    %v7153 = vmax.f32 %v7151, %v7152
    %v7154 = vrot.slane %v7153, 1
    %v7155 = vmax.f32 %v7153, %v7154
    %v7156 = vsel %vm6182, %v5432, -inf
    %v7157 = vrot.slane %v7156, 4
    %v7158 = vmax.f32 %v7156, %v7157
    %v7159 = vrot.slane %v7158, 2
    %v7160 = vmax.f32 %v7158, %v7159
    %v7161 = vrot.slane %v7160, 1
    %v7162 = vmax.f32 %v7160, %v7161
    %v7163 = vsel %vm6182, %v5440, -inf
    %v7164 = vrot.slane %v7163, 4
    %v7165 = vmax.f32 %v7163, %v7164
    %v7166 = vrot.slane %v7165, 2
    %v7167 = vmax.f32 %v7165, %v7166
    %v7168 = vrot.slane %v7167, 1
    %v7169 = vmax.f32 %v7167, %v7168
    %v7170 = vsel %vm6182, %v5448, -inf
    %v7171 = vrot.slane %v7170, 4
    %v7172 = vmax.f32 %v7170, %v7171
    %v7173 = vrot.slane %v7172, 2
    %v7174 = vmax.f32 %v7172, %v7173
    %v7175 = vrot.slane %v7174, 1
    %v7176 = vmax.f32 %v7174, %v7175
    %v7177 = vsel %vm6182, %v5447, -inf
    %v7178 = vrot.slane %v7177, 4
    %v7179 = vmax.f32 %v7177, %v7178
    %v7180 = vrot.slane %v7179, 2
    %v7181 = vmax.f32 %v7179, %v7180
    %v7182 = vrot.slane %v7181, 1
    %v7183 = vmax.f32 %v7181, %v7182
    %v7184 = vsel %vm6182, %v5449, -inf
    %v7185 = vrot.slane %v7184, 4
    %v7186 = vmax.f32 %v7184, %v7185
    %v7187 = vrot.slane %v7186, 2
    %v7188 = vmax.f32 %v7186, %v7187
    %v7189 = vrot.slane %v7188, 1
    %v7190 = vmax.f32 %v7188, %v7189
    %v7191 = vsel %vm6182, %v5457, -inf
    %v7192 = vrot.slane %v7191, 4
    %v7193 = vmax.f32 %v7191, %v7192
    %v7194 = vrot.slane %v7193, 2
    %v7195 = vmax.f32 %v7193, %v7194
    %v7196 = vrot.slane %v7195, 1
    %v7197 = vmax.f32 %v7195, %v7196
    %v7198 = vsel %vm6182, %v5465, -inf
    %v7199 = vrot.slane %v7198, 4
    %v7200 = vmax.f32 %v7198, %v7199
    %v7201 = vrot.slane %v7200, 2
    %v7202 = vmax.f32 %v7200, %v7201
    %v7203 = vrot.slane %v7202, 1
    %v7204 = vmax.f32 %v7202, %v7203
    %v7205 = vsel %vm6182, %v5464, -inf
    %v7206 = vrot.slane %v7205, 4
    %v7207 = vmax.f32 %v7205, %v7206
    %v7208 = vrot.slane %v7207, 2
    %v7209 = vmax.f32 %v7207, %v7208
    %v7210 = vrot.slane %v7209, 1
    %v7211 = vmax.f32 %v7209, %v7210
    %v7212 = vsel %vm6182, %v5466, -inf
    %v7213 = vrot.slane %v7212, 4
    %v7214 = vmax.f32 %v7212, %v7213
    %v7215 = vrot.slane %v7214, 2
    %v7216 = vmax.f32 %v7214, %v7215
    %v7217 = vrot.slane %v7216, 1
    %v7218 = vmax.f32 %v7216, %v7217
    %v7219 = vsel %vm6182, %v5474, -inf
    %v7220 = vrot.slane %v7219, 4
    %v7221 = vmax.f32 %v7219, %v7220
    %v7222 = vrot.slane %v7221, 2
    %v7223 = vmax.f32 %v7221, %v7222
    %v7224 = vrot.slane %v7223, 1
    %v7225 = vmax.f32 %v7223, %v7224
    %v7226 = vsel %vm6182, %v5482, -inf
    %v7227 = vrot.slane %v7226, 4
    %v7228 = vmax.f32 %v7226, %v7227
    %v7229 = vrot.slane %v7228, 2
    %v7230 = vmax.f32 %v7228, %v7229
    %v7231 = vrot.slane %v7230, 1
    %v7232 = vmax.f32 %v7230, %v7231
    %v7233 = vsel %vm6182, %v5481, -inf
    %v7234 = vrot.slane %v7233, 4
    %v7235 = vmax.f32 %v7233, %v7234
    %v7236 = vrot.slane %v7235, 2
    %v7237 = vmax.f32 %v7235, %v7236
    %v7238 = vrot.slane %v7237, 1
    %v7239 = vmax.f32 %v7237, %v7238
    %v7240 = vsel %vm6182, %v5483, -inf
    %v7241 = vrot.slane %v7240, 4
    %v7242 = vmax.f32 %v7240, %v7241
    %v7243 = vrot.slane %v7242, 2
    %v7244 = vmax.f32 %v7242, %v7243
    %v7245 = vrot.slane %v7244, 1
    %v7246 = vmax.f32 %v7244, %v7245
    %v7247 = vsel %vm6182, %v5491, -inf
    %v7248 = vrot.slane %v7247, 4
    %v7249 = vmax.f32 %v7247, %v7248
    %v7250 = vrot.slane %v7249, 2
    %v7251 = vmax.f32 %v7249, %v7250
    %v7252 = vrot.slane %v7251, 1
    %v7253 = vmax.f32 %v7251, %v7252
    %v7254 = vsel %vm6182, %v5499, -inf
    %v7255 = vrot.slane %v7254, 4
    %v7256 = vmax.f32 %v7254, %v7255
    %v7257 = vrot.slane %v7256, 2
    %v7258 = vmax.f32 %v7256, %v7257
    %v7259 = vrot.slane %v7258, 1
    %v7260 = vmax.f32 %v7258, %v7259
    %v7261 = vsel %vm6182, %v5498, -inf
    %v7262 = vrot.slane %v7261, 4
    %v7263 = vmax.f32 %v7261, %v7262
    %v7264 = vrot.slane %v7263, 2
    %v7265 = vmax.f32 %v7263, %v7264
    %v7266 = vrot.slane %v7265, 1
    %v7267 = vmax.f32 %v7265, %v7266
    %v7268 = vsel %vm6182, %v5500, -inf
    %v7269 = vrot.slane %v7268, 4
    %v7270 = vmax.f32 %v7268, %v7269
    %v7271 = vrot.slane %v7270, 2
    %v7272 = vmax.f32 %v7270, %v7271
    %v7273 = vrot.slane %v7272, 1
    %v7274 = vmax.f32 %v7272, %v7273
    %v7275 = vsel %vm6182, %v5508, -inf
    %v7276 = vrot.slane %v7275, 4
    %v7277 = vmax.f32 %v7275, %v7276
    %v7278 = vrot.slane %v7277, 2
    %v7279 = vmax.f32 %v7277, %v7278
    %v7280 = vrot.slane %v7279, 1
    %v7281 = vmax.f32 %v7279, %v7280
    %v7282 = vsel %vm6182, %v5516, -inf
    %v7283 = vrot.slane %v7282, 4
    %v7284 = vmax.f32 %v7282, %v7283
    %v7285 = vrot.slane %v7284, 2
    %v7286 = vmax.f32 %v7284, %v7285
    %v7287 = vrot.slane %v7286, 1
    %v7288 = vmax.f32 %v7286, %v7287
    %v7289 = vsel %vm6182, %v5515, -inf
    %v7290 = vrot.slane %v7289, 4
    %v7291 = vmax.f32 %v7289, %v7290
    %v7292 = vrot.slane %v7291, 2
    %v7293 = vmax.f32 %v7291, %v7292
    %v7294 = vrot.slane %v7293, 1
    %v7295 = vmax.f32 %v7293, %v7294
    %v7296 = vsel %vm6182, %v5517, -inf
    %v7297 = vrot.slane %v7296, 4
    %v7298 = vmax.f32 %v7296, %v7297
    %v7299 = vrot.slane %v7298, 2
    %v7300 = vmax.f32 %v7298, %v7299
    %v7301 = vrot.slane %v7300, 1
    %v7302 = vmax.f32 %v7300, %v7301
    %v7303 = vsel %vm6182, %v5525, -inf
    %v7304 = vrot.slane %v7303, 4
    %v7305 = vmax.f32 %v7303, %v7304
    %v7306 = vrot.slane %v7305, 2
    %v7307 = vmax.f32 %v7305, %v7306
    %v7308 = vrot.slane %v7307, 1
    %v7309 = vmax.f32 %v7307, %v7308
    %v7310 = vsel %vm6182, %v5533, -inf
    %v7311 = vrot.slane %v7310, 4
    %v7312 = vmax.f32 %v7310, %v7311
    %v7313 = vrot.slane %v7312, 2
    %v7314 = vmax.f32 %v7312, %v7313
    %v7315 = vrot.slane %v7314, 1
    %v7316 = vmax.f32 %v7314, %v7315
    %v7317 = vsel %vm6182, %v5532, -inf
    %v7318 = vrot.slane %v7317, 4
    %v7319 = vmax.f32 %v7317, %v7318
    %v7320 = vrot.slane %v7319, 2
    %v7321 = vmax.f32 %v7319, %v7320
    %v7322 = vrot.slane %v7321, 1
    %v7323 = vmax.f32 %v7321, %v7322
    %v7324 = vsel %vm6182, %v5534, -inf
    %v7325 = vrot.slane %v7324, 4
    %v7326 = vmax.f32 %v7324, %v7325
    %v7327 = vrot.slane %v7326, 2
    %v7328 = vmax.f32 %v7326, %v7327
    %v7329 = vrot.slane %v7328, 1
    %v7330 = vmax.f32 %v7328, %v7329
    %v7331 = vsel %vm6182, %v5542, -inf
    %v7332 = vrot.slane %v7331, 4
    %v7333 = vmax.f32 %v7331, %v7332
    %v7334 = vrot.slane %v7333, 2
    %v7335 = vmax.f32 %v7333, %v7334
    %v7336 = vrot.slane %v7335, 1
    %v7337 = vmax.f32 %v7335, %v7336
    %v7338 = vsel %vm6182, %v5550, -inf
    %v7339 = vrot.slane %v7338, 4
    %v7340 = vmax.f32 %v7338, %v7339
    %v7341 = vrot.slane %v7340, 2
    %v7342 = vmax.f32 %v7340, %v7341
    %v7343 = vrot.slane %v7342, 1
    %v7344 = vmax.f32 %v7342, %v7343
    %v7345 = vsel %vm6182, %v5549, -inf
    %v7346 = vrot.slane %v7345, 4
    %v7347 = vmax.f32 %v7345, %v7346
    %v7348 = vrot.slane %v7347, 2
    %v7349 = vmax.f32 %v7347, %v7348
    %v7350 = vrot.slane %v7349, 1
    %v7351 = vmax.f32 %v7349, %v7350
    %v7352 = vsel %vm6182, %v5551, -inf
    %v7353 = vrot.slane %v7352, 4
    %v7354 = vmax.f32 %v7352, %v7353
    %v7355 = vrot.slane %v7354, 2
    %v7356 = vmax.f32 %v7354, %v7355
    %v7357 = vrot.slane %v7356, 1
    %v7358 = vmax.f32 %v7356, %v7357
    %v7359 = vsel %vm6182, %v5559, -inf
    %v7360 = vrot.slane %v7359, 4
    %v7361 = vmax.f32 %v7359, %v7360
    %v7362 = vrot.slane %v7361, 2
    %v7363 = vmax.f32 %v7361, %v7362
    %v7364 = vrot.slane %v7363, 1
    %v7365 = vmax.f32 %v7363, %v7364
    %v7366 = vsel %vm6182, %v5567, -inf
    %v7367 = vrot.slane %v7366, 4
    %v7368 = vmax.f32 %v7366, %v7367
    %v7369 = vrot.slane %v7368, 2
    %v7370 = vmax.f32 %v7368, %v7369
    %v7371 = vrot.slane %v7370, 1
    %v7372 = vmax.f32 %v7370, %v7371
    %v7373 = vsel %vm6182, %v5566, -inf
    %v7374 = vrot.slane %v7373, 4
    %v7375 = vmax.f32 %v7373, %v7374
    %v7376 = vrot.slane %v7375, 2
    %v7377 = vmax.f32 %v7375, %v7376
    %v7378 = vrot.slane %v7377, 1
    %v7379 = vmax.f32 %v7377, %v7378
    %v7380 = vsel %vm6182, %v5568, -inf
    %v7381 = vrot.slane %v7380, 4
    %v7382 = vmax.f32 %v7380, %v7381
    %v7383 = vrot.slane %v7382, 2
    %v7384 = vmax.f32 %v7382, %v7383
    %v7385 = vrot.slane %v7384, 1
    %v7386 = vmax.f32 %v7384, %v7385
    %v7387 = vsel %vm6182, %v5576, -inf
    %v7388 = vrot.slane %v7387, 4
    %v7389 = vmax.f32 %v7387, %v7388
    %v7390 = vrot.slane %v7389, 2
    %v7391 = vmax.f32 %v7389, %v7390
    %v7392 = vrot.slane %v7391, 1
    %v7393 = vmax.f32 %v7391, %v7392
    %v7394 = vsel %vm6182, %v5584, -inf
    %v7395 = vrot.slane %v7394, 4
    %v7396 = vmax.f32 %v7394, %v7395
    %v7397 = vrot.slane %v7396, 2
    %v7398 = vmax.f32 %v7396, %v7397
    %v7399 = vrot.slane %v7398, 1
    %v7400 = vmax.f32 %v7398, %v7399
    %v7401 = vsel %vm6182, %v5583, -inf
    %v7402 = vrot.slane %v7401, 4
    %v7403 = vmax.f32 %v7401, %v7402
    %v7404 = vrot.slane %v7403, 2
    %v7405 = vmax.f32 %v7403, %v7404
    %v7406 = vrot.slane %v7405, 1
    %v7407 = vmax.f32 %v7405, %v7406
    %v7408 = vsel %vm6182, %v5585, -inf
    %v7409 = vrot.slane %v7408, 4
    %v7410 = vmax.f32 %v7408, %v7409
    %v7411 = vrot.slane %v7410, 2
    %v7412 = vmax.f32 %v7410, %v7411
    %v7413 = vrot.slane %v7412, 1
    %v7414 = vmax.f32 %v7412, %v7413
    %v7415 = vsel %vm6182, %v5593, -inf
    %v7416 = vrot.slane %v7415, 4
    %v7417 = vmax.f32 %v7415, %v7416
    %v7418 = vrot.slane %v7417, 2
    %v7419 = vmax.f32 %v7417, %v7418
    %v7420 = vrot.slane %v7419, 1
    %v7421 = vmax.f32 %v7419, %v7420
    %v7422 = vsel %vm6182, %v5601, -inf
    %v7423 = vrot.slane %v7422, 4
    %v7424 = vmax.f32 %v7422, %v7423
    %v7425 = vrot.slane %v7424, 2
    %v7426 = vmax.f32 %v7424, %v7425
    %v7427 = vrot.slane %v7426, 1
    %v7428 = vmax.f32 %v7426, %v7427
    %v7429 = vsel %vm6182, %v5600, -inf
    %v7430 = vrot.slane %v7429, 4
    %v7431 = vmax.f32 %v7429, %v7430
    %v7432 = vrot.slane %v7431, 2
    %v7433 = vmax.f32 %v7431, %v7432
    %v7434 = vrot.slane %v7433, 1
    %v7435 = vmax.f32 %v7433, %v7434
    %v7436 = vsel %vm6182, %v5602, -inf
    %v7437 = vrot.slane %v7436, 4
    %v7438 = vmax.f32 %v7436, %v7437
    %v7439 = vrot.slane %v7438, 2
    %v7440 = vmax.f32 %v7438, %v7439
    %v7441 = vrot.slane %v7440, 1
    %v7442 = vmax.f32 %v7440, %v7441
    %v7443 = vsel %vm6182, %v5610, -inf
    %v7444 = vrot.slane %v7443, 4
    %v7445 = vmax.f32 %v7443, %v7444
    %v7446 = vrot.slane %v7445, 2
    %v7447 = vmax.f32 %v7445, %v7446
    %v7448 = vrot.slane %v7447, 1
    %v7449 = vmax.f32 %v7447, %v7448
    %v7450 = vsel %vm6182, %v5618, -inf
    %v7451 = vrot.slane %v7450, 4
    %v7452 = vmax.f32 %v7450, %v7451
    %v7453 = vrot.slane %v7452, 2
    %v7454 = vmax.f32 %v7452, %v7453
    %v7455 = vrot.slane %v7454, 1
    %v7456 = vmax.f32 %v7454, %v7455
    %v7457 = vsel %vm6182, %v5617, -inf
    %v7458 = vrot.slane %v7457, 4
    %v7459 = vmax.f32 %v7457, %v7458
    %v7460 = vrot.slane %v7459, 2
    %v7461 = vmax.f32 %v7459, %v7460
    %v7462 = vrot.slane %v7461, 1
    %v7463 = vmax.f32 %v7461, %v7462
    %v7464 = vsel %vm6182, %v5619, -inf
    %v7465 = vrot.slane %v7464, 4
    %v7466 = vmax.f32 %v7464, %v7465
    %v7467 = vrot.slane %v7466, 2
    %v7468 = vmax.f32 %v7466, %v7467
    %v7469 = vrot.slane %v7468, 1
    %v7470 = vmax.f32 %v7468, %v7469
    %v7471 = vsel %vm6182, %v5627, -inf
    %v7472 = vrot.slane %v7471, 4
    %v7473 = vmax.f32 %v7471, %v7472
    %v7474 = vrot.slane %v7473, 2
    %v7475 = vmax.f32 %v7473, %v7474
    %v7476 = vrot.slane %v7475, 1
    %v7477 = vmax.f32 %v7475, %v7476
    %v7478 = vsel %vm6182, %v5635, -inf
    %v7479 = vrot.slane %v7478, 4
    %v7480 = vmax.f32 %v7478, %v7479
    %v7481 = vrot.slane %v7480, 2
    %v7482 = vmax.f32 %v7480, %v7481
    %v7483 = vrot.slane %v7482, 1
    %v7484 = vmax.f32 %v7482, %v7483
    %v7485 = vsel %vm6182, %v5634, -inf
    %v7486 = vrot.slane %v7485, 4
    %v7487 = vmax.f32 %v7485, %v7486
    %v7488 = vrot.slane %v7487, 2
    %v7489 = vmax.f32 %v7487, %v7488
    %v7490 = vrot.slane %v7489, 1
    %v7491 = vmax.f32 %v7489, %v7490
    %v7492 = vsel %vm6182, %v5636, -inf
    %v7493 = vrot.slane %v7492, 4
    %v7494 = vmax.f32 %v7492, %v7493
    %v7495 = vrot.slane %v7494, 2
    %v7496 = vmax.f32 %v7494, %v7495
    %v7497 = vrot.slane %v7496, 1
    %v7498 = vmax.f32 %v7496, %v7497
    %v7499 = vsel %vm6182, %v5644, -inf
    %v7500 = vrot.slane %v7499, 4
    %v7501 = vmax.f32 %v7499, %v7500
    %v7502 = vrot.slane %v7501, 2
    %v7503 = vmax.f32 %v7501, %v7502
    %v7504 = vrot.slane %v7503, 1
    %v7505 = vmax.f32 %v7503, %v7504
    %v7506 = vsel %vm6182, %v5652, -inf
    %v7507 = vrot.slane %v7506, 4
    %v7508 = vmax.f32 %v7506, %v7507
    %v7509 = vrot.slane %v7508, 2
    %v7510 = vmax.f32 %v7508, %v7509
    %v7511 = vrot.slane %v7510, 1
    %v7512 = vmax.f32 %v7510, %v7511
    %v7513 = vsel %vm6182, %v5651, -inf
    %v7514 = vrot.slane %v7513, 4
    %v7515 = vmax.f32 %v7513, %v7514
    %v7516 = vrot.slane %v7515, 2
    %v7517 = vmax.f32 %v7515, %v7516
    %v7518 = vrot.slane %v7517, 1
    %v7519 = vmax.f32 %v7517, %v7518
    %v7520 = vsel %vm6182, %v5653, -inf
    %v7521 = vrot.slane %v7520, 4
    %v7522 = vmax.f32 %v7520, %v7521
    %v7523 = vrot.slane %v7522, 2
    %v7524 = vmax.f32 %v7522, %v7523
    %v7525 = vrot.slane %v7524, 1
    %v7526 = vmax.f32 %v7524, %v7525
    %v7527 = vsel %vm6182, %v5661, -inf
    %v7528 = vrot.slane %v7527, 4
    %v7529 = vmax.f32 %v7527, %v7528
    %v7530 = vrot.slane %v7529, 2
    %v7531 = vmax.f32 %v7529, %v7530
    %v7532 = vrot.slane %v7531, 1
    %v7533 = vmax.f32 %v7531, %v7532
    %v7534 = vsel %vm6182, %v5669, -inf
    %v7535 = vrot.slane %v7534, 4
    %v7536 = vmax.f32 %v7534, %v7535
    %v7537 = vrot.slane %v7536, 2
    %v7538 = vmax.f32 %v7536, %v7537
    %v7539 = vrot.slane %v7538, 1
    %v7540 = vmax.f32 %v7538, %v7539
    %v7541 = vsel %vm6182, %v5668, -inf
    %v7542 = vrot.slane %v7541, 4
    %v7543 = vmax.f32 %v7541, %v7542
    %v7544 = vrot.slane %v7543, 2
    %v7545 = vmax.f32 %v7543, %v7544
    %v7546 = vrot.slane %v7545, 1
    %v7547 = vmax.f32 %v7545, %v7546
    %v7548 = vsel %vm6182, %v5670, -inf
    %v7549 = vrot.slane %v7548, 4
    %v7550 = vmax.f32 %v7548, %v7549
    %v7551 = vrot.slane %v7550, 2
    %v7552 = vmax.f32 %v7550, %v7551
    %v7553 = vrot.slane %v7552, 1
    %v7554 = vmax.f32 %v7552, %v7553
    %v7555 = vsel %vm6182, %v5678, -inf
    %v7556 = vrot.slane %v7555, 4
    %v7557 = vmax.f32 %v7555, %v7556
    %v7558 = vrot.slane %v7557, 2
    %v7559 = vmax.f32 %v7557, %v7558
    %v7560 = vrot.slane %v7559, 1
    %v7561 = vmax.f32 %v7559, %v7560
    %v7562 = vsel %vm6182, %v5686, -inf
    %v7563 = vrot.slane %v7562, 4
    %v7564 = vmax.f32 %v7562, %v7563
    %v7565 = vrot.slane %v7564, 2
    %v7566 = vmax.f32 %v7564, %v7565
    %v7567 = vrot.slane %v7566, 1
    %v7568 = vmax.f32 %v7566, %v7567
    %v7569 = vsel %vm6182, %v5685, -inf
    %v7570 = vrot.slane %v7569, 4
    %v7571 = vmax.f32 %v7569, %v7570
    %v7572 = vrot.slane %v7571, 2
    %v7573 = vmax.f32 %v7571, %v7572
    %v7574 = vrot.slane %v7573, 1
    %v7575 = vmax.f32 %v7573, %v7574
    %v7576 = vsel %vm6182, %v5687, -inf
    %v7577 = vrot.slane %v7576, 4
    %v7578 = vmax.f32 %v7576, %v7577
    %v7579 = vrot.slane %v7578, 2
    %v7580 = vmax.f32 %v7578, %v7579
    %v7581 = vrot.slane %v7580, 1
    %v7582 = vmax.f32 %v7580, %v7581
    %v7583 = vsel %vm6182, %v5695, -inf
    %v7584 = vrot.slane %v7583, 4
    %v7585 = vmax.f32 %v7583, %v7584
    %v7586 = vrot.slane %v7585, 2
    %v7587 = vmax.f32 %v7585, %v7586
    %v7588 = vrot.slane %v7587, 1
    %v7589 = vmax.f32 %v7587, %v7588
    %v7590 = vsel %vm6182, %v5703, -inf
    %v7591 = vrot.slane %v7590, 4
    %v7592 = vmax.f32 %v7590, %v7591
    %v7593 = vrot.slane %v7592, 2
    %v7594 = vmax.f32 %v7592, %v7593
    %v7595 = vrot.slane %v7594, 1
    %v7596 = vmax.f32 %v7594, %v7595
    %v7597 = vsel %vm6182, %v5702, -inf
    %v7598 = vrot.slane %v7597, 4
    %v7599 = vmax.f32 %v7597, %v7598
    %v7600 = vrot.slane %v7599, 2
    %v7601 = vmax.f32 %v7599, %v7600
    %v7602 = vrot.slane %v7601, 1
    %v7603 = vmax.f32 %v7601, %v7602
    %v7604 = vsel %vm6182, %v5704, -inf
    %v7605 = vrot.slane %v7604, 4
    %v7606 = vmax.f32 %v7604, %v7605
    %v7607 = vrot.slane %v7606, 2
    %v7608 = vmax.f32 %v7606, %v7607
    %v7609 = vrot.slane %v7608, 1
    %v7610 = vmax.f32 %v7608, %v7609
    %v7611 = vsel %vm6182, %v5712, -inf
    %v7612 = vrot.slane %v7611, 4
    %v7613 = vmax.f32 %v7611, %v7612
    %v7614 = vrot.slane %v7613, 2
    %v7615 = vmax.f32 %v7613, %v7614
    %v7616 = vrot.slane %v7615, 1
    %v7617 = vmax.f32 %v7615, %v7616
    %v7618 = vsel %vm6182, %v5720, -inf
    %v7619 = vrot.slane %v7618, 4
    %v7620 = vmax.f32 %v7618, %v7619
    %v7621 = vrot.slane %v7620, 2
    %v7622 = vmax.f32 %v7620, %v7621
    %v7623 = vrot.slane %v7622, 1
    %v7624 = vmax.f32 %v7622, %v7623
    %v7625 = vsel %vm6182, %v5719, -inf
    %v7626 = vrot.slane %v7625, 4
    %v7627 = vmax.f32 %v7625, %v7626
    %v7628 = vrot.slane %v7627, 2
    %v7629 = vmax.f32 %v7627, %v7628
    %v7630 = vrot.slane %v7629, 1
    %v7631 = vmax.f32 %v7629, %v7630
    %v7632 = vsel %vm6182, %v5721, -inf
    %v7633 = vrot.slane %v7632, 4
    %v7634 = vmax.f32 %v7632, %v7633
    %v7635 = vrot.slane %v7634, 2
    %v7636 = vmax.f32 %v7634, %v7635
    %v7637 = vrot.slane %v7636, 1
    %v7638 = vmax.f32 %v7636, %v7637
    %v7639 = vsel %vm6182, %v5729, -inf
    %v7640 = vrot.slane %v7639, 4
    %v7641 = vmax.f32 %v7639, %v7640
    %v7642 = vrot.slane %v7641, 2
    %v7643 = vmax.f32 %v7641, %v7642
    %v7644 = vrot.slane %v7643, 1
    %v7645 = vmax.f32 %v7643, %v7644
    %v7646 = vsel %vm6182, %v5737, -inf
    %v7647 = vrot.slane %v7646, 4
    %v7648 = vmax.f32 %v7646, %v7647
    %v7649 = vrot.slane %v7648, 2
    %v7650 = vmax.f32 %v7648, %v7649
    %v7651 = vrot.slane %v7650, 1
    %v7652 = vmax.f32 %v7650, %v7651
    %v7653 = vsel %vm6182, %v5736, -inf
    %v7654 = vrot.slane %v7653, 4
    %v7655 = vmax.f32 %v7653, %v7654
    %v7656 = vrot.slane %v7655, 2
    %v7657 = vmax.f32 %v7655, %v7656
    %v7658 = vrot.slane %v7657, 1
    %v7659 = vmax.f32 %v7657, %v7658
    %v7660 = vsel %vm6182, %v5738, -inf
    %v7661 = vrot.slane %v7660, 4
    %v7662 = vmax.f32 %v7660, %v7661
    %v7663 = vrot.slane %v7662, 2
    %v7664 = vmax.f32 %v7662, %v7663
    %v7665 = vrot.slane %v7664, 1
    %v7666 = vmax.f32 %v7664, %v7665
    %v7667 = vsel %vm6182, %v5746, -inf
    %v7668 = vrot.slane %v7667, 4
    %v7669 = vmax.f32 %v7667, %v7668
    %v7670 = vrot.slane %v7669, 2
    %v7671 = vmax.f32 %v7669, %v7670
    %v7672 = vrot.slane %v7671, 1
    %v7673 = vmax.f32 %v7671, %v7672
    %v7674 = vsel %vm6182, %v5754, -inf
    %v7675 = vrot.slane %v7674, 4
    %v7676 = vmax.f32 %v7674, %v7675
    %v7677 = vrot.slane %v7676, 2
    %v7678 = vmax.f32 %v7676, %v7677
    %v7679 = vrot.slane %v7678, 1
    %v7680 = vmax.f32 %v7678, %v7679
    %v7681 = vsel %vm6182, %v5753, -inf
    %v7682 = vrot.slane %v7681, 4
    %v7683 = vmax.f32 %v7681, %v7682
    %v7684 = vrot.slane %v7683, 2
    %v7685 = vmax.f32 %v7683, %v7684
    %v7686 = vrot.slane %v7685, 1
    %v7687 = vmax.f32 %v7685, %v7686
    %v7688 = vsel %vm6182, %v5755, -inf
    %v7689 = vrot.slane %v7688, 4
    %v7690 = vmax.f32 %v7688, %v7689
    %v7691 = vrot.slane %v7690, 2
    %v7692 = vmax.f32 %v7690, %v7691
    %v7693 = vrot.slane %v7692, 1
    %v7694 = vmax.f32 %v7692, %v7693
    %v7695 = vsel %vm6182, %v5763, -inf
    %v7696 = vrot.slane %v7695, 4
    %v7697 = vmax.f32 %v7695, %v7696
    %v7698 = vrot.slane %v7697, 2
    %v7699 = vmax.f32 %v7697, %v7698
    %v7700 = vrot.slane %v7699, 1
    %v7701 = vmax.f32 %v7699, %v7700
    %v7702 = vsel %vm6182, %v5771, -inf
    %v7703 = vrot.slane %v7702, 4
    %v7704 = vmax.f32 %v7702, %v7703
    %v7705 = vrot.slane %v7704, 2
    %v7706 = vmax.f32 %v7704, %v7705
    %v7707 = vrot.slane %v7706, 1
    %v7708 = vmax.f32 %v7706, %v7707
    %v7709 = vsel %vm6182, %v5770, -inf
    %v7710 = vrot.slane %v7709, 4
    %v7711 = vmax.f32 %v7709, %v7710
    %v7712 = vrot.slane %v7711, 2
    %v7713 = vmax.f32 %v7711, %v7712
    %v7714 = vrot.slane %v7713, 1
    %v7715 = vmax.f32 %v7713, %v7714
    %v7716 = vsel %vm6182, %v5772, -inf
    %v7717 = vrot.slane %v7716, 4
    %v7718 = vmax.f32 %v7716, %v7717
    %v7719 = vrot.slane %v7718, 2
    %v7720 = vmax.f32 %v7718, %v7719
    %v7721 = vrot.slane %v7720, 1
    %v7722 = vmax.f32 %v7720, %v7721
    %v7723 = vsel %vm6182, %v5780, -inf
    %v7724 = vrot.slane %v7723, 4
    %v7725 = vmax.f32 %v7723, %v7724
    %v7726 = vrot.slane %v7725, 2
    %v7727 = vmax.f32 %v7725, %v7726
    %v7728 = vrot.slane %v7727, 1
    %v7729 = vmax.f32 %v7727, %v7728
    %v7730 = vsel %vm6182, %v5788, -inf
    %v7731 = vrot.slane %v7730, 4
    %v7732 = vmax.f32 %v7730, %v7731
    %v7733 = vrot.slane %v7732, 2
    %v7734 = vmax.f32 %v7732, %v7733
    %v7735 = vrot.slane %v7734, 1
    %v7736 = vmax.f32 %v7734, %v7735
    %v7737 = vsel %vm6182, %v5787, -inf
    %v7738 = vrot.slane %v7737, 4
    %v7739 = vmax.f32 %v7737, %v7738
    %v7740 = vrot.slane %v7739, 2
    %v7741 = vmax.f32 %v7739, %v7740
    %v7742 = vrot.slane %v7741, 1
    %v7743 = vmax.f32 %v7741, %v7742
    %v7744 = vsel %vm6182, %v5789, -inf
    %v7745 = vrot.slane %v7744, 4
    %v7746 = vmax.f32 %v7744, %v7745
    %v7747 = vrot.slane %v7746, 2
    %v7748 = vmax.f32 %v7746, %v7747
    %v7749 = vrot.slane %v7748, 1
    %v7750 = vmax.f32 %v7748, %v7749
    %v7751 = vsel %vm6182, %v5797, -inf
    %v7752 = vrot.slane %v7751, 4
    %v7753 = vmax.f32 %v7751, %v7752
    %v7754 = vrot.slane %v7753, 2
    %v7755 = vmax.f32 %v7753, %v7754
    %v7756 = vrot.slane %v7755, 1
    %v7757 = vmax.f32 %v7755, %v7756
    %v7758 = vsel %vm6182, %v5805, -inf
    %v7759 = vrot.slane %v7758, 4
    %v7760 = vmax.f32 %v7758, %v7759
    %v7761 = vrot.slane %v7760, 2
    %v7762 = vmax.f32 %v7760, %v7761
    %v7763 = vrot.slane %v7762, 1
    %v7764 = vmax.f32 %v7762, %v7763
    %v7765 = vsel %vm6182, %v5804, -inf
    %v7766 = vrot.slane %v7765, 4
    %v7767 = vmax.f32 %v7765, %v7766
    %v7768 = vrot.slane %v7767, 2
    %v7769 = vmax.f32 %v7767, %v7768
    %v7770 = vrot.slane %v7769, 1
    %v7771 = vmax.f32 %v7769, %v7770
    %v7772 = vsel %vm6182, %v5806, -inf
    %v7773 = vrot.slane %v7772, 4
    %v7774 = vmax.f32 %v7772, %v7773
    %v7775 = vrot.slane %v7774, 2
    %v7776 = vmax.f32 %v7774, %v7775
    %v7777 = vrot.slane %v7776, 1
    %v7778 = vmax.f32 %v7776, %v7777
    %v7779 = vsel %vm6182, %v5814, -inf
    %v7780 = vrot.slane %v7779, 4
    %v7781 = vmax.f32 %v7779, %v7780
    %v7782 = vrot.slane %v7781, 2
    %v7783 = vmax.f32 %v7781, %v7782
    %v7784 = vrot.slane %v7783, 1
    %v7785 = vmax.f32 %v7783, %v7784
    %v7786 = vsel %vm6182, %v5822, -inf
    %v7787 = vrot.slane %v7786, 4
    %v7788 = vmax.f32 %v7786, %v7787
    %v7789 = vrot.slane %v7788, 2
    %v7790 = vmax.f32 %v7788, %v7789
    %v7791 = vrot.slane %v7790, 1
    %v7792 = vmax.f32 %v7790, %v7791
    %v7793 = vsel %vm6182, %v5821, -inf
    %v7794 = vrot.slane %v7793, 4
    %v7795 = vmax.f32 %v7793, %v7794
    %v7796 = vrot.slane %v7795, 2
    %v7797 = vmax.f32 %v7795, %v7796
    %v7798 = vrot.slane %v7797, 1
    %v7799 = vmax.f32 %v7797, %v7798
    %v7800 = vsel %vm6182, %v5823, -inf
    %v7801 = vrot.slane %v7800, 4
    %v7802 = vmax.f32 %v7800, %v7801
    %v7803 = vrot.slane %v7802, 2
    %v7804 = vmax.f32 %v7802, %v7803
    %v7805 = vrot.slane %v7804, 1
    %v7806 = vmax.f32 %v7804, %v7805
    %v7807 = vsel %vm6182, %v5831, -inf
    %v7808 = vrot.slane %v7807, 4
    %v7809 = vmax.f32 %v7807, %v7808
    %v7810 = vrot.slane %v7809, 2
    %v7811 = vmax.f32 %v7809, %v7810
    %v7812 = vrot.slane %v7811, 1
    %v7813 = vmax.f32 %v7811, %v7812
    %v7814 = vsel %vm6182, %v5839, -inf
    %v7815 = vrot.slane %v7814, 4
    %v7816 = vmax.f32 %v7814, %v7815
    %v7817 = vrot.slane %v7816, 2
    %v7818 = vmax.f32 %v7816, %v7817
    %v7819 = vrot.slane %v7818, 1
    %v7820 = vmax.f32 %v7818, %v7819
    %v7821 = vsel %vm6182, %v5838, -inf
    %v7822 = vrot.slane %v7821, 4
    %v7823 = vmax.f32 %v7821, %v7822
    %v7824 = vrot.slane %v7823, 2
    %v7825 = vmax.f32 %v7823, %v7824
    %v7826 = vrot.slane %v7825, 1
    %v7827 = vmax.f32 %v7825, %v7826
    %v7828 = vsel %vm6182, %v5840, -inf
    %v7829 = vrot.slane %v7828, 4
    %v7830 = vmax.f32 %v7828, %v7829
    %v7831 = vrot.slane %v7830, 2
    %v7832 = vmax.f32 %v7830, %v7831
    %v7833 = vrot.slane %v7832, 1
    %v7834 = vmax.f32 %v7832, %v7833
    %v7835 = vsel %vm6182, %v5848, -inf
    %v7836 = vrot.slane %v7835, 4
    %v7837 = vmax.f32 %v7835, %v7836
    %v7838 = vrot.slane %v7837, 2
    %v7839 = vmax.f32 %v7837, %v7838
    %v7840 = vrot.slane %v7839, 1
    %v7841 = vmax.f32 %v7839, %v7840
    %v7842 = vsel %vm6182, %v5856, -inf
    %v7843 = vrot.slane %v7842, 4
    %v7844 = vmax.f32 %v7842, %v7843
    %v7845 = vrot.slane %v7844, 2
    %v7846 = vmax.f32 %v7844, %v7845
    %v7847 = vrot.slane %v7846, 1
    %v7848 = vmax.f32 %v7846, %v7847
    %v7849 = vsel %vm6182, %v5855, -inf
    %v7850 = vrot.slane %v7849, 4
    %v7851 = vmax.f32 %v7849, %v7850
    %v7852 = vrot.slane %v7851, 2
    %v7853 = vmax.f32 %v7851, %v7852
    %v7854 = vrot.slane %v7853, 1
    %v7855 = vmax.f32 %v7853, %v7854
    %v7856 = vsel %vm6182, %v5857, -inf
    %v7857 = vrot.slane %v7856, 4
    %v7858 = vmax.f32 %v7856, %v7857
    %v7859 = vrot.slane %v7858, 2
    %v7860 = vmax.f32 %v7858, %v7859
    %v7861 = vrot.slane %v7860, 1
    %v7862 = vmax.f32 %v7860, %v7861
    %v7863 = vsel %vm6182, %v5865, -inf
    %v7864 = vrot.slane %v7863, 4
    %v7865 = vmax.f32 %v7863, %v7864
    %v7866 = vrot.slane %v7865, 2
    %v7867 = vmax.f32 %v7865, %v7866
    %v7868 = vrot.slane %v7867, 1
    %v7869 = vmax.f32 %v7867, %v7868
    %v7870 = vsel %vm6182, %v5873, -inf
    %v7871 = vrot.slane %v7870, 4
    %v7872 = vmax.f32 %v7870, %v7871
    %v7873 = vrot.slane %v7872, 2
    %v7874 = vmax.f32 %v7872, %v7873
    %v7875 = vrot.slane %v7874, 1
    %v7876 = vmax.f32 %v7874, %v7875
    %v7877 = vsel %vm6182, %v5872, -inf
    %v7878 = vrot.slane %v7877, 4
    %v7879 = vmax.f32 %v7877, %v7878
    %v7880 = vrot.slane %v7879, 2
    %v7881 = vmax.f32 %v7879, %v7880
    %v7882 = vrot.slane %v7881, 1
    %v7883 = vmax.f32 %v7881, %v7882
    %v7884 = vsel %vm6182, %v5874, -inf
    %v7885 = vrot.slane %v7884, 4
    %v7886 = vmax.f32 %v7884, %v7885
    %v7887 = vrot.slane %v7886, 2
    %v7888 = vmax.f32 %v7886, %v7887
    %v7889 = vrot.slane %v7888, 1
    %v7890 = vmax.f32 %v7888, %v7889
    %v7891 = vsel %vm6182, %v5882, -inf
    %v7892 = vrot.slane %v7891, 4
    %v7893 = vmax.f32 %v7891, %v7892
    %v7894 = vrot.slane %v7893, 2
    %v7895 = vmax.f32 %v7893, %v7894
    %v7896 = vrot.slane %v7895, 1
    %v7897 = vmax.f32 %v7895, %v7896
    %v7898 = vsel %vm6182, %v5890, -inf
    %v7899 = vrot.slane %v7898, 4
    %v7900 = vmax.f32 %v7898, %v7899
    %v7901 = vrot.slane %v7900, 2
    %v7902 = vmax.f32 %v7900, %v7901
    %v7903 = vrot.slane %v7902, 1
    %v7904 = vmax.f32 %v7902, %v7903
    %v7905 = vsel %vm6182, %v5889, -inf
    %v7906 = vrot.slane %v7905, 4
    %v7907 = vmax.f32 %v7905, %v7906
    %v7908 = vrot.slane %v7907, 2
    %v7909 = vmax.f32 %v7907, %v7908
    %v7910 = vrot.slane %v7909, 1
    %v7911 = vmax.f32 %v7909, %v7910
    %v7912 = vsel %vm6182, %v5891, -inf
    %v7913 = vrot.slane %v7912, 4
    %v7914 = vmax.f32 %v7912, %v7913
    %v7915 = vrot.slane %v7914, 2
    %v7916 = vmax.f32 %v7914, %v7915
    %v7917 = vrot.slane %v7916, 1
    %v7918 = vmax.f32 %v7916, %v7917
    %v7919 = vsel %vm6182, %v5899, -inf
    %v7920 = vrot.slane %v7919, 4
    %v7921 = vmax.f32 %v7919, %v7920
    %v7922 = vrot.slane %v7921, 2
    %v7923 = vmax.f32 %v7921, %v7922
    %v7924 = vrot.slane %v7923, 1
    %v7925 = vmax.f32 %v7923, %v7924
    %v7926 = vsel %vm6182, %v5907, -inf
    %v7927 = vrot.slane %v7926, 4
    %v7928 = vmax.f32 %v7926, %v7927
    %v7929 = vrot.slane %v7928, 2
    %v7930 = vmax.f32 %v7928, %v7929
    %v7931 = vrot.slane %v7930, 1
    %v7932 = vmax.f32 %v7930, %v7931
    %v7933 = vsel %vm6182, %v5906, -inf
    %v7934 = vrot.slane %v7933, 4
    %v7935 = vmax.f32 %v7933, %v7934
    %v7936 = vrot.slane %v7935, 2
    %v7937 = vmax.f32 %v7935, %v7936
    %v7938 = vrot.slane %v7937, 1
    %v7939 = vmax.f32 %v7937, %v7938
    %v7940 = vsel %vm6182, %v5908, -inf
    %v7941 = vrot.slane %v7940, 4
    %v7942 = vmax.f32 %v7940, %v7941
    %v7943 = vrot.slane %v7942, 2
    %v7944 = vmax.f32 %v7942, %v7943
    %v7945 = vrot.slane %v7944, 1
    %v7946 = vmax.f32 %v7944, %v7945
    %v7947 = vsel %vm6182, %v5916, -inf
    %v7948 = vrot.slane %v7947, 4
    %v7949 = vmax.f32 %v7947, %v7948
    %v7950 = vrot.slane %v7949, 2
    %v7951 = vmax.f32 %v7949, %v7950
    %v7952 = vrot.slane %v7951, 1
    %v7953 = vmax.f32 %v7951, %v7952
    %v7954 = vsel %vm6182, %v5924, -inf
    %v7955 = vrot.slane %v7954, 4
    %v7956 = vmax.f32 %v7954, %v7955
    %v7957 = vrot.slane %v7956, 2
    %v7958 = vmax.f32 %v7956, %v7957
    %v7959 = vrot.slane %v7958, 1
    %v7960 = vmax.f32 %v7958, %v7959
    %v7961 = vsel %vm6182, %v5923, -inf
    %v7962 = vrot.slane %v7961, 4
    %v7963 = vmax.f32 %v7961, %v7962
    %v7964 = vrot.slane %v7963, 2
    %v7965 = vmax.f32 %v7963, %v7964
    %v7966 = vrot.slane %v7965, 1
    %v7967 = vmax.f32 %v7965, %v7966
    %v7968 = vsel %vm6182, %v5925, -inf
    %v7969 = vrot.slane %v7968, 4
    %v7970 = vmax.f32 %v7968, %v7969
    %v7971 = vrot.slane %v7970, 2
    %v7972 = vmax.f32 %v7970, %v7971
    %v7973 = vrot.slane %v7972, 1
    %v7974 = vmax.f32 %v7972, %v7973
    %vm7975 = vcmask 64512
    %v7976 = vsel %vm7975, %v6189, -inf
    %v7977 = vsel %vm7975, %v6245, -inf
    %v7978 = vmax.f32 %v7976, %v7977
    %v7979 = vsel %vm7975, %v6196, -inf
    %v7980 = vsel %vm7975, %v6252, -inf
    %v7981 = vmax.f32 %v7979, %v7980
    %v7982 = vsel %vm7975, %v6203, -inf
    %v7983 = vsel %vm7975, %v6259, -inf
    %v7984 = vmax.f32 %v7982, %v7983
    %v7985 = vsel %vm7975, %v6210, -inf
    %v7986 = vsel %vm7975, %v6266, -inf
    %v7987 = vmax.f32 %v7985, %v7986
    %v7988 = vsel %vm7975, %v6217, -inf
    %v7989 = vsel %vm7975, %v6273, -inf
    %v7990 = vmax.f32 %v7988, %v7989
    %v7991 = vsel %vm7975, %v6224, -inf
    %v7992 = vsel %vm7975, %v6280, -inf
    %v7993 = vmax.f32 %v7991, %v7992
    %v7994 = vsel %vm7975, %v6231, -inf
    %v7995 = vsel %vm7975, %v6287, -inf
    %v7996 = vmax.f32 %v7994, %v7995
    %v7997 = vsel %vm7975, %v6238, -inf
    %v7998 = vsel %vm7975, %v6294, -inf
    %v7999 = vmax.f32 %v7997, %v7998
    %v8000 = vsel %vm7975, %v6301, -inf
    %v8001 = vsel %vm7975, %v6357, -inf
    %v8002 = vmax.f32 %v8000, %v8001
    %v8003 = vsel %vm7975, %v6308, -inf
    %v8004 = vsel %vm7975, %v6364, -inf
    %v8005 = vmax.f32 %v8003, %v8004
    %v8006 = vsel %vm7975, %v6315, -inf
    %v8007 = vsel %vm7975, %v6371, -inf
    %v8008 = vmax.f32 %v8006, %v8007
    %v8009 = vsel %vm7975, %v6322, -inf
    %v8010 = vsel %vm7975, %v6378, -inf
    %v8011 = vmax.f32 %v8009, %v8010
    %v8012 = vsel %vm7975, %v6329, -inf
    %v8013 = vsel %vm7975, %v6385, -inf
    %v8014 = vmax.f32 %v8012, %v8013
    %v8015 = vsel %vm7975, %v6336, -inf
    %v8016 = vsel %vm7975, %v6392, -inf
    %v8017 = vmax.f32 %v8015, %v8016
    %v8018 = vsel %vm7975, %v6343, -inf
    %v8019 = vsel %vm7975, %v6399, -inf
    %v8020 = vmax.f32 %v8018, %v8019
    %v8021 = vsel %vm7975, %v6350, -inf
    %v8022 = vsel %vm7975, %v6406, -inf
    %v8023 = vmax.f32 %v8021, %v8022
    %v8024 = vsel %vm7975, %v6413, -inf
    %v8025 = vsel %vm7975, %v6469, -inf
    %v8026 = vmax.f32 %v8024, %v8025
    %v8027 = vsel %vm7975, %v6420, -inf
    %v8028 = vsel %vm7975, %v6476, -inf
    %v8029 = vmax.f32 %v8027, %v8028
    %v8030 = vsel %vm7975, %v6427, -inf
    %v8031 = vsel %vm7975, %v6483, -inf
    %v8032 = vmax.f32 %v8030, %v8031
    %v8033 = vsel %vm7975, %v6434, -inf
    %v8034 = vsel %vm7975, %v6490, -inf
    %v8035 = vmax.f32 %v8033, %v8034
    %v8036 = vsel %vm7975, %v6441, -inf
    %v8037 = vsel %vm7975, %v6497, -inf
    %v8038 = vmax.f32 %v8036, %v8037
    %v8039 = vsel %vm7975, %v6448, -inf
    %v8040 = vsel %vm7975, %v6504, -inf
    %v8041 = vmax.f32 %v8039, %v8040
    %v8042 = vsel %vm7975, %v6455, -inf
    %v8043 = vsel %vm7975, %v6511, -inf
    %v8044 = vmax.f32 %v8042, %v8043
    %v8045 = vsel %vm7975, %v6462, -inf
    %v8046 = vsel %vm7975, %v6518, -inf
    %v8047 = vmax.f32 %v8045, %v8046
    %v8048 = vsel %vm7975, %v6525, -inf
    %v8049 = vsel %vm7975, %v6581, -inf
    %v8050 = vmax.f32 %v8048, %v8049
    %v8051 = vsel %vm7975, %v6532, -inf
    %v8052 = vsel %vm7975, %v6588, -inf
    %v8053 = vmax.f32 %v8051, %v8052
    %v8054 = vsel %vm7975, %v6539, -inf
    %v8055 = vsel %vm7975, %v6595, -inf
    %v8056 = vmax.f32 %v8054, %v8055
    %v8057 = vsel %vm7975, %v6546, -inf
    %v8058 = vsel %vm7975, %v6602, -inf
    %v8059 = vmax.f32 %v8057, %v8058
    %v8060 = vsel %vm7975, %v6553, -inf
    %v8061 = vsel %vm7975, %v6609, -inf
    %v8062 = vmax.f32 %v8060, %v8061
    %v8063 = vsel %vm7975, %v6560, -inf
    %v8064 = vsel %vm7975, %v6616, -inf
    %v8065 = vmax.f32 %v8063, %v8064
    %v8066 = vsel %vm7975, %v6567, -inf
    %v8067 = vsel %vm7975, %v6623, -inf
    %v8068 = vmax.f32 %v8066, %v8067
    %v8069 = vsel %vm7975, %v6574, -inf
    %v8070 = vsel %vm7975, %v6630, -inf
    %v8071 = vmax.f32 %v8069, %v8070
    %v8072 = vsel %vm7975, %v6637, -inf
    %v8073 = vsel %vm7975, %v6693, -inf
    %v8074 = vmax.f32 %v8072, %v8073
    %v8075 = vsel %vm7975, %v6644, -inf
    %v8076 = vsel %vm7975, %v6700, -inf
    %v8077 = vmax.f32 %v8075, %v8076
    %v8078 = vsel %vm7975, %v6651, -inf
    %v8079 = vsel %vm7975, %v6707, -inf
    %v8080 = vmax.f32 %v8078, %v8079
    %v8081 = vsel %vm7975, %v6658, -inf
    %v8082 = vsel %vm7975, %v6714, -inf
    %v8083 = vmax.f32 %v8081, %v8082
    %v8084 = vsel %vm7975, %v6665, -inf
    %v8085 = vsel %vm7975, %v6721, -inf
    %v8086 = vmax.f32 %v8084, %v8085
    %v8087 = vsel %vm7975, %v6672, -inf
    %v8088 = vsel %vm7975, %v6728, -inf
    %v8089 = vmax.f32 %v8087, %v8088
    %v8090 = vsel %vm7975, %v6679, -inf
    %v8091 = vsel %vm7975, %v6735, -inf
    %v8092 = vmax.f32 %v8090, %v8091
    %v8093 = vsel %vm7975, %v6686, -inf
    %v8094 = vsel %vm7975, %v6742, -inf
    %v8095 = vmax.f32 %v8093, %v8094
    %v8096 = vsel %vm7975, %v6749, -inf
    %v8097 = vsel %vm7975, %v6805, -inf
    %v8098 = vmax.f32 %v8096, %v8097
    %v8099 = vsel %vm7975, %v6756, -inf
    %v8100 = vsel %vm7975, %v6812, -inf
    %v8101 = vmax.f32 %v8099, %v8100
    %v8102 = vsel %vm7975, %v6763, -inf
    %v8103 = vsel %vm7975, %v6819, -inf
    %v8104 = vmax.f32 %v8102, %v8103
    %v8105 = vsel %vm7975, %v6770, -inf
    %v8106 = vsel %vm7975, %v6826, -inf
    %v8107 = vmax.f32 %v8105, %v8106
    %v8108 = vsel %vm7975, %v6777, -inf
    %v8109 = vsel %vm7975, %v6833, -inf
    %v8110 = vmax.f32 %v8108, %v8109
    %v8111 = vsel %vm7975, %v6784, -inf
    %v8112 = vsel %vm7975, %v6840, -inf
    %v8113 = vmax.f32 %v8111, %v8112
    %v8114 = vsel %vm7975, %v6791, -inf
    %v8115 = vsel %vm7975, %v6847, -inf
    %v8116 = vmax.f32 %v8114, %v8115
    %v8117 = vsel %vm7975, %v6798, -inf
    %v8118 = vsel %vm7975, %v6854, -inf
    %v8119 = vmax.f32 %v8117, %v8118
    %v8120 = vsel %vm7975, %v6861, -inf
    %v8121 = vsel %vm7975, %v6917, -inf
    %v8122 = vmax.f32 %v8120, %v8121
    %v8123 = vsel %vm7975, %v6868, -inf
    %v8124 = vsel %vm7975, %v6924, -inf
    %v8125 = vmax.f32 %v8123, %v8124
    %v8126 = vsel %vm7975, %v6875, -inf
    %v8127 = vsel %vm7975, %v6931, -inf
    %v8128 = vmax.f32 %v8126, %v8127
    %v8129 = vsel %vm7975, %v6882, -inf
    %v8130 = vsel %vm7975, %v6938, -inf
    %v8131 = vmax.f32 %v8129, %v8130
    %v8132 = vsel %vm7975, %v6889, -inf
    %v8133 = vsel %vm7975, %v6945, -inf
    %v8134 = vmax.f32 %v8132, %v8133
    %v8135 = vsel %vm7975, %v6896, -inf
    %v8136 = vsel %vm7975, %v6952, -inf
    %v8137 = vmax.f32 %v8135, %v8136
    %v8138 = vsel %vm7975, %v6903, -inf
    %v8139 = vsel %vm7975, %v6959, -inf
    %v8140 = vmax.f32 %v8138, %v8139
    %v8141 = vsel %vm7975, %v6910, -inf
    %v8142 = vsel %vm7975, %v6966, -inf
    %v8143 = vmax.f32 %v8141, %v8142
    %v8144 = vsel %vm7975, %v6973, -inf
    %v8145 = vsel %vm7975, %v7029, -inf
    %v8146 = vmax.f32 %v8144, %v8145
    %v8147 = vsel %vm7975, %v6980, -inf
    %v8148 = vsel %vm7975, %v7036, -inf
    %v8149 = vmax.f32 %v8147, %v8148
    %v8150 = vsel %vm7975, %v6987, -inf
    %v8151 = vsel %vm7975, %v7043, -inf
    %v8152 = vmax.f32 %v8150, %v8151
    %v8153 = vsel %vm7975, %v6994, -inf
    %v8154 = vsel %vm7975, %v7050, -inf
    %v8155 = vmax.f32 %v8153, %v8154
    %v8156 = vsel %vm7975, %v7001, -inf
    %v8157 = vsel %vm7975, %v7057, -inf
    %v8158 = vmax.f32 %v8156, %v8157
    %v8159 = vsel %vm7975, %v7008, -inf
    %v8160 = vsel %vm7975, %v7064, -inf
    %v8161 = vmax.f32 %v8159, %v8160
    %v8162 = vsel %vm7975, %v7015, -inf
    %v8163 = vsel %vm7975, %v7071, -inf
    %v8164 = vmax.f32 %v8162, %v8163
    %v8165 = vsel %vm7975, %v7022, -inf
    %v8166 = vsel %vm7975, %v7078, -inf
    %v8167 = vmax.f32 %v8165, %v8166
    %v8168 = vsel %vm7975, %v7085, -inf
    %v8169 = vsel %vm7975, %v7141, -inf
    %v8170 = vmax.f32 %v8168, %v8169
    %v8171 = vsel %vm7975, %v7092, -inf
    %v8172 = vsel %vm7975, %v7148, -inf
    %v8173 = vmax.f32 %v8171, %v8172
    %v8174 = vsel %vm7975, %v7099, -inf
    %v8175 = vsel %vm7975, %v7155, -inf
    %v8176 = vmax.f32 %v8174, %v8175
    %v8177 = vsel %vm7975, %v7106, -inf
    %v8178 = vsel %vm7975, %v7162, -inf
    %v8179 = vmax.f32 %v8177, %v8178
    %v8180 = vsel %vm7975, %v7113, -inf
    %v8181 = vsel %vm7975, %v7169, -inf
    %v8182 = vmax.f32 %v8180, %v8181
    %v8183 = vsel %vm7975, %v7120, -inf
    %v8184 = vsel %vm7975, %v7176, -inf
    %v8185 = vmax.f32 %v8183, %v8184
    %v8186 = vsel %vm7975, %v7127, -inf
    %v8187 = vsel %vm7975, %v7183, -inf
    %v8188 = vmax.f32 %v8186, %v8187
    %v8189 = vsel %vm7975, %v7134, -inf
    %v8190 = vsel %vm7975, %v7190, -inf
    %v8191 = vmax.f32 %v8189, %v8190
    %v8192 = vsel %vm7975, %v7197, -inf
    %v8193 = vsel %vm7975, %v7253, -inf
    %v8194 = vmax.f32 %v8192, %v8193
    %v8195 = vsel %vm7975, %v7204, -inf
    %v8196 = vsel %vm7975, %v7260, -inf
    %v8197 = vmax.f32 %v8195, %v8196
    %v8198 = vsel %vm7975, %v7211, -inf
    %v8199 = vsel %vm7975, %v7267, -inf
    %v8200 = vmax.f32 %v8198, %v8199
    %v8201 = vsel %vm7975, %v7218, -inf
    %v8202 = vsel %vm7975, %v7274, -inf
    %v8203 = vmax.f32 %v8201, %v8202
    %v8204 = vsel %vm7975, %v7225, -inf
    %v8205 = vsel %vm7975, %v7281, -inf
    %v8206 = vmax.f32 %v8204, %v8205
    %v8207 = vsel %vm7975, %v7232, -inf
    %v8208 = vsel %vm7975, %v7288, -inf
    %v8209 = vmax.f32 %v8207, %v8208
    %v8210 = vsel %vm7975, %v7239, -inf
    %v8211 = vsel %vm7975, %v7295, -inf
    %v8212 = vmax.f32 %v8210, %v8211
    %v8213 = vsel %vm7975, %v7246, -inf
    %v8214 = vsel %vm7975, %v7302, -inf
    %v8215 = vmax.f32 %v8213, %v8214
    %v8216 = vsel %vm7975, %v7309, -inf
    %v8217 = vsel %vm7975, %v7365, -inf
    %v8218 = vmax.f32 %v8216, %v8217
    %v8219 = vsel %vm7975, %v7316, -inf
    %v8220 = vsel %vm7975, %v7372, -inf
    %v8221 = vmax.f32 %v8219, %v8220
    %v8222 = vsel %vm7975, %v7323, -inf
    %v8223 = vsel %vm7975, %v7379, -inf
    %v8224 = vmax.f32 %v8222, %v8223
    %v8225 = vsel %vm7975, %v7330, -inf
    %v8226 = vsel %vm7975, %v7386, -inf
    %v8227 = vmax.f32 %v8225, %v8226
    %v8228 = vsel %vm7975, %v7337, -inf
    %v8229 = vsel %vm7975, %v7393, -inf
    %v8230 = vmax.f32 %v8228, %v8229
    %v8231 = vsel %vm7975, %v7344, -inf
    %v8232 = vsel %vm7975, %v7400, -inf
    %v8233 = vmax.f32 %v8231, %v8232
    %v8234 = vsel %vm7975, %v7351, -inf
    %v8235 = vsel %vm7975, %v7407, -inf
    %v8236 = vmax.f32 %v8234, %v8235
    %v8237 = vsel %vm7975, %v7358, -inf
    %v8238 = vsel %vm7975, %v7414, -inf
    %v8239 = vmax.f32 %v8237, %v8238
    %v8240 = vsel %vm7975, %v7421, -inf
    %v8241 = vsel %vm7975, %v7477, -inf
    %v8242 = vmax.f32 %v8240, %v8241
    %v8243 = vsel %vm7975, %v7428, -inf
    %v8244 = vsel %vm7975, %v7484, -inf
    %v8245 = vmax.f32 %v8243, %v8244
    %v8246 = vsel %vm7975, %v7435, -inf
    %v8247 = vsel %vm7975, %v7491, -inf
    %v8248 = vmax.f32 %v8246, %v8247
    %v8249 = vsel %vm7975, %v7442, -inf
    %v8250 = vsel %vm7975, %v7498, -inf
    %v8251 = vmax.f32 %v8249, %v8250
    %v8252 = vsel %vm7975, %v7449, -inf
    %v8253 = vsel %vm7975, %v7505, -inf
    %v8254 = vmax.f32 %v8252, %v8253
    %v8255 = vsel %vm7975, %v7456, -inf
    %v8256 = vsel %vm7975, %v7512, -inf
    %v8257 = vmax.f32 %v8255, %v8256
    %v8258 = vsel %vm7975, %v7463, -inf
    %v8259 = vsel %vm7975, %v7519, -inf
    %v8260 = vmax.f32 %v8258, %v8259
    %v8261 = vsel %vm7975, %v7470, -inf
    %v8262 = vsel %vm7975, %v7526, -inf
    %v8263 = vmax.f32 %v8261, %v8262
    %v8264 = vsel %vm7975, %v7533, -inf
    %v8265 = vsel %vm7975, %v7589, -inf
    %v8266 = vmax.f32 %v8264, %v8265
    %v8267 = vsel %vm7975, %v7540, -inf
    %v8268 = vsel %vm7975, %v7596, -inf
    %v8269 = vmax.f32 %v8267, %v8268
    %v8270 = vsel %vm7975, %v7547, -inf
    %v8271 = vsel %vm7975, %v7603, -inf
    %v8272 = vmax.f32 %v8270, %v8271
    %v8273 = vsel %vm7975, %v7554, -inf
    %v8274 = vsel %vm7975, %v7610, -inf
    %v8275 = vmax.f32 %v8273, %v8274
    %v8276 = vsel %vm7975, %v7561, -inf
    %v8277 = vsel %vm7975, %v7617, -inf
    %v8278 = vmax.f32 %v8276, %v8277
    %v8279 = vsel %vm7975, %v7568, -inf
    %v8280 = vsel %vm7975, %v7624, -inf
    %v8281 = vmax.f32 %v8279, %v8280
    %v8282 = vsel %vm7975, %v7575, -inf
    %v8283 = vsel %vm7975, %v7631, -inf
    %v8284 = vmax.f32 %v8282, %v8283
    %v8285 = vsel %vm7975, %v7582, -inf
    %v8286 = vsel %vm7975, %v7638, -inf
    %v8287 = vmax.f32 %v8285, %v8286
    %v8288 = vsel %vm7975, %v7645, -inf
    %v8289 = vsel %vm7975, %v7701, -inf
    %v8290 = vmax.f32 %v8288, %v8289
    %v8291 = vsel %vm7975, %v7652, -inf
    %v8292 = vsel %vm7975, %v7708, -inf
    %v8293 = vmax.f32 %v8291, %v8292
    %v8294 = vsel %vm7975, %v7659, -inf
    %v8295 = vsel %vm7975, %v7715, -inf
    %v8296 = vmax.f32 %v8294, %v8295
    %v8297 = vsel %vm7975, %v7666, -inf
    %v8298 = vsel %vm7975, %v7722, -inf
    %v8299 = vmax.f32 %v8297, %v8298
    %v8300 = vsel %vm7975, %v7673, -inf
    %v8301 = vsel %vm7975, %v7729, -inf
    %v8302 = vmax.f32 %v8300, %v8301
    %v8303 = vsel %vm7975, %v7680, -inf
    %v8304 = vsel %vm7975, %v7736, -inf
    %v8305 = vmax.f32 %v8303, %v8304
    %v8306 = vsel %vm7975, %v7687, -inf
    %v8307 = vsel %vm7975, %v7743, -inf
    %v8308 = vmax.f32 %v8306, %v8307
    %v8309 = vsel %vm7975, %v7694, -inf
    %v8310 = vsel %vm7975, %v7750, -inf
    %v8311 = vmax.f32 %v8309, %v8310
    %v8312 = vsel %vm7975, %v7757, -inf
    %v8313 = vsel %vm7975, %v7813, -inf
    %v8314 = vmax.f32 %v8312, %v8313
    %v8315 = vsel %vm7975, %v7764, -inf
    %v8316 = vsel %vm7975, %v7820, -inf
    %v8317 = vmax.f32 %v8315, %v8316
    %v8318 = vsel %vm7975, %v7771, -inf
    %v8319 = vsel %vm7975, %v7827, -inf
    %v8320 = vmax.f32 %v8318, %v8319
    %v8321 = vsel %vm7975, %v7778, -inf
    %v8322 = vsel %vm7975, %v7834, -inf
    %v8323 = vmax.f32 %v8321, %v8322
    %v8324 = vsel %vm7975, %v7785, -inf
    %v8325 = vsel %vm7975, %v7841, -inf
    %v8326 = vmax.f32 %v8324, %v8325
    %v8327 = vsel %vm7975, %v7792, -inf
    %v8328 = vsel %vm7975, %v7848, -inf
    %v8329 = vmax.f32 %v8327, %v8328
    %v8330 = vsel %vm7975, %v7799, -inf
    %v8331 = vsel %vm7975, %v7855, -inf
    %v8332 = vmax.f32 %v8330, %v8331
    %v8333 = vsel %vm7975, %v7806, -inf
    %v8334 = vsel %vm7975, %v7862, -inf
    %v8335 = vmax.f32 %v8333, %v8334
    %v8336 = vsel %vm7975, %v7869, -inf
    %v8337 = vsel %vm7975, %v7925, -inf
    %v8338 = vmax.f32 %v8336, %v8337
    %v8339 = vsel %vm7975, %v7876, -inf
    %v8340 = vsel %vm7975, %v7932, -inf
    %v8341 = vmax.f32 %v8339, %v8340
    %v8342 = vsel %vm7975, %v7883, -inf
    %v8343 = vsel %vm7975, %v7939, -inf
    %v8344 = vmax.f32 %v8342, %v8343
    %v8345 = vsel %vm7975, %v7890, -inf
    %v8346 = vsel %vm7975, %v7946, -inf
    %v8347 = vmax.f32 %v8345, %v8346
    %v8348 = vsel %vm7975, %v7897, -inf
    %v8349 = vsel %vm7975, %v7953, -inf
    %v8350 = vmax.f32 %v8348, %v8349
    %v8351 = vsel %vm7975, %v7904, -inf
    %v8352 = vsel %vm7975, %v7960, -inf
    %v8353 = vmax.f32 %v8351, %v8352
    %v8354 = vsel %vm7975, %v7911, -inf
    %v8355 = vsel %vm7975, %v7967, -inf
    %v8356 = vmax.f32 %v8354, %v8355
    %v8357 = vsel %vm7975, %v7918, -inf
    %v8358 = vsel %vm7975, %v7974, -inf
    %v8359 = vmax.f32 %v8357, %v8358
    %8360 = vst.msk [vmem:[#allocation2] sm:$0xff] %vm7975, 0.0
    %8361 = vst.msk [vmem:[#allocation2 + $0x8] sm:$0x3] %vm6182, 0.0
    %8362 = vst.msk [vmem:[#allocation2 + $0x10] sm:$0xff] %vm7975, 0.0
    %8363 = vst.msk [vmem:[#allocation2 + $0x18] sm:$0x3] %vm6182, 0.0
    %8364 = vst.msk [vmem:[#allocation2 + $0x20] sm:$0xff] %vm7975, 0.0
    %8365 = vst.msk [vmem:[#allocation2 + $0x28] sm:$0x3] %vm6182, 0.0
    %8366 = vst.msk [vmem:[#allocation2 + $0x30] sm:$0xff] %vm7975, 0.0
    %8367 = vst.msk [vmem:[#allocation2 + $0x38] sm:$0x3] %vm6182, 0.0
    %8368 = vst.msk [vmem:[#allocation2 + $0x40] sm:$0xff] %vm7975, 0.0
    %8369 = vst.msk [vmem:[#allocation2 + $0x48] sm:$0x3] %vm6182, 0.0
    %8370 = vst.msk [vmem:[#allocation2 + $0x50] sm:$0xff] %vm7975, 0.0
    %8371 = vst.msk [vmem:[#allocation2 + $0x58] sm:$0x3] %vm6182, 0.0
    %8372 = vst.msk [vmem:[#allocation2 + $0x60] sm:$0xff] %vm7975, 0.0
    %8373 = vst.msk [vmem:[#allocation2 + $0x68] sm:$0x3] %vm6182, 0.0
    %8374 = vst.msk [vmem:[#allocation2 + $0x70] sm:$0xff] %vm7975, 0.0
    %8375 = vst.msk [vmem:[#allocation2 + $0x78] sm:$0x3] %vm6182, 0.0
    %8376 = vst.msk [vmem:[#allocation2 + $0x80] sm:$0xff] %vm7975, 0.0
    %8377 = vst.msk [vmem:[#allocation2 + $0x88] sm:$0x3] %vm6182, 0.0
    %8378 = vst.msk [vmem:[#allocation2 + $0x90] sm:$0xff] %vm7975, 0.0
    %8379 = vst.msk [vmem:[#allocation2 + $0x98] sm:$0x3] %vm6182, 0.0
    %8380 = vst.msk [vmem:[#allocation2 + $0xa0] sm:$0xff] %vm7975, 0.0
    %8381 = vst.msk [vmem:[#allocation2 + $0xa8] sm:$0x3] %vm6182, 0.0
    %8382 = vst.msk [vmem:[#allocation2 + $0xb0] sm:$0xff] %vm7975, 0.0
    %8383 = vst.msk [vmem:[#allocation2 + $0xb8] sm:$0x3] %vm6182, 0.0
    %8384 = vst.msk [vmem:[#allocation2 + $0xc0] sm:$0xff] %vm7975, 0.0
    %8385 = vst.msk [vmem:[#allocation2 + $0xc8] sm:$0x3] %vm6182, 0.0
    %8386 = vst.msk [vmem:[#allocation2 + $0xd0] sm:$0xff] %vm7975, 0.0
    %8387 = vst.msk [vmem:[#allocation2 + $0xd8] sm:$0x3] %vm6182, 0.0
    %8388 = vst.msk [vmem:[#allocation2 + $0xe0] sm:$0xff] %vm7975, 0.0
    %8389 = vst.msk [vmem:[#allocation2 + $0xe8] sm:$0x3] %vm6182, 0.0
    %8390 = vst.msk [vmem:[#allocation2 + $0xf0] sm:$0xff] %vm7975, 0.0
    %8391 = vst.msk [vmem:[#allocation2 + $0xf8] sm:$0x3] %vm6182, 0.0
    %8392 = vst.msk [vmem:[#allocation2 + $0x100] sm:$0xff] %vm7975, 0.0
    %8393 = vst.msk [vmem:[#allocation2 + $0x108] sm:$0x3] %vm6182, 0.0
    %8394 = vst.msk [vmem:[#allocation2 + $0x110] sm:$0xff] %vm7975, 0.0
    %8395 = vst.msk [vmem:[#allocation2 + $0x118] sm:$0x3] %vm6182, 0.0
    %8396 = vst.msk [vmem:[#allocation2 + $0x120] sm:$0xff] %vm7975, 0.0
    %8397 = vst.msk [vmem:[#allocation2 + $0x128] sm:$0x3] %vm6182, 0.0
    %8398 = vst.msk [vmem:[#allocation2 + $0x130] sm:$0xff] %vm7975, 0.0
    %8399 = vst.msk [vmem:[#allocation2 + $0x138] sm:$0x3] %vm6182, 0.0
    %vm8528 = vcmask 1041409
    %v8529 = vsel %vm8528, %v7981, %v7978
    %vm8530 = vcmask 1042434
    %v8531 = vsel %vm8530, %v7984, %v8529
    %vm8532 = vcmask 1043459
    %v8533 = vsel %vm8532, %v7987, %v8531
    %vm8534 = vcmask 1044484
    %v8535 = vsel %vm8534, %v7990, %v8533
    %vm8536 = vcmask 1045509
    %v8537 = vsel %vm8536, %v7993, %v8535
    %vm8538 = vcmask 1046534
    %v8539 = vsel %vm8538, %v7996, %v8537
    %vm8540 = vcmask 1047559
    %v8541 = vsel %vm8540, %v7999, %v8539
    %v8542 = vsel %vm8528, %v8005, %v8002
    %v8543 = vsel %vm8530, %v8008, %v8542
    %v8544 = vsel %vm8532, %v8011, %v8543
    %v8545 = vsel %vm8534, %v8014, %v8544
    %v8546 = vsel %vm8536, %v8017, %v8545
    %v8547 = vsel %vm8538, %v8020, %v8546
    %v8548 = vsel %vm8540, %v8023, %v8547
    %v8549 = vsel %vm8528, %v8029, %v8026
    %v8550 = vsel %vm8530, %v8032, %v8549
    %v8551 = vsel %vm8532, %v8035, %v8550
    %v8552 = vsel %vm8534, %v8038, %v8551
    %v8553 = vsel %vm8536, %v8041, %v8552
    %v8554 = vsel %vm8538, %v8044, %v8553
    %v8555 = vsel %vm8540, %v8047, %v8554
    %v8556 = vsel %vm8528, %v8053, %v8050
    %v8557 = vsel %vm8530, %v8056, %v8556
    %v8558 = vsel %vm8532, %v8059, %v8557
    %v8559 = vsel %vm8534, %v8062, %v8558
    %v8560 = vsel %vm8536, %v8065, %v8559
    %v8561 = vsel %vm8538, %v8068, %v8560
    %v8562 = vsel %vm8540, %v8071, %v8561
    %v8563 = vsel %vm8528, %v8077, %v8074
    %v8564 = vsel %vm8530, %v8080, %v8563
    %v8565 = vsel %vm8532, %v8083, %v8564
    %v8566 = vsel %vm8534, %v8086, %v8565
    %v8567 = vsel %vm8536, %v8089, %v8566
    %v8568 = vsel %vm8538, %v8092, %v8567
    %v8569 = vsel %vm8540, %v8095, %v8568
    %v8570 = vsel %vm8528, %v8101, %v8098
    %v8571 = vsel %vm8530, %v8104, %v8570
    %v8572 = vsel %vm8532, %v8107, %v8571
    %v8573 = vsel %vm8534, %v8110, %v8572
    %v8574 = vsel %vm8536, %v8113, %v8573
    %v8575 = vsel %vm8538, %v8116, %v8574
    %v8576 = vsel %vm8540, %v8119, %v8575
    %v8577 = vsel %vm8528, %v8125, %v8122
    %v8578 = vsel %vm8530, %v8128, %v8577
    %v8579 = vsel %vm8532, %v8131, %v8578
    %v8580 = vsel %vm8534, %v8134, %v8579
    %v8581 = vsel %vm8536, %v8137, %v8580
    %v8582 = vsel %vm8538, %v8140, %v8581
    %v8583 = vsel %vm8540, %v8143, %v8582
    %v8584 = vsel %vm8528, %v8149, %v8146
    %v8585 = vsel %vm8530, %v8152, %v8584
    %v8586 = vsel %vm8532, %v8155, %v8585
    %v8587 = vsel %vm8534, %v8158, %v8586
    %v8588 = vsel %vm8536, %v8161, %v8587
    %v8589 = vsel %vm8538, %v8164, %v8588
    %v8590 = vsel %vm8540, %v8167, %v8589
    %v8591 = vsel %vm8528, %v8173, %v8170
    %v8592 = vsel %vm8530, %v8176, %v8591
    %v8593 = vsel %vm8532, %v8179, %v8592
    %v8594 = vsel %vm8534, %v8182, %v8593
    %v8595 = vsel %vm8536, %v8185, %v8594
    %v8596 = vsel %vm8538, %v8188, %v8595
    %v8597 = vsel %vm8540, %v8191, %v8596
    %v8598 = vsel %vm8528, %v8197, %v8194
    %v8599 = vsel %vm8530, %v8200, %v8598
    %v8600 = vsel %vm8532, %v8203, %v8599
    %v8601 = vsel %vm8534, %v8206, %v8600
    %v8602 = vsel %vm8536, %v8209, %v8601
    %v8603 = vsel %vm8538, %v8212, %v8602
    %v8604 = vsel %vm8540, %v8215, %v8603
    %v8605 = vsel %vm8528, %v8221, %v8218
    %v8606 = vsel %vm8530, %v8224, %v8605
    %v8607 = vsel %vm8532, %v8227, %v8606
    %v8608 = vsel %vm8534, %v8230, %v8607
    %v8609 = vsel %vm8536, %v8233, %v8608
    %v8610 = vsel %vm8538, %v8236, %v8609
    %v8611 = vsel %vm8540, %v8239, %v8610
    %v8612 = vsel %vm8528, %v8245, %v8242
    %v8613 = vsel %vm8530, %v8248, %v8612
    %v8614 = vsel %vm8532, %v8251, %v8613
    %v8615 = vsel %vm8534, %v8254, %v8614
    %v8616 = vsel %vm8536, %v8257, %v8615
    %v8617 = vsel %vm8538, %v8260, %v8616
    %v8618 = vsel %vm8540, %v8263, %v8617
    %v8619 = vsel %vm8528, %v8269, %v8266
    %v8620 = vsel %vm8530, %v8272, %v8619
    %v8621 = vsel %vm8532, %v8275, %v8620
    %v8622 = vsel %vm8534, %v8278, %v8621
    %v8623 = vsel %vm8536, %v8281, %v8622
    %v8624 = vsel %vm8538, %v8284, %v8623
    %v8625 = vsel %vm8540, %v8287, %v8624
    %v8626 = vsel %vm8528, %v8293, %v8290
    %v8627 = vsel %vm8530, %v8296, %v8626
    %v8628 = vsel %vm8532, %v8299, %v8627
    %v8629 = vsel %vm8534, %v8302, %v8628
    %v8630 = vsel %vm8536, %v8305, %v8629
    %v8631 = vsel %vm8538, %v8308, %v8630
    %v8632 = vsel %vm8540, %v8311, %v8631
    %v8633 = vsel %vm8528, %v8317, %v8314
    %v8634 = vsel %vm8530, %v8320, %v8633
    %v8635 = vsel %vm8532, %v8323, %v8634
    %v8636 = vsel %vm8534, %v8326, %v8635
    %v8637 = vsel %vm8536, %v8329, %v8636
    %v8638 = vsel %vm8538, %v8332, %v8637
    %v8639 = vsel %vm8540, %v8335, %v8638
    %v8640 = vsel %vm8528, %v8341, %v8338
    %v8641 = vsel %vm8530, %v8344, %v8640
    %v8642 = vsel %vm8532, %v8347, %v8641
    %v8643 = vsel %vm8534, %v8350, %v8642
    %v8644 = vsel %vm8536, %v8353, %v8643
    %v8645 = vsel %vm8538, %v8356, %v8644
    %v8646 = vsel %vm8540, %v8359, %v8645
    %s8663 = scalar_lea.vmem [#allocation2], 16
    %8664 = vst.msk [vmem:[%s8663 + $0x1] sm:$0xff] %vm7975, %v8541
    %8665 = vst.msk [vmem:[%s8663 + $0x11] sm:$0xff] %vm7975, %v8548
    %8666 = vst.msk [vmem:[%s8663 + $0x21] sm:$0xff] %vm7975, %v8555
    %8667 = vst.msk [vmem:[%s8663 + $0x31] sm:$0xff] %vm7975, %v8562
    %8668 = vst.msk [vmem:[%s8663 + $0x41] sm:$0xff] %vm7975, %v8569
    %8669 = vst.msk [vmem:[%s8663 + $0x51] sm:$0xff] %vm7975, %v8576
    %8670 = vst.msk [vmem:[%s8663 + $0x61] sm:$0xff] %vm7975, %v8583
    %8671 = vst.msk [vmem:[%s8663 + $0x71] sm:$0xff] %vm7975, %v8590
    %8672 = vst.msk [vmem:[%s8663 + $0xa1] sm:$0xff] %vm7975, %v8597
    %8673 = vst.msk [vmem:[%s8663 + $0xb1] sm:$0xff] %vm7975, %v8604
    %8674 = vst.msk [vmem:[%s8663 + $0xc1] sm:$0xff] %vm7975, %v8611
    %8675 = vst.msk [vmem:[%s8663 + $0xd1] sm:$0xff] %vm7975, %v8618
    %8676 = vst.msk [vmem:[%s8663 + $0xe1] sm:$0xff] %vm7975, %v8625
    %8677 = vst.msk [vmem:[%s8663 + $0xf1] sm:$0xff] %vm7975, %v8632
    %8678 = vst.msk [vmem:[%s8663 + $0x101] sm:$0xff] %vm7975, %v8639
    %8679 = vst.msk [vmem:[%s8663 + $0x111] sm:$0xff] %vm7975, %v8646
    %v8680 = vld [vmem:[#allocation2] sm:$0xff]
    %v8681 = vld [vmem:[#allocation2 + $0x10] sm:$0xff]
    %v8682 = vld [vmem:[#allocation2 + $0x20] sm:$0xff]
    %v8683 = vld [vmem:[#allocation2 + $0x30] sm:$0xff]
    %v8684 = vld [vmem:[#allocation2 + $0x40] sm:$0xff]
    %v8685 = vld [vmem:[#allocation2 + $0x50] sm:$0xff]
    %v8686 = vld [vmem:[#allocation2 + $0x60] sm:$0xff]
    %v8687 = vld [vmem:[#allocation2 + $0x70] sm:$0xff]
    %v8688 = vld [vmem:[#allocation2 + $0xa0] sm:$0xff]
    %v8689 = vld [vmem:[#allocation2 + $0xb0] sm:$0xff]
    %v8690 = vld [vmem:[#allocation2 + $0xc0] sm:$0xff]
    %v8691 = vld [vmem:[#allocation2 + $0xd0] sm:$0xff]
    %v8692 = vld [vmem:[#allocation2 + $0xe0] sm:$0xff]
    %v8693 = vld [vmem:[#allocation2 + $0xf0] sm:$0xff]
    %v8694 = vld [vmem:[#allocation2 + $0x100] sm:$0xff]
    %v8695 = vld [vmem:[#allocation2 + $0x110] sm:$0xff]
    %v8696 = vpack.c.bf16 %v8681, %v8680
    %v8697 = vpack.c.bf16 %v8683, %v8682
    %v8698 = vpack.c.bf16 %v8685, %v8684
    %v8699 = vpack.c.bf16 %v8687, %v8686
    %v8700 = vpack.c.bf16 %v8689, %v8688
    %v8701 = vpack.c.bf16 %v8691, %v8690
    %v8702 = vpack.c.bf16 %v8693, %v8692
    %v8703 = vpack.c.bf16 %v8695, %v8694
    %v8704 = vld [vmem:[%s3] sm:$0xf]
    %v8705 = vld [vmem:[#allocation2 + $0x1] sm:$0xff]
    %v8706 = vld [vmem:[#allocation2 + $0x11] sm:$0xff]
    %v8707 = vld [vmem:[#allocation2 + $0x21] sm:$0xff]
    %v8708 = vld [vmem:[#allocation2 + $0x31] sm:$0xff]
    %v8709 = vld [vmem:[#allocation2 + $0x41] sm:$0xff]
    %v8710 = vld [vmem:[#allocation2 + $0x51] sm:$0xff]
    %v8711 = vld [vmem:[#allocation2 + $0x61] sm:$0xff]
    %v8712 = vld [vmem:[#allocation2 + $0x71] sm:$0xff]
    %v8713 = vld [vmem:[#allocation2 + $0xa1] sm:$0xff]
    %v8714 = vld [vmem:[#allocation2 + $0xb1] sm:$0xff]
    %v8715 = vld [vmem:[#allocation2 + $0xc1] sm:$0xff]
    %v8716 = vld [vmem:[#allocation2 + $0xd1] sm:$0xff]
    %v8717 = vld [vmem:[#allocation2 + $0xe1] sm:$0xff]
    %v8718 = vld [vmem:[#allocation2 + $0xf1] sm:$0xff]
    %v8719 = vld [vmem:[#allocation2 + $0x101] sm:$0xff]
    %v8720 = vld [vmem:[#allocation2 + $0x111] sm:$0xff]
    %v8721 = vpack.c.bf16 %v8706, %v8705
    %v8722 = vpack.c.bf16 %v8708, %v8707
    %v8723 = vpack.c.bf16 %v8710, %v8709
    %v8724 = vpack.c.bf16 %v8712, %v8711
    %v8725 = vpack.c.bf16 %v8714, %v8713
    %v8726 = vpack.c.bf16 %v8716, %v8715
    %v8727 = vpack.c.bf16 %v8718, %v8717
    %v8728 = vpack.c.bf16 %v8720, %v8719
    %s8729 = scalar_lea.vmem %s3, 4
    %v8730 = vld [vmem:[%s8729] sm:$0xf]
    %v8732 = vsel %vm7975, %v8721, 0
    %v8735 = vsel %vm7975, %v8722, 0
    %v8738 = vsel %vm7975, %v8723, 0
    %v8741 = vsel %vm7975, %v8724, 0
    %v8744 = vsel %vm7975, %v8725, 0
    %v8747 = vsel %vm7975, %v8726, 0
    %v8750 = vsel %vm7975, %v8727, 0
    %v8753 = vsel %vm7975, %v8728, 0
    %vm8755 = vcmask 1043456
    %v8757 = vsel %vm8755, %v8730, 0
    %8759 = vmatprep.subr.bf16.mxu0 0
    %8760 = vmatpush1.bf16.msra.mxu0 %v8757
    %8761 = vmatprep.subr.bf16.mxu0 0
    %8762 = vmatpush1.bf16.msra.mxu0 0
    %8763 = vmatprep.subr.bf16.mxu0 0
    %8764 = vmatpush1.bf16.msra.mxu0 0
    %8765 = vmatprep.subr.bf16.mxu0 0
    %8766 = vmatpush1.bf16.msra.mxu0 0
    %8767 = vmatprep.subr.bf16.mxu0 0
    %8768 = vmatpush1.bf16.msra.mxu0 0
    %8769 = vmatprep.subr.bf16.mxu0 0
    %8770 = vmatpush1.bf16.msra.mxu0 0
    %8771 = vmatprep.subr.bf16.mxu0 0
    %8772 = vmatpush1.bf16.msra.mxu0 0
    %8773 = vmatprep.subr.bf16.mxu0 0
    %8774 = vmatpush1.bf16.msra.mxu0 0
    %8775 = vmatprep.subr.bf16.mxu0 0
    %8776 = vmatpush1.bf16.msra.mxu0 0
    %8777 = vmatprep.subr.bf16.mxu0 0
    %8778 = vmatpush1.bf16.msra.mxu0 0
    %8779 = vmatprep.subr.bf16.mxu0 0
    %8780 = vmatpush1.bf16.msra.mxu0 0
    %8781 = vmatprep.subr.bf16.mxu0 0
    %8782 = vmatpush1.bf16.msra.mxu0 0
    %8783 = vmatprep.subr.bf16.mxu0 0
    %8784 = vmatpush1.bf16.msra.mxu0 0
    %8785 = vmatprep.subr.bf16.mxu0 0
    %8786 = vmatpush1.bf16.msra.mxu0 0
    %8787 = vmatprep.subr.bf16.mxu0 0
    %8788 = vmatpush1.bf16.msra.mxu0 0
    %8789 = vmatprep.subr.bf16.mxu0 0
    %8790 = vmatpush1.bf16.msra.mxu0 0
    %8791 = vmatprep.mubr.bf16.mxu0 0
    %8792 = vmatmul.mubr.bf16.gmra.mrb[0].mxu0 %v8732
    %v8793 = vpop.f32.mrb[0].mxu0
    %v8794 = vadd.f32 0.0, %v8793
    %v8795 = vpop.f32.mrb[0].mxu0
    %v8796 = vpop.f32.mrb[0].mxu0
    %v8797 = vadd.f32 0.0, %v8796
    %v8798 = vpop.f32.mrb[0].mxu0
    %8799 = vmatprep.mubr.bf16.mxu0 0
    %8800 = vmatmul.mubr.bf16.gmra.mrb[0].mxu0 %v8735
    %v8801 = vpop.f32.mrb[0].mxu0
    %v8802 = vadd.f32 0.0, %v8801
    %v8803 = vpop.f32.mrb[0].mxu0
    %v8804 = vpop.f32.mrb[0].mxu0
    %v8805 = vadd.f32 0.0, %v8804
    %v8806 = vpop.f32.mrb[0].mxu0
    %8807 = vmatprep.mubr.bf16.mxu0 0
    %8808 = vmatmul.mubr.bf16.gmra.mrb[0].mxu0 %v8738
    %v8809 = vpop.f32.mrb[0].mxu0
    %v8810 = vadd.f32 0.0, %v8809
    %v8811 = vpop.f32.mrb[0].mxu0
    %v8812 = vpop.f32.mrb[0].mxu0
    %v8813 = vadd.f32 0.0, %v8812
    %v8814 = vpop.f32.mrb[0].mxu0
    %8815 = vmatprep.mubr.bf16.mxu0 0
    %8816 = vmatmul.mubr.bf16.gmra.mrb[0].mxu0 %v8741
    %v8817 = vpop.f32.mrb[0].mxu0
    %v8818 = vadd.f32 0.0, %v8817
    %v8819 = vpop.f32.mrb[0].mxu0
    %v8820 = vpop.f32.mrb[0].mxu0
    %v8821 = vadd.f32 0.0, %v8820
    %v8822 = vpop.f32.mrb[0].mxu0
    %8823 = vmatprep.mubr.bf16.mxu0 0
    %8824 = vmatmul.mubr.bf16.gmra.mrb[0].mxu0 %v8744
    %v8825 = vpop.f32.mrb[0].mxu0
    %v8826 = vadd.f32 0.0, %v8825
    %v8827 = vpop.f32.mrb[0].mxu0
    %v8828 = vpop.f32.mrb[0].mxu0
    %v8829 = vadd.f32 0.0, %v8828
    %v8830 = vpop.f32.mrb[0].mxu0
    %8831 = vmatprep.mubr.bf16.mxu0 0
    %8832 = vmatmul.mubr.bf16.gmra.mrb[0].mxu0 %v8747
    %v8833 = vpop.f32.mrb[0].mxu0
    %v8834 = vadd.f32 0.0, %v8833
    %v8835 = vpop.f32.mrb[0].mxu0
    %v8836 = vpop.f32.mrb[0].mxu0
    %v8837 = vadd.f32 0.0, %v8836
    %v8838 = vpop.f32.mrb[0].mxu0
    %8839 = vmatprep.mubr.bf16.mxu0 0
    %8840 = vmatmul.mubr.bf16.gmra.mrb[0].mxu0 %v8750
    %v8841 = vpop.f32.mrb[0].mxu0
    %v8842 = vadd.f32 0.0, %v8841
    %v8843 = vpop.f32.mrb[0].mxu0
    %v8844 = vpop.f32.mrb[0].mxu0
    %v8845 = vadd.f32 0.0, %v8844
    %v8846 = vpop.f32.mrb[0].mxu0
    %8847 = vmatprep.mubr.bf16.mxu0 0
    %8848 = vmatmul.mubr.bf16.gmra.mrb[0].mxu0 %v8753
    %v8849 = vpop.f32.mrb[0].mxu0
    %v8850 = vadd.f32 0.0, %v8849
    %v8851 = vpop.f32.mrb[0].mxu0
    %v8852 = vpop.f32.mrb[0].mxu0
    %v8853 = vadd.f32 0.0, %v8852
    %v8854 = vpop.f32.mrb[0].mxu0
    %8855 = vdwg.mxu0
    %v8857 = vsel %vm7975, %v8696, 0
    %v8860 = vsel %vm7975, %v8697, 0
    %v8863 = vsel %vm7975, %v8698, 0
    %v8866 = vsel %vm7975, %v8699, 0
    %v8869 = vsel %vm7975, %v8700, 0
    %v8872 = vsel %vm7975, %v8701, 0
    %v8875 = vsel %vm7975, %v8702, 0
    %v8878 = vsel %vm7975, %v8703, 0
    %v8881 = vsel %vm8755, %v8704, 0
    %8883 = vmatprep.subr.bf16.mxu0 0
    %8884 = vmatpush1.bf16.msra.mxu0 %v8881
    %8885 = vmatprep.subr.bf16.mxu0 0
    %8886 = vmatpush1.bf16.msra.mxu0 0
    %8887 = vmatprep.subr.bf16.mxu0 0
    %8888 = vmatpush1.bf16.msra.mxu0 0
    %8889 = vmatprep.subr.bf16.mxu0 0
    %8890 = vmatpush1.bf16.msra.mxu0 0
    %8891 = vmatprep.subr.bf16.mxu0 0
    %8892 = vmatpush1.bf16.msra.mxu0 0
    %8893 = vmatprep.subr.bf16.mxu0 0
    %8894 = vmatpush1.bf16.msra.mxu0 0
    %8895 = vmatprep.subr.bf16.mxu0 0
    %8896 = vmatpush1.bf16.msra.mxu0 0
    %8897 = vmatprep.subr.bf16.mxu0 0
    %8898 = vmatpush1.bf16.msra.mxu0 0
    %8899 = vmatprep.subr.bf16.mxu0 0
    %8900 = vmatpush1.bf16.msra.mxu0 0
    %8901 = vmatprep.subr.bf16.mxu0 0
    %8902 = vmatpush1.bf16.msra.mxu0 0
    %8903 = vmatprep.subr.bf16.mxu0 0
    %8904 = vmatpush1.bf16.msra.mxu0 0
    %8905 = vmatprep.subr.bf16.mxu0 0
    %8906 = vmatpush1.bf16.msra.mxu0 0
    %8907 = vmatprep.subr.bf16.mxu0 0
    %8908 = vmatpush1.bf16.msra.mxu0 0
    %8909 = vmatprep.subr.bf16.mxu0 0
    %8910 = vmatpush1.bf16.msra.mxu0 0
    %8911 = vmatprep.subr.bf16.mxu0 0
    %8912 = vmatpush1.bf16.msra.mxu0 0
    %8913 = vmatprep.subr.bf16.mxu0 0
    %8914 = vmatpush1.bf16.msra.mxu0 0
    %8915 = vmatprep.mubr.bf16.mxu0 0
    %8916 = vmatmul.mubr.bf16.gmra.mrb[0].mxu0 %v8857
    %v8917 = vpop.f32.mrb[0].mxu0
    %v8918 = vadd.f32 %v8794, %v8917
    %v8919 = vpop.f32.mrb[0].mxu0
    %v8920 = vpop.f32.mrb[0].mxu0
    %v8921 = vadd.f32 %v8797, %v8920
    %v8922 = vpop.f32.mrb[0].mxu0
    %8923 = vmatprep.mubr.bf16.mxu0 0
    %8924 = vmatmul.mubr.bf16.gmra.mrb[0].mxu0 %v8860
    %v8925 = vpop.f32.mrb[0].mxu0
    %v8926 = vadd.f32 %v8802, %v8925
    %v8927 = vpop.f32.mrb[0].mxu0
    %v8928 = vpop.f32.mrb[0].mxu0
    %v8929 = vadd.f32 %v8805, %v8928
    %v8930 = vpop.f32.mrb[0].mxu0
    %8931 = vmatprep.mubr.bf16.mxu0 0
    %8932 = vmatmul.mubr.bf16.gmra.mrb[0].mxu0 %v8863
    %v8933 = vpop.f32.mrb[0].mxu0
    %v8934 = vadd.f32 %v8810, %v8933
    %v8935 = vpop.f32.mrb[0].mxu0
    %v8936 = vpop.f32.mrb[0].mxu0
    %v8937 = vadd.f32 %v8813, %v8936
    %v8938 = vpop.f32.mrb[0].mxu0
    %8939 = vmatprep.mubr.bf16.mxu0 0
    %8940 = vmatmul.mubr.bf16.gmra.mrb[0].mxu0 %v8866
    %v8941 = vpop.f32.mrb[0].mxu0
    %v8942 = vadd.f32 %v8818, %v8941
    %v8943 = vpop.f32.mrb[0].mxu0
    %v8944 = vpop.f32.mrb[0].mxu0
    %v8945 = vadd.f32 %v8821, %v8944
    %v8946 = vpop.f32.mrb[0].mxu0
    %8947 = vmatprep.mubr.bf16.mxu0 0
    %8948 = vmatmul.mubr.bf16.gmra.mrb[0].mxu0 %v8869
    %v8949 = vpop.f32.mrb[0].mxu0
    %v8950 = vadd.f32 %v8826, %v8949
    %v8951 = vpop.f32.mrb[0].mxu0
    %v8952 = vpop.f32.mrb[0].mxu0
    %v8953 = vadd.f32 %v8829, %v8952
    %v8954 = vpop.f32.mrb[0].mxu0
    %8955 = vmatprep.mubr.bf16.mxu0 0
    %8956 = vmatmul.mubr.bf16.gmra.mrb[0].mxu0 %v8872
    %v8957 = vpop.f32.mrb[0].mxu0
    %v8958 = vadd.f32 %v8834, %v8957
    %v8959 = vpop.f32.mrb[0].mxu0
    %v8960 = vpop.f32.mrb[0].mxu0
    %v8961 = vadd.f32 %v8837, %v8960
    %v8962 = vpop.f32.mrb[0].mxu0
    %8963 = vmatprep.mubr.bf16.mxu0 0
    %8964 = vmatmul.mubr.bf16.gmra.mrb[0].mxu0 %v8875
    %v8965 = vpop.f32.mrb[0].mxu0
    %v8966 = vadd.f32 %v8842, %v8965
    %v8967 = vpop.f32.mrb[0].mxu0
    %v8968 = vpop.f32.mrb[0].mxu0
    %v8969 = vadd.f32 %v8845, %v8968
    %v8970 = vpop.f32.mrb[0].mxu0
    %8971 = vmatprep.mubr.bf16.mxu0 0
    %8972 = vmatmul.mubr.bf16.gmra.mrb[0].mxu0 %v8878
    %v8973 = vpop.f32.mrb[0].mxu0
    %v8974 = vadd.f32 %v8850, %v8973
    %v8975 = vpop.f32.mrb[0].mxu0
    %v8976 = vpop.f32.mrb[0].mxu0
    %v8977 = vadd.f32 %v8853, %v8976
    %v8978 = vpop.f32.mrb[0].mxu0
    %8979 = vdwg.mxu0
    %v8980 = vld [vmem:[#allocation2 + $0x2] sm:$0xff]
    %v8981 = vld [vmem:[#allocation2 + $0x12] sm:$0xff]
    %v8982 = vld [vmem:[#allocation2 + $0x22] sm:$0xff]
    %v8983 = vld [vmem:[#allocation2 + $0x32] sm:$0xff]
    %v8984 = vld [vmem:[#allocation2 + $0x42] sm:$0xff]
    %v8985 = vld [vmem:[#allocation2 + $0x52] sm:$0xff]
    %v8986 = vld [vmem:[#allocation2 + $0x62] sm:$0xff]
    %v8987 = vld [vmem:[#allocation2 + $0x72] sm:$0xff]
    %v8988 = vld [vmem:[#allocation2 + $0xa2] sm:$0xff]
    %v8989 = vld [vmem:[#allocation2 + $0xb2] sm:$0xff]
    %v8990 = vld [vmem:[#allocation2 + $0xc2] sm:$0xff]
    %v8991 = vld [vmem:[#allocation2 + $0xd2] sm:$0xff]
    %v8992 = vld [vmem:[#allocation2 + $0xe2] sm:$0xff]
    %v8993 = vld [vmem:[#allocation2 + $0xf2] sm:$0xff]
    %v8994 = vld [vmem:[#allocation2 + $0x102] sm:$0xff]
    %v8995 = vld [vmem:[#allocation2 + $0x112] sm:$0xff]
    %v8996 = vpack.c.bf16 %v8981, %v8980
    %v8997 = vpack.c.bf16 %v8983, %v8982
    %v8998 = vpack.c.bf16 %v8985, %v8984
    %v8999 = vpack.c.bf16 %v8987, %v8986
    %v9000 = vpack.c.bf16 %v8989, %v8988
    %v9001 = vpack.c.bf16 %v8991, %v8990
    %v9002 = vpack.c.bf16 %v8993, %v8992
    %v9003 = vpack.c.bf16 %v8995, %v8994
    %s9004 = scalar_lea.vmem %s3, 8
    %v9005 = vld [vmem:[%s9004] sm:$0xf]
    %v9007 = vsel %vm7975, %v8996, 0
    %v9010 = vsel %vm7975, %v8997, 0
    %v9013 = vsel %vm7975, %v8998, 0
    %v9016 = vsel %vm7975, %v8999, 0
    %v9019 = vsel %vm7975, %v9000, 0
    %v9022 = vsel %vm7975, %v9001, 0
    %v9025 = vsel %vm7975, %v9002, 0
    %v9028 = vsel %vm7975, %v9003, 0
    %v9031 = vsel %vm8755, %v9005, 0
    %9033 = vmatprep.subr.bf16.mxu0 0
    %9034 = vmatpush1.bf16.msra.mxu0 %v9031
    %9035 = vmatprep.subr.bf16.mxu0 0
    %9036 = vmatpush1.bf16.msra.mxu0 0
    %9037 = vmatprep.subr.bf16.mxu0 0
    %9038 = vmatpush1.bf16.msra.mxu0 0
    %9039 = vmatprep.subr.bf16.mxu0 0
    %9040 = vmatpush1.bf16.msra.mxu0 0
    %9041 = vmatprep.subr.bf16.mxu0 0
    %9042 = vmatpush1.bf16.msra.mxu0 0
    %9043 = vmatprep.subr.bf16.mxu0 0
    %9044 = vmatpush1.bf16.msra.mxu0 0
    %9045 = vmatprep.subr.bf16.mxu0 0
    %9046 = vmatpush1.bf16.msra.mxu0 0
    %9047 = vmatprep.subr.bf16.mxu0 0
    %9048 = vmatpush1.bf16.msra.mxu0 0
    %9049 = vmatprep.subr.bf16.mxu0 0
    %9050 = vmatpush1.bf16.msra.mxu0 0
    %9051 = vmatprep.subr.bf16.mxu0 0
    %9052 = vmatpush1.bf16.msra.mxu0 0
    %9053 = vmatprep.subr.bf16.mxu0 0
    %9054 = vmatpush1.bf16.msra.mxu0 0
    %9055 = vmatprep.subr.bf16.mxu0 0
    %9056 = vmatpush1.bf16.msra.mxu0 0
    %9057 = vmatprep.subr.bf16.mxu0 0
    %9058 = vmatpush1.bf16.msra.mxu0 0
    %9059 = vmatprep.subr.bf16.mxu0 0
    %9060 = vmatpush1.bf16.msra.mxu0 0
    %9061 = vmatprep.subr.bf16.mxu0 0
    %9062 = vmatpush1.bf16.msra.mxu0 0
    %9063 = vmatprep.subr.bf16.mxu0 0
    %9064 = vmatpush1.bf16.msra.mxu0 0
    %9065 = vmatprep.mubr.bf16.mxu0 0
    %9066 = vmatmul.mubr.bf16.gmra.mrb[0].mxu0 %v9007
    %v9067 = vpop.f32.mrb[0].mxu0
    %v9068 = vadd.f32 0.0, %v9067
    %v9069 = vpop.f32.mrb[0].mxu0
    %v9070 = vpop.f32.mrb[0].mxu0
    %v9071 = vadd.f32 0.0, %v9070
    %v9072 = vpop.f32.mrb[0].mxu0
    %9073 = vmatprep.mubr.bf16.mxu0 0
    %9074 = vmatmul.mubr.bf16.gmra.mrb[0].mxu0 %v9010
    %v9075 = vpop.f32.mrb[0].mxu0
    %v9076 = vadd.f32 0.0, %v9075
    %v9077 = vpop.f32.mrb[0].mxu0
    %v9078 = vpop.f32.mrb[0].mxu0
    %v9079 = vadd.f32 0.0, %v9078
    %v9080 = vpop.f32.mrb[0].mxu0
    %9081 = vmatprep.mubr.bf16.mxu0 0
    %9082 = vmatmul.mubr.bf16.gmra.mrb[0].mxu0 %v9013
    %v9083 = vpop.f32.mrb[0].mxu0
    %v9084 = vadd.f32 0.0, %v9083
    %v9085 = vpop.f32.mrb[0].mxu0
    %v9086 = vpop.f32.mrb[0].mxu0
    %v9087 = vadd.f32 0.0, %v9086
    %v9088 = vpop.f32.mrb[0].mxu0
    %9089 = vmatprep.mubr.bf16.mxu0 0
    %9090 = vmatmul.mubr.bf16.gmra.mrb[0].mxu0 %v9016
    %v9091 = vpop.f32.mrb[0].mxu0
    %v9092 = vadd.f32 0.0, %v9091
    %v9093 = vpop.f32.mrb[0].mxu0
    %v9094 = vpop.f32.mrb[0].mxu0
    %v9095 = vadd.f32 0.0, %v9094
    %v9096 = vpop.f32.mrb[0].mxu0
    %9097 = vmatprep.mubr.bf16.mxu0 0
    %9098 = vmatmul.mubr.bf16.gmra.mrb[0].mxu0 %v9019
    %v9099 = vpop.f32.mrb[0].mxu0
    %v9100 = vadd.f32 0.0, %v9099
    %v9101 = vpop.f32.mrb[0].mxu0
    %v9102 = vpop.f32.mrb[0].mxu0
    %v9103 = vadd.f32 0.0, %v9102
    %v9104 = vpop.f32.mrb[0].mxu0
    %9105 = vmatprep.mubr.bf16.mxu0 0
    %9106 = vmatmul.mubr.bf16.gmra.mrb[0].mxu0 %v9022
    %v9107 = vpop.f32.mrb[0].mxu0
    %v9108 = vadd.f32 0.0, %v9107
    %v9109 = vpop.f32.mrb[0].mxu0
    %v9110 = vpop.f32.mrb[0].mxu0
    %v9111 = vadd.f32 0.0, %v9110
    %v9112 = vpop.f32.mrb[0].mxu0
    %9113 = vmatprep.mubr.bf16.mxu0 0
    %9114 = vmatmul.mubr.bf16.gmra.mrb[0].mxu0 %v9025
    %v9115 = vpop.f32.mrb[0].mxu0
    %v9116 = vadd.f32 0.0, %v9115
    %v9117 = vpop.f32.mrb[0].mxu0
    %v9118 = vpop.f32.mrb[0].mxu0
    %v9119 = vadd.f32 0.0, %v9118
    %v9120 = vpop.f32.mrb[0].mxu0
    %9121 = vmatprep.mubr.bf16.mxu0 0
    %9122 = vmatmul.mubr.bf16.gmra.mrb[0].mxu0 %v9028
    %v9123 = vpop.f32.mrb[0].mxu0
    %v9124 = vadd.f32 0.0, %v9123
    %v9125 = vpop.f32.mrb[0].mxu0
    %v9126 = vpop.f32.mrb[0].mxu0
    %v9127 = vadd.f32 0.0, %v9126
    %v9128 = vpop.f32.mrb[0].mxu0
    %9129 = vdwg.mxu0
    %v9130 = vadd.f32 %v8918, %v9068
    %v9131 = vadd.f32 %v8921, %v9071
    %v9132 = vadd.f32 %v8926, %v9076
    %v9133 = vadd.f32 %v8929, %v9079
    %v9134 = vadd.f32 %v8934, %v9084
    %v9135 = vadd.f32 %v8937, %v9087
    %v9136 = vadd.f32 %v8942, %v9092
    %v9137 = vadd.f32 %v8945, %v9095
    %v9138 = vadd.f32 %v8950, %v9100
    %v9139 = vadd.f32 %v8953, %v9103
    %v9140 = vadd.f32 %v8958, %v9108
    %v9141 = vadd.f32 %v8961, %v9111
    %v9142 = vadd.f32 %v8966, %v9116
    %v9143 = vadd.f32 %v8969, %v9119
    %v9144 = vadd.f32 %v8974, %v9124
    %v9145 = vadd.f32 %v8977, %v9127
    %v9146 = vld [vmem:[%s8663] sm:$0xff]
    %v9147 = vld [vmem:[%s8663 + $0x10] sm:$0xff]
    %v9148 = vld [vmem:[%s8663 + $0x20] sm:$0xff]
    %v9149 = vld [vmem:[%s8663 + $0x30] sm:$0xff]
    %v9150 = vld [vmem:[%s8663 + $0x40] sm:$0xff]
    %v9151 = vld [vmem:[%s8663 + $0x50] sm:$0xff]
    %v9152 = vld [vmem:[%s8663 + $0x60] sm:$0xff]
    %v9153 = vld [vmem:[%s8663 + $0x70] sm:$0xff]
    %v9154 = vld [vmem:[%s8663 + $0xa0] sm:$0xff]
    %v9155 = vld [vmem:[%s8663 + $0xb0] sm:$0xff]
    %v9156 = vld [vmem:[%s8663 + $0xc0] sm:$0xff]
    %v9157 = vld [vmem:[%s8663 + $0xd0] sm:$0xff]
    %v9158 = vld [vmem:[%s8663 + $0xe0] sm:$0xff]
    %v9159 = vld [vmem:[%s8663 + $0xf0] sm:$0xff]
    %v9160 = vld [vmem:[%s8663 + $0x100] sm:$0xff]
    %v9161 = vld [vmem:[%s8663 + $0x110] sm:$0xff]
    %v9162 = vpack.c.bf16 %v9147, %v9146
    %v9163 = vpack.c.bf16 %v9149, %v9148
    %v9164 = vpack.c.bf16 %v9151, %v9150
    %v9165 = vpack.c.bf16 %v9153, %v9152
    %v9166 = vpack.c.bf16 %v9155, %v9154
    %v9167 = vpack.c.bf16 %v9157, %v9156
    %v9168 = vpack.c.bf16 %v9159, %v9158
    %v9169 = vpack.c.bf16 %v9161, %v9160
    %s9170 = scalar_lea.vmem %s3, 12
    %v9171 = vld [vmem:[%s9170] sm:$0xf]
    %v9173 = vsel %vm7975, %v9162, 0
    %v9176 = vsel %vm7975, %v9163, 0
    %v9179 = vsel %vm7975, %v9164, 0
    %v9182 = vsel %vm7975, %v9165, 0
    %v9185 = vsel %vm7975, %v9166, 0
    %v9188 = vsel %vm7975, %v9167, 0
    %v9191 = vsel %vm7975, %v9168, 0
    %v9194 = vsel %vm7975, %v9169, 0
    %v9197 = vsel %vm8755, %v9171, 0
    %9199 = vmatprep.subr.bf16.mxu0 0
    %9200 = vmatpush1.bf16.msra.mxu0 %v9197
    %9201 = vmatprep.subr.bf16.mxu0 0
    %9202 = vmatpush1.bf16.msra.mxu0 0
    %9203 = vmatprep.subr.bf16.mxu0 0
    %9204 = vmatpush1.bf16.msra.mxu0 0
    %9205 = vmatprep.subr.bf16.mxu0 0
    %9206 = vmatpush1.bf16.msra.mxu0 0
    %9207 = vmatprep.subr.bf16.mxu0 0
    %9208 = vmatpush1.bf16.msra.mxu0 0
    %9209 = vmatprep.subr.bf16.mxu0 0
    %9210 = vmatpush1.bf16.msra.mxu0 0
    %9211 = vmatprep.subr.bf16.mxu0 0
    %9212 = vmatpush1.bf16.msra.mxu0 0
    %9213 = vmatprep.subr.bf16.mxu0 0
    %9214 = vmatpush1.bf16.msra.mxu0 0
    %9215 = vmatprep.subr.bf16.mxu0 0
    %9216 = vmatpush1.bf16.msra.mxu0 0
    %9217 = vmatprep.subr.bf16.mxu0 0
    %9218 = vmatpush1.bf16.msra.mxu0 0
    %9219 = vmatprep.subr.bf16.mxu0 0
    %9220 = vmatpush1.bf16.msra.mxu0 0
    %9221 = vmatprep.subr.bf16.mxu0 0
    %9222 = vmatpush1.bf16.msra.mxu0 0
    %9223 = vmatprep.subr.bf16.mxu0 0
    %9224 = vmatpush1.bf16.msra.mxu0 0
    %9225 = vmatprep.subr.bf16.mxu0 0
    %9226 = vmatpush1.bf16.msra.mxu0 0
    %9227 = vmatprep.subr.bf16.mxu0 0
    %9228 = vmatpush1.bf16.msra.mxu0 0
    %9229 = vmatprep.subr.bf16.mxu0 0
    %9230 = vmatpush1.bf16.msra.mxu0 0
    %9231 = vmatprep.mubr.bf16.mxu0 0
    %9232 = vmatmul.mubr.bf16.gmra.mrb[0].mxu0 %v9173
    %v9233 = vpop.f32.mrb[0].mxu0
    %v9234 = vadd.f32 0.0, %v9233
    %v9235 = vpop.f32.mrb[0].mxu0
    %v9236 = vpop.f32.mrb[0].mxu0
    %v9237 = vadd.f32 0.0, %v9236
    %v9238 = vpop.f32.mrb[0].mxu0
    %9239 = vmatprep.mubr.bf16.mxu0 0
    %9240 = vmatmul.mubr.bf16.gmra.mrb[0].mxu0 %v9176
    %v9241 = vpop.f32.mrb[0].mxu0
    %v9242 = vadd.f32 0.0, %v9241
    %v9243 = vpop.f32.mrb[0].mxu0
    %v9244 = vpop.f32.mrb[0].mxu0
    %v9245 = vadd.f32 0.0, %v9244
    %v9246 = vpop.f32.mrb[0].mxu0
    %9247 = vmatprep.mubr.bf16.mxu0 0
    %9248 = vmatmul.mubr.bf16.gmra.mrb[0].mxu0 %v9179
    %v9249 = vpop.f32.mrb[0].mxu0
    %v9250 = vadd.f32 0.0, %v9249
    %v9251 = vpop.f32.mrb[0].mxu0
    %v9252 = vpop.f32.mrb[0].mxu0
    %v9253 = vadd.f32 0.0, %v9252
    %v9254 = vpop.f32.mrb[0].mxu0
    %9255 = vmatprep.mubr.bf16.mxu0 0
    %9256 = vmatmul.mubr.bf16.gmra.mrb[0].mxu0 %v9182
    %v9257 = vpop.f32.mrb[0].mxu0
    %v9258 = vadd.f32 0.0, %v9257
    %v9259 = vpop.f32.mrb[0].mxu0
    %v9260 = vpop.f32.mrb[0].mxu0
    %v9261 = vadd.f32 0.0, %v9260
    %v9262 = vpop.f32.mrb[0].mxu0
    %9263 = vmatprep.mubr.bf16.mxu0 0
    %9264 = vmatmul.mubr.bf16.gmra.mrb[0].mxu0 %v9185
    %v9265 = vpop.f32.mrb[0].mxu0
    %v9266 = vadd.f32 0.0, %v9265
    %v9267 = vpop.f32.mrb[0].mxu0
    %v9268 = vpop.f32.mrb[0].mxu0
    %v9269 = vadd.f32 0.0, %v9268
    %v9270 = vpop.f32.mrb[0].mxu0
    %9271 = vmatprep.mubr.bf16.mxu0 0
    %9272 = vmatmul.mubr.bf16.gmra.mrb[0].mxu0 %v9188
    %v9273 = vpop.f32.mrb[0].mxu0
    %v9274 = vadd.f32 0.0, %v9273
    %v9275 = vpop.f32.mrb[0].mxu0
    %v9276 = vpop.f32.mrb[0].mxu0
    %v9277 = vadd.f32 0.0, %v9276
    %v9278 = vpop.f32.mrb[0].mxu0
    %9279 = vmatprep.mubr.bf16.mxu0 0
    %9280 = vmatmul.mubr.bf16.gmra.mrb[0].mxu0 %v9191
    %v9281 = vpop.f32.mrb[0].mxu0
    %v9282 = vadd.f32 0.0, %v9281
    %v9283 = vpop.f32.mrb[0].mxu0
    %v9284 = vpop.f32.mrb[0].mxu0
    %v9285 = vadd.f32 0.0, %v9284
    %v9286 = vpop.f32.mrb[0].mxu0
    %9287 = vmatprep.mubr.bf16.mxu0 0
    %9288 = vmatmul.mubr.bf16.gmra.mrb[0].mxu0 %v9194
    %v9289 = vpop.f32.mrb[0].mxu0
    %v9290 = vadd.f32 0.0, %v9289
    %v9291 = vpop.f32.mrb[0].mxu0
    %v9292 = vpop.f32.mrb[0].mxu0
    %v9293 = vadd.f32 0.0, %v9292
    %v9294 = vpop.f32.mrb[0].mxu0
    %9295 = vdwg.mxu0
    %v9296 = vadd.f32 %v9130, %v9234
    %v9297 = vadd.f32 %v9131, %v9237
    %v9298 = vadd.f32 %v9132, %v9242
    %v9299 = vadd.f32 %v9133, %v9245
    %v9300 = vadd.f32 %v9134, %v9250
    %v9301 = vadd.f32 %v9135, %v9253
    %v9302 = vadd.f32 %v9136, %v9258
    %v9303 = vadd.f32 %v9137, %v9261
    %v9304 = vadd.f32 %v9138, %v9266
    %v9305 = vadd.f32 %v9139, %v9269
    %v9306 = vadd.f32 %v9140, %v9274
    %v9307 = vadd.f32 %v9141, %v9277
    %v9308 = vadd.f32 %v9142, %v9282
    %v9309 = vadd.f32 %v9143, %v9285
    %v9310 = vadd.f32 %v9144, %v9290
    %v9311 = vadd.f32 %v9145, %v9293
    %v9312 = vld [vmem:[%s8663 + $0x1] sm:$0xff]
    %v9313 = vld [vmem:[%s8663 + $0x11] sm:$0xff]
    %v9314 = vld [vmem:[%s8663 + $0x21] sm:$0xff]
    %v9315 = vld [vmem:[%s8663 + $0x31] sm:$0xff]
    %v9316 = vld [vmem:[%s8663 + $0x41] sm:$0xff]
    %v9317 = vld [vmem:[%s8663 + $0x51] sm:$0xff]
    %v9318 = vld [vmem:[%s8663 + $0x61] sm:$0xff]
    %v9319 = vld [vmem:[%s8663 + $0x71] sm:$0xff]
    %v9320 = vld [vmem:[%s8663 + $0xa1] sm:$0xff]
    %v9321 = vld [vmem:[%s8663 + $0xb1] sm:$0xff]
    %v9322 = vld [vmem:[%s8663 + $0xc1] sm:$0xff]
    %v9323 = vld [vmem:[%s8663 + $0xd1] sm:$0xff]
    %v9324 = vld [vmem:[%s8663 + $0xe1] sm:$0xff]
    %v9325 = vld [vmem:[%s8663 + $0xf1] sm:$0xff]
    %v9326 = vld [vmem:[%s8663 + $0x101] sm:$0xff]
    %v9327 = vld [vmem:[%s8663 + $0x111] sm:$0xff]
    %v9328 = vpack.c.bf16 %v9313, %v9312
    %v9329 = vpack.c.bf16 %v9315, %v9314
    %v9330 = vpack.c.bf16 %v9317, %v9316
    %v9331 = vpack.c.bf16 %v9319, %v9318
    %v9332 = vpack.c.bf16 %v9321, %v9320
    %v9333 = vpack.c.bf16 %v9323, %v9322
    %v9334 = vpack.c.bf16 %v9325, %v9324
    %v9335 = vpack.c.bf16 %v9327, %v9326
    %s9336 = scalar_lea.vmem %s3, 16
    %v9337 = vld [vmem:[%s9336] sm:$0xf]
    %v9339 = vsel %vm7975, %v9328, 0
    %v9342 = vsel %vm7975, %v9329, 0
    %v9345 = vsel %vm7975, %v9330, 0
    %v9348 = vsel %vm7975, %v9331, 0
    %v9351 = vsel %vm7975, %v9332, 0
    %v9354 = vsel %vm7975, %v9333, 0
    %v9357 = vsel %vm7975, %v9334, 0
    %v9360 = vsel %vm7975, %v9335, 0
    %v9363 = vsel %vm8755, %v9337, 0
    %9365 = vmatprep.subr.bf16.mxu0 0
    %9366 = vmatpush1.bf16.msra.mxu0 %v9363
    %9367 = vmatprep.subr.bf16.mxu0 0
    %9368 = vmatpush1.bf16.msra.mxu0 0
    %9369 = vmatprep.subr.bf16.mxu0 0
    %9370 = vmatpush1.bf16.msra.mxu0 0
    %9371 = vmatprep.subr.bf16.mxu0 0
    %9372 = vmatpush1.bf16.msra.mxu0 0
    %9373 = vmatprep.subr.bf16.mxu0 0
    %9374 = vmatpush1.bf16.msra.mxu0 0
    %9375 = vmatprep.subr.bf16.mxu0 0
    %9376 = vmatpush1.bf16.msra.mxu0 0
    %9377 = vmatprep.subr.bf16.mxu0 0
    %9378 = vmatpush1.bf16.msra.mxu0 0
    %9379 = vmatprep.subr.bf16.mxu0 0
    %9380 = vmatpush1.bf16.msra.mxu0 0
    %9381 = vmatprep.subr.bf16.mxu0 0
    %9382 = vmatpush1.bf16.msra.mxu0 0
    %9383 = vmatprep.subr.bf16.mxu0 0
    %9384 = vmatpush1.bf16.msra.mxu0 0
    %9385 = vmatprep.subr.bf16.mxu0 0
    %9386 = vmatpush1.bf16.msra.mxu0 0
    %9387 = vmatprep.subr.bf16.mxu0 0
    %9388 = vmatpush1.bf16.msra.mxu0 0
    %9389 = vmatprep.subr.bf16.mxu0 0
    %9390 = vmatpush1.bf16.msra.mxu0 0
    %9391 = vmatprep.subr.bf16.mxu0 0
    %9392 = vmatpush1.bf16.msra.mxu0 0
    %9393 = vmatprep.subr.bf16.mxu0 0
    %9394 = vmatpush1.bf16.msra.mxu0 0
    %9395 = vmatprep.subr.bf16.mxu0 0
    %9396 = vmatpush1.bf16.msra.mxu0 0
    %9397 = vmatprep.mubr.bf16.mxu0 0
    %9398 = vmatmul.mubr.bf16.gmra.mrb[0].mxu0 %v9339
    %v9399 = vpop.f32.mrb[0].mxu0
    %v9400 = vadd.f32 0.0, %v9399
    %v9401 = vpop.f32.mrb[0].mxu0
    %v9402 = vpop.f32.mrb[0].mxu0
    %v9403 = vadd.f32 0.0, %v9402
    %v9404 = vpop.f32.mrb[0].mxu0
    %9405 = vmatprep.mubr.bf16.mxu0 0
    %9406 = vmatmul.mubr.bf16.gmra.mrb[0].mxu0 %v9342
    %v9407 = vpop.f32.mrb[0].mxu0
    %v9408 = vadd.f32 0.0, %v9407
    %v9409 = vpop.f32.mrb[0].mxu0
    %v9410 = vpop.f32.mrb[0].mxu0
    %v9411 = vadd.f32 0.0, %v9410
    %v9412 = vpop.f32.mrb[0].mxu0
    %9413 = vmatprep.mubr.bf16.mxu0 0
    %9414 = vmatmul.mubr.bf16.gmra.mrb[0].mxu0 %v9345
    %v9415 = vpop.f32.mrb[0].mxu0
    %v9416 = vadd.f32 0.0, %v9415
    %v9417 = vpop.f32.mrb[0].mxu0
    %v9418 = vpop.f32.mrb[0].mxu0
    %v9419 = vadd.f32 0.0, %v9418
    %v9420 = vpop.f32.mrb[0].mxu0
    %9421 = vmatprep.mubr.bf16.mxu0 0
    %9422 = vmatmul.mubr.bf16.gmra.mrb[0].mxu0 %v9348
    %v9423 = vpop.f32.mrb[0].mxu0
    %v9424 = vadd.f32 0.0, %v9423
    %v9425 = vpop.f32.mrb[0].mxu0
    %v9426 = vpop.f32.mrb[0].mxu0
    %v9427 = vadd.f32 0.0, %v9426
    %v9428 = vpop.f32.mrb[0].mxu0
    %9429 = vmatprep.mubr.bf16.mxu0 0
    %9430 = vmatmul.mubr.bf16.gmra.mrb[0].mxu0 %v9351
    %v9431 = vpop.f32.mrb[0].mxu0
    %v9432 = vadd.f32 0.0, %v9431
    %v9433 = vpop.f32.mrb[0].mxu0
    %v9434 = vpop.f32.mrb[0].mxu0
    %v9435 = vadd.f32 0.0, %v9434
    %v9436 = vpop.f32.mrb[0].mxu0
    %9437 = vmatprep.mubr.bf16.mxu0 0
    %9438 = vmatmul.mubr.bf16.gmra.mrb[0].mxu0 %v9354
    %v9439 = vpop.f32.mrb[0].mxu0
    %v9440 = vadd.f32 0.0, %v9439
    %v9441 = vpop.f32.mrb[0].mxu0
    %v9442 = vpop.f32.mrb[0].mxu0
    %v9443 = vadd.f32 0.0, %v9442
    %v9444 = vpop.f32.mrb[0].mxu0
    %9445 = vmatprep.mubr.bf16.mxu0 0
    %9446 = vmatmul.mubr.bf16.gmra.mrb[0].mxu0 %v9357
    %v9447 = vpop.f32.mrb[0].mxu0
    %v9448 = vadd.f32 0.0, %v9447
    %v9449 = vpop.f32.mrb[0].mxu0
    %v9450 = vpop.f32.mrb[0].mxu0
    %v9451 = vadd.f32 0.0, %v9450
    %v9452 = vpop.f32.mrb[0].mxu0
    %9453 = vmatprep.mubr.bf16.mxu0 0
    %9454 = vmatmul.mubr.bf16.gmra.mrb[0].mxu0 %v9360
    %v9455 = vpop.f32.mrb[0].mxu0
    %v9456 = vadd.f32 0.0, %v9455
    %v9457 = vpop.f32.mrb[0].mxu0
    %v9458 = vpop.f32.mrb[0].mxu0
    %v9459 = vadd.f32 0.0, %v9458
    %v9460 = vpop.f32.mrb[0].mxu0
    %9461 = vdwg.mxu0
    %v9462 = vadd.f32 %v9296, %v9400
    %v9463 = vadd.f32 %v9297, %v9403
    %v9464 = vadd.f32 %v9298, %v9408
    %v9465 = vadd.f32 %v9299, %v9411
    %v9466 = vadd.f32 %v9300, %v9416
    %v9467 = vadd.f32 %v9301, %v9419
    %v9468 = vadd.f32 %v9302, %v9424
    %v9469 = vadd.f32 %v9303, %v9427
    %v9470 = vadd.f32 %v9304, %v9432
    %v9471 = vadd.f32 %v9305, %v9435
    %v9472 = vadd.f32 %v9306, %v9440
    %v9473 = vadd.f32 %v9307, %v9443
    %v9474 = vadd.f32 %v9308, %v9448
    %v9475 = vadd.f32 %v9309, %v9451
    %v9476 = vadd.f32 %v9310, %v9456
    %v9477 = vadd.f32 %v9311, %v9459
    %v9478 = vld [vmem:[%s8663 + $0x2] sm:$0xff]
    %v9479 = vld [vmem:[%s8663 + $0x12] sm:$0xff]
    %v9480 = vld [vmem:[%s8663 + $0x22] sm:$0xff]
    %v9481 = vld [vmem:[%s8663 + $0x32] sm:$0xff]
    %v9482 = vld [vmem:[%s8663 + $0x42] sm:$0xff]
    %v9483 = vld [vmem:[%s8663 + $0x52] sm:$0xff]
    %v9484 = vld [vmem:[%s8663 + $0x62] sm:$0xff]
    %v9485 = vld [vmem:[%s8663 + $0x72] sm:$0xff]
    %v9486 = vld [vmem:[%s8663 + $0xa2] sm:$0xff]
    %v9487 = vld [vmem:[%s8663 + $0xb2] sm:$0xff]
    %v9488 = vld [vmem:[%s8663 + $0xc2] sm:$0xff]
    %v9489 = vld [vmem:[%s8663 + $0xd2] sm:$0xff]
    %v9490 = vld [vmem:[%s8663 + $0xe2] sm:$0xff]
    %v9491 = vld [vmem:[%s8663 + $0xf2] sm:$0xff]
    %v9492 = vld [vmem:[%s8663 + $0x102] sm:$0xff]
    %v9493 = vld [vmem:[%s8663 + $0x112] sm:$0xff]
    %v9494 = vpack.c.bf16 %v9479, %v9478
    %v9495 = vpack.c.bf16 %v9481, %v9480
    %v9496 = vpack.c.bf16 %v9483, %v9482
    %v9497 = vpack.c.bf16 %v9485, %v9484
    %v9498 = vpack.c.bf16 %v9487, %v9486
    %v9499 = vpack.c.bf16 %v9489, %v9488
    %v9500 = vpack.c.bf16 %v9491, %v9490
    %v9501 = vpack.c.bf16 %v9493, %v9492
    %s9502 = scalar_lea.vmem %s3, 20
    %v9503 = vld [vmem:[%s9502] sm:$0xf]
    %v9505 = vsel %vm7975, %v9494, 0
    %v9508 = vsel %vm7975, %v9495, 0
    %v9511 = vsel %vm7975, %v9496, 0
    %v9514 = vsel %vm7975, %v9497, 0
    %v9517 = vsel %vm7975, %v9498, 0
    %v9520 = vsel %vm7975, %v9499, 0
    %v9523 = vsel %vm7975, %v9500, 0
    %v9526 = vsel %vm7975, %v9501, 0
    %v9529 = vsel %vm8755, %v9503, 0
    %9531 = vmatprep.subr.bf16.mxu0 0
    %9532 = vmatpush1.bf16.msra.mxu0 %v9529
    %9533 = vmatprep.subr.bf16.mxu0 0
    %9534 = vmatpush1.bf16.msra.mxu0 0
    %9535 = vmatprep.subr.bf16.mxu0 0
    %9536 = vmatpush1.bf16.msra.mxu0 0
    %9537 = vmatprep.subr.bf16.mxu0 0
    %9538 = vmatpush1.bf16.msra.mxu0 0
    %9539 = vmatprep.subr.bf16.mxu0 0
    %9540 = vmatpush1.bf16.msra.mxu0 0
    %9541 = vmatprep.subr.bf16.mxu0 0
    %9542 = vmatpush1.bf16.msra.mxu0 0
    %9543 = vmatprep.subr.bf16.mxu0 0
    %9544 = vmatpush1.bf16.msra.mxu0 0
    %9545 = vmatprep.subr.bf16.mxu0 0
    %9546 = vmatpush1.bf16.msra.mxu0 0
    %9547 = vmatprep.subr.bf16.mxu0 0
    %9548 = vmatpush1.bf16.msra.mxu0 0
    %9549 = vmatprep.subr.bf16.mxu0 0
    %9550 = vmatpush1.bf16.msra.mxu0 0
    %9551 = vmatprep.subr.bf16.mxu0 0
    %9552 = vmatpush1.bf16.msra.mxu0 0
    %9553 = vmatprep.subr.bf16.mxu0 0
    %9554 = vmatpush1.bf16.msra.mxu0 0
    %9555 = vmatprep.subr.bf16.mxu0 0
    %9556 = vmatpush1.bf16.msra.mxu0 0
    %9557 = vmatprep.subr.bf16.mxu0 0
    %9558 = vmatpush1.bf16.msra.mxu0 0
    %9559 = vmatprep.subr.bf16.mxu0 0
    %9560 = vmatpush1.bf16.msra.mxu0 0
    %9561 = vmatprep.subr.bf16.mxu0 0
    %9562 = vmatpush1.bf16.msra.mxu0 0
    %9563 = vmatprep.mubr.bf16.mxu0 0
    %9564 = vmatmul.mubr.bf16.gmra.mrb[0].mxu0 %v9505
    %v9565 = vpop.f32.mrb[0].mxu0
    %v9566 = vadd.f32 0.0, %v9565
    %v9567 = vpop.f32.mrb[0].mxu0
    %v9568 = vpop.f32.mrb[0].mxu0
    %v9569 = vadd.f32 0.0, %v9568
    %v9570 = vpop.f32.mrb[0].mxu0
    %9571 = vmatprep.mubr.bf16.mxu0 0
    %9572 = vmatmul.mubr.bf16.gmra.mrb[0].mxu0 %v9508
    %v9573 = vpop.f32.mrb[0].mxu0
    %v9574 = vadd.f32 0.0, %v9573
    %v9575 = vpop.f32.mrb[0].mxu0
    %v9576 = vpop.f32.mrb[0].mxu0
    %v9577 = vadd.f32 0.0, %v9576
    %v9578 = vpop.f32.mrb[0].mxu0
    %9579 = vmatprep.mubr.bf16.mxu0 0
    %9580 = vmatmul.mubr.bf16.gmra.mrb[0].mxu0 %v9511
    %v9581 = vpop.f32.mrb[0].mxu0
    %v9582 = vadd.f32 0.0, %v9581
    %v9583 = vpop.f32.mrb[0].mxu0
    %v9584 = vpop.f32.mrb[0].mxu0
    %v9585 = vadd.f32 0.0, %v9584
    %v9586 = vpop.f32.mrb[0].mxu0
    %9587 = vmatprep.mubr.bf16.mxu0 0
    %9588 = vmatmul.mubr.bf16.gmra.mrb[0].mxu0 %v9514
    %v9589 = vpop.f32.mrb[0].mxu0
    %v9590 = vadd.f32 0.0, %v9589
    %v9591 = vpop.f32.mrb[0].mxu0
    %v9592 = vpop.f32.mrb[0].mxu0
    %v9593 = vadd.f32 0.0, %v9592
    %v9594 = vpop.f32.mrb[0].mxu0
    %9595 = vmatprep.mubr.bf16.mxu0 0
    %9596 = vmatmul.mubr.bf16.gmra.mrb[0].mxu0 %v9517
    %v9597 = vpop.f32.mrb[0].mxu0
    %v9598 = vadd.f32 0.0, %v9597
    %v9599 = vpop.f32.mrb[0].mxu0
    %v9600 = vpop.f32.mrb[0].mxu0
    %v9601 = vadd.f32 0.0, %v9600
    %v9602 = vpop.f32.mrb[0].mxu0
    %9603 = vmatprep.mubr.bf16.mxu0 0
    %9604 = vmatmul.mubr.bf16.gmra.mrb[0].mxu0 %v9520
    %v9605 = vpop.f32.mrb[0].mxu0
    %v9606 = vadd.f32 0.0, %v9605
    %v9607 = vpop.f32.mrb[0].mxu0
    %v9608 = vpop.f32.mrb[0].mxu0
    %v9609 = vadd.f32 0.0, %v9608
    %v9610 = vpop.f32.mrb[0].mxu0
    %9611 = vmatprep.mubr.bf16.mxu0 0
    %9612 = vmatmul.mubr.bf16.gmra.mrb[0].mxu0 %v9523
    %v9613 = vpop.f32.mrb[0].mxu0
    %v9614 = vadd.f32 0.0, %v9613
    %v9615 = vpop.f32.mrb[0].mxu0
    %v9616 = vpop.f32.mrb[0].mxu0
    %v9617 = vadd.f32 0.0, %v9616
    %v9618 = vpop.f32.mrb[0].mxu0
    %9619 = vmatprep.mubr.bf16.mxu0 0
    %9620 = vmatmul.mubr.bf16.gmra.mrb[0].mxu0 %v9526
    %v9621 = vpop.f32.mrb[0].mxu0
    %v9622 = vadd.f32 0.0, %v9621
    %v9623 = vpop.f32.mrb[0].mxu0
    %v9624 = vpop.f32.mrb[0].mxu0
    %v9625 = vadd.f32 0.0, %v9624
    %v9626 = vpop.f32.mrb[0].mxu0
    %9627 = vdwg.mxu0
    %v9628 = vadd.f32 %v9462, %v9566
    %v9629 = vadd.f32 %v9463, %v9569
    %v9630 = vadd.f32 %v9464, %v9574
    %v9631 = vadd.f32 %v9465, %v9577
    %v9632 = vadd.f32 %v9466, %v9582
    %v9633 = vadd.f32 %v9467, %v9585
    %v9634 = vadd.f32 %v9468, %v9590
    %v9635 = vadd.f32 %v9469, %v9593
    %v9636 = vadd.f32 %v9470, %v9598
    %v9637 = vadd.f32 %v9471, %v9601
    %v9638 = vadd.f32 %v9472, %v9606
    %v9639 = vadd.f32 %v9473, %v9609
    %v9640 = vadd.f32 %v9474, %v9614
    %v9641 = vadd.f32 %v9475, %v9617
    %v9642 = vadd.f32 %v9476, %v9622
    %v9643 = vadd.f32 %v9477, %v9625
    %s9644 = scalar_lea.vmem [#allocation2], 32
    %v9645 = vld [vmem:[%s9644] sm:$0xff]
    %v9646 = vld [vmem:[%s9644 + $0x10] sm:$0xff]
    %v9647 = vld [vmem:[%s9644 + $0x20] sm:$0xff]
    %v9648 = vld [vmem:[%s9644 + $0x30] sm:$0xff]
    %v9649 = vld [vmem:[%s9644 + $0x40] sm:$0xff]
    %v9650 = vld [vmem:[%s9644 + $0x50] sm:$0xff]
    %v9651 = vld [vmem:[%s9644 + $0x60] sm:$0xff]
    %v9652 = vld [vmem:[%s9644 + $0x70] sm:$0xff]
    %v9653 = vld [vmem:[%s9644 + $0xa0] sm:$0xff]
    %v9654 = vld [vmem:[%s9644 + $0xb0] sm:$0xff]
    %v9655 = vld [vmem:[%s9644 + $0xc0] sm:$0xff]
    %v9656 = vld [vmem:[%s9644 + $0xd0] sm:$0xff]
    %v9657 = vld [vmem:[%s9644 + $0xe0] sm:$0xff]
    %v9658 = vld [vmem:[%s9644 + $0xf0] sm:$0xff]
    %v9659 = vld [vmem:[%s9644 + $0x100] sm:$0xff]
    %v9660 = vld [vmem:[%s9644 + $0x110] sm:$0xff]
    %v9661 = vpack.c.bf16 %v9646, %v9645
    %v9662 = vpack.c.bf16 %v9648, %v9647
    %v9663 = vpack.c.bf16 %v9650, %v9649
    %v9664 = vpack.c.bf16 %v9652, %v9651
    %v9665 = vpack.c.bf16 %v9654, %v9653
    %v9666 = vpack.c.bf16 %v9656, %v9655
    %v9667 = vpack.c.bf16 %v9658, %v9657
    %v9668 = vpack.c.bf16 %v9660, %v9659
    %s9669 = scalar_lea.vmem %s3, 24
    %v9670 = vld [vmem:[%s9669] sm:$0xf]
    %v9672 = vsel %vm7975, %v9661, 0
    %v9675 = vsel %vm7975, %v9662, 0
    %v9678 = vsel %vm7975, %v9663, 0
    %v9681 = vsel %vm7975, %v9664, 0
    %v9684 = vsel %vm7975, %v9665, 0
    %v9687 = vsel %vm7975, %v9666, 0
    %v9690 = vsel %vm7975, %v9667, 0
    %v9693 = vsel %vm7975, %v9668, 0
    %v9696 = vsel %vm8755, %v9670, 0
    %9698 = vmatprep.subr.bf16.mxu0 0
    %9699 = vmatpush1.bf16.msra.mxu0 %v9696
    %9700 = vmatprep.subr.bf16.mxu0 0
    %9701 = vmatpush1.bf16.msra.mxu0 0
    %9702 = vmatprep.subr.bf16.mxu0 0
    %9703 = vmatpush1.bf16.msra.mxu0 0
    %9704 = vmatprep.subr.bf16.mxu0 0
    %9705 = vmatpush1.bf16.msra.mxu0 0
    %9706 = vmatprep.subr.bf16.mxu0 0
    %9707 = vmatpush1.bf16.msra.mxu0 0
    %9708 = vmatprep.subr.bf16.mxu0 0
    %9709 = vmatpush1.bf16.msra.mxu0 0
    %9710 = vmatprep.subr.bf16.mxu0 0
    %9711 = vmatpush1.bf16.msra.mxu0 0
    %9712 = vmatprep.subr.bf16.mxu0 0
    %9713 = vmatpush1.bf16.msra.mxu0 0
    %9714 = vmatprep.subr.bf16.mxu0 0
    %9715 = vmatpush1.bf16.msra.mxu0 0
    %9716 = vmatprep.subr.bf16.mxu0 0
    %9717 = vmatpush1.bf16.msra.mxu0 0
    %9718 = vmatprep.subr.bf16.mxu0 0
    %9719 = vmatpush1.bf16.msra.mxu0 0
    %9720 = vmatprep.subr.bf16.mxu0 0
    %9721 = vmatpush1.bf16.msra.mxu0 0
    %9722 = vmatprep.subr.bf16.mxu0 0
    %9723 = vmatpush1.bf16.msra.mxu0 0
    %9724 = vmatprep.subr.bf16.mxu0 0
    %9725 = vmatpush1.bf16.msra.mxu0 0
    %9726 = vmatprep.subr.bf16.mxu0 0
    %9727 = vmatpush1.bf16.msra.mxu0 0
    %9728 = vmatprep.subr.bf16.mxu0 0
    %9729 = vmatpush1.bf16.msra.mxu0 0
    %9730 = vmatprep.mubr.bf16.mxu0 0
    %9731 = vmatmul.mubr.bf16.gmra.mrb[0].mxu0 %v9672
    %v9732 = vpop.f32.mrb[0].mxu0
    %v9733 = vadd.f32 0.0, %v9732
    %v9734 = vpop.f32.mrb[0].mxu0
    %v9735 = vpop.f32.mrb[0].mxu0
    %v9736 = vadd.f32 0.0, %v9735
    %v9737 = vpop.f32.mrb[0].mxu0
    %9738 = vmatprep.mubr.bf16.mxu0 0
    %9739 = vmatmul.mubr.bf16.gmra.mrb[0].mxu0 %v9675
    %v9740 = vpop.f32.mrb[0].mxu0
    %v9741 = vadd.f32 0.0, %v9740
    %v9742 = vpop.f32.mrb[0].mxu0
    %v9743 = vpop.f32.mrb[0].mxu0
    %v9744 = vadd.f32 0.0, %v9743
    %v9745 = vpop.f32.mrb[0].mxu0
    %9746 = vmatprep.mubr.bf16.mxu0 0
    %9747 = vmatmul.mubr.bf16.gmra.mrb[0].mxu0 %v9678
    %v9748 = vpop.f32.mrb[0].mxu0
    %v9749 = vadd.f32 0.0, %v9748
    %v9750 = vpop.f32.mrb[0].mxu0
    %v9751 = vpop.f32.mrb[0].mxu0
    %v9752 = vadd.f32 0.0, %v9751
    %v9753 = vpop.f32.mrb[0].mxu0
    %9754 = vmatprep.mubr.bf16.mxu0 0
    %9755 = vmatmul.mubr.bf16.gmra.mrb[0].mxu0 %v9681
    %v9756 = vpop.f32.mrb[0].mxu0
    %v9757 = vadd.f32 0.0, %v9756
    %v9758 = vpop.f32.mrb[0].mxu0
    %v9759 = vpop.f32.mrb[0].mxu0
    %v9760 = vadd.f32 0.0, %v9759
    %v9761 = vpop.f32.mrb[0].mxu0
    %9762 = vmatprep.mubr.bf16.mxu0 0
    %9763 = vmatmul.mubr.bf16.gmra.mrb[0].mxu0 %v9684
    %v9764 = vpop.f32.mrb[0].mxu0
    %v9765 = vadd.f32 0.0, %v9764
    %v9766 = vpop.f32.mrb[0].mxu0
    %v9767 = vpop.f32.mrb[0].mxu0
    %v9768 = vadd.f32 0.0, %v9767
    %v9769 = vpop.f32.mrb[0].mxu0
    %9770 = vmatprep.mubr.bf16.mxu0 0
    %9771 = vmatmul.mubr.bf16.gmra.mrb[0].mxu0 %v9687
    %v9772 = vpop.f32.mrb[0].mxu0
    %v9773 = vadd.f32 0.0, %v9772
    %v9774 = vpop.f32.mrb[0].mxu0
    %v9775 = vpop.f32.mrb[0].mxu0
    %v9776 = vadd.f32 0.0, %v9775
    %v9777 = vpop.f32.mrb[0].mxu0
    %9778 = vmatprep.mubr.bf16.mxu0 0
    %9779 = vmatmul.mubr.bf16.gmra.mrb[0].mxu0 %v9690
    %v9780 = vpop.f32.mrb[0].mxu0
    %v9781 = vadd.f32 0.0, %v9780
    %v9782 = vpop.f32.mrb[0].mxu0
    %v9783 = vpop.f32.mrb[0].mxu0
    %v9784 = vadd.f32 0.0, %v9783
    %v9785 = vpop.f32.mrb[0].mxu0
    %9786 = vmatprep.mubr.bf16.mxu0 0
    %9787 = vmatmul.mubr.bf16.gmra.mrb[0].mxu0 %v9693
    %v9788 = vpop.f32.mrb[0].mxu0
    %v9789 = vadd.f32 0.0, %v9788
    %v9790 = vpop.f32.mrb[0].mxu0
    %v9791 = vpop.f32.mrb[0].mxu0
    %v9792 = vadd.f32 0.0, %v9791
    %v9793 = vpop.f32.mrb[0].mxu0
    %9794 = vdwg.mxu0
    %v9795 = vadd.f32 %v9628, %v9733
    %v9796 = vadd.f32 %v9629, %v9736
    %v9797 = vadd.f32 %v9630, %v9741
    %v9798 = vadd.f32 %v9631, %v9744
    %v9799 = vadd.f32 %v9632, %v9749
    %v9800 = vadd.f32 %v9633, %v9752
    %v9801 = vadd.f32 %v9634, %v9757
    %v9802 = vadd.f32 %v9635, %v9760
    %v9803 = vadd.f32 %v9636, %v9765
    %v9804 = vadd.f32 %v9637, %v9768
    %v9805 = vadd.f32 %v9638, %v9773
    %v9806 = vadd.f32 %v9639, %v9776
    %v9807 = vadd.f32 %v9640, %v9781
    %v9808 = vadd.f32 %v9641, %v9784
    %v9809 = vadd.f32 %v9642, %v9789
    %v9810 = vadd.f32 %v9643, %v9792
    %v9811 = vld [vmem:[%s9644 + $0x1] sm:$0xff]
    %v9812 = vld [vmem:[%s9644 + $0x11] sm:$0xff]
    %v9813 = vld [vmem:[%s9644 + $0x21] sm:$0xff]
    %v9814 = vld [vmem:[%s9644 + $0x31] sm:$0xff]
    %v9815 = vld [vmem:[%s9644 + $0x41] sm:$0xff]
    %v9816 = vld [vmem:[%s9644 + $0x51] sm:$0xff]
    %v9817 = vld [vmem:[%s9644 + $0x61] sm:$0xff]
    %v9818 = vld [vmem:[%s9644 + $0x71] sm:$0xff]
    %v9819 = vld [vmem:[%s9644 + $0xa1] sm:$0xff]
    %v9820 = vld [vmem:[%s9644 + $0xb1] sm:$0xff]
    %v9821 = vld [vmem:[%s9644 + $0xc1] sm:$0xff]
    %v9822 = vld [vmem:[%s9644 + $0xd1] sm:$0xff]
    %v9823 = vld [vmem:[%s9644 + $0xe1] sm:$0xff]
    %v9824 = vld [vmem:[%s9644 + $0xf1] sm:$0xff]
    %v9825 = vld [vmem:[%s9644 + $0x101] sm:$0xff]
    %v9826 = vld [vmem:[%s9644 + $0x111] sm:$0xff]
    %v9827 = vpack.c.bf16 %v9812, %v9811
    %v9828 = vpack.c.bf16 %v9814, %v9813
    %v9829 = vpack.c.bf16 %v9816, %v9815
    %v9830 = vpack.c.bf16 %v9818, %v9817
    %v9831 = vpack.c.bf16 %v9820, %v9819
    %v9832 = vpack.c.bf16 %v9822, %v9821
    %v9833 = vpack.c.bf16 %v9824, %v9823
    %v9834 = vpack.c.bf16 %v9826, %v9825
    %s9835 = scalar_lea.vmem %s3, 28
    %v9836 = vld [vmem:[%s9835] sm:$0xf]
    %v9838 = vsel %vm7975, %v9827, 0
    %v9841 = vsel %vm7975, %v9828, 0
    %v9844 = vsel %vm7975, %v9829, 0
    %v9847 = vsel %vm7975, %v9830, 0
    %v9850 = vsel %vm7975, %v9831, 0
    %v9853 = vsel %vm7975, %v9832, 0
    %v9856 = vsel %vm7975, %v9833, 0
    %v9859 = vsel %vm7975, %v9834, 0
    %v9862 = vsel %vm8755, %v9836, 0
    %9864 = vmatprep.subr.bf16.mxu0 0
    %9865 = vmatpush1.bf16.msra.mxu0 %v9862
    %9866 = vmatprep.subr.bf16.mxu0 0
    %9867 = vmatpush1.bf16.msra.mxu0 0
    %9868 = vmatprep.subr.bf16.mxu0 0
    %9869 = vmatpush1.bf16.msra.mxu0 0
    %9870 = vmatprep.subr.bf16.mxu0 0
    %9871 = vmatpush1.bf16.msra.mxu0 0
    %9872 = vmatprep.subr.bf16.mxu0 0
    %9873 = vmatpush1.bf16.msra.mxu0 0
    %9874 = vmatprep.subr.bf16.mxu0 0
    %9875 = vmatpush1.bf16.msra.mxu0 0
    %9876 = vmatprep.subr.bf16.mxu0 0
    %9877 = vmatpush1.bf16.msra.mxu0 0
    %9878 = vmatprep.subr.bf16.mxu0 0
    %9879 = vmatpush1.bf16.msra.mxu0 0
    %9880 = vmatprep.subr.bf16.mxu0 0
    %9881 = vmatpush1.bf16.msra.mxu0 0
    %9882 = vmatprep.subr.bf16.mxu0 0
    %9883 = vmatpush1.bf16.msra.mxu0 0
    %9884 = vmatprep.subr.bf16.mxu0 0
    %9885 = vmatpush1.bf16.msra.mxu0 0
    %9886 = vmatprep.subr.bf16.mxu0 0
    %9887 = vmatpush1.bf16.msra.mxu0 0
    %9888 = vmatprep.subr.bf16.mxu0 0
    %9889 = vmatpush1.bf16.msra.mxu0 0
    %9890 = vmatprep.subr.bf16.mxu0 0
    %9891 = vmatpush1.bf16.msra.mxu0 0
    %9892 = vmatprep.subr.bf16.mxu0 0
    %9893 = vmatpush1.bf16.msra.mxu0 0
    %9894 = vmatprep.subr.bf16.mxu0 0
    %9895 = vmatpush1.bf16.msra.mxu0 0
    %9896 = vmatprep.mubr.bf16.mxu0 0
    %9897 = vmatmul.mubr.bf16.gmra.mrb[0].mxu0 %v9838
    %v9898 = vpop.f32.mrb[0].mxu0
    %v9899 = vadd.f32 0.0, %v9898
    %v9900 = vpop.f32.mrb[0].mxu0
    %v9901 = vpop.f32.mrb[0].mxu0
    %v9902 = vadd.f32 0.0, %v9901
    %v9903 = vpop.f32.mrb[0].mxu0
    %9904 = vmatprep.mubr.bf16.mxu0 0
    %9905 = vmatmul.mubr.bf16.gmra.mrb[0].mxu0 %v9841
    %v9906 = vpop.f32.mrb[0].mxu0
    %v9907 = vadd.f32 0.0, %v9906
    %v9908 = vpop.f32.mrb[0].mxu0
    %v9909 = vpop.f32.mrb[0].mxu0
    %v9910 = vadd.f32 0.0, %v9909
    %v9911 = vpop.f32.mrb[0].mxu0
    %9912 = vmatprep.mubr.bf16.mxu0 0
    %9913 = vmatmul.mubr.bf16.gmra.mrb[0].mxu0 %v9844
    %v9914 = vpop.f32.mrb[0].mxu0
    %v9915 = vadd.f32 0.0, %v9914
    %v9916 = vpop.f32.mrb[0].mxu0
    %v9917 = vpop.f32.mrb[0].mxu0
    %v9918 = vadd.f32 0.0, %v9917
    %v9919 = vpop.f32.mrb[0].mxu0
    %9920 = vmatprep.mubr.bf16.mxu0 0
    %9921 = vmatmul.mubr.bf16.gmra.mrb[0].mxu0 %v9847
    %v9922 = vpop.f32.mrb[0].mxu0
    %v9923 = vadd.f32 0.0, %v9922
    %v9924 = vpop.f32.mrb[0].mxu0
    %v9925 = vpop.f32.mrb[0].mxu0
    %v9926 = vadd.f32 0.0, %v9925
    %v9927 = vpop.f32.mrb[0].mxu0
    %9928 = vmatprep.mubr.bf16.mxu0 0
    %9929 = vmatmul.mubr.bf16.gmra.mrb[0].mxu0 %v9850
    %v9930 = vpop.f32.mrb[0].mxu0
    %v9931 = vadd.f32 0.0, %v9930
    %v9932 = vpop.f32.mrb[0].mxu0
    %v9933 = vpop.f32.mrb[0].mxu0
    %v9934 = vadd.f32 0.0, %v9933
    %v9935 = vpop.f32.mrb[0].mxu0
    %9936 = vmatprep.mubr.bf16.mxu0 0
    %9937 = vmatmul.mubr.bf16.gmra.mrb[0].mxu0 %v9853
    %v9938 = vpop.f32.mrb[0].mxu0
    %v9939 = vadd.f32 0.0, %v9938
    %v9940 = vpop.f32.mrb[0].mxu0
    %v9941 = vpop.f32.mrb[0].mxu0
    %v9942 = vadd.f32 0.0, %v9941
    %v9943 = vpop.f32.mrb[0].mxu0
    %9944 = vmatprep.mubr.bf16.mxu0 0
    %9945 = vmatmul.mubr.bf16.gmra.mrb[0].mxu0 %v9856
    %v9946 = vpop.f32.mrb[0].mxu0
    %v9947 = vadd.f32 0.0, %v9946
    %v9948 = vpop.f32.mrb[0].mxu0
    %v9949 = vpop.f32.mrb[0].mxu0
    %v9950 = vadd.f32 0.0, %v9949
    %v9951 = vpop.f32.mrb[0].mxu0
    %9952 = vmatprep.mubr.bf16.mxu0 0
    %9953 = vmatmul.mubr.bf16.gmra.mrb[0].mxu0 %v9859
    %v9954 = vpop.f32.mrb[0].mxu0
    %v9955 = vadd.f32 0.0, %v9954
    %v9956 = vpop.f32.mrb[0].mxu0
    %v9957 = vpop.f32.mrb[0].mxu0
    %v9958 = vadd.f32 0.0, %v9957
    %v9959 = vpop.f32.mrb[0].mxu0
    %9960 = vdwg.mxu0
    %v9961 = vadd.f32 %v9795, %v9899
    %v9962 = vadd.f32 %v9796, %v9902
    %v9963 = vadd.f32 %v9797, %v9907
    %v9964 = vadd.f32 %v9798, %v9910
    %v9965 = vadd.f32 %v9799, %v9915
    %v9966 = vadd.f32 %v9800, %v9918
    %v9967 = vadd.f32 %v9801, %v9923
    %v9968 = vadd.f32 %v9802, %v9926
    %v9969 = vadd.f32 %v9803, %v9931
    %v9970 = vadd.f32 %v9804, %v9934
    %v9971 = vadd.f32 %v9805, %v9939
    %v9972 = vadd.f32 %v9806, %v9942
    %v9973 = vadd.f32 %v9807, %v9947
    %v9974 = vadd.f32 %v9808, %v9950
    %v9975 = vadd.f32 %v9809, %v9955
    %v9976 = vadd.f32 %v9810, %v9958
    %v9977 = vld [vmem:[%s9644 + $0x2] sm:$0xff]
    %v9978 = vld [vmem:[%s9644 + $0x12] sm:$0xff]
    %v9979 = vld [vmem:[%s9644 + $0x22] sm:$0xff]
    %v9980 = vld [vmem:[%s9644 + $0x32] sm:$0xff]
    %v9981 = vld [vmem:[%s9644 + $0x42] sm:$0xff]
    %v9982 = vld [vmem:[%s9644 + $0x52] sm:$0xff]
    %v9983 = vld [vmem:[%s9644 + $0x62] sm:$0xff]
    %v9984 = vld [vmem:[%s9644 + $0x72] sm:$0xff]
    %v9985 = vld [vmem:[%s9644 + $0xa2] sm:$0xff]
    %v9986 = vld [vmem:[%s9644 + $0xb2] sm:$0xff]
    %v9987 = vld [vmem:[%s9644 + $0xc2] sm:$0xff]
    %v9988 = vld [vmem:[%s9644 + $0xd2] sm:$0xff]
    %v9989 = vld [vmem:[%s9644 + $0xe2] sm:$0xff]
    %v9990 = vld [vmem:[%s9644 + $0xf2] sm:$0xff]
    %v9991 = vld [vmem:[%s9644 + $0x102] sm:$0xff]
    %v9992 = vld [vmem:[%s9644 + $0x112] sm:$0xff]
    %v9993 = vpack.c.bf16 %v9978, %v9977
    %v9994 = vpack.c.bf16 %v9980, %v9979
    %v9995 = vpack.c.bf16 %v9982, %v9981
    %v9996 = vpack.c.bf16 %v9984, %v9983
    %v9997 = vpack.c.bf16 %v9986, %v9985
    %v9998 = vpack.c.bf16 %v9988, %v9987
    %v9999 = vpack.c.bf16 %v9990, %v9989
    %v10000 = vpack.c.bf16 %v9992, %v9991
    %s10001 = scalar_lea.vmem %s3, 32
    %v10002 = vld [vmem:[%s10001] sm:$0xf]
    %v10004 = vsel %vm7975, %v9993, 0
    %v10007 = vsel %vm7975, %v9994, 0
    %v10010 = vsel %vm7975, %v9995, 0
    %v10013 = vsel %vm7975, %v9996, 0
    %v10016 = vsel %vm7975, %v9997, 0
    %v10019 = vsel %vm7975, %v9998, 0
    %v10022 = vsel %vm7975, %v9999, 0
    %v10025 = vsel %vm7975, %v10000, 0
    %v10028 = vsel %vm8755, %v10002, 0
    %10030 = vmatprep.subr.bf16.mxu0 0
    %10031 = vmatpush1.bf16.msra.mxu0 %v10028
    %10032 = vmatprep.subr.bf16.mxu0 0
    %10033 = vmatpush1.bf16.msra.mxu0 0
    %10034 = vmatprep.subr.bf16.mxu0 0
    %10035 = vmatpush1.bf16.msra.mxu0 0
    %10036 = vmatprep.subr.bf16.mxu0 0
    %10037 = vmatpush1.bf16.msra.mxu0 0
    %10038 = vmatprep.subr.bf16.mxu0 0
    %10039 = vmatpush1.bf16.msra.mxu0 0
    %10040 = vmatprep.subr.bf16.mxu0 0
    %10041 = vmatpush1.bf16.msra.mxu0 0
    %10042 = vmatprep.subr.bf16.mxu0 0
    %10043 = vmatpush1.bf16.msra.mxu0 0
    %10044 = vmatprep.subr.bf16.mxu0 0
    %10045 = vmatpush1.bf16.msra.mxu0 0
    %10046 = vmatprep.subr.bf16.mxu0 0
    %10047 = vmatpush1.bf16.msra.mxu0 0
    %10048 = vmatprep.subr.bf16.mxu0 0
    %10049 = vmatpush1.bf16.msra.mxu0 0
    %10050 = vmatprep.subr.bf16.mxu0 0
    %10051 = vmatpush1.bf16.msra.mxu0 0
    %10052 = vmatprep.subr.bf16.mxu0 0
    %10053 = vmatpush1.bf16.msra.mxu0 0
    %10054 = vmatprep.subr.bf16.mxu0 0
    %10055 = vmatpush1.bf16.msra.mxu0 0
    %10056 = vmatprep.subr.bf16.mxu0 0
    %10057 = vmatpush1.bf16.msra.mxu0 0
    %10058 = vmatprep.subr.bf16.mxu0 0
    %10059 = vmatpush1.bf16.msra.mxu0 0
    %10060 = vmatprep.subr.bf16.mxu0 0
    %10061 = vmatpush1.bf16.msra.mxu0 0
    %10062 = vmatprep.mubr.bf16.mxu0 0
    %10063 = vmatmul.mubr.bf16.gmra.mrb[0].mxu0 %v10004
    %v10064 = vpop.f32.mrb[0].mxu0
    %v10065 = vadd.f32 0.0, %v10064
    %v10066 = vpop.f32.mrb[0].mxu0
    %v10067 = vpop.f32.mrb[0].mxu0
    %v10068 = vadd.f32 0.0, %v10067
    %v10069 = vpop.f32.mrb[0].mxu0
    %10070 = vmatprep.mubr.bf16.mxu0 0
    %10071 = vmatmul.mubr.bf16.gmra.mrb[0].mxu0 %v10007
    %v10072 = vpop.f32.mrb[0].mxu0
    %v10073 = vadd.f32 0.0, %v10072
    %v10074 = vpop.f32.mrb[0].mxu0
    %v10075 = vpop.f32.mrb[0].mxu0
    %v10076 = vadd.f32 0.0, %v10075
    %v10077 = vpop.f32.mrb[0].mxu0
    %10078 = vmatprep.mubr.bf16.mxu0 0
    %10079 = vmatmul.mubr.bf16.gmra.mrb[0].mxu0 %v10010
    %v10080 = vpop.f32.mrb[0].mxu0
    %v10081 = vadd.f32 0.0, %v10080
    %v10082 = vpop.f32.mrb[0].mxu0
    %v10083 = vpop.f32.mrb[0].mxu0
    %v10084 = vadd.f32 0.0, %v10083
    %v10085 = vpop.f32.mrb[0].mxu0
    %10086 = vmatprep.mubr.bf16.mxu0 0
    %10087 = vmatmul.mubr.bf16.gmra.mrb[0].mxu0 %v10013
    %v10088 = vpop.f32.mrb[0].mxu0
    %v10089 = vadd.f32 0.0, %v10088
    %v10090 = vpop.f32.mrb[0].mxu0
    %v10091 = vpop.f32.mrb[0].mxu0
    %v10092 = vadd.f32 0.0, %v10091
    %v10093 = vpop.f32.mrb[0].mxu0
    %10094 = vmatprep.mubr.bf16.mxu0 0
    %10095 = vmatmul.mubr.bf16.gmra.mrb[0].mxu0 %v10016
    %v10096 = vpop.f32.mrb[0].mxu0
    %v10097 = vadd.f32 0.0, %v10096
    %v10098 = vpop.f32.mrb[0].mxu0
    %v10099 = vpop.f32.mrb[0].mxu0
    %v10100 = vadd.f32 0.0, %v10099
    %v10101 = vpop.f32.mrb[0].mxu0
    %10102 = vmatprep.mubr.bf16.mxu0 0
    %10103 = vmatmul.mubr.bf16.gmra.mrb[0].mxu0 %v10019
    %v10104 = vpop.f32.mrb[0].mxu0
    %v10105 = vadd.f32 0.0, %v10104
    %v10106 = vpop.f32.mrb[0].mxu0
    %v10107 = vpop.f32.mrb[0].mxu0
    %v10108 = vadd.f32 0.0, %v10107
    %v10109 = vpop.f32.mrb[0].mxu0
    %10110 = vmatprep.mubr.bf16.mxu0 0
    %10111 = vmatmul.mubr.bf16.gmra.mrb[0].mxu0 %v10022
    %v10112 = vpop.f32.mrb[0].mxu0
    %v10113 = vadd.f32 0.0, %v10112
    %v10114 = vpop.f32.mrb[0].mxu0
    %v10115 = vpop.f32.mrb[0].mxu0
    %v10116 = vadd.f32 0.0, %v10115
    %v10117 = vpop.f32.mrb[0].mxu0
    %10118 = vmatprep.mubr.bf16.mxu0 0
    %10119 = vmatmul.mubr.bf16.gmra.mrb[0].mxu0 %v10025
    %v10120 = vpop.f32.mrb[0].mxu0
    %v10121 = vadd.f32 0.0, %v10120
    %v10122 = vpop.f32.mrb[0].mxu0
    %v10123 = vpop.f32.mrb[0].mxu0
    %v10124 = vadd.f32 0.0, %v10123
    %v10125 = vpop.f32.mrb[0].mxu0
    %10126 = vdwg.mxu0
    %v10127 = vadd.f32 %v9961, %v10065
    %v10128 = vadd.f32 %v9962, %v10068
    %v10129 = vadd.f32 %v9963, %v10073
    %v10130 = vadd.f32 %v9964, %v10076
    %v10131 = vadd.f32 %v9965, %v10081
    %v10132 = vadd.f32 %v9966, %v10084
    %v10133 = vadd.f32 %v9967, %v10089
    %v10134 = vadd.f32 %v9968, %v10092
    %v10135 = vadd.f32 %v9969, %v10097
    %v10136 = vadd.f32 %v9970, %v10100
    %v10137 = vadd.f32 %v9971, %v10105
    %v10138 = vadd.f32 %v9972, %v10108
    %v10139 = vadd.f32 %v9973, %v10113
    %v10140 = vadd.f32 %v9974, %v10116
    %v10141 = vadd.f32 %v9975, %v10121
    %v10142 = vadd.f32 %v9976, %v10124
    %v10143 = vld [vmem:[%s4] sm:$0x1]
    %v10145 = vlaneseq
    %v10146 = vshrl.u32 %v10145, 7
    %v10147 = vsub.s32 0, %v10146
    %v10148 = vrot.slane %v10143, %v10147
    %v10150 = vadd.f32 %v10127, %v10148
    %v10151 = vadd.f32 %v10128, %v10148
    %v10152 = vadd.f32 %v10129, %v10148
    %v10153 = vadd.f32 %v10130, %v10148
    %v10154 = vadd.f32 %v10131, %v10148
    %v10155 = vadd.f32 %v10132, %v10148
    %v10156 = vadd.f32 %v10133, %v10148
    %v10157 = vadd.f32 %v10134, %v10148
    %v10158 = vadd.f32 %v10135, %v10148
    %v10159 = vadd.f32 %v10136, %v10148
    %v10160 = vadd.f32 %v10137, %v10148
    %v10161 = vadd.f32 %v10138, %v10148
    %v10162 = vadd.f32 %v10139, %v10148
    %v10163 = vadd.f32 %v10140, %v10148
    %v10164 = vadd.f32 %v10141, %v10148
    %v10165 = vadd.f32 %v10142, %v10148
    %v10166 = vmax.f32 %v10150, 0.0
    %v10167 = vmax.f32 %v10151, 0.0
    %v10168 = vmax.f32 %v10152, 0.0
    %v10169 = vmax.f32 %v10153, 0.0
    %v10170 = vmax.f32 %v10154, 0.0
    %v10171 = vmax.f32 %v10155, 0.0
    %v10172 = vmax.f32 %v10156, 0.0
    %v10173 = vmax.f32 %v10157, 0.0
    %v10174 = vmax.f32 %v10158, 0.0
    %v10175 = vmax.f32 %v10159, 0.0
    %v10176 = vmax.f32 %v10160, 0.0
    %v10177 = vmax.f32 %v10161, 0.0
    %v10178 = vmax.f32 %v10162, 0.0
    %v10179 = vmax.f32 %v10163, 0.0
    %v10180 = vmax.f32 %v10164, 0.0
    %v10181 = vmax.f32 %v10165, 0.0
    %v10198 = vcombine.high %v10166, %v10166
    %v10200 = vunpack.c.l.s4 1983009808
    %v10201 = vunpack.c.0.s8 %v10200
    %v10202 = vlaneseq
    %v10203 = vshrl.u32 %v10202, 7
    %v10204 = vsub.s32 %v10201, %v10203
    %v10205 = vrot.slane %v10166, %v10204
    %v10207 = vunpack.c.l.s4 1983009808
    %v10208 = vunpack.c.0.s8 %v10207
    %v10209 = vlaneseq
    %v10210 = vshrl.u32 %v10209, 7
    %v10211 = vsub.s32 %v10208, %v10210
    %v10212 = vrot.slane %v10198, %v10211
    %v10213 = vcombine.high %v10205, %v10205
    %v10214 = vcombine.high %v10212, %v10212
    %v10215 = vcombine.high %v10167, %v10167
    %v10217 = vunpack.c.l.s4 1983009808
    %v10218 = vunpack.c.0.s8 %v10217
    %v10219 = vlaneseq
    %v10220 = vshrl.u32 %v10219, 7
    %v10221 = vsub.s32 %v10218, %v10220
    %v10222 = vrot.slane %v10167, %v10221
    %v10224 = vunpack.c.l.s4 1983009808
    %v10225 = vunpack.c.0.s8 %v10224
    %v10226 = vlaneseq
    %v10227 = vshrl.u32 %v10226, 7
    %v10228 = vsub.s32 %v10225, %v10227
    %v10229 = vrot.slane %v10215, %v10228
    %v10230 = vcombine.high %v10222, %v10222
    %v10231 = vcombine.high %v10229, %v10229
    %v10232 = vcombine.high %v10168, %v10168
    %v10234 = vunpack.c.l.s4 1983009808
    %v10235 = vunpack.c.0.s8 %v10234
    %v10236 = vlaneseq
    %v10237 = vshrl.u32 %v10236, 7
    %v10238 = vsub.s32 %v10235, %v10237
    %v10239 = vrot.slane %v10168, %v10238
    %v10241 = vunpack.c.l.s4 1983009808
    %v10242 = vunpack.c.0.s8 %v10241
    %v10243 = vlaneseq
    %v10244 = vshrl.u32 %v10243, 7
    %v10245 = vsub.s32 %v10242, %v10244
    %v10246 = vrot.slane %v10232, %v10245
    %v10247 = vcombine.high %v10239, %v10239
    %v10248 = vcombine.high %v10246, %v10246
    %v10249 = vcombine.high %v10169, %v10169
    %v10251 = vunpack.c.l.s4 1983009808
    %v10252 = vunpack.c.0.s8 %v10251
    %v10253 = vlaneseq
    %v10254 = vshrl.u32 %v10253, 7
    %v10255 = vsub.s32 %v10252, %v10254
    %v10256 = vrot.slane %v10169, %v10255
    %v10258 = vunpack.c.l.s4 1983009808
    %v10259 = vunpack.c.0.s8 %v10258
    %v10260 = vlaneseq
    %v10261 = vshrl.u32 %v10260, 7
    %v10262 = vsub.s32 %v10259, %v10261
    %v10263 = vrot.slane %v10249, %v10262
    %v10264 = vcombine.high %v10256, %v10256
    %v10265 = vcombine.high %v10263, %v10263
    %v10266 = vcombine.high %v10170, %v10170
    %v10268 = vunpack.c.l.s4 1983009808
    %v10269 = vunpack.c.0.s8 %v10268
    %v10270 = vlaneseq
    %v10271 = vshrl.u32 %v10270, 7
    %v10272 = vsub.s32 %v10269, %v10271
    %v10273 = vrot.slane %v10170, %v10272
    %v10275 = vunpack.c.l.s4 1983009808
    %v10276 = vunpack.c.0.s8 %v10275
    %v10277 = vlaneseq
    %v10278 = vshrl.u32 %v10277, 7
    %v10279 = vsub.s32 %v10276, %v10278
    %v10280 = vrot.slane %v10266, %v10279
    %v10281 = vcombine.high %v10273, %v10273
    %v10282 = vcombine.high %v10280, %v10280
    %v10283 = vcombine.high %v10171, %v10171
    %v10285 = vunpack.c.l.s4 1983009808
    %v10286 = vunpack.c.0.s8 %v10285
    %v10287 = vlaneseq
    %v10288 = vshrl.u32 %v10287, 7
    %v10289 = vsub.s32 %v10286, %v10288
    %v10290 = vrot.slane %v10171, %v10289
    %v10292 = vunpack.c.l.s4 1983009808
    %v10293 = vunpack.c.0.s8 %v10292
    %v10294 = vlaneseq
    %v10295 = vshrl.u32 %v10294, 7
    %v10296 = vsub.s32 %v10293, %v10295
    %v10297 = vrot.slane %v10283, %v10296
    %v10298 = vcombine.high %v10290, %v10290
    %v10299 = vcombine.high %v10297, %v10297
    %v10300 = vcombine.high %v10172, %v10172
    %v10302 = vunpack.c.l.s4 1983009808
    %v10303 = vunpack.c.0.s8 %v10302
    %v10304 = vlaneseq
    %v10305 = vshrl.u32 %v10304, 7
    %v10306 = vsub.s32 %v10303, %v10305
    %v10307 = vrot.slane %v10172, %v10306
    %v10309 = vunpack.c.l.s4 1983009808
    %v10310 = vunpack.c.0.s8 %v10309
    %v10311 = vlaneseq
    %v10312 = vshrl.u32 %v10311, 7
    %v10313 = vsub.s32 %v10310, %v10312
    %v10314 = vrot.slane %v10300, %v10313
    %v10315 = vcombine.high %v10307, %v10307
    %v10316 = vcombine.high %v10314, %v10314
    %v10317 = vcombine.high %v10173, %v10173
    %v10319 = vunpack.c.l.s4 1983009808
    %v10320 = vunpack.c.0.s8 %v10319
    %v10321 = vlaneseq
    %v10322 = vshrl.u32 %v10321, 7
    %v10323 = vsub.s32 %v10320, %v10322
    %v10324 = vrot.slane %v10173, %v10323
    %v10326 = vunpack.c.l.s4 1983009808
    %v10327 = vunpack.c.0.s8 %v10326
    %v10328 = vlaneseq
    %v10329 = vshrl.u32 %v10328, 7
    %v10330 = vsub.s32 %v10327, %v10329
    %v10331 = vrot.slane %v10317, %v10330
    %v10332 = vcombine.high %v10324, %v10324
    %v10333 = vcombine.high %v10331, %v10331
    %v10334 = vcombine.high %v10174, %v10174
    %v10336 = vunpack.c.l.s4 1983009808
    %v10337 = vunpack.c.0.s8 %v10336
    %v10338 = vlaneseq
    %v10339 = vshrl.u32 %v10338, 7
    %v10340 = vsub.s32 %v10337, %v10339
    %v10341 = vrot.slane %v10174, %v10340
    %v10343 = vunpack.c.l.s4 1983009808
    %v10344 = vunpack.c.0.s8 %v10343
    %v10345 = vlaneseq
    %v10346 = vshrl.u32 %v10345, 7
    %v10347 = vsub.s32 %v10344, %v10346
    %v10348 = vrot.slane %v10334, %v10347
    %v10349 = vcombine.high %v10341, %v10341
    %v10350 = vcombine.high %v10348, %v10348
    %v10351 = vcombine.high %v10175, %v10175
    %v10353 = vunpack.c.l.s4 1983009808
    %v10354 = vunpack.c.0.s8 %v10353
    %v10355 = vlaneseq
    %v10356 = vshrl.u32 %v10355, 7
    %v10357 = vsub.s32 %v10354, %v10356
    %v10358 = vrot.slane %v10175, %v10357
    %v10360 = vunpack.c.l.s4 1983009808
    %v10361 = vunpack.c.0.s8 %v10360
    %v10362 = vlaneseq
    %v10363 = vshrl.u32 %v10362, 7
    %v10364 = vsub.s32 %v10361, %v10363
    %v10365 = vrot.slane %v10351, %v10364
    %v10366 = vcombine.high %v10358, %v10358
    %v10367 = vcombine.high %v10365, %v10365
    %v10368 = vcombine.high %v10176, %v10176
    %v10370 = vunpack.c.l.s4 1983009808
    %v10371 = vunpack.c.0.s8 %v10370
    %v10372 = vlaneseq
    %v10373 = vshrl.u32 %v10372, 7
    %v10374 = vsub.s32 %v10371, %v10373
    %v10375 = vrot.slane %v10176, %v10374
    %v10377 = vunpack.c.l.s4 1983009808
    %v10378 = vunpack.c.0.s8 %v10377
    %v10379 = vlaneseq
    %v10380 = vshrl.u32 %v10379, 7
    %v10381 = vsub.s32 %v10378, %v10380
    %v10382 = vrot.slane %v10368, %v10381
    %v10383 = vcombine.high %v10375, %v10375
    %v10384 = vcombine.high %v10382, %v10382
    %v10385 = vcombine.high %v10177, %v10177
    %v10387 = vunpack.c.l.s4 1983009808
    %v10388 = vunpack.c.0.s8 %v10387
    %v10389 = vlaneseq
    %v10390 = vshrl.u32 %v10389, 7
    %v10391 = vsub.s32 %v10388, %v10390
    %v10392 = vrot.slane %v10177, %v10391
    %v10394 = vunpack.c.l.s4 1983009808
    %v10395 = vunpack.c.0.s8 %v10394
    %v10396 = vlaneseq
    %v10397 = vshrl.u32 %v10396, 7
    %v10398 = vsub.s32 %v10395, %v10397
    %v10399 = vrot.slane %v10385, %v10398
    %v10400 = vcombine.high %v10392, %v10392
    %v10401 = vcombine.high %v10399, %v10399
    %v10402 = vcombine.high %v10178, %v10178
    %v10404 = vunpack.c.l.s4 1983009808
    %v10405 = vunpack.c.0.s8 %v10404
    %v10406 = vlaneseq
    %v10407 = vshrl.u32 %v10406, 7
    %v10408 = vsub.s32 %v10405, %v10407
    %v10409 = vrot.slane %v10178, %v10408
    %v10411 = vunpack.c.l.s4 1983009808
    %v10412 = vunpack.c.0.s8 %v10411
    %v10413 = vlaneseq
    %v10414 = vshrl.u32 %v10413, 7
    %v10415 = vsub.s32 %v10412, %v10414
    %v10416 = vrot.slane %v10402, %v10415
    %v10417 = vcombine.high %v10409, %v10409
    %v10418 = vcombine.high %v10416, %v10416
    %v10419 = vcombine.high %v10179, %v10179
    %v10421 = vunpack.c.l.s4 1983009808
    %v10422 = vunpack.c.0.s8 %v10421
    %v10423 = vlaneseq
    %v10424 = vshrl.u32 %v10423, 7
    %v10425 = vsub.s32 %v10422, %v10424
    %v10426 = vrot.slane %v10179, %v10425
    %v10428 = vunpack.c.l.s4 1983009808
    %v10429 = vunpack.c.0.s8 %v10428
    %v10430 = vlaneseq
    %v10431 = vshrl.u32 %v10430, 7
    %v10432 = vsub.s32 %v10429, %v10431
    %v10433 = vrot.slane %v10419, %v10432
    %v10434 = vcombine.high %v10426, %v10426
    %v10435 = vcombine.high %v10433, %v10433
    %v10436 = vcombine.high %v10180, %v10180
    %v10438 = vunpack.c.l.s4 1983009808
    %v10439 = vunpack.c.0.s8 %v10438
    %v10440 = vlaneseq
    %v10441 = vshrl.u32 %v10440, 7
    %v10442 = vsub.s32 %v10439, %v10441
    %v10443 = vrot.slane %v10180, %v10442
    %v10445 = vunpack.c.l.s4 1983009808
    %v10446 = vunpack.c.0.s8 %v10445
    %v10447 = vlaneseq
    %v10448 = vshrl.u32 %v10447, 7
    %v10449 = vsub.s32 %v10446, %v10448
    %v10450 = vrot.slane %v10436, %v10449
    %v10451 = vcombine.high %v10443, %v10443
    %v10452 = vcombine.high %v10450, %v10450
    %v10453 = vcombine.high %v10181, %v10181
    %v10455 = vunpack.c.l.s4 1983009808
    %v10456 = vunpack.c.0.s8 %v10455
    %v10457 = vlaneseq
    %v10458 = vshrl.u32 %v10457, 7
    %v10459 = vsub.s32 %v10456, %v10458
    %v10460 = vrot.slane %v10181, %v10459
    %v10462 = vunpack.c.l.s4 1983009808
    %v10463 = vunpack.c.0.s8 %v10462
    %v10464 = vlaneseq
    %v10465 = vshrl.u32 %v10464, 7
    %v10466 = vsub.s32 %v10463, %v10465
    %v10467 = vrot.slane %v10453, %v10466
    %v10468 = vcombine.high %v10460, %v10460
    %v10469 = vcombine.high %v10467, %v10467
    %vm10534 = vcmask 123904
    %v10535 = vsel %vm10534, %v10205, -inf
    %v10536 = vrot.slane %v10535, 4
    %v10537 = vmax.f32 %v10535, %v10536
    %v10538 = vrot.slane %v10537, 2
    %v10539 = vmax.f32 %v10537, %v10538
    %v10540 = vrot.slane %v10539, 1
    %v10541 = vmax.f32 %v10539, %v10540
    %v10542 = vsel %vm10534, %v10213, -inf
    %v10543 = vrot.slane %v10542, 4
    %v10544 = vmax.f32 %v10542, %v10543
    %v10545 = vrot.slane %v10544, 2
    %v10546 = vmax.f32 %v10544, %v10545
    %v10547 = vrot.slane %v10546, 1
    %v10548 = vmax.f32 %v10546, %v10547
    %v10549 = vsel %vm10534, %v10212, -inf
    %v10550 = vrot.slane %v10549, 4
    %v10551 = vmax.f32 %v10549, %v10550
    %v10552 = vrot.slane %v10551, 2
    %v10553 = vmax.f32 %v10551, %v10552
    %v10554 = vrot.slane %v10553, 1
    %v10555 = vmax.f32 %v10553, %v10554
    %v10556 = vsel %vm10534, %v10214, -inf
    %v10557 = vrot.slane %v10556, 4
    %v10558 = vmax.f32 %v10556, %v10557
    %v10559 = vrot.slane %v10558, 2
    %v10560 = vmax.f32 %v10558, %v10559
    %v10561 = vrot.slane %v10560, 1
    %v10562 = vmax.f32 %v10560, %v10561
    %v10563 = vsel %vm10534, %v10222, -inf
    %v10564 = vrot.slane %v10563, 4
    %v10565 = vmax.f32 %v10563, %v10564
    %v10566 = vrot.slane %v10565, 2
    %v10567 = vmax.f32 %v10565, %v10566
    %v10568 = vrot.slane %v10567, 1
    %v10569 = vmax.f32 %v10567, %v10568
    %v10570 = vsel %vm10534, %v10230, -inf
    %v10571 = vrot.slane %v10570, 4
    %v10572 = vmax.f32 %v10570, %v10571
    %v10573 = vrot.slane %v10572, 2
    %v10574 = vmax.f32 %v10572, %v10573
    %v10575 = vrot.slane %v10574, 1
    %v10576 = vmax.f32 %v10574, %v10575
    %v10577 = vsel %vm10534, %v10229, -inf
    %v10578 = vrot.slane %v10577, 4
    %v10579 = vmax.f32 %v10577, %v10578
    %v10580 = vrot.slane %v10579, 2
    %v10581 = vmax.f32 %v10579, %v10580
    %v10582 = vrot.slane %v10581, 1
    %v10583 = vmax.f32 %v10581, %v10582
    %v10584 = vsel %vm10534, %v10231, -inf
    %v10585 = vrot.slane %v10584, 4
    %v10586 = vmax.f32 %v10584, %v10585
    %v10587 = vrot.slane %v10586, 2
    %v10588 = vmax.f32 %v10586, %v10587
    %v10589 = vrot.slane %v10588, 1
    %v10590 = vmax.f32 %v10588, %v10589
    %v10591 = vsel %vm10534, %v10239, -inf
    %v10592 = vrot.slane %v10591, 4
    %v10593 = vmax.f32 %v10591, %v10592
    %v10594 = vrot.slane %v10593, 2
    %v10595 = vmax.f32 %v10593, %v10594
    %v10596 = vrot.slane %v10595, 1
    %v10597 = vmax.f32 %v10595, %v10596
    %v10598 = vsel %vm10534, %v10247, -inf
    %v10599 = vrot.slane %v10598, 4
    %v10600 = vmax.f32 %v10598, %v10599
    %v10601 = vrot.slane %v10600, 2
    %v10602 = vmax.f32 %v10600, %v10601
    %v10603 = vrot.slane %v10602, 1
    %v10604 = vmax.f32 %v10602, %v10603
    %v10605 = vsel %vm10534, %v10246, -inf
    %v10606 = vrot.slane %v10605, 4
    %v10607 = vmax.f32 %v10605, %v10606
    %v10608 = vrot.slane %v10607, 2
    %v10609 = vmax.f32 %v10607, %v10608
    %v10610 = vrot.slane %v10609, 1
    %v10611 = vmax.f32 %v10609, %v10610
    %v10612 = vsel %vm10534, %v10248, -inf
    %v10613 = vrot.slane %v10612, 4
    %v10614 = vmax.f32 %v10612, %v10613
    %v10615 = vrot.slane %v10614, 2
    %v10616 = vmax.f32 %v10614, %v10615
    %v10617 = vrot.slane %v10616, 1
    %v10618 = vmax.f32 %v10616, %v10617
    %v10619 = vsel %vm10534, %v10256, -inf
    %v10620 = vrot.slane %v10619, 4
    %v10621 = vmax.f32 %v10619, %v10620
    %v10622 = vrot.slane %v10621, 2
    %v10623 = vmax.f32 %v10621, %v10622
    %v10624 = vrot.slane %v10623, 1
    %v10625 = vmax.f32 %v10623, %v10624
    %v10626 = vsel %vm10534, %v10264, -inf
    %v10627 = vrot.slane %v10626, 4
    %v10628 = vmax.f32 %v10626, %v10627
    %v10629 = vrot.slane %v10628, 2
    %v10630 = vmax.f32 %v10628, %v10629
    %v10631 = vrot.slane %v10630, 1
    %v10632 = vmax.f32 %v10630, %v10631
    %v10633 = vsel %vm10534, %v10263, -inf
    %v10634 = vrot.slane %v10633, 4
    %v10635 = vmax.f32 %v10633, %v10634
    %v10636 = vrot.slane %v10635, 2
    %v10637 = vmax.f32 %v10635, %v10636
    %v10638 = vrot.slane %v10637, 1
    %v10639 = vmax.f32 %v10637, %v10638
    %v10640 = vsel %vm10534, %v10265, -inf
    %v10641 = vrot.slane %v10640, 4
    %v10642 = vmax.f32 %v10640, %v10641
    %v10643 = vrot.slane %v10642, 2
    %v10644 = vmax.f32 %v10642, %v10643
    %v10645 = vrot.slane %v10644, 1
    %v10646 = vmax.f32 %v10644, %v10645
    %v10647 = vsel %vm10534, %v10273, -inf
    %v10648 = vrot.slane %v10647, 4
    %v10649 = vmax.f32 %v10647, %v10648
    %v10650 = vrot.slane %v10649, 2
    %v10651 = vmax.f32 %v10649, %v10650
    %v10652 = vrot.slane %v10651, 1
    %v10653 = vmax.f32 %v10651, %v10652
    %v10654 = vsel %vm10534, %v10281, -inf
    %v10655 = vrot.slane %v10654, 4
    %v10656 = vmax.f32 %v10654, %v10655
    %v10657 = vrot.slane %v10656, 2
    %v10658 = vmax.f32 %v10656, %v10657
    %v10659 = vrot.slane %v10658, 1
    %v10660 = vmax.f32 %v10658, %v10659
    %v10661 = vsel %vm10534, %v10280, -inf
    %v10662 = vrot.slane %v10661, 4
    %v10663 = vmax.f32 %v10661, %v10662
    %v10664 = vrot.slane %v10663, 2
    %v10665 = vmax.f32 %v10663, %v10664
    %v10666 = vrot.slane %v10665, 1
    %v10667 = vmax.f32 %v10665, %v10666
    %v10668 = vsel %vm10534, %v10282, -inf
    %v10669 = vrot.slane %v10668, 4
    %v10670 = vmax.f32 %v10668, %v10669
    %v10671 = vrot.slane %v10670, 2
    %v10672 = vmax.f32 %v10670, %v10671
    %v10673 = vrot.slane %v10672, 1
    %v10674 = vmax.f32 %v10672, %v10673
    %v10675 = vsel %vm10534, %v10290, -inf
    %v10676 = vrot.slane %v10675, 4
    %v10677 = vmax.f32 %v10675, %v10676
    %v10678 = vrot.slane %v10677, 2
    %v10679 = vmax.f32 %v10677, %v10678
    %v10680 = vrot.slane %v10679, 1
    %v10681 = vmax.f32 %v10679, %v10680
    %v10682 = vsel %vm10534, %v10298, -inf
    %v10683 = vrot.slane %v10682, 4
    %v10684 = vmax.f32 %v10682, %v10683
    %v10685 = vrot.slane %v10684, 2
    %v10686 = vmax.f32 %v10684, %v10685
    %v10687 = vrot.slane %v10686, 1
    %v10688 = vmax.f32 %v10686, %v10687
    %v10689 = vsel %vm10534, %v10297, -inf
    %v10690 = vrot.slane %v10689, 4
    %v10691 = vmax.f32 %v10689, %v10690
    %v10692 = vrot.slane %v10691, 2
    %v10693 = vmax.f32 %v10691, %v10692
    %v10694 = vrot.slane %v10693, 1
    %v10695 = vmax.f32 %v10693, %v10694
    %v10696 = vsel %vm10534, %v10299, -inf
    %v10697 = vrot.slane %v10696, 4
    %v10698 = vmax.f32 %v10696, %v10697
    %v10699 = vrot.slane %v10698, 2
    %v10700 = vmax.f32 %v10698, %v10699
    %v10701 = vrot.slane %v10700, 1
    %v10702 = vmax.f32 %v10700, %v10701
    %v10703 = vsel %vm10534, %v10307, -inf
    %v10704 = vrot.slane %v10703, 4
    %v10705 = vmax.f32 %v10703, %v10704
    %v10706 = vrot.slane %v10705, 2
    %v10707 = vmax.f32 %v10705, %v10706
    %v10708 = vrot.slane %v10707, 1
    %v10709 = vmax.f32 %v10707, %v10708
    %v10710 = vsel %vm10534, %v10315, -inf
    %v10711 = vrot.slane %v10710, 4
    %v10712 = vmax.f32 %v10710, %v10711
    %v10713 = vrot.slane %v10712, 2
    %v10714 = vmax.f32 %v10712, %v10713
    %v10715 = vrot.slane %v10714, 1
    %v10716 = vmax.f32 %v10714, %v10715
    %v10717 = vsel %vm10534, %v10314, -inf
    %v10718 = vrot.slane %v10717, 4
    %v10719 = vmax.f32 %v10717, %v10718
    %v10720 = vrot.slane %v10719, 2
    %v10721 = vmax.f32 %v10719, %v10720
    %v10722 = vrot.slane %v10721, 1
    %v10723 = vmax.f32 %v10721, %v10722
    %v10724 = vsel %vm10534, %v10316, -inf
    %v10725 = vrot.slane %v10724, 4
    %v10726 = vmax.f32 %v10724, %v10725
    %v10727 = vrot.slane %v10726, 2
    %v10728 = vmax.f32 %v10726, %v10727
    %v10729 = vrot.slane %v10728, 1
    %v10730 = vmax.f32 %v10728, %v10729
    %v10731 = vsel %vm10534, %v10324, -inf
    %v10732 = vrot.slane %v10731, 4
    %v10733 = vmax.f32 %v10731, %v10732
    %v10734 = vrot.slane %v10733, 2
    %v10735 = vmax.f32 %v10733, %v10734
    %v10736 = vrot.slane %v10735, 1
    %v10737 = vmax.f32 %v10735, %v10736
    %v10738 = vsel %vm10534, %v10332, -inf
    %v10739 = vrot.slane %v10738, 4
    %v10740 = vmax.f32 %v10738, %v10739
    %v10741 = vrot.slane %v10740, 2
    %v10742 = vmax.f32 %v10740, %v10741
    %v10743 = vrot.slane %v10742, 1
    %v10744 = vmax.f32 %v10742, %v10743
    %v10745 = vsel %vm10534, %v10331, -inf
    %v10746 = vrot.slane %v10745, 4
    %v10747 = vmax.f32 %v10745, %v10746
    %v10748 = vrot.slane %v10747, 2
    %v10749 = vmax.f32 %v10747, %v10748
    %v10750 = vrot.slane %v10749, 1
    %v10751 = vmax.f32 %v10749, %v10750
    %v10752 = vsel %vm10534, %v10333, -inf
    %v10753 = vrot.slane %v10752, 4
    %v10754 = vmax.f32 %v10752, %v10753
    %v10755 = vrot.slane %v10754, 2
    %v10756 = vmax.f32 %v10754, %v10755
    %v10757 = vrot.slane %v10756, 1
    %v10758 = vmax.f32 %v10756, %v10757
    %v10759 = vsel %vm10534, %v10341, -inf
    %v10760 = vrot.slane %v10759, 4
    %v10761 = vmax.f32 %v10759, %v10760
    %v10762 = vrot.slane %v10761, 2
    %v10763 = vmax.f32 %v10761, %v10762
    %v10764 = vrot.slane %v10763, 1
    %v10765 = vmax.f32 %v10763, %v10764
    %v10766 = vsel %vm10534, %v10349, -inf
    %v10767 = vrot.slane %v10766, 4
    %v10768 = vmax.f32 %v10766, %v10767
    %v10769 = vrot.slane %v10768, 2
    %v10770 = vmax.f32 %v10768, %v10769
    %v10771 = vrot.slane %v10770, 1
    %v10772 = vmax.f32 %v10770, %v10771
    %v10773 = vsel %vm10534, %v10348, -inf
    %v10774 = vrot.slane %v10773, 4
    %v10775 = vmax.f32 %v10773, %v10774
    %v10776 = vrot.slane %v10775, 2
    %v10777 = vmax.f32 %v10775, %v10776
    %v10778 = vrot.slane %v10777, 1
    %v10779 = vmax.f32 %v10777, %v10778
    %v10780 = vsel %vm10534, %v10350, -inf
    %v10781 = vrot.slane %v10780, 4
    %v10782 = vmax.f32 %v10780, %v10781
    %v10783 = vrot.slane %v10782, 2
    %v10784 = vmax.f32 %v10782, %v10783
    %v10785 = vrot.slane %v10784, 1
    %v10786 = vmax.f32 %v10784, %v10785
    %v10787 = vsel %vm10534, %v10358, -inf
    %v10788 = vrot.slane %v10787, 4
    %v10789 = vmax.f32 %v10787, %v10788
    %v10790 = vrot.slane %v10789, 2
    %v10791 = vmax.f32 %v10789, %v10790
    %v10792 = vrot.slane %v10791, 1
    %v10793 = vmax.f32 %v10791, %v10792
    %v10794 = vsel %vm10534, %v10366, -inf
    %v10795 = vrot.slane %v10794, 4
    %v10796 = vmax.f32 %v10794, %v10795
    %v10797 = vrot.slane %v10796, 2
    %v10798 = vmax.f32 %v10796, %v10797
    %v10799 = vrot.slane %v10798, 1
    %v10800 = vmax.f32 %v10798, %v10799
    %v10801 = vsel %vm10534, %v10365, -inf
    %v10802 = vrot.slane %v10801, 4
    %v10803 = vmax.f32 %v10801, %v10802
    %v10804 = vrot.slane %v10803, 2
    %v10805 = vmax.f32 %v10803, %v10804
    %v10806 = vrot.slane %v10805, 1
    %v10807 = vmax.f32 %v10805, %v10806
    %v10808 = vsel %vm10534, %v10367, -inf
    %v10809 = vrot.slane %v10808, 4
    %v10810 = vmax.f32 %v10808, %v10809
    %v10811 = vrot.slane %v10810, 2
    %v10812 = vmax.f32 %v10810, %v10811
    %v10813 = vrot.slane %v10812, 1
    %v10814 = vmax.f32 %v10812, %v10813
    %v10815 = vsel %vm10534, %v10375, -inf
    %v10816 = vrot.slane %v10815, 4
    %v10817 = vmax.f32 %v10815, %v10816
    %v10818 = vrot.slane %v10817, 2
    %v10819 = vmax.f32 %v10817, %v10818
    %v10820 = vrot.slane %v10819, 1
    %v10821 = vmax.f32 %v10819, %v10820
    %v10822 = vsel %vm10534, %v10383, -inf
    %v10823 = vrot.slane %v10822, 4
    %v10824 = vmax.f32 %v10822, %v10823
    %v10825 = vrot.slane %v10824, 2
    %v10826 = vmax.f32 %v10824, %v10825
    %v10827 = vrot.slane %v10826, 1
    %v10828 = vmax.f32 %v10826, %v10827
    %v10829 = vsel %vm10534, %v10382, -inf
    %v10830 = vrot.slane %v10829, 4
    %v10831 = vmax.f32 %v10829, %v10830
    %v10832 = vrot.slane %v10831, 2
    %v10833 = vmax.f32 %v10831, %v10832
    %v10834 = vrot.slane %v10833, 1
    %v10835 = vmax.f32 %v10833, %v10834
    %v10836 = vsel %vm10534, %v10384, -inf
    %v10837 = vrot.slane %v10836, 4
    %v10838 = vmax.f32 %v10836, %v10837
    %v10839 = vrot.slane %v10838, 2
    %v10840 = vmax.f32 %v10838, %v10839
    %v10841 = vrot.slane %v10840, 1
    %v10842 = vmax.f32 %v10840, %v10841
    %v10843 = vsel %vm10534, %v10392, -inf
    %v10844 = vrot.slane %v10843, 4
    %v10845 = vmax.f32 %v10843, %v10844
    %v10846 = vrot.slane %v10845, 2
    %v10847 = vmax.f32 %v10845, %v10846
    %v10848 = vrot.slane %v10847, 1
    %v10849 = vmax.f32 %v10847, %v10848
    %v10850 = vsel %vm10534, %v10400, -inf
    %v10851 = vrot.slane %v10850, 4
    %v10852 = vmax.f32 %v10850, %v10851
    %v10853 = vrot.slane %v10852, 2
    %v10854 = vmax.f32 %v10852, %v10853
    %v10855 = vrot.slane %v10854, 1
    %v10856 = vmax.f32 %v10854, %v10855
    %v10857 = vsel %vm10534, %v10399, -inf
    %v10858 = vrot.slane %v10857, 4
    %v10859 = vmax.f32 %v10857, %v10858
    %v10860 = vrot.slane %v10859, 2
    %v10861 = vmax.f32 %v10859, %v10860
    %v10862 = vrot.slane %v10861, 1
    %v10863 = vmax.f32 %v10861, %v10862
    %v10864 = vsel %vm10534, %v10401, -inf
    %v10865 = vrot.slane %v10864, 4
    %v10866 = vmax.f32 %v10864, %v10865
    %v10867 = vrot.slane %v10866, 2
    %v10868 = vmax.f32 %v10866, %v10867
    %v10869 = vrot.slane %v10868, 1
    %v10870 = vmax.f32 %v10868, %v10869
    %v10871 = vsel %vm10534, %v10409, -inf
    %v10872 = vrot.slane %v10871, 4
    %v10873 = vmax.f32 %v10871, %v10872
    %v10874 = vrot.slane %v10873, 2
    %v10875 = vmax.f32 %v10873, %v10874
    %v10876 = vrot.slane %v10875, 1
    %v10877 = vmax.f32 %v10875, %v10876
    %v10878 = vsel %vm10534, %v10417, -inf
    %v10879 = vrot.slane %v10878, 4
    %v10880 = vmax.f32 %v10878, %v10879
    %v10881 = vrot.slane %v10880, 2
    %v10882 = vmax.f32 %v10880, %v10881
    %v10883 = vrot.slane %v10882, 1
    %v10884 = vmax.f32 %v10882, %v10883
    %v10885 = vsel %vm10534, %v10416, -inf
    %v10886 = vrot.slane %v10885, 4
    %v10887 = vmax.f32 %v10885, %v10886
    %v10888 = vrot.slane %v10887, 2
    %v10889 = vmax.f32 %v10887, %v10888
    %v10890 = vrot.slane %v10889, 1
    %v10891 = vmax.f32 %v10889, %v10890
    %v10892 = vsel %vm10534, %v10418, -inf
    %v10893 = vrot.slane %v10892, 4
    %v10894 = vmax.f32 %v10892, %v10893
    %v10895 = vrot.slane %v10894, 2
    %v10896 = vmax.f32 %v10894, %v10895
    %v10897 = vrot.slane %v10896, 1
    %v10898 = vmax.f32 %v10896, %v10897
    %v10899 = vsel %vm10534, %v10426, -inf
    %v10900 = vrot.slane %v10899, 4
    %v10901 = vmax.f32 %v10899, %v10900
    %v10902 = vrot.slane %v10901, 2
    %v10903 = vmax.f32 %v10901, %v10902
    %v10904 = vrot.slane %v10903, 1
    %v10905 = vmax.f32 %v10903, %v10904
    %v10906 = vsel %vm10534, %v10434, -inf
    %v10907 = vrot.slane %v10906, 4
    %v10908 = vmax.f32 %v10906, %v10907
    %v10909 = vrot.slane %v10908, 2
    %v10910 = vmax.f32 %v10908, %v10909
    %v10911 = vrot.slane %v10910, 1
    %v10912 = vmax.f32 %v10910, %v10911
    %v10913 = vsel %vm10534, %v10433, -inf
    %v10914 = vrot.slane %v10913, 4
    %v10915 = vmax.f32 %v10913, %v10914
    %v10916 = vrot.slane %v10915, 2
    %v10917 = vmax.f32 %v10915, %v10916
    %v10918 = vrot.slane %v10917, 1
    %v10919 = vmax.f32 %v10917, %v10918
    %v10920 = vsel %vm10534, %v10435, -inf
    %v10921 = vrot.slane %v10920, 4
    %v10922 = vmax.f32 %v10920, %v10921
    %v10923 = vrot.slane %v10922, 2
    %v10924 = vmax.f32 %v10922, %v10923
    %v10925 = vrot.slane %v10924, 1
    %v10926 = vmax.f32 %v10924, %v10925
    %v10927 = vsel %vm10534, %v10443, -inf
    %v10928 = vrot.slane %v10927, 4
    %v10929 = vmax.f32 %v10927, %v10928
    %v10930 = vrot.slane %v10929, 2
    %v10931 = vmax.f32 %v10929, %v10930
    %v10932 = vrot.slane %v10931, 1
    %v10933 = vmax.f32 %v10931, %v10932
    %v10934 = vsel %vm10534, %v10451, -inf
    %v10935 = vrot.slane %v10934, 4
    %v10936 = vmax.f32 %v10934, %v10935
    %v10937 = vrot.slane %v10936, 2
    %v10938 = vmax.f32 %v10936, %v10937
    %v10939 = vrot.slane %v10938, 1
    %v10940 = vmax.f32 %v10938, %v10939
    %v10941 = vsel %vm10534, %v10450, -inf
    %v10942 = vrot.slane %v10941, 4
    %v10943 = vmax.f32 %v10941, %v10942
    %v10944 = vrot.slane %v10943, 2
    %v10945 = vmax.f32 %v10943, %v10944
    %v10946 = vrot.slane %v10945, 1
    %v10947 = vmax.f32 %v10945, %v10946
    %v10948 = vsel %vm10534, %v10452, -inf
    %v10949 = vrot.slane %v10948, 4
    %v10950 = vmax.f32 %v10948, %v10949
    %v10951 = vrot.slane %v10950, 2
    %v10952 = vmax.f32 %v10950, %v10951
    %v10953 = vrot.slane %v10952, 1
    %v10954 = vmax.f32 %v10952, %v10953
    %v10955 = vsel %vm10534, %v10460, -inf
    %v10956 = vrot.slane %v10955, 4
    %v10957 = vmax.f32 %v10955, %v10956
    %v10958 = vrot.slane %v10957, 2
    %v10959 = vmax.f32 %v10957, %v10958
    %v10960 = vrot.slane %v10959, 1
    %v10961 = vmax.f32 %v10959, %v10960
    %v10962 = vsel %vm10534, %v10468, -inf
    %v10963 = vrot.slane %v10962, 4
    %v10964 = vmax.f32 %v10962, %v10963
    %v10965 = vrot.slane %v10964, 2
    %v10966 = vmax.f32 %v10964, %v10965
    %v10967 = vrot.slane %v10966, 1
    %v10968 = vmax.f32 %v10966, %v10967
    %v10969 = vsel %vm10534, %v10467, -inf
    %v10970 = vrot.slane %v10969, 4
    %v10971 = vmax.f32 %v10969, %v10970
    %v10972 = vrot.slane %v10971, 2
    %v10973 = vmax.f32 %v10971, %v10972
    %v10974 = vrot.slane %v10973, 1
    %v10975 = vmax.f32 %v10973, %v10974
    %v10976 = vsel %vm10534, %v10469, -inf
    %v10977 = vrot.slane %v10976, 4
    %v10978 = vmax.f32 %v10976, %v10977
    %v10979 = vrot.slane %v10978, 2
    %v10980 = vmax.f32 %v10978, %v10979
    %v10981 = vrot.slane %v10980, 1
    %v10982 = vmax.f32 %v10980, %v10981
    %vm10983 = vcmask 130048
    %v10984 = vsel %vm10983, %v10541, -inf
    %v10985 = vsel %vm10983, %v10569, -inf
    %v10986 = vmax.f32 %v10984, %v10985
    %v10987 = vsel %vm10983, %v10548, -inf
    %v10988 = vsel %vm10983, %v10576, -inf
    %v10989 = vmax.f32 %v10987, %v10988
    %v10990 = vsel %vm10983, %v10555, -inf
    %v10991 = vsel %vm10983, %v10583, -inf
    %v10992 = vmax.f32 %v10990, %v10991
    %v10993 = vsel %vm10983, %v10562, -inf
    %v10994 = vsel %vm10983, %v10590, -inf
    %v10995 = vmax.f32 %v10993, %v10994
    %v10996 = vsel %vm10983, %v10597, -inf
    %v10997 = vsel %vm10983, %v10625, -inf
    %v10998 = vmax.f32 %v10996, %v10997
    %v10999 = vsel %vm10983, %v10604, -inf
    %v11000 = vsel %vm10983, %v10632, -inf
    %v11001 = vmax.f32 %v10999, %v11000
    %v11002 = vsel %vm10983, %v10611, -inf
    %v11003 = vsel %vm10983, %v10639, -inf
    %v11004 = vmax.f32 %v11002, %v11003
    %v11005 = vsel %vm10983, %v10618, -inf
    %v11006 = vsel %vm10983, %v10646, -inf
    %v11007 = vmax.f32 %v11005, %v11006
    %v11008 = vsel %vm10983, %v10653, -inf
    %v11009 = vsel %vm10983, %v10681, -inf
    %v11010 = vmax.f32 %v11008, %v11009
    %v11011 = vsel %vm10983, %v10660, -inf
    %v11012 = vsel %vm10983, %v10688, -inf
    %v11013 = vmax.f32 %v11011, %v11012
    %v11014 = vsel %vm10983, %v10667, -inf
    %v11015 = vsel %vm10983, %v10695, -inf
    %v11016 = vmax.f32 %v11014, %v11015
    %v11017 = vsel %vm10983, %v10674, -inf
    %v11018 = vsel %vm10983, %v10702, -inf
    %v11019 = vmax.f32 %v11017, %v11018
    %v11020 = vsel %vm10983, %v10709, -inf
    %v11021 = vsel %vm10983, %v10737, -inf
    %v11022 = vmax.f32 %v11020, %v11021
    %v11023 = vsel %vm10983, %v10716, -inf
    %v11024 = vsel %vm10983, %v10744, -inf
    %v11025 = vmax.f32 %v11023, %v11024
    %v11026 = vsel %vm10983, %v10723, -inf
    %v11027 = vsel %vm10983, %v10751, -inf
    %v11028 = vmax.f32 %v11026, %v11027
    %v11029 = vsel %vm10983, %v10730, -inf
    %v11030 = vsel %vm10983, %v10758, -inf
    %v11031 = vmax.f32 %v11029, %v11030
    %v11032 = vsel %vm10983, %v10765, -inf
    %v11033 = vsel %vm10983, %v10793, -inf
    %v11034 = vmax.f32 %v11032, %v11033
    %v11035 = vsel %vm10983, %v10772, -inf
    %v11036 = vsel %vm10983, %v10800, -inf
    %v11037 = vmax.f32 %v11035, %v11036
    %v11038 = vsel %vm10983, %v10779, -inf
    %v11039 = vsel %vm10983, %v10807, -inf
    %v11040 = vmax.f32 %v11038, %v11039
    %v11041 = vsel %vm10983, %v10786, -inf
    %v11042 = vsel %vm10983, %v10814, -inf
    %v11043 = vmax.f32 %v11041, %v11042
    %v11044 = vsel %vm10983, %v10821, -inf
    %v11045 = vsel %vm10983, %v10849, -inf
    %v11046 = vmax.f32 %v11044, %v11045
    %v11047 = vsel %vm10983, %v10828, -inf
    %v11048 = vsel %vm10983, %v10856, -inf
    %v11049 = vmax.f32 %v11047, %v11048
    %v11050 = vsel %vm10983, %v10835, -inf
    %v11051 = vsel %vm10983, %v10863, -inf
    %v11052 = vmax.f32 %v11050, %v11051
    %v11053 = vsel %vm10983, %v10842, -inf
    %v11054 = vsel %vm10983, %v10870, -inf
    %v11055 = vmax.f32 %v11053, %v11054
    %v11056 = vsel %vm10983, %v10877, -inf
    %v11057 = vsel %vm10983, %v10905, -inf
    %v11058 = vmax.f32 %v11056, %v11057
    %v11059 = vsel %vm10983, %v10884, -inf
    %v11060 = vsel %vm10983, %v10912, -inf
    %v11061 = vmax.f32 %v11059, %v11060
    %v11062 = vsel %vm10983, %v10891, -inf
    %v11063 = vsel %vm10983, %v10919, -inf
    %v11064 = vmax.f32 %v11062, %v11063
    %v11065 = vsel %vm10983, %v10898, -inf
    %v11066 = vsel %vm10983, %v10926, -inf
    %v11067 = vmax.f32 %v11065, %v11066
    %v11068 = vsel %vm10983, %v10933, -inf
    %v11069 = vsel %vm10983, %v10961, -inf
    %v11070 = vmax.f32 %v11068, %v11069
    %v11071 = vsel %vm10983, %v10940, -inf
    %v11072 = vsel %vm10983, %v10968, -inf
    %v11073 = vmax.f32 %v11071, %v11072
    %v11074 = vsel %vm10983, %v10947, -inf
    %v11075 = vsel %vm10983, %v10975, -inf
    %v11076 = vmax.f32 %v11074, %v11075
    %v11077 = vsel %vm10983, %v10954, -inf
    %v11078 = vsel %vm10983, %v10982, -inf
    %v11079 = vmax.f32 %v11077, %v11078
    %v11112 = vsel %vm8528, %v10989, %v10986
    %v11113 = vsel %vm8530, %v10992, %v11112
    %v11114 = vsel %vm8532, %v10995, %v11113
    %v11115 = vsel %vm8528, %v11001, %v10998
    %v11116 = vsel %vm8530, %v11004, %v11115
    %v11117 = vsel %vm8532, %v11007, %v11116
    %v11118 = vsel %vm8528, %v11013, %v11010
    %v11119 = vsel %vm8530, %v11016, %v11118
    %v11120 = vsel %vm8532, %v11019, %v11119
    %v11121 = vsel %vm8528, %v11025, %v11022
    %v11122 = vsel %vm8530, %v11028, %v11121
    %v11123 = vsel %vm8532, %v11031, %v11122
    %v11124 = vsel %vm8528, %v11037, %v11034
    %v11125 = vsel %vm8530, %v11040, %v11124
    %v11126 = vsel %vm8532, %v11043, %v11125
    %v11127 = vsel %vm8528, %v11049, %v11046
    %v11128 = vsel %vm8530, %v11052, %v11127
    %v11129 = vsel %vm8532, %v11055, %v11128
    %v11130 = vsel %vm8528, %v11061, %v11058
    %v11131 = vsel %vm8530, %v11064, %v11130
    %v11132 = vsel %vm8532, %v11067, %v11131
    %v11133 = vsel %vm8528, %v11073, %v11070
    %v11134 = vsel %vm8530, %v11076, %v11133
    %v11135 = vsel %vm8532, %v11079, %v11134
    %vm11144 = vcmask 125952
    %11145 = vst.msk [vmem:[#allocation3] sm:$0xf] %vm11144, %v11114
    %11146 = vst.msk [vmem:[#allocation3 + $0x4] sm:$0xf] %vm11144, %v11117
    %11147 = vst.msk [vmem:[#allocation3 + $0x8] sm:$0xf] %vm11144, %v11120
    %11148 = vst.msk [vmem:[#allocation3 + $0xc] sm:$0xf] %vm11144, %v11123
    %11149 = vst.msk [vmem:[#allocation3 + $0x10] sm:$0xf] %vm11144, %v11126
    %11150 = vst.msk [vmem:[#allocation3 + $0x14] sm:$0xf] %vm11144, %v11129
    %11151 = vst.msk [vmem:[#allocation3 + $0x18] sm:$0xf] %vm11144, %v11132
    %11152 = vst.msk [vmem:[#allocation3 + $0x1c] sm:$0xf] %vm11144, %v11135
    // Predicated region
    $region22: #{_lambda_.1} parent=1 // pred_check
      _
    $region23: #{_lambda_.1} parent=1 // pred_check_branch
      %11154 = sbr.rel (0) target = $region25
    $region24: #{_lambda_.1} parent=1 // pred_region
      %s11156 = ssub.s32 512, 512
      %11157 = vsyncadd [#allocation4], %s11156
      %s11158 = sshll.u32 [#allocation3], 4
      %s11159 = int_to_ptr.vmem [resolvable:$true] %s11158
      %11164 = dma.vmem_to_hbm [thread:$0]  %s11159, 512, %s5, [#allocation4], 64, 64, 4
    $region25: #{_lambda_.1} parent=1 // pred_fallthru
      _
    // Predicated region
    $region26: #{_lambda_.1} parent=1 // pred_check
      _
    $region27: #{_lambda_.1} parent=1 // pred_check_branch
      %11166 = sbr.rel (0) target = $region29
    $region28: #{_lambda_.1} parent=1 // pred_region
      %11167 = dma.done [#allocation4], 512
    $region29: #{_lambda_.1} parent=1 // pred_fallthru
      _
    %11168 = vsyncpa [#allocation4], 1

</llo_original>
